<compile_context>
chip_gen: v6e
topology: v6e:2x2x1
jax: 0.10.0
libtpu: 0.0.40
codegen_flags: <defaults>
</compile_context>

<pallas_src>
import functools
import math

import jax
import jax.numpy as jnp
from jax import lax
from jax.experimental import pallas as pl
from jax.experimental.pallas import tpu as pltpu


# ----------------------------------------------------------------------------
# Fused ASPP kernel: all conv branches + projection for one (batch, row-tile)
# ----------------------------------------------------------------------------
def aspp_fused_kernel(
    pbias_ref,   # (N, Cout)                 f32   pooling-branch projection + proj BN bias
    xp_ref,      # (Hp, Wp, Cin)             bf16  zero-padded NHWC image (batch squeezed)
    w1_ref,      # (Cin, Cout)               bf16  1x1 branch weight (BN scale folded)
    w3_ref,      # (n_rates*3, 3*Cin, Cout)  bf16  dilated taps, kw-packed along Cin
    wp_ref,      # (n_rates+1, Cout, Cout)   bf16  projection weight, per-branch slices
    bb_ref,      # (1+n_rates, Cout)         f32   per-branch BN bias (1x1 first)
    o_ref,       # (TH, W, Cout)             out   output tile (batch squeezed)
    *, rates, rmax, th, width, cin, cout,
):
    n = pl.program_id(0)
    i = pl.program_id(1)
    row0 = pl.multiple_of(i * th, th)
    hw = th * width
    cdt = wp_ref.dtype  # bf16 MXU operand dtype

    # Pooling branch + projection bias: precomputed per batch in the wrapper (f32).
    acc = pbias_ref[pl.ds(n, 1), :]                                         # (1, Cout)

    # ---- Branch 0: 1x1 conv + BN bias + ReLU, projected immediately.
    xc = xp_ref[pl.ds(row0 + rmax, th), pl.ds(rmax, width), :].reshape(hw, cin)
    y = jnp.dot(xc, w1_ref[...], preferred_element_type=jnp.float32)
    y = jnp.maximum(y + bb_ref[0:1, :], 0.0)
    acc = acc + jnp.dot(y.astype(cdt), wp_ref[0], preferred_element_type=jnp.float32)

    # ---- Dilated 3x3 branches: one row-slab load + one K=3*Cin matmul per (rate, kh).
    for r, d in enumerate(rates):
        yb = jnp.zeros((hw, cout), jnp.float32)
        for kh in range(3):
            rs = row0 + rmax + (kh - 1) * d                  # padded row start (>= 0)
            slab = xp_ref[pl.ds(rs, th), pl.ds(rmax - d, width + 2 * d), :]
            # three kw taps as static column slices, concatenated along Cin (lanes)
            xt3 = jnp.concatenate(
                [slab[:, kw * d:kw * d + width, :] for kw in range(3)], axis=-1
            ).reshape(hw, 3 * cin)
            yb = yb + jnp.dot(xt3, w3_ref[r * 3 + kh],
                              preferred_element_type=jnp.float32)
        yb = jnp.maximum(yb + bb_ref[r + 1:r + 2, :], 0.0)
        acc = acc + jnp.dot(yb.astype(cdt), wp_ref[r + 1],
                            preferred_element_type=jnp.float32)

    # ---- Projection epilogue: ReLU (BN folded; Dropout is identity in eval mode).
    o_ref[...] = jnp.maximum(acc, 0.0).reshape(th, width, cout).astype(o_ref.dtype)


# ----------------------------------------------------------------------------
# Wrapper: layout plumbing, pooling-branch prefold, VMEM budgeting, pallas_call
# ----------------------------------------------------------------------------
def aspp_forward(x_nchw, kparams, rates, *, out_dtype=jnp.float32):
    rates = tuple(rates)
    N, cin, H, W = x_nchw.shape
    cout = kparams["w1"].shape[-1]
    n_rates = len(rates)
    rmax = max(rates)

    th = 8 if H >= 8 else H
    n_row_tiles = pl.cdiv(H, th)
    H_pad = n_row_tiles * th                      # ragged rows run on zeros, sliced off
    Hp, Wp = H_pad + 2 * rmax, W + 2 * rmax

    # ---- ASPPPooling branch, folded (exactly) into a per-batch projection bias:
    #      relu(mean(x) @ Wpool + bpool) @ Wp_pool + bproj.  (f32, tiny matrices.)
    pooled = jnp.mean(x_nchw, axis=(2, 3))                                    # (N, Cin)
    pf = jnp.maximum(pooled @ kparams["wpool"] + kparams["bpool"], 0.0)       # (N, Cout)
    pbias = (pf @ kparams["wp_pool"] + kparams["bproj"]).astype(jnp.float32)  # (N, Cout)

    # ---- Layout prep: cast to bf16 BEFORE transpose/pad (half the bytes moved).
    xh = jnp.transpose(x_nchw.astype(jnp.bfloat16), (0, 2, 3, 1))             # NHWC bf16
    xp = jnp.pad(xh, ((0, 0), (rmax, rmax + (H_pad - H)), (rmax, rmax), (0, 0)))

    grid = (N, n_row_tiles)
    kernel = functools.partial(aspp_fused_kernel, rates=rates, rmax=rmax,
                               th=th, width=W, cin=cin, cout=cout)

    # ---- Explicit VMEM budget: single-buffered resident inputs + double-buffered output
    #      tile + headroom, clamped to the chip's physical VMEM.
    def nbytes(shape, dt):
        return math.prod(shape) * jnp.dtype(dt).itemsize
    est = (nbytes((Hp, Wp, cin), jnp.bfloat16)
           + nbytes((cin, cout), jnp.bfloat16)
           + nbytes((n_rates * 3, 3 * cin, cout), jnp.bfloat16)
           + nbytes((n_rates + 1, cout, cout), jnp.bfloat16)
           + nbytes((n_rates + 1, cout), jnp.float32)
           + nbytes((N, cout), jnp.float32)
           + 2 * nbytes((th, W, cout), out_dtype)
           + (8 << 20))                                            # compiler scratch slack
    try:
        vmem_cap = pltpu.get_tpu_info().vmem_capacity_bytes
    except Exception:
        vmem_cap = 64 << 20                                        # conservative (v7x)
    vmem_limit = int(min(max(est, 32 << 20), int(0.9 * vmem_cap)))

    def build(single_buffer):
        def inv(shape, idx):
            # Grid-invariant (or batch-only-varying) inputs: single-buffer to halve
            # resident VMEM; Pallas double-buffers by default even for constant blocks.
            if single_buffer:
                return pl.BlockSpec(shape, idx, pipeline_mode=pl.Buffered(1))
            return pl.BlockSpec(shape, idx)
        return pl.pallas_call(
            kernel,
            out_shape=jax.ShapeDtypeStruct((N, H_pad, W, cout), out_dtype),
            grid=grid,
            in_specs=[
                inv((N, cout), lambda n, i: (0, 0)),                        # pooling+proj bias
                inv((None, Hp, Wp, cin), lambda n, i: (n, 0, 0, 0)),        # padded image
                inv((cin, cout), lambda n, i: (0, 0)),                      # w1
                inv((n_rates * 3, 3 * cin, cout), lambda n, i: (0, 0, 0)),  # dilated taps
                inv((n_rates + 1, cout, cout), lambda n, i: (0, 0, 0)),     # proj slices
                inv((n_rates + 1, cout), lambda n, i: (0, 0)),              # branch biases
            ],
            out_specs=pl.BlockSpec((None, th, W, cout), lambda n, i: (n, i, 0, 0)),
            compiler_params=pltpu.CompilerParams(
                dimension_semantics=("parallel", "parallel"),
                vmem_limit_bytes=vmem_limit),
        )

    args = (pbias, xp, kparams["w1"], kparams["w3"], kparams["wp"], kparams["bb"])
    try:
        out_nhwc = build(True)(*args)
    except Exception:
        # pl.Buffered(1) (single buffering) unsupported on this jax build -> default depth.
        out_nhwc = build(False)(*args)

    return jnp.transpose(out_nhwc[:, :H], (0, 3, 1, 2))             # back to NCHW


# ----------------------------------------------------------------------------
# Parameters: raw (PyTorch-like) init + BN folding / packing for the kernel
# ----------------------------------------------------------------------------
def init_params(key, cin, rates, cout):
    """Raw parameters: conv weights (HWIO layout) + BatchNorm eval statistics."""
    rates = tuple(rates)
    n_branches = 2 + len(rates)

    def bn(k, c):
        k1, k2, k3, k4 = jax.random.split(k, 4)
        gamma = 1.0 + 0.1 * jax.random.normal(k1, (c,), jnp.float32)
        beta = 0.1 * jax.random.normal(k2, (c,), jnp.float32)
        mean = 0.1 * jax.random.normal(k3, (c,), jnp.float32)
        var = jnp.abs(jax.random.normal(k4, (c,), jnp.float32)) + 0.5
        return (gamma, beta, mean, var)

    keys = jax.random.split(key, 2 * (n_branches + 1))
    ki = iter(range(len(keys)))
    raw = {"rates": rates}
    raw["w1"] = 0.1 * jax.random.normal(keys[next(ki)], (cin, cout), jnp.float32)
    raw["bn1"] = bn(keys[next(ki)], cout)
    raw["w3"], raw["bn3"] = {}, {}
    for d in rates:
        raw["w3"][d] = 0.1 * jax.random.normal(keys[next(ki)], (3, 3, cin, cout), jnp.float32)
        raw["bn3"][d] = bn(keys[next(ki)], cout)
    raw["wpool"] = 0.1 * jax.random.normal(keys[next(ki)], (cin, cout), jnp.float32)
    raw["bnpool"] = bn(keys[next(ki)], cout)
    raw["wproj"] = 0.1 * jax.random.normal(
        keys[next(ki)], (n_branches * cout, cout), jnp.float32)
    raw["bnproj"] = bn(keys[next(ki)], cout)
    return raw


def fold_bn(gamma, beta, mean, var, eps=1e-5):
    scale = gamma / jnp.sqrt(var + eps)
    bias = beta - mean * scale
    return scale, bias


def prepare_kernel_params(raw, dtype=jnp.bfloat16):
    """Fold eval-mode BN into conv weights and pack them in the kernel layout."""
    rates = raw["rates"]
    cin, cout = raw["w1"].shape
    n_rates = len(rates)

    s1, b1 = fold_bn(*raw["bn1"])
    w1 = (raw["w1"] * s1[None, :]).astype(dtype)

    w3_rows, bb = [], [b1]
    for d in rates:
        s, b = fold_bn(*raw["bn3"][d])
        w = raw["w3"][d] * s[None, None, None, :]                  # (3, 3, Cin, Cout)
        for kh in range(3):
            # kw = 0,1,2 stacked along Cin -> (3*Cin, Cout); matches the kernel's
            # lane-concat order of the three column-shifted views.
            w3_rows.append(jnp.concatenate([w[kh, kw] for kw in range(3)], axis=0))
        bb.append(b)
    w3 = jnp.stack(w3_rows, axis=0).astype(dtype)                  # (n_rates*3, 3*Cin, Cout)
    bb = jnp.stack(bb, axis=0).astype(jnp.float32)                 # (1+n_rates, Cout)

    sp, bp = fold_bn(*raw["bnpool"])
    wpool = raw["wpool"] * sp[None, :]                             # f32 (wrapper-side)
    bpool = bp.reshape(1, cout)

    sj, bj = fold_bn(*raw["bnproj"])
    wproj = (raw["wproj"] * sj[None, :]).reshape(n_rates + 2, cout, cout)
    wp = wproj[:n_rates + 1].astype(dtype)                         # kernel proj slices
    wp_pool = wproj[n_rates + 1]                                   # f32 (wrapper-side)
    bproj = bj.reshape(1, cout)

    return {"w1": w1, "w3": w3, "wp": wp, "bb": bb,
            "wpool": wpool, "bpool": bpool, "wp_pool": wp_pool, "bproj": bproj}


# ----------------------------------------------------------------------------
# Pure-JAX f32 reference (uses the raw, unfolded parameters)
# ----------------------------------------------------------------------------
def aspp_reference(x_nchw, raw, rates, eps=1e-5):
    x = jnp.transpose(x_nchw, (0, 2, 3, 1)).astype(jnp.float32)
    N, H, W, cin = x.shape
    dn = ("NHWC", "HWIO", "NHWC")
    hp = lax.Precision.HIGHEST

    def bn_relu(y, bnp):
        g, b, m, v = bnp
        return jnp.maximum((y - m) * (g / jnp.sqrt(v + eps)) + b, 0.0)

    outs = []
    y = lax.conv_general_dilated(x, raw["w1"].reshape(1, 1, cin, -1), (1, 1), "VALID",
                                 dimension_numbers=dn, precision=hp)
    outs.append(bn_relu(y, raw["bn1"]))
    for d in rates:
        y = lax.conv_general_dilated(x, raw["w3"][d], (1, 1),
                                     ((d, d), (d, d)), rhs_dilation=(d, d),
                                     dimension_numbers=dn, precision=hp)
        outs.append(bn_relu(y, raw["bn3"][d]))
    pooled = jnp.mean(x, axis=(1, 2), keepdims=True)
    y = lax.conv_general_dilated(pooled, raw["wpool"].reshape(1, 1, cin, -1), (1, 1), "VALID",
                                 dimension_numbers=dn, precision=hp)
    y = bn_relu(y, raw["bnpool"])
    outs.append(jnp.broadcast_to(y, (N, H, W, y.shape[-1])))
    cat = jnp.concatenate(outs, axis=-1)
    y = lax.conv_general_dilated(cat, raw["wproj"].reshape(1, 1, cat.shape[-1], -1), (1, 1),
                                 "VALID", dimension_numbers=dn, precision=hp)
    y = bn_relu(y, raw["bnproj"])
    return jnp.transpose(y, (0, 3, 1, 2))


# ----------------------------------------------------------------------------
if __name__ == "__main__":
    # NOTE: toy shape for correctness only; benchmark with Cin/Cout >= 128 (MXU/lane dense).
    N, cin, H, W = 2, 8, 16, 16
    cout = 32
    rates = (2, 3)

    key = jax.random.PRNGKey(0)
    kx, kp = jax.random.split(key)
    x = jax.random.normal(kx, (N, cin, H, W), jnp.float32)        # NCHW, like PyTorch
    raw = init_params(kp, cin, rates, cout)
    kparams = prepare_kernel_params(raw)

    out = jax.block_until_ready(aspp_forward(x, kparams, rates))
    ref = jax.block_until_ready(aspp_reference(x, raw, rates))

    assert out.shape == (N, cout, H, W), out.shape
    max_err = float(jnp.max(jnp.abs(out - ref)))
    # bf16 MXU operands vs f32 reference -> loosened tolerance.
    assert jnp.allclose(out, ref, rtol=5e-2, atol=5e-2), max_err
    print("KERNEL_OK")
</pallas_src>

<mosaic_0001>
module attributes {stable_mosaic.version = 11 : i64} {
  func.func @aspp_fused_kernel(%arg0: i32, %arg1: i32, %arg2: memref<2x32xf32, #tpu.memory_space<vmem>>, %arg3: memref<1x22x22x8xbf16, #tpu.memory_space<vmem>>, %arg4: memref<8x32xbf16, #tpu.memory_space<vmem>>, %arg5: memref<6x24x32xbf16, #tpu.memory_space<vmem>>, %arg6: memref<3x32x32xbf16, #tpu.memory_space<vmem>>, %arg7: memref<3x32xf32, #tpu.memory_space<vmem>>, %arg8: memref<1x8x16x32xf32, #tpu.memory_space<vmem>>) attributes {dimension_semantics = [#tpu.dimension_semantics<parallel>, #tpu.dimension_semantics<parallel>], iteration_bounds = array<i64: 2, 2>, scalar_prefetch = 0 : i64, scratch_operands = 0 : i64, tpu.core_type = #tpu.core_type<tc>, window_params = [{pipeline_mode = #tpu.pipeline_mode<synchronous>, transform_indices = @transform_0, window_bounds = array<i64: 2, 32>}, {pipeline_mode = #tpu.pipeline_mode<synchronous>, transform_indices = @transform_1, window_bounds = array<i64: 1, 22, 22, 8>}, {pipeline_mode = #tpu.pipeline_mode<synchronous>, transform_indices = @transform_2, window_bounds = array<i64: 8, 32>}, {pipeline_mode = #tpu.pipeline_mode<synchronous>, transform_indices = @transform_3, window_bounds = array<i64: 6, 24, 32>}, {pipeline_mode = #tpu.pipeline_mode<synchronous>, transform_indices = @transform_4, window_bounds = array<i64: 3, 32, 32>}, {pipeline_mode = #tpu.pipeline_mode<synchronous>, transform_indices = @transform_5, window_bounds = array<i64: 3, 32>}, {transform_indices = @transform_6, window_bounds = array<i64: 1, 8, 16, 32>}]} {
    %c8_i32 = arith.constant 8 : i32
    %0 = arith.muli %arg1, %c8_i32 : i32
    %1 = tpu.assume_multiple %0, 8 : i32
    %2 = arith.index_cast %arg0 : i32 to index
    %c0 = arith.constant 0 : index
    %3 = vector.load %arg2[%2, %c0] : memref<2x32xf32, #tpu.memory_space<vmem>>, vector<1x32xf32>
    %c3_i32 = arith.constant 3 : i32
    %4 = arith.addi %1, %c3_i32 : i32
    %c0_0 = arith.constant 0 : index
    %5 = arith.index_cast %4 : i32 to index
    %c3 = arith.constant 3 : index
    %c0_1 = arith.constant 0 : index
    %6 = vector.load %arg3[%c0_0, %5, %c3, %c0_1] : memref<1x22x22x8xbf16, #tpu.memory_space<vmem>>, vector<1x8x16x8xbf16>
    %7 = vector.shape_cast %6 : vector<1x8x16x8xbf16> to vector<8x16x8xbf16>
    %8 = vector.shape_cast %7 : vector<8x16x8xbf16> to vector<128x8xbf16>
    %c0_2 = arith.constant 0 : index
    %c0_3 = arith.constant 0 : index
    %9 = vector.load %arg4[%c0_2, %c0_3] : memref<8x32xbf16, #tpu.memory_space<vmem>>, vector<8x32xbf16>
    %cst = arith.constant dense<0.000000e+00> : vector<128x32xf32>
    %10 = tpu.matmul %8, %9, %cst {dimension_numbers = #tpu.dot_dimension_numbers<[1], [0], [0], [1], [0, 0, 1, 1], [], []>} : vector<128x8xbf16>, vector<8x32xbf16>, vector<128x32xf32> -> vector<128x32xf32>
    %c0_4 = arith.constant 0 : index
    %c0_5 = arith.constant 0 : index
    %11 = vector.load %arg7[%c0_4, %c0_5] : memref<3x32xf32, #tpu.memory_space<vmem>>, vector<1x32xf32>
    %12 = vector.broadcast %11 : vector<1x32xf32> to vector<128x32xf32>
    %13 = arith.addf %10, %12 : vector<128x32xf32>
    %cst_6 = arith.constant 0.000000e+00 : f32
    %14 = vector.broadcast %cst_6 : f32 to vector<128x32xf32>
    %15 = arith.maximumf %13, %14 : vector<128x32xf32>
    %16 = arith.truncf %15 : vector<128x32xf32> to vector<128x32xbf16>
    %c0_7 = arith.constant 0 : index
    %c0_8 = arith.constant 0 : index
    %c0_9 = arith.constant 0 : index
    %17 = vector.load %arg6[%c0_7, %c0_8, %c0_9] : memref<3x32x32xbf16, #tpu.memory_space<vmem>>, vector<1x32x32xbf16>
    %18 = vector.shape_cast %17 : vector<1x32x32xbf16> to vector<32x32xbf16>
    %cst_10 = arith.constant dense<0.000000e+00> : vector<128x32xf32>
    %19 = tpu.matmul %16, %18, %cst_10 {dimension_numbers = #tpu.dot_dimension_numbers<[1], [0], [0], [1], [0, 0, 1, 1], [], []>} : vector<128x32xbf16>, vector<32x32xbf16>, vector<128x32xf32> -> vector<128x32xf32>
    %20 = vector.broadcast %3 : vector<1x32xf32> to vector<128x32xf32>
    %21 = arith.addf %20, %19 : vector<128x32xf32>
    %cst_11 = arith.constant 0.000000e+00 : f32
    %22 = vector.broadcast %cst_11 : f32 to vector<128x32xf32>
    %c3_i32_12 = arith.constant 3 : i32
    %23 = arith.addi %1, %c3_i32_12 : i32
    %c-2_i32 = arith.constant -2 : i32
    %24 = arith.addi %23, %c-2_i32 : i32
    %c0_13 = arith.constant 0 : index
    %25 = arith.index_cast %24 : i32 to index
    %c1 = arith.constant 1 : index
    %c0_14 = arith.constant 0 : index
    %26 = vector.load %arg3[%c0_13, %25, %c1, %c0_14] : memref<1x22x22x8xbf16, #tpu.memory_space<vmem>>, vector<1x8x20x8xbf16>
    %27 = vector.shape_cast %26 : vector<1x8x20x8xbf16> to vector<8x20x8xbf16>
    %28 = vector.extract_strided_slice %27 {offsets = [0, 0, 0], sizes = [8, 16, 8], strides = [1, 1, 1]} : vector<8x20x8xbf16> to vector<8x16x8xbf16>
    %29 = vector.extract_strided_slice %27 {offsets = [0, 2, 0], sizes = [8, 16, 8], strides = [1, 1, 1]} : vector<8x20x8xbf16> to vector<8x16x8xbf16>
    %30 = vector.extract_strided_slice %27 {offsets = [0, 4, 0], sizes = [8, 16, 8], strides = [1, 1, 1]} : vector<8x20x8xbf16> to vector<8x16x8xbf16>
    %31 = tpu.concatenate %28, %29, %30 in 2 : vector<8x16x8xbf16>, vector<8x16x8xbf16>, vector<8x16x8xbf16> -> vector<8x16x24xbf16>
    %32 = vector.shape_cast %31 : vector<8x16x24xbf16> to vector<128x24xbf16>
    %c0_15 = arith.constant 0 : index
    %c0_16 = arith.constant 0 : index
    %c0_17 = arith.constant 0 : index
    %33 = vector.load %arg5[%c0_15, %c0_16, %c0_17] : memref<6x24x32xbf16, #tpu.memory_space<vmem>>, vector<1x24x32xbf16>
    %34 = vector.shape_cast %33 : vector<1x24x32xbf16> to vector<24x32xbf16>
    %cst_18 = arith.constant dense<0.000000e+00> : vector<128x32xf32>
    %35 = tpu.matmul %32, %34, %cst_18 {dimension_numbers = #tpu.dot_dimension_numbers<[1], [0], [0], [1], [0, 0, 1, 1], [], []>} : vector<128x24xbf16>, vector<24x32xbf16>, vector<128x32xf32> -> vector<128x32xf32>
    %36 = arith.addf %22, %35 : vector<128x32xf32>
    %c3_i32_19 = arith.constant 3 : i32
    %37 = arith.addi %1, %c3_i32_19 : i32
    %c0_i32 = arith.constant 0 : i32
    %38 = arith.addi %37, %c0_i32 : i32
    %c0_20 = arith.constant 0 : index
    %39 = arith.index_cast %38 : i32 to index
    %c1_21 = arith.constant 1 : index
    %c0_22 = arith.constant 0 : index
    %40 = vector.load %arg3[%c0_20, %39, %c1_21, %c0_22] : memref<1x22x22x8xbf16, #tpu.memory_space<vmem>>, vector<1x8x20x8xbf16>
    %41 = vector.shape_cast %40 : vector<1x8x20x8xbf16> to vector<8x20x8xbf16>
    %42 = vector.extract_strided_slice %41 {offsets = [0, 0, 0], sizes = [8, 16, 8], strides = [1, 1, 1]} : vector<8x20x8xbf16> to vector<8x16x8xbf16>
    %43 = vector.extract_strided_slice %41 {offsets = [0, 2, 0], sizes = [8, 16, 8], strides = [1, 1, 1]} : vector<8x20x8xbf16> to vector<8x16x8xbf16>
    %44 = vector.extract_strided_slice %41 {offsets = [0, 4, 0], sizes = [8, 16, 8], strides = [1, 1, 1]} : vector<8x20x8xbf16> to vector<8x16x8xbf16>
    %45 = tpu.concatenate %42, %43, %44 in 2 : vector<8x16x8xbf16>, vector<8x16x8xbf16>, vector<8x16x8xbf16> -> vector<8x16x24xbf16>
    %46 = vector.shape_cast %45 : vector<8x16x24xbf16> to vector<128x24xbf16>
    %c1_23 = arith.constant 1 : index
    %c0_24 = arith.constant 0 : index
    %c0_25 = arith.constant 0 : index
    %47 = vector.load %arg5[%c1_23, %c0_24, %c0_25] : memref<6x24x32xbf16, #tpu.memory_space<vmem>>, vector<1x24x32xbf16>
    %48 = vector.shape_cast %47 : vector<1x24x32xbf16> to vector<24x32xbf16>
    %cst_26 = arith.constant dense<0.000000e+00> : vector<128x32xf32>
    %49 = tpu.matmul %46, %48, %cst_26 {dimension_numbers = #tpu.dot_dimension_numbers<[1], [0], [0], [1], [0, 0, 1, 1], [], []>} : vector<128x24xbf16>, vector<24x32xbf16>, vector<128x32xf32> -> vector<128x32xf32>
    %50 = arith.addf %36, %49 : vector<128x32xf32>
    %c3_i32_27 = arith.constant 3 : i32
    %51 = arith.addi %1, %c3_i32_27 : i32
    %c2_i32 = arith.constant 2 : i32
    %52 = arith.addi %51, %c2_i32 : i32
    %c0_28 = arith.constant 0 : index
    %53 = arith.index_cast %52 : i32 to index
    %c1_29 = arith.constant 1 : index
    %c0_30 = arith.constant 0 : index
    %54 = vector.load %arg3[%c0_28, %53, %c1_29, %c0_30] : memref<1x22x22x8xbf16, #tpu.memory_space<vmem>>, vector<1x8x20x8xbf16>
    %55 = vector.shape_cast %54 : vector<1x8x20x8xbf16> to vector<8x20x8xbf16>
    %56 = vector.extract_strided_slice %55 {offsets = [0, 0, 0], sizes = [8, 16, 8], strides = [1, 1, 1]} : vector<8x20x8xbf16> to vector<8x16x8xbf16>
    %57 = vector.extract_strided_slice %55 {offsets = [0, 2, 0], sizes = [8, 16, 8], strides = [1, 1, 1]} : vector<8x20x8xbf16> to vector<8x16x8xbf16>
    %58 = vector.extract_strided_slice %55 {offsets = [0, 4, 0], sizes = [8, 16, 8], strides = [1, 1, 1]} : vector<8x20x8xbf16> to vector<8x16x8xbf16>
    %59 = tpu.concatenate %56, %57, %58 in 2 : vector<8x16x8xbf16>, vector<8x16x8xbf16>, vector<8x16x8xbf16> -> vector<8x16x24xbf16>
    %60 = vector.shape_cast %59 : vector<8x16x24xbf16> to vector<128x24xbf16>
    %c2 = arith.constant 2 : index
    %c0_31 = arith.constant 0 : index
    %c0_32 = arith.constant 0 : index
    %61 = vector.load %arg5[%c2, %c0_31, %c0_32] : memref<6x24x32xbf16, #tpu.memory_space<vmem>>, vector<1x24x32xbf16>
    %62 = vector.shape_cast %61 : vector<1x24x32xbf16> to vector<24x32xbf16>
    %cst_33 = arith.constant dense<0.000000e+00> : vector<128x32xf32>
    %63 = tpu.matmul %60, %62, %cst_33 {dimension_numbers = #tpu.dot_dimension_numbers<[1], [0], [0], [1], [0, 0, 1, 1], [], []>} : vector<128x24xbf16>, vector<24x32xbf16>, vector<128x32xf32> -> vector<128x32xf32>
    %64 = arith.addf %50, %63 : vector<128x32xf32>
    %c1_34 = arith.constant 1 : index
    %c0_35 = arith.constant 0 : index
    %65 = vector.load %arg7[%c1_34, %c0_35] : memref<3x32xf32, #tpu.memory_space<vmem>>, vector<1x32xf32>
    %66 = vector.broadcast %65 : vector<1x32xf32> to vector<128x32xf32>
    %67 = arith.addf %64, %66 : vector<128x32xf32>
    %cst_36 = arith.constant 0.000000e+00 : f32
    %68 = vector.broadcast %cst_36 : f32 to vector<128x32xf32>
    %69 = arith.maximumf %67, %68 : vector<128x32xf32>
    %70 = arith.truncf %69 : vector<128x32xf32> to vector<128x32xbf16>
    %c1_37 = arith.constant 1 : index
    %c0_38 = arith.constant 0 : index
    %c0_39 = arith.constant 0 : index
    %71 = vector.load %arg6[%c1_37, %c0_38, %c0_39] : memref<3x32x32xbf16, #tpu.memory_space<vmem>>, vector<1x32x32xbf16>
    %72 = vector.shape_cast %71 : vector<1x32x32xbf16> to vector<32x32xbf16>
    %cst_40 = arith.constant dense<0.000000e+00> : vector<128x32xf32>
    %73 = tpu.matmul %70, %72, %cst_40 {dimension_numbers = #tpu.dot_dimension_numbers<[1], [0], [0], [1], [0, 0, 1, 1], [], []>} : vector<128x32xbf16>, vector<32x32xbf16>, vector<128x32xf32> -> vector<128x32xf32>
    %74 = arith.addf %21, %73 : vector<128x32xf32>
    %cst_41 = arith.constant 0.000000e+00 : f32
    %75 = vector.broadcast %cst_41 : f32 to vector<128x32xf32>
    %c3_i32_42 = arith.constant 3 : i32
    %76 = arith.addi %1, %c3_i32_42 : i32
    %c-3_i32 = arith.constant -3 : i32
    %77 = arith.addi %76, %c-3_i32 : i32
    %c0_43 = arith.constant 0 : index
    %78 = arith.index_cast %77 : i32 to index
    %c0_44 = arith.constant 0 : index
    %c0_45 = arith.constant 0 : index
    %79 = vector.load %arg3[%c0_43, %78, %c0_44, %c0_45] : memref<1x22x22x8xbf16, #tpu.memory_space<vmem>>, vector<1x8x22x8xbf16>
    %80 = vector.shape_cast %79 : vector<1x8x22x8xbf16> to vector<8x22x8xbf16>
    %81 = vector.extract_strided_slice %80 {offsets = [0, 0, 0], sizes = [8, 16, 8], strides = [1, 1, 1]} : vector<8x22x8xbf16> to vector<8x16x8xbf16>
    %82 = vector.extract_strided_slice %80 {offsets = [0, 3, 0], sizes = [8, 16, 8], strides = [1, 1, 1]} : vector<8x22x8xbf16> to vector<8x16x8xbf16>
    %83 = vector.extract_strided_slice %80 {offsets = [0, 6, 0], sizes = [8, 16, 8], strides = [1, 1, 1]} : vector<8x22x8xbf16> to vector<8x16x8xbf16>
    %84 = tpu.concatenate %81, %82, %83 in 2 : vector<8x16x8xbf16>, vector<8x16x8xbf16>, vector<8x16x8xbf16> -> vector<8x16x24xbf16>
    %85 = vector.shape_cast %84 : vector<8x16x24xbf16> to vector<128x24xbf16>
    %c3_46 = arith.constant 3 : index
    %c0_47 = arith.constant 0 : index
    %c0_48 = arith.constant 0 : index
    %86 = vector.load %arg5[%c3_46, %c0_47, %c0_48] : memref<6x24x32xbf16, #tpu.memory_space<vmem>>, vector<1x24x32xbf16>
    %87 = vector.shape_cast %86 : vector<1x24x32xbf16> to vector<24x32xbf16>
    %cst_49 = arith.constant dense<0.000000e+00> : vector<128x32xf32>
    %88 = tpu.matmul %85, %87, %cst_49 {dimension_numbers = #tpu.dot_dimension_numbers<[1], [0], [0], [1], [0, 0, 1, 1], [], []>} : vector<128x24xbf16>, vector<24x32xbf16>, vector<128x32xf32> -> vector<128x32xf32>
    %89 = arith.addf %75, %88 : vector<128x32xf32>
    %c3_i32_50 = arith.constant 3 : i32
    %90 = arith.addi %1, %c3_i32_50 : i32
    %c0_i32_51 = arith.constant 0 : i32
    %91 = arith.addi %90, %c0_i32_51 : i32
    %c0_52 = arith.constant 0 : index
    %92 = arith.index_cast %91 : i32 to index
    %c0_53 = arith.constant 0 : index
    %c0_54 = arith.constant 0 : index
    %93 = vector.load %arg3[%c0_52, %92, %c0_53, %c0_54] : memref<1x22x22x8xbf16, #tpu.memory_space<vmem>>, vector<1x8x22x8xbf16>
    %94 = vector.shape_cast %93 : vector<1x8x22x8xbf16> to vector<8x22x8xbf16>
    %95 = vector.extract_strided_slice %94 {offsets = [0, 0, 0], sizes = [8, 16, 8], strides = [1, 1, 1]} : vector<8x22x8xbf16> to vector<8x16x8xbf16>
    %96 = vector.extract_strided_slice %94 {offsets = [0, 3, 0], sizes = [8, 16, 8], strides = [1, 1, 1]} : vector<8x22x8xbf16> to vector<8x16x8xbf16>
    %97 = vector.extract_strided_slice %94 {offsets = [0, 6, 0], sizes = [8, 16, 8], strides = [1, 1, 1]} : vector<8x22x8xbf16> to vector<8x16x8xbf16>
    %98 = tpu.concatenate %95, %96, %97 in 2 : vector<8x16x8xbf16>, vector<8x16x8xbf16>, vector<8x16x8xbf16> -> vector<8x16x24xbf16>
    %99 = vector.shape_cast %98 : vector<8x16x24xbf16> to vector<128x24xbf16>
    %c4 = arith.constant 4 : index
    %c0_55 = arith.constant 0 : index
    %c0_56 = arith.constant 0 : index
    %100 = vector.load %arg5[%c4, %c0_55, %c0_56] : memref<6x24x32xbf16, #tpu.memory_space<vmem>>, vector<1x24x32xbf16>
    %101 = vector.shape_cast %100 : vector<1x24x32xbf16> to vector<24x32xbf16>
    %cst_57 = arith.constant dense<0.000000e+00> : vector<128x32xf32>
    %102 = tpu.matmul %99, %101, %cst_57 {dimension_numbers = #tpu.dot_dimension_numbers<[1], [0], [0], [1], [0, 0, 1, 1], [], []>} : vector<128x24xbf16>, vector<24x32xbf16>, vector<128x32xf32> -> vector<128x32xf32>
    %103 = arith.addf %89, %102 : vector<128x32xf32>
    %c3_i32_58 = arith.constant 3 : i32
    %104 = arith.addi %1, %c3_i32_58 : i32
    %c3_i32_59 = arith.constant 3 : i32
    %105 = arith.addi %104, %c3_i32_59 : i32
    %c0_60 = arith.constant 0 : index
    %106 = arith.index_cast %105 : i32 to index
    %c0_61 = arith.constant 0 : index
    %c0_62 = arith.constant 0 : index
    %107 = vector.load %arg3[%c0_60, %106, %c0_61, %c0_62] : memref<1x22x22x8xbf16, #tpu.memory_space<vmem>>, vector<1x8x22x8xbf16>
    %108 = vector.shape_cast %107 : vector<1x8x22x8xbf16> to vector<8x22x8xbf16>
    %109 = vector.extract_strided_slice %108 {offsets = [0, 0, 0], sizes = [8, 16, 8], strides = [1, 1, 1]} : vector<8x22x8xbf16> to vector<8x16x8xbf16>
    %110 = vector.extract_strided_slice %108 {offsets = [0, 3, 0], sizes = [8, 16, 8], strides = [1, 1, 1]} : vector<8x22x8xbf16> to vector<8x16x8xbf16>
    %111 = vector.extract_strided_slice %108 {offsets = [0, 6, 0], sizes = [8, 16, 8], strides = [1, 1, 1]} : vector<8x22x8xbf16> to vector<8x16x8xbf16>
    %112 = tpu.concatenate %109, %110, %111 in 2 : vector<8x16x8xbf16>, vector<8x16x8xbf16>, vector<8x16x8xbf16> -> vector<8x16x24xbf16>
    %113 = vector.shape_cast %112 : vector<8x16x24xbf16> to vector<128x24xbf16>
    %c5 = arith.constant 5 : index
    %c0_63 = arith.constant 0 : index
    %c0_64 = arith.constant 0 : index
    %114 = vector.load %arg5[%c5, %c0_63, %c0_64] : memref<6x24x32xbf16, #tpu.memory_space<vmem>>, vector<1x24x32xbf16>
    %115 = vector.shape_cast %114 : vector<1x24x32xbf16> to vector<24x32xbf16>
    %cst_65 = arith.constant dense<0.000000e+00> : vector<128x32xf32>
    %116 = tpu.matmul %113, %115, %cst_65 {dimension_numbers = #tpu.dot_dimension_numbers<[1], [0], [0], [1], [0, 0, 1, 1], [], []>} : vector<128x24xbf16>, vector<24x32xbf16>, vector<128x32xf32> -> vector<128x32xf32>
    %117 = arith.addf %103, %116 : vector<128x32xf32>
    %c2_66 = arith.constant 2 : index
    %c0_67 = arith.constant 0 : index
    %118 = vector.load %arg7[%c2_66, %c0_67] : memref<3x32xf32, #tpu.memory_space<vmem>>, vector<1x32xf32>
    %119 = vector.broadcast %118 : vector<1x32xf32> to vector<128x32xf32>
    %120 = arith.addf %117, %119 : vector<128x32xf32>
    %cst_68 = arith.constant 0.000000e+00 : f32
    %121 = vector.broadcast %cst_68 : f32 to vector<128x32xf32>
    %122 = arith.maximumf %120, %121 : vector<128x32xf32>
    %123 = arith.truncf %122 : vector<128x32xf32> to vector<128x32xbf16>
    %c2_69 = arith.constant 2 : index
    %c0_70 = arith.constant 0 : index
    %c0_71 = arith.constant 0 : index
    %124 = vector.load %arg6[%c2_69, %c0_70, %c0_71] : memref<3x32x32xbf16, #tpu.memory_space<vmem>>, vector<1x32x32xbf16>
    %125 = vector.shape_cast %124 : vector<1x32x32xbf16> to vector<32x32xbf16>
    %cst_72 = arith.constant dense<0.000000e+00> : vector<128x32xf32>
    %126 = tpu.matmul %123, %125, %cst_72 {dimension_numbers = #tpu.dot_dimension_numbers<[1], [0], [0], [1], [0, 0, 1, 1], [], []>} : vector<128x32xbf16>, vector<32x32xbf16>, vector<128x32xf32> -> vector<128x32xf32>
    %127 = arith.addf %74, %126 : vector<128x32xf32>
    %cst_73 = arith.constant 0.000000e+00 : f32
    %128 = vector.broadcast %cst_73 : f32 to vector<128x32xf32>
    %129 = arith.maximumf %127, %128 : vector<128x32xf32>
    %130 = vector.shape_cast %129 : vector<128x32xf32> to vector<8x16x32xf32>
    %c0_74 = arith.constant 0 : index
    %c0_75 = arith.constant 0 : index
    %c0_76 = arith.constant 0 : index
    %c0_77 = arith.constant 0 : index
    %131 = vector.load %arg8[%c0_74, %c0_75, %c0_76, %c0_77] : memref<1x8x16x32xf32, #tpu.memory_space<vmem>>, vector<1x8x16x32xf32>
    %132 = vector.shape_cast %131 : vector<1x8x16x32xf32> to vector<8x16x32xf32>
    %133 = vector.shape_cast %130 : vector<8x16x32xf32> to vector<1x8x16x32xf32>
    tpu.vector_store %arg8[%c0_74, %c0_75, %c0_76, %c0_77], %133 {strides = array<i32>} : memref<1x8x16x32xf32, #tpu.memory_space<vmem>>, vector<1x8x16x32xf32>,
    return
  }
  func.func @transform_0(%arg0: i32, %arg1: i32) -> (i32, i32) {
    %c0_i32 = arith.constant 0 : i32
    %c0_i32_0 = arith.constant 0 : i32
    %c0_i32_1 = arith.constant 0 : i32
    return %c0_i32, %c0_i32_0 : i32, i32
  }
  func.func @transform_1(%arg0: i32, %arg1: i32) -> (i32, i32, i32, i32) {
    %c0_i32 = arith.constant 0 : i32
    %c0_i32_0 = arith.constant 0 : i32
    %c0_i32_1 = arith.constant 0 : i32
    %c0_i32_2 = arith.constant 0 : i32
    return %arg0, %c0_i32, %c0_i32_0, %c0_i32_1 : i32, i32, i32, i32
  }
  func.func @transform_2(%arg0: i32, %arg1: i32) -> (i32, i32) {
    %c0_i32 = arith.constant 0 : i32
    %c0_i32_0 = arith.constant 0 : i32
    %c0_i32_1 = arith.constant 0 : i32
    return %c0_i32, %c0_i32_0 : i32, i32
  }
  func.func @transform_3(%arg0: i32, %arg1: i32) -> (i32, i32, i32) {
    %c0_i32 = arith.constant 0 : i32
    %c0_i32_0 = arith.constant 0 : i32
    %c0_i32_1 = arith.constant 0 : i32
    %c0_i32_2 = arith.constant 0 : i32
    return %c0_i32, %c0_i32_0, %c0_i32_1 : i32, i32, i32
  }
  func.func @transform_4(%arg0: i32, %arg1: i32) -> (i32, i32, i32) {
    %c0_i32 = arith.constant 0 : i32
    %c0_i32_0 = arith.constant 0 : i32
    %c0_i32_1 = arith.constant 0 : i32
    %c0_i32_2 = arith.constant 0 : i32
    return %c0_i32, %c0_i32_0, %c0_i32_1 : i32, i32, i32
  }
  func.func @transform_5(%arg0: i32, %arg1: i32) -> (i32, i32) {
    %c0_i32 = arith.constant 0 : i32
    %c0_i32_0 = arith.constant 0 : i32
    %c0_i32_1 = arith.constant 0 : i32
    return %c0_i32, %c0_i32_0 : i32, i32
  }
  func.func @transform_6(%arg0: i32, %arg1: i32) -> (i32, i32, i32, i32) {
    %c0_i32 = arith.constant 0 : i32
    %c0_i32_0 = arith.constant 0 : i32
    %c0_i32_1 = arith.constant 0 : i32
    return %arg0, %arg1, %c0_i32, %c0_i32_0 : i32, i32, i32, i32
  }
}

module attributes {stable_mosaic.version = 11 : i64} {
  func.func @aspp_fused_kernel(%arg0: i32, %arg1: i32, %arg2: memref<2x32xf32, #tpu.memory_space<vmem>>, %arg3: memref<1x22x22x8xbf16, #tpu.memory_space<vmem>>, %arg4: memref<8x32xbf16, #tpu.memory_space<vmem>>, %arg5: memref<6x24x32xbf16, #tpu.memory_space<vmem>>, %arg6: memref<3x32x32xbf16, #tpu.memory_space<vmem>>, %arg7: memref<3x32xf32, #tpu.memory_space<vmem>>, %arg8: memref<1x8x16x32xf32, #tpu.memory_space<vmem>>) attributes {dimension_semantics = [#tpu.dimension_semantics<parallel>, #tpu.dimension_semantics<parallel>], iteration_bounds = array<i64: 2, 2>, scalar_prefetch = 0 : i64, scratch_operands = 0 : i64, tpu.core_type = #tpu.core_type<tc>, window_params = [{pipeline_mode = #tpu.pipeline_mode<synchronous>, transform_indices = @transform_0, window_bounds = array<i64: 2, 32>}, {transform_indices = @transform_1, window_bounds = array<i64: 1, 22, 22, 8>}, {pipeline_mode = #tpu.pipeline_mode<synchronous>, transform_indices = @transform_2, window_bounds = array<i64: 8, 32>}, {pipeline_mode = #tpu.pipeline_mode<synchronous>, transform_indices = @transform_3, window_bounds = array<i64: 6, 24, 32>}, {pipeline_mode = #tpu.pipeline_mode<synchronous>, transform_indices = @transform_4, window_bounds = array<i64: 3, 32, 32>}, {pipeline_mode = #tpu.pipeline_mode<synchronous>, transform_indices = @transform_5, window_bounds = array<i64: 3, 32>}, {transform_indices = @transform_6, window_bounds = array<i64: 1, 8, 16, 32>}]} {
    %c8_i32 = arith.constant 8 : i32
    %0 = arith.muli %arg1, %c8_i32 : i32
    %1 = tpu.assume_multiple %0, 8 : i32
    %2 = arith.index_cast %arg0 : i32 to index
    %c0 = arith.constant 0 : index
    %3 = vector.load %arg2[%2, %c0] : memref<2x32xf32, #tpu.memory_space<vmem>>, vector<1x32xf32>
    %c3_i32 = arith.constant 3 : i32
    %4 = arith.addi %1, %c3_i32 : i32
    %c0_0 = arith.constant 0 : index
    %5 = arith.index_cast %4 : i32 to index
    %c3 = arith.constant 3 : index
    %c0_1 = arith.constant 0 : index
    %6 = vector.load %arg3[%c0_0, %5, %c3, %c0_1] : memref<1x22x22x8xbf16, #tpu.memory_space<vmem>>, vector<1x8x16x8xbf16>
    %7 = vector.shape_cast %6 : vector<1x8x16x8xbf16> to vector<8x16x8xbf16>
    %8 = vector.shape_cast %7 : vector<8x16x8xbf16> to vector<128x8xbf16>
    %c0_2 = arith.constant 0 : index
    %c0_3 = arith.constant 0 : index
    %9 = vector.load %arg4[%c0_2, %c0_3] : memref<8x32xbf16, #tpu.memory_space<vmem>>, vector<8x32xbf16>
    %cst = arith.constant dense<0.000000e+00> : vector<128x32xf32>
    %10 = tpu.matmul %8, %9, %cst {dimension_numbers = #tpu.dot_dimension_numbers<[1], [0], [0], [1], [0, 0, 1, 1], [], []>} : vector<128x8xbf16>, vector<8x32xbf16>, vector<128x32xf32> -> vector<128x32xf32>
    %c0_4 = arith.constant 0 : index
    %c0_5 = arith.constant 0 : index
    %11 = vector.load %arg7[%c0_4, %c0_5] : memref<3x32xf32, #tpu.memory_space<vmem>>, vector<1x32xf32>
    %12 = vector.broadcast %11 : vector<1x32xf32> to vector<128x32xf32>
    %13 = arith.addf %10, %12 : vector<128x32xf32>
    %cst_6 = arith.constant 0.000000e+00 : f32
    %14 = vector.broadcast %cst_6 : f32 to vector<128x32xf32>
    %15 = arith.maximumf %13, %14 : vector<128x32xf32>
    %16 = arith.truncf %15 : vector<128x32xf32> to vector<128x32xbf16>
    %c0_7 = arith.constant 0 : index
    %c0_8 = arith.constant 0 : index
    %c0_9 = arith.constant 0 : index
    %17 = vector.load %arg6[%c0_7, %c0_8, %c0_9] : memref<3x32x32xbf16, #tpu.memory_space<vmem>>, vector<1x32x32xbf16>
    %18 = vector.shape_cast %17 : vector<1x32x32xbf16> to vector<32x32xbf16>
    %cst_10 = arith.constant dense<0.000000e+00> : vector<128x32xf32>
    %19 = tpu.matmul %16, %18, %cst_10 {dimension_numbers = #tpu.dot_dimension_numbers<[1], [0], [0], [1], [0, 0, 1, 1], [], []>} : vector<128x32xbf16>, vector<32x32xbf16>, vector<128x32xf32> -> vector<128x32xf32>
    %20 = vector.broadcast %3 : vector<1x32xf32> to vector<128x32xf32>
    %21 = arith.addf %20, %19 : vector<128x32xf32>
    %cst_11 = arith.constant 0.000000e+00 : f32
    %22 = vector.broadcast %cst_11 : f32 to vector<128x32xf32>
    %c3_i32_12 = arith.constant 3 : i32
    %23 = arith.addi %1, %c3_i32_12 : i32
    %c-2_i32 = arith.constant -2 : i32
    %24 = arith.addi %23, %c-2_i32 : i32
    %c0_13 = arith.constant 0 : index
    %25 = arith.index_cast %24 : i32 to index
    %c1 = arith.constant 1 : index
    %c0_14 = arith.constant 0 : index
    %26 = vector.load %arg3[%c0_13, %25, %c1, %c0_14] : memref<1x22x22x8xbf16, #tpu.memory_space<vmem>>, vector<1x8x20x8xbf16>
    %27 = vector.shape_cast %26 : vector<1x8x20x8xbf16> to vector<8x20x8xbf16>
    %28 = vector.extract_strided_slice %27 {offsets = [0, 0, 0], sizes = [8, 16, 8], strides = [1, 1, 1]} : vector<8x20x8xbf16> to vector<8x16x8xbf16>
    %29 = vector.extract_strided_slice %27 {offsets = [0, 2, 0], sizes = [8, 16, 8], strides = [1, 1, 1]} : vector<8x20x8xbf16> to vector<8x16x8xbf16>
    %30 = vector.extract_strided_slice %27 {offsets = [0, 4, 0], sizes = [8, 16, 8], strides = [1, 1, 1]} : vector<8x20x8xbf16> to vector<8x16x8xbf16>
    %31 = tpu.concatenate %28, %29, %30 in 2 : vector<8x16x8xbf16>, vector<8x16x8xbf16>, vector<8x16x8xbf16> -> vector<8x16x24xbf16>
    %32 = vector.shape_cast %31 : vector<8x16x24xbf16> to vector<128x24xbf16>
    %c0_15 = arith.constant 0 : index
    %c0_16 = arith.constant 0 : index
    %c0_17 = arith.constant 0 : index
    %33 = vector.load %arg5[%c0_15, %c0_16, %c0_17] : memref<6x24x32xbf16, #tpu.memory_space<vmem>>, vector<1x24x32xbf16>
    %34 = vector.shape_cast %33 : vector<1x24x32xbf16> to vector<24x32xbf16>
    %cst_18 = arith.constant dense<0.000000e+00> : vector<128x32xf32>
    %35 = tpu.matmul %32, %34, %cst_18 {dimension_numbers = #tpu.dot_dimension_numbers<[1], [0], [0], [1], [0, 0, 1, 1], [], []>} : vector<128x24xbf16>, vector<24x32xbf16>, vector<128x32xf32> -> vector<128x32xf32>
    %36 = arith.addf %22, %35 : vector<128x32xf32>
    %c3_i32_19 = arith.constant 3 : i32
    %37 = arith.addi %1, %c3_i32_19 : i32
    %c0_i32 = arith.constant 0 : i32
    %38 = arith.addi %37, %c0_i32 : i32
    %c0_20 = arith.constant 0 : index
    %39 = arith.index_cast %38 : i32 to index
    %c1_21 = arith.constant 1 : index
    %c0_22 = arith.constant 0 : index
    %40 = vector.load %arg3[%c0_20, %39, %c1_21, %c0_22] : memref<1x22x22x8xbf16, #tpu.memory_space<vmem>>, vector<1x8x20x8xbf16>
    %41 = vector.shape_cast %40 : vector<1x8x20x8xbf16> to vector<8x20x8xbf16>
    %42 = vector.extract_strided_slice %41 {offsets = [0, 0, 0], sizes = [8, 16, 8], strides = [1, 1, 1]} : vector<8x20x8xbf16> to vector<8x16x8xbf16>
    %43 = vector.extract_strided_slice %41 {offsets = [0, 2, 0], sizes = [8, 16, 8], strides = [1, 1, 1]} : vector<8x20x8xbf16> to vector<8x16x8xbf16>
    %44 = vector.extract_strided_slice %41 {offsets = [0, 4, 0], sizes = [8, 16, 8], strides = [1, 1, 1]} : vector<8x20x8xbf16> to vector<8x16x8xbf16>
    %45 = tpu.concatenate %42, %43, %44 in 2 : vector<8x16x8xbf16>, vector<8x16x8xbf16>, vector<8x16x8xbf16> -> vector<8x16x24xbf16>
    %46 = vector.shape_cast %45 : vector<8x16x24xbf16> to vector<128x24xbf16>
    %c1_23 = arith.constant 1 : index
    %c0_24 = arith.constant 0 : index
    %c0_25 = arith.constant 0 : index
    %47 = vector.load %arg5[%c1_23, %c0_24, %c0_25] : memref<6x24x32xbf16, #tpu.memory_space<vmem>>, vector<1x24x32xbf16>
    %48 = vector.shape_cast %47 : vector<1x24x32xbf16> to vector<24x32xbf16>
    %cst_26 = arith.constant dense<0.000000e+00> : vector<128x32xf32>
    %49 = tpu.matmul %46, %48, %cst_26 {dimension_numbers = #tpu.dot_dimension_numbers<[1], [0], [0], [1], [0, 0, 1, 1], [], []>} : vector<128x24xbf16>, vector<24x32xbf16>, vector<128x32xf32> -> vector<128x32xf32>
    %50 = arith.addf %36, %49 : vector<128x32xf32>
    %c3_i32_27 = arith.constant 3 : i32
    %51 = arith.addi %1, %c3_i32_27 : i32
    %c2_i32 = arith.constant 2 : i32
    %52 = arith.addi %51, %c2_i32 : i32
    %c0_28 = arith.constant 0 : index
    %53 = arith.index_cast %52 : i32 to index
    %c1_29 = arith.constant 1 : index
    %c0_30 = arith.constant 0 : index
    %54 = vector.load %arg3[%c0_28, %53, %c1_29, %c0_30] : memref<1x22x22x8xbf16, #tpu.memory_space<vmem>>, vector<1x8x20x8xbf16>
    %55 = vector.shape_cast %54 : vector<1x8x20x8xbf16> to vector<8x20x8xbf16>
    %56 = vector.extract_strided_slice %55 {offsets = [0, 0, 0], sizes = [8, 16, 8], strides = [1, 1, 1]} : vector<8x20x8xbf16> to vector<8x16x8xbf16>
    %57 = vector.extract_strided_slice %55 {offsets = [0, 2, 0], sizes = [8, 16, 8], strides = [1, 1, 1]} : vector<8x20x8xbf16> to vector<8x16x8xbf16>
    %58 = vector.extract_strided_slice %55 {offsets = [0, 4, 0], sizes = [8, 16, 8], strides = [1, 1, 1]} : vector<8x20x8xbf16> to vector<8x16x8xbf16>
    %59 = tpu.concatenate %56, %57, %58 in 2 : vector<8x16x8xbf16>, vector<8x16x8xbf16>, vector<8x16x8xbf16> -> vector<8x16x24xbf16>
    %60 = vector.shape_cast %59 : vector<8x16x24xbf16> to vector<128x24xbf16>
    %c2 = arith.constant 2 : index
    %c0_31 = arith.constant 0 : index
    %c0_32 = arith.constant 0 : index
    %61 = vector.load %arg5[%c2, %c0_31, %c0_32] : memref<6x24x32xbf16, #tpu.memory_space<vmem>>, vector<1x24x32xbf16>
    %62 = vector.shape_cast %61 : vector<1x24x32xbf16> to vector<24x32xbf16>
    %cst_33 = arith.constant dense<0.000000e+00> : vector<128x32xf32>
    %63 = tpu.matmul %60, %62, %cst_33 {dimension_numbers = #tpu.dot_dimension_numbers<[1], [0], [0], [1], [0, 0, 1, 1], [], []>} : vector<128x24xbf16>, vector<24x32xbf16>, vector<128x32xf32> -> vector<128x32xf32>
    %64 = arith.addf %50, %63 : vector<128x32xf32>
    %c1_34 = arith.constant 1 : index
    %c0_35 = arith.constant 0 : index
    %65 = vector.load %arg7[%c1_34, %c0_35] : memref<3x32xf32, #tpu.memory_space<vmem>>, vector<1x32xf32>
    %66 = vector.broadcast %65 : vector<1x32xf32> to vector<128x32xf32>
    %67 = arith.addf %64, %66 : vector<128x32xf32>
    %cst_36 = arith.constant 0.000000e+00 : f32
    %68 = vector.broadcast %cst_36 : f32 to vector<128x32xf32>
    %69 = arith.maximumf %67, %68 : vector<128x32xf32>
    %70 = arith.truncf %69 : vector<128x32xf32> to vector<128x32xbf16>
    %c1_37 = arith.constant 1 : index
    %c0_38 = arith.constant 0 : index
    %c0_39 = arith.constant 0 : index
    %71 = vector.load %arg6[%c1_37, %c0_38, %c0_39] : memref<3x32x32xbf16, #tpu.memory_space<vmem>>, vector<1x32x32xbf16>
    %72 = vector.shape_cast %71 : vector<1x32x32xbf16> to vector<32x32xbf16>
    %cst_40 = arith.constant dense<0.000000e+00> : vector<128x32xf32>
    %73 = tpu.matmul %70, %72, %cst_40 {dimension_numbers = #tpu.dot_dimension_numbers<[1], [0], [0], [1], [0, 0, 1, 1], [], []>} : vector<128x32xbf16>, vector<32x32xbf16>, vector<128x32xf32> -> vector<128x32xf32>
    %74 = arith.addf %21, %73 : vector<128x32xf32>
    %cst_41 = arith.constant 0.000000e+00 : f32
    %75 = vector.broadcast %cst_41 : f32 to vector<128x32xf32>
    %c3_i32_42 = arith.constant 3 : i32
    %76 = arith.addi %1, %c3_i32_42 : i32
    %c-3_i32 = arith.constant -3 : i32
    %77 = arith.addi %76, %c-3_i32 : i32
    %c0_43 = arith.constant 0 : index
    %78 = arith.index_cast %77 : i32 to index
    %c0_44 = arith.constant 0 : index
    %c0_45 = arith.constant 0 : index
    %79 = vector.load %arg3[%c0_43, %78, %c0_44, %c0_45] : memref<1x22x22x8xbf16, #tpu.memory_space<vmem>>, vector<1x8x22x8xbf16>
    %80 = vector.shape_cast %79 : vector<1x8x22x8xbf16> to vector<8x22x8xbf16>
    %81 = vector.extract_strided_slice %80 {offsets = [0, 0, 0], sizes = [8, 16, 8], strides = [1, 1, 1]} : vector<8x22x8xbf16> to vector<8x16x8xbf16>
    %82 = vector.extract_strided_slice %80 {offsets = [0, 3, 0], sizes = [8, 16, 8], strides = [1, 1, 1]} : vector<8x22x8xbf16> to vector<8x16x8xbf16>
    %83 = vector.extract_strided_slice %80 {offsets = [0, 6, 0], sizes = [8, 16, 8], strides = [1, 1, 1]} : vector<8x22x8xbf16> to vector<8x16x8xbf16>
    %84 = tpu.concatenate %81, %82, %83 in 2 : vector<8x16x8xbf16>, vector<8x16x8xbf16>, vector<8x16x8xbf16> -> vector<8x16x24xbf16>
    %85 = vector.shape_cast %84 : vector<8x16x24xbf16> to vector<128x24xbf16>
    %c3_46 = arith.constant 3 : index
    %c0_47 = arith.constant 0 : index
    %c0_48 = arith.constant 0 : index
    %86 = vector.load %arg5[%c3_46, %c0_47, %c0_48] : memref<6x24x32xbf16, #tpu.memory_space<vmem>>, vector<1x24x32xbf16>
    %87 = vector.shape_cast %86 : vector<1x24x32xbf16> to vector<24x32xbf16>
    %cst_49 = arith.constant dense<0.000000e+00> : vector<128x32xf32>
    %88 = tpu.matmul %85, %87, %cst_49 {dimension_numbers = #tpu.dot_dimension_numbers<[1], [0], [0], [1], [0, 0, 1, 1], [], []>} : vector<128x24xbf16>, vector<24x32xbf16>, vector<128x32xf32> -> vector<128x32xf32>
    %89 = arith.addf %75, %88 : vector<128x32xf32>
    %c3_i32_50 = arith.constant 3 : i32
    %90 = arith.addi %1, %c3_i32_50 : i32
    %c0_i32_51 = arith.constant 0 : i32
    %91 = arith.addi %90, %c0_i32_51 : i32
    %c0_52 = arith.constant 0 : index
    %92 = arith.index_cast %91 : i32 to index
    %c0_53 = arith.constant 0 : index
    %c0_54 = arith.constant 0 : index
    %93 = vector.load %arg3[%c0_52, %92, %c0_53, %c0_54] : memref<1x22x22x8xbf16, #tpu.memory_space<vmem>>, vector<1x8x22x8xbf16>
    %94 = vector.shape_cast %93 : vector<1x8x22x8xbf16> to vector<8x22x8xbf16>
    %95 = vector.extract_strided_slice %94 {offsets = [0, 0, 0], sizes = [8, 16, 8], strides = [1, 1, 1]} : vector<8x22x8xbf16> to vector<8x16x8xbf16>
    %96 = vector.extract_strided_slice %94 {offsets = [0, 3, 0], sizes = [8, 16, 8], strides = [1, 1, 1]} : vector<8x22x8xbf16> to vector<8x16x8xbf16>
    %97 = vector.extract_strided_slice %94 {offsets = [0, 6, 0], sizes = [8, 16, 8], strides = [1, 1, 1]} : vector<8x22x8xbf16> to vector<8x16x8xbf16>
    %98 = tpu.concatenate %95, %96, %97 in 2 : vector<8x16x8xbf16>, vector<8x16x8xbf16>, vector<8x16x8xbf16> -> vector<8x16x24xbf16>
    %99 = vector.shape_cast %98 : vector<8x16x24xbf16> to vector<128x24xbf16>
    %c4 = arith.constant 4 : index
    %c0_55 = arith.constant 0 : index
    %c0_56 = arith.constant 0 : index
    %100 = vector.load %arg5[%c4, %c0_55, %c0_56] : memref<6x24x32xbf16, #tpu.memory_space<vmem>>, vector<1x24x32xbf16>
    %101 = vector.shape_cast %100 : vector<1x24x32xbf16> to vector<24x32xbf16>
    %cst_57 = arith.constant dense<0.000000e+00> : vector<128x32xf32>
    %102 = tpu.matmul %99, %101, %cst_57 {dimension_numbers = #tpu.dot_dimension_numbers<[1], [0], [0], [1], [0, 0, 1, 1], [], []>} : vector<128x24xbf16>, vector<24x32xbf16>, vector<128x32xf32> -> vector<128x32xf32>
    %103 = arith.addf %89, %102 : vector<128x32xf32>
    %c3_i32_58 = arith.constant 3 : i32
    %104 = arith.addi %1, %c3_i32_58 : i32
    %c3_i32_59 = arith.constant 3 : i32
    %105 = arith.addi %104, %c3_i32_59 : i32
    %c0_60 = arith.constant 0 : index
    %106 = arith.index_cast %105 : i32 to index
    %c0_61 = arith.constant 0 : index
    %c0_62 = arith.constant 0 : index
    %107 = vector.load %arg3[%c0_60, %106, %c0_61, %c0_62] : memref<1x22x22x8xbf16, #tpu.memory_space<vmem>>, vector<1x8x22x8xbf16>
    %108 = vector.shape_cast %107 : vector<1x8x22x8xbf16> to vector<8x22x8xbf16>
    %109 = vector.extract_strided_slice %108 {offsets = [0, 0, 0], sizes = [8, 16, 8], strides = [1, 1, 1]} : vector<8x22x8xbf16> to vector<8x16x8xbf16>
    %110 = vector.extract_strided_slice %108 {offsets = [0, 3, 0], sizes = [8, 16, 8], strides = [1, 1, 1]} : vector<8x22x8xbf16> to vector<8x16x8xbf16>
    %111 = vector.extract_strided_slice %108 {offsets = [0, 6, 0], sizes = [8, 16, 8], strides = [1, 1, 1]} : vector<8x22x8xbf16> to vector<8x16x8xbf16>
    %112 = tpu.concatenate %109, %110, %111 in 2 : vector<8x16x8xbf16>, vector<8x16x8xbf16>, vector<8x16x8xbf16> -> vector<8x16x24xbf16>
    %113 = vector.shape_cast %112 : vector<8x16x24xbf16> to vector<128x24xbf16>
    %c5 = arith.constant 5 : index
    %c0_63 = arith.constant 0 : index
    %c0_64 = arith.constant 0 : index
    %114 = vector.load %arg5[%c5, %c0_63, %c0_64] : memref<6x24x32xbf16, #tpu.memory_space<vmem>>, vector<1x24x32xbf16>
    %115 = vector.shape_cast %114 : vector<1x24x32xbf16> to vector<24x32xbf16>
    %cst_65 = arith.constant dense<0.000000e+00> : vector<128x32xf32>
    %116 = tpu.matmul %113, %115, %cst_65 {dimension_numbers = #tpu.dot_dimension_numbers<[1], [0], [0], [1], [0, 0, 1, 1], [], []>} : vector<128x24xbf16>, vector<24x32xbf16>, vector<128x32xf32> -> vector<128x32xf32>
    %117 = arith.addf %103, %116 : vector<128x32xf32>
    %c2_66 = arith.constant 2 : index
    %c0_67 = arith.constant 0 : index
    %118 = vector.load %arg7[%c2_66, %c0_67] : memref<3x32xf32, #tpu.memory_space<vmem>>, vector<1x32xf32>
    %119 = vector.broadcast %118 : vector<1x32xf32> to vector<128x32xf32>
    %120 = arith.addf %117, %119 : vector<128x32xf32>
    %cst_68 = arith.constant 0.000000e+00 : f32
    %121 = vector.broadcast %cst_68 : f32 to vector<128x32xf32>
    %122 = arith.maximumf %120, %121 : vector<128x32xf32>
    %123 = arith.truncf %122 : vector<128x32xf32> to vector<128x32xbf16>
    %c2_69 = arith.constant 2 : index
    %c0_70 = arith.constant 0 : index
    %c0_71 = arith.constant 0 : index
    %124 = vector.load %arg6[%c2_69, %c0_70, %c0_71] : memref<3x32x32xbf16, #tpu.memory_space<vmem>>, vector<1x32x32xbf16>
    %125 = vector.shape_cast %124 : vector<1x32x32xbf16> to vector<32x32xbf16>
    %cst_72 = arith.constant dense<0.000000e+00> : vector<128x32xf32>
    %126 = tpu.matmul %123, %125, %cst_72 {dimension_numbers = #tpu.dot_dimension_numbers<[1], [0], [0], [1], [0, 0, 1, 1], [], []>} : vector<128x32xbf16>, vector<32x32xbf16>, vector<128x32xf32> -> vector<128x32xf32>
    %127 = arith.addf %74, %126 : vector<128x32xf32>
    %cst_73 = arith.constant 0.000000e+00 : f32
    %128 = vector.broadcast %cst_73 : f32 to vector<128x32xf32>
    %129 = arith.maximumf %127, %128 : vector<128x32xf32>
    %130 = vector.shape_cast %129 : vector<128x32xf32> to vector<8x16x32xf32>
    %c0_74 = arith.constant 0 : index
    %c0_75 = arith.constant 0 : index
    %c0_76 = arith.constant 0 : index
    %c0_77 = arith.constant 0 : index
    %131 = vector.load %arg8[%c0_74, %c0_75, %c0_76, %c0_77] : memref<1x8x16x32xf32, #tpu.memory_space<vmem>>, vector<1x8x16x32xf32>
    %132 = vector.shape_cast %131 : vector<1x8x16x32xf32> to vector<8x16x32xf32>
    %133 = vector.shape_cast %130 : vector<8x16x32xf32> to vector<1x8x16x32xf32>
    tpu.vector_store %arg8[%c0_74, %c0_75, %c0_76, %c0_77], %133 {strides = array<i32>} : memref<1x8x16x32xf32, #tpu.memory_space<vmem>>, vector<1x8x16x32xf32>,
    return
  }
  func.func @transform_0(%arg0: i32, %arg1: i32) -> (i32, i32) {
    %c0_i32 = arith.constant 0 : i32
    %c0_i32_0 = arith.constant 0 : i32
    %c0_i32_1 = arith.constant 0 : i32
    return %c0_i32, %c0_i32_0 : i32, i32
  }
  func.func @transform_1(%arg0: i32, %arg1: i32) -> (i32, i32, i32, i32) {
    %c0_i32 = arith.constant 0 : i32
    %c0_i32_0 = arith.constant 0 : i32
    %c0_i32_1 = arith.constant 0 : i32
    %c0_i32_2 = arith.constant 0 : i32
    return %arg0, %c0_i32, %c0_i32_0, %c0_i32_1 : i32, i32, i32, i32
  }
  func.func @transform_2(%arg0: i32, %arg1: i32) -> (i32, i32) {
    %c0_i32 = arith.constant 0 : i32
    %c0_i32_0 = arith.constant 0 : i32
    %c0_i32_1 = arith.constant 0 : i32
    return %c0_i32, %c0_i32_0 : i32, i32
  }
  func.func @transform_3(%arg0: i32, %arg1: i32) -> (i32, i32, i32) {
    %c0_i32 = arith.constant 0 : i32
    %c0_i32_0 = arith.constant 0 : i32
    %c0_i32_1 = arith.constant 0 : i32
    %c0_i32_2 = arith.constant 0 : i32
    return %c0_i32, %c0_i32_0, %c0_i32_1 : i32, i32, i32
  }
  func.func @transform_4(%arg0: i32, %arg1: i32) -> (i32, i32, i32) {
    %c0_i32 = arith.constant 0 : i32
    %c0_i32_0 = arith.constant 0 : i32
    %c0_i32_1 = arith.constant 0 : i32
    %c0_i32_2 = arith.constant 0 : i32
    return %c0_i32, %c0_i32_0, %c0_i32_1 : i32, i32, i32
  }
  func.func @transform_5(%arg0: i32, %arg1: i32) -> (i32, i32) {
    %c0_i32 = arith.constant 0 : i32
    %c0_i32_0 = arith.constant 0 : i32
    %c0_i32_1 = arith.constant 0 : i32
    return %c0_i32, %c0_i32_0 : i32, i32
  }
  func.func @transform_6(%arg0: i32, %arg1: i32) -> (i32, i32, i32, i32) {
    %c0_i32 = arith.constant 0 : i32
    %c0_i32_0 = arith.constant 0 : i32
    %c0_i32_1 = arith.constant 0 : i32
    return %arg0, %arg1, %c0_i32, %c0_i32_0 : i32, i32, i32, i32
  }
}

</mosaic_0001>

<llo_original>
// kernel: tpu_custom_call.1
$region0: #{tpu_custom_call.1}
  #allocation0 [shape = 'u32[]', space=smem, size = 0x4, offset = 0x4, fixed_abs, tag = 'smem constant byte address 0x4 - core index']
  #allocation1 [shape = 'u32[144,128]{1,0:T(1,128)}', space=vmem, size = 0x12000, scoped, tag = 'internal scratch']
  %s0 = inlined_call_operand.vmem [shape: f32[2,32], index: 0, kind: input, shape index: {}]
  %s1 = inlined_call_operand.vmem [shape: bf16[2,22,22,8], index: 1, kind: input, shape index: {}]
  %s2 = inlined_call_operand.vmem [shape: bf16[8,32], index: 2, kind: input, shape index: {}]
  %s3 = inlined_call_operand.vmem [shape: bf16[6,24,32], index: 3, kind: input, shape index: {}]
  %s4 = inlined_call_operand.vmem [shape: bf16[3,32,32], index: 4, kind: input, shape index: {}]
  %s5 = inlined_call_operand.vmem [shape: f32[3,32], index: 5, kind: input, shape index: {}]
  %s6 = inlined_call_operand.hbm [shape: f32[2,16,16,32], index: 6, kind: output, shape index: {}]
  %s7 = sld [smem:[#allocation0]]
  $region57: #{tpu_custom_call.1} parent=0
    _
  %s9 = ssub.s32 1, %s7
  %s10 = scalar_select 0, %s9, %s7
  $region1: #{tpu_custom_call.1} parent=0
    #allocation2 [shape = 'u8[131072]{0}', space=vmem, size = 0x20000, scoped, tag = 'output window, operand 0']
    #allocation3 [shape = 's32[2]{0}', space=sflag, size = 0x8, scoped, tag = 'scoped memory for tpu_custom_call.1']
    %11 = vsyncpa [#allocation3], 0
    %s12 = scalar_lea.sflag [#allocation3], 1
    %13 = vsyncpa %s12, 0
    loop: start=0, step=1, limit=6
    $region2: #{tpu_custom_call.1} parent=1 // loop_pre_header
      _
    $region3: #{tpu_custom_call.1} parent=1 // loop_header
      %s15 = sphi 0, %s19
      %p16 = scmp.ge.s32.totalorder %s15, 6
      %s22 = sphi 0, %s34
      %s23 = sphi 0, %s30
      %s24 = sphi 0, %s22
      %s25 = sphi 0, %s23
      %s26 = sphi 0, %s24
      %s27 = sphi 0, %s25
      %s35 = sphi 0, %s35
      %s37 = sphi 0, %s35
      %s38 = sphi 0, %s37
      %s52 = sphi 0, %s38
      %s58 = sphi 0, %s60
      %s61 = sphi 0, %s58
      %s62 = sphi 0, %s61
      %s78 = sphi 0, %s62
      %s82 = sphi 0, %s82
      %s84 = sphi 0, %s82
      %s85 = sphi 0, %s84
      %s99 = sphi 0, %s85
      %s103 = sphi 0, %s103
      %s105 = sphi 0, %s103
      %s106 = sphi 0, %s105
      %s120 = sphi 0, %s106
      %s124 = sphi 0, %s124
      %s126 = sphi 0, %s124
      %s127 = sphi 0, %s126
      %s141 = sphi 0, %s127
      %s145 = sphi 0, %s145
      %s147 = sphi 0, %s145
      %s148 = sphi 0, %s147
      %s162 = sphi 0, %s148
      %s170 = sphi 0, %s172
      %s173 = sphi 0, %s170
      %s174 = sphi 0, %s173
      %s190 = sphi 0, %s174
    $region4: #{tpu_custom_call.1} parent=1 // loop_header_branch
      %18 = sbr.rel (%p16) target = $region8
    $region5: #{tpu_custom_call.1} parent=1 // loop_body
      %s20 = ssub.s32 %s15, 1
      %s21 = ssub.s32 %s15, 2
      %s28 = sadd.s32 1, %s23
      %p29 = scmp.ge.s32.totalorder %s28, 2
      %s30 = scalar_select %p29, 0, %s28
      %s31 = sadd.s32 1, %s22
      %s32 = scalar_select %p29, %s31, %s22
      %p33 = scmp.ge.s32.totalorder %s32, 2
      %s34 = scalar_select %p33, 0, %s32
      %s36 = sadd.s32 %s35, 1
      %p39 = scmp.eq.s32.totalorder %s15, 3
      %p40 = scmp.ne.s32.totalorder %s35, %s37
      %p41 = scmp.eq.s32.totalorder %s15, 0
      %p42 = por %p40, %p41
      %p43 = scmp.ne.s32.totalorder %s35, %s37
      %p44 = scmp.eq.s32.totalorder %s20, 3
      %p45 = por %p43, %p44
      %p46 = scmp.ne.s32.totalorder %s37, %s38
      %p47 = scmp.eq.s32.totalorder %s20, 0
      %p48 = por %p46, %p47
      %p49 = scmp.ne.s32.totalorder %s37, %s38
      %p50 = scmp.eq.s32.totalorder %s21, 3
      %p51 = por %p49, %p50
      %p53 = scmp.ne.s32.totalorder %s38, %s52
      %p54 = scmp.eq.s32.totalorder %s21, 0
      %p55 = por %p53, %p54
      %s56 = ssub.s32 %s22, %s34
      %p57 = scmp.eq.s32.totalorder %s56, 0
      %s59 = sadd.s32 %s58, 1
      %s60 = scalar_select %p57, %s58, %s59
      %p63 = pneg %p57
      %p64 = scmp.eq.s32.totalorder %s15, 3
      %p65 = por %p63, %p64
      %p66 = scmp.ne.s32.totalorder %s58, %s61
      %p67 = scmp.eq.s32.totalorder %s15, 0
      %p68 = por %p66, %p67
      %p69 = scmp.ne.s32.totalorder %s58, %s61
      %p70 = scmp.eq.s32.totalorder %s20, 3
      %p71 = por %p69, %p70
      %p72 = scmp.ne.s32.totalorder %s61, %s62
      %p73 = scmp.eq.s32.totalorder %s20, 0
      %p74 = por %p72, %p73
      %p75 = scmp.ne.s32.totalorder %s61, %s62
      %p76 = scmp.eq.s32.totalorder %s21, 3
      %p77 = por %p75, %p76
      %p79 = scmp.ne.s32.totalorder %s62, %s78
      %p80 = scmp.eq.s32.totalorder %s21, 0
      %p81 = por %p79, %p80
      %s83 = sadd.s32 %s82, 1
      %p86 = scmp.eq.s32.totalorder %s15, 3
      %p87 = scmp.ne.s32.totalorder %s82, %s84
      %p88 = scmp.eq.s32.totalorder %s15, 0
      %p89 = por %p87, %p88
      %p90 = scmp.ne.s32.totalorder %s82, %s84
      %p91 = scmp.eq.s32.totalorder %s20, 3
      %p92 = por %p90, %p91
      %p93 = scmp.ne.s32.totalorder %s84, %s85
      %p94 = scmp.eq.s32.totalorder %s20, 0
      %p95 = por %p93, %p94
      %p96 = scmp.ne.s32.totalorder %s84, %s85
      %p97 = scmp.eq.s32.totalorder %s21, 3
      %p98 = por %p96, %p97
      %p100 = scmp.ne.s32.totalorder %s85, %s99
      %p101 = scmp.eq.s32.totalorder %s21, 0
      %p102 = por %p100, %p101
      %s104 = sadd.s32 %s103, 1
      %p107 = scmp.eq.s32.totalorder %s15, 3
      %p108 = scmp.ne.s32.totalorder %s103, %s105
      %p109 = scmp.eq.s32.totalorder %s15, 0
      %p110 = por %p108, %p109
      %p111 = scmp.ne.s32.totalorder %s103, %s105
      %p112 = scmp.eq.s32.totalorder %s20, 3
      %p113 = por %p111, %p112
      %p114 = scmp.ne.s32.totalorder %s105, %s106
      %p115 = scmp.eq.s32.totalorder %s20, 0
      %p116 = por %p114, %p115
      %p117 = scmp.ne.s32.totalorder %s105, %s106
      %p118 = scmp.eq.s32.totalorder %s21, 3
      %p119 = por %p117, %p118
      %p121 = scmp.ne.s32.totalorder %s106, %s120
      %p122 = scmp.eq.s32.totalorder %s21, 0
      %p123 = por %p121, %p122
      %s125 = sadd.s32 %s124, 1
      %p128 = scmp.eq.s32.totalorder %s15, 3
      %p129 = scmp.ne.s32.totalorder %s124, %s126
      %p130 = scmp.eq.s32.totalorder %s15, 0
      %p131 = por %p129, %p130
      %p132 = scmp.ne.s32.totalorder %s124, %s126
      %p133 = scmp.eq.s32.totalorder %s20, 3
      %p134 = por %p132, %p133
      %p135 = scmp.ne.s32.totalorder %s126, %s127
      %p136 = scmp.eq.s32.totalorder %s20, 0
      %p137 = por %p135, %p136
      %p138 = scmp.ne.s32.totalorder %s126, %s127
      %p139 = scmp.eq.s32.totalorder %s21, 3
      %p140 = por %p138, %p139
      %p142 = scmp.ne.s32.totalorder %s127, %s141
      %p143 = scmp.eq.s32.totalorder %s21, 0
      %p144 = por %p142, %p143
      %s146 = sadd.s32 %s145, 1
      %p149 = scmp.eq.s32.totalorder %s15, 3
      %p150 = scmp.ne.s32.totalorder %s145, %s147
      %p151 = scmp.eq.s32.totalorder %s15, 0
      %p152 = por %p150, %p151
      %p153 = scmp.ne.s32.totalorder %s145, %s147
      %p154 = scmp.eq.s32.totalorder %s20, 3
      %p155 = por %p153, %p154
      %p156 = scmp.ne.s32.totalorder %s147, %s148
      %p157 = scmp.eq.s32.totalorder %s20, 0
      %p158 = por %p156, %p157
      %p159 = scmp.ne.s32.totalorder %s147, %s148
      %p160 = scmp.eq.s32.totalorder %s21, 3
      %p161 = por %p159, %p160
      %p163 = scmp.ne.s32.totalorder %s148, %s162
      %p164 = scmp.eq.s32.totalorder %s21, 0
      %p165 = por %p163, %p164
      %s166 = ssub.s32 %s22, %s34
      %s167 = ssub.s32 %s23, %s30
      %s168 = sor.u32 %s166, %s167
      %p169 = scmp.eq.s32.totalorder %s168, 0
      %s171 = sadd.s32 %s170, 1
      %s172 = scalar_select %p169, %s170, %s171
      %p175 = pneg %p169
      %p176 = scmp.eq.s32.totalorder %s15, 3
      %p177 = por %p175, %p176
      %p178 = scmp.ne.s32.totalorder %s170, %s173
      %p179 = scmp.eq.s32.totalorder %s15, 0
      %p180 = por %p178, %p179
      %p181 = scmp.ne.s32.totalorder %s170, %s173
      %p182 = scmp.eq.s32.totalorder %s20, 3
      %p183 = por %p181, %p182
      %p184 = scmp.ne.s32.totalorder %s173, %s174
      %p185 = scmp.eq.s32.totalorder %s20, 0
      %p186 = por %p184, %p185
      %p187 = scmp.ne.s32.totalorder %s173, %s174
      %p188 = scmp.eq.s32.totalorder %s21, 3
      %p189 = por %p187, %p188
      %p191 = scmp.ne.s32.totalorder %s174, %s190
      %p192 = scmp.eq.s32.totalorder %s21, 0
      %p193 = por %p191, %p192
      %p194 = scmp.le.s32.totalorder 1, %s15
      %p195 = scmp.lt.s32.totalorder %s15, 5
      %p196 = pnand %p194, %p195
      %p197 = pneg %p196
      // Predicated region
      $region9: #{tpu_custom_call.1} parent=5 // pred_check
        _
      $region10: #{tpu_custom_call.1} parent=5 // pred_check_branch
        %199 = sbr.rel (%p196) target = $region12
      $region11: #{tpu_custom_call.1} parent=5 // pred_region
        %s200 = ssub.s32 %s15, 1
        // Predicated region
        $region13: #{tpu_custom_call.1} parent=11 // pred_check
          %p201 = pneg %p48
        $region14: #{tpu_custom_call.1} parent=11 // pred_check_branch
          %203 = sbr.rel (%p201) target = $region16
        $region15: #{tpu_custom_call.1} parent=11 // pred_region
          _
        $region16: #{tpu_custom_call.1} parent=11 // pred_fallthru
          _
        // Predicated region
        $region17: #{tpu_custom_call.1} parent=11 // pred_check
          %p204 = pneg %p74
        $region18: #{tpu_custom_call.1} parent=11 // pred_check_branch
          %206 = sbr.rel (%p204) target = $region20
        $region19: #{tpu_custom_call.1} parent=11 // pred_region
          %p207 = scmp.lt.s32.totalorder %s24, 1
          %s208 = scalar_select %p207, %s24, 1
          %s209 = smul.addr %s208, 66
          %s210 = smul.addr %s209, 4
          %s211 = scalar_lea.vmem %s1, %s210
        $region20: #{tpu_custom_call.1} parent=11 // pred_fallthru
          _
        // Predicated region
        $region21: #{tpu_custom_call.1} parent=11 // pred_check
          %p212 = pneg %p95
        $region22: #{tpu_custom_call.1} parent=11 // pred_check_branch
          %214 = sbr.rel (%p212) target = $region24
        $region23: #{tpu_custom_call.1} parent=11 // pred_region
          _
        $region24: #{tpu_custom_call.1} parent=11 // pred_fallthru
          _
        // Predicated region
        $region25: #{tpu_custom_call.1} parent=11 // pred_check
          %p215 = pneg %p116
        $region26: #{tpu_custom_call.1} parent=11 // pred_check_branch
          %217 = sbr.rel (%p215) target = $region28
        $region27: #{tpu_custom_call.1} parent=11 // pred_region
          _
        $region28: #{tpu_custom_call.1} parent=11 // pred_fallthru
          _
        // Predicated region
        $region29: #{tpu_custom_call.1} parent=11 // pred_check
          %p218 = pneg %p137
        $region30: #{tpu_custom_call.1} parent=11 // pred_check_branch
          %220 = sbr.rel (%p218) target = $region32
        $region31: #{tpu_custom_call.1} parent=11 // pred_region
          _
        $region32: #{tpu_custom_call.1} parent=11 // pred_fallthru
          _
        // Predicated region
        $region33: #{tpu_custom_call.1} parent=11 // pred_check
          %p221 = pneg %p158
        $region34: #{tpu_custom_call.1} parent=11 // pred_check_branch
          %223 = sbr.rel (%p221) target = $region36
        $region35: #{tpu_custom_call.1} parent=11 // pred_region
          _
        $region36: #{tpu_custom_call.1} parent=11 // pred_fallthru
          _
      $region12: #{tpu_custom_call.1} parent=5 // pred_fallthru
        _
      %p224 = scmp.lt.s32.totalorder %s15, 4
      // Predicated region
      $region37: #{tpu_custom_call.1} parent=5 // pred_check
        %p225 = pneg %p224
      $region38: #{tpu_custom_call.1} parent=5 // pred_check_branch
        %227 = sbr.rel (%p225) target = $region40
      $region39: #{tpu_custom_call.1} parent=5 // pred_region
        _
      $region40: #{tpu_custom_call.1} parent=5 // pred_fallthru
        _
      %p228 = scmp.le.s32.totalorder 1, %s15
      %p229 = scmp.lt.s32.totalorder %s15, 5
      %p230 = pnand %p228, %p229
      %p231 = pneg %p230
      // Predicated region
      $region41: #{tpu_custom_call.1} parent=5 // pred_check
        _
      $region42: #{tpu_custom_call.1} parent=5 // pred_check_branch
        %233 = sbr.rel (%p230) target = $region44
      $region43: #{tpu_custom_call.1} parent=5 // pred_region
        %s234 = ssub.s32 %s15, 1
        %p235 = pneg %p48
        %p236 = pneg %p45
        %p237 = scmp.lt.s32.totalorder %s24, 1
        %s238 = scalar_select %p237, %s24, 1
        %s239 = smul.addr %s238, 66
        %s240 = smul.addr %s239, 4
        %s241 = scalar_lea.vmem %s1, %s240
        %p242 = pneg %p74
        %p243 = pneg %p71
        %p244 = pneg %p95
        %p245 = pneg %p92
        %p246 = pneg %p116
        %p247 = pneg %p113
        %p248 = pneg %p137
        %p249 = pneg %p134
        %p250 = pneg %p158
        %p251 = pneg %p155
        %p252 = pneg %p186
        %p253 = pneg %p183
        %s254 = sand.u32 %s173, 1
        %s255 = scalar_lea.sflag [#allocation3], %s254
        %s256 = sand.u32 %s173, 1
        %s257 = smul.addr %s256, 128
        %s258 = scalar_lea.vmem [#allocation2], %s257
        %p259 = scmp.lt.s32.totalorder %s24, 1
        %s260 = scalar_select %p259, %s24, 1
        %s261 = smul.addr %s260, 66
        %s262 = smul.addr %s261, 4
        %s263 = scalar_lea.vmem %s1, %s262
        %s264 = smul.u32 8, %s25
        %s266 = smul.u32 %s25, 8
        %s267 = scalar_lea.vmem %s0, %s24
        %v268 = vld [vmem:[%s267] sm:$0x1]
        %s269 = sadd.s32 %s266, 3
        %s270 = smul.u32 %s269, 3
        %s271 = smul.addr %s270, 4
        %s272 = scalar_lea.vmem %s263, %s271
        %v273 = vld [vmem:[%s272] sm:$0xe]
        %v274 = vld [vmem:[%s272 + $0x4] sm:$0xf]
        %v275 = vld [vmem:[%s272 + $0x8] sm:$0x3]
        %v276 = vld [vmem:[%s272 + $0xc] sm:$0xe]
        %v277 = vld [vmem:[%s272 + $0x10] sm:$0xf]
        %v278 = vld [vmem:[%s272 + $0x14] sm:$0x3]
        %v279 = vld [vmem:[%s272 + $0x18] sm:$0xe]
        %v280 = vld [vmem:[%s272 + $0x1c] sm:$0xf]
        %v281 = vld [vmem:[%s272 + $0x20] sm:$0x3]
        %v282 = vld [vmem:[%s272 + $0x24] sm:$0xe]
        %v283 = vld [vmem:[%s272 + $0x28] sm:$0xf]
        %v284 = vld [vmem:[%s272 + $0x2c] sm:$0x3]
        %v285 = vld [vmem:[%s272 + $0x30] sm:$0xe]
        %v286 = vld [vmem:[%s272 + $0x34] sm:$0xf]
        %v287 = vld [vmem:[%s272 + $0x38] sm:$0x3]
        %v288 = vld [vmem:[%s272 + $0x3c] sm:$0xe]
        %v289 = vld [vmem:[%s272 + $0x40] sm:$0xf]
        %v290 = vld [vmem:[%s272 + $0x44] sm:$0x3]
        %v291 = vld [vmem:[%s272 + $0x48] sm:$0xe]
        %v292 = vld [vmem:[%s272 + $0x4c] sm:$0xf]
        %v293 = vld [vmem:[%s272 + $0x50] sm:$0x3]
        %v294 = vld [vmem:[%s272 + $0x54] sm:$0xe]
        %v295 = vld [vmem:[%s272 + $0x58] sm:$0xf]
        %v296 = vld [vmem:[%s272 + $0x5c] sm:$0x3]
        %vm297 = vsmask.f32 2304
        %vm298 = vsmask.f32 6416
        %vm299 = vmor %vm297, %vm298
        %v301 = vshrl.u32 %v273, 16
        %v303 = vrot.slane %v301, 5
        %v304 = vshll.u32 %v273, 16
        %v306 = vrot.slane %v304, 6
        %v307 = vor.u32 %v303, %v306
        %v308 = vrot.slane %v307, 4
        %v310 = vshrl.u32 %v274, 16
        %v312 = vrot.slane %v310, 5
        %v313 = vshll.u32 %v274, 16
        %v315 = vrot.slane %v313, 6
        %v316 = vor.u32 %v312, %v315
        %v317 = vsel %vm299, %v308, %v316
        %v318 = vrot.slane %v316, 4
        %v320 = vshrl.u32 %v275, 16
        %v322 = vrot.slane %v320, 5
        %v323 = vshll.u32 %v275, 16
        %v325 = vrot.slane %v323, 6
        %v326 = vor.u32 %v322, %v325
        %v327 = vsel %vm299, %v318, %v326
        %v329 = vshrl.u32 %v276, 16
        %v331 = vrot.slane %v329, 5
        %v332 = vshll.u32 %v276, 16
        %v334 = vrot.slane %v332, 6
        %v335 = vor.u32 %v331, %v334
        %v336 = vrot.slane %v335, 4
        %v338 = vshrl.u32 %v277, 16
        %v340 = vrot.slane %v338, 5
        %v341 = vshll.u32 %v277, 16
        %v343 = vrot.slane %v341, 6
        %v344 = vor.u32 %v340, %v343
        %v345 = vsel %vm299, %v336, %v344
        %v346 = vrot.slane %v344, 4
        %v348 = vshrl.u32 %v278, 16
        %v350 = vrot.slane %v348, 5
        %v351 = vshll.u32 %v278, 16
        %v353 = vrot.slane %v351, 6
        %v354 = vor.u32 %v350, %v353
        %v355 = vsel %vm299, %v346, %v354
        %v357 = vshrl.u32 %v279, 16
        %v359 = vrot.slane %v357, 5
        %v360 = vshll.u32 %v279, 16
        %v362 = vrot.slane %v360, 6
        %v363 = vor.u32 %v359, %v362
        %v364 = vrot.slane %v363, 4
        %v366 = vshrl.u32 %v280, 16
        %v368 = vrot.slane %v366, 5
        %v369 = vshll.u32 %v280, 16
        %v371 = vrot.slane %v369, 6
        %v372 = vor.u32 %v368, %v371
        %v373 = vsel %vm299, %v364, %v372
        %v374 = vrot.slane %v372, 4
        %v376 = vshrl.u32 %v281, 16
        %v378 = vrot.slane %v376, 5
        %v379 = vshll.u32 %v281, 16
        %v381 = vrot.slane %v379, 6
        %v382 = vor.u32 %v378, %v381
        %v383 = vsel %vm299, %v374, %v382
        %v385 = vshrl.u32 %v282, 16
        %v387 = vrot.slane %v385, 5
        %v388 = vshll.u32 %v282, 16
        %v390 = vrot.slane %v388, 6
        %v391 = vor.u32 %v387, %v390
        %v392 = vrot.slane %v391, 4
        %v394 = vshrl.u32 %v283, 16
        %v396 = vrot.slane %v394, 5
        %v397 = vshll.u32 %v283, 16
        %v399 = vrot.slane %v397, 6
        %v400 = vor.u32 %v396, %v399
        %v401 = vsel %vm299, %v392, %v400
        %v402 = vrot.slane %v400, 4
        %v404 = vshrl.u32 %v284, 16
        %v406 = vrot.slane %v404, 5
        %v407 = vshll.u32 %v284, 16
        %v409 = vrot.slane %v407, 6
        %v410 = vor.u32 %v406, %v409
        %v411 = vsel %vm299, %v402, %v410
        %v413 = vshrl.u32 %v285, 16
        %v415 = vrot.slane %v413, 5
        %v416 = vshll.u32 %v285, 16
        %v418 = vrot.slane %v416, 6
        %v419 = vor.u32 %v415, %v418
        %v420 = vrot.slane %v419, 4
        %v422 = vshrl.u32 %v286, 16
        %v424 = vrot.slane %v422, 5
        %v425 = vshll.u32 %v286, 16
        %v427 = vrot.slane %v425, 6
        %v428 = vor.u32 %v424, %v427
        %v429 = vsel %vm299, %v420, %v428
        %v430 = vrot.slane %v428, 4
        %v432 = vshrl.u32 %v287, 16
        %v434 = vrot.slane %v432, 5
        %v435 = vshll.u32 %v287, 16
        %v437 = vrot.slane %v435, 6
        %v438 = vor.u32 %v434, %v437
        %v439 = vsel %vm299, %v430, %v438
        %v441 = vshrl.u32 %v288, 16
        %v443 = vrot.slane %v441, 5
        %v444 = vshll.u32 %v288, 16
        %v446 = vrot.slane %v444, 6
        %v447 = vor.u32 %v443, %v446
        %v448 = vrot.slane %v447, 4
        %v450 = vshrl.u32 %v289, 16
        %v452 = vrot.slane %v450, 5
        %v453 = vshll.u32 %v289, 16
        %v455 = vrot.slane %v453, 6
        %v456 = vor.u32 %v452, %v455
        %v457 = vsel %vm299, %v448, %v456
        %v458 = vrot.slane %v456, 4
        %v460 = vshrl.u32 %v290, 16
        %v462 = vrot.slane %v460, 5
        %v463 = vshll.u32 %v290, 16
        %v465 = vrot.slane %v463, 6
        %v466 = vor.u32 %v462, %v465
        %v467 = vsel %vm299, %v458, %v466
        %v469 = vshrl.u32 %v291, 16
        %v471 = vrot.slane %v469, 5
        %v472 = vshll.u32 %v291, 16
        %v474 = vrot.slane %v472, 6
        %v475 = vor.u32 %v471, %v474
        %v476 = vrot.slane %v475, 4
        %v478 = vshrl.u32 %v292, 16
        %v480 = vrot.slane %v478, 5
        %v481 = vshll.u32 %v292, 16
        %v483 = vrot.slane %v481, 6
        %v484 = vor.u32 %v480, %v483
        %v485 = vsel %vm299, %v476, %v484
        %v486 = vrot.slane %v484, 4
        %v488 = vshrl.u32 %v293, 16
        %v490 = vrot.slane %v488, 5
        %v491 = vshll.u32 %v293, 16
        %v493 = vrot.slane %v491, 6
        %v494 = vor.u32 %v490, %v493
        %v495 = vsel %vm299, %v486, %v494
        %v497 = vshrl.u32 %v294, 16
        %v499 = vrot.slane %v497, 5
        %v500 = vshll.u32 %v294, 16
        %v502 = vrot.slane %v500, 6
        %v503 = vor.u32 %v499, %v502
        %v504 = vrot.slane %v503, 4
        %v506 = vshrl.u32 %v295, 16
        %v508 = vrot.slane %v506, 5
        %v509 = vshll.u32 %v295, 16
        %v511 = vrot.slane %v509, 6
        %v512 = vor.u32 %v508, %v511
        %v513 = vsel %vm299, %v504, %v512
        %v514 = vrot.slane %v512, 4
        %v516 = vshrl.u32 %v296, 16
        %v518 = vrot.slane %v516, 5
        %v519 = vshll.u32 %v296, 16
        %v521 = vrot.slane %v519, 6
        %v522 = vor.u32 %v518, %v521
        %v523 = vsel %vm299, %v514, %v522
        %v524 = vld [vmem:[%s2] sm:$0xf]
        %v525 = vld [vmem:[%s5] sm:$0x1]
        %v526 = vlaneseq
        %v527 = vshrl.u32 %v526, 7
        %v528 = vsub.s32 0, %v527
        %v529 = vrot.slane %v525, %v528
        %v530 = vunpack.c.l.b16 %v317
        %v531 = vunpack.c.l.b16 %v327
        %v532 = vunpack.c.l.b16 %v345
        %v533 = vunpack.c.l.b16 %v355
        %v534 = vunpack.c.l.b16 %v373
        %v535 = vunpack.c.l.b16 %v383
        %v536 = vunpack.c.l.b16 %v401
        %v537 = vunpack.c.l.b16 %v411
        %v538 = vunpack.c.l.b16 %v429
        %v539 = vunpack.c.l.b16 %v439
        %v540 = vunpack.c.l.b16 %v457
        %v541 = vunpack.c.l.b16 %v467
        %v542 = vunpack.c.l.b16 %v485
        %v543 = vunpack.c.l.b16 %v495
        %v544 = vunpack.c.l.b16 %v513
        %v545 = vunpack.c.l.b16 %v523
        %v546 = vpack.c.b16 %v531, %v530
        %v547 = vpack.c.b16 %v533, %v532
        %v548 = vpack.c.b16 %v535, %v534
        %v549 = vpack.c.b16 %v537, %v536
        %v550 = vpack.c.b16 %v539, %v538
        %v551 = vpack.c.b16 %v541, %v540
        %v552 = vpack.c.b16 %v543, %v542
        %v553 = vpack.c.b16 %v545, %v544
        %vm554 = vcmask 64512
        %v556 = vsel %vm554, %v546, 0
        %v559 = vsel %vm554, %v547, 0
        %v562 = vsel %vm554, %v548, 0
        %v565 = vsel %vm554, %v549, 0
        %v568 = vsel %vm554, %v550, 0
        %v571 = vsel %vm554, %v551, 0
        %v574 = vsel %vm554, %v552, 0
        %v577 = vsel %vm554, %v553, 0
        %vm579 = vcmask 1043456
        %v581 = vsel %vm579, %v524, 0
        %583 = vmatprep.subr.bf16.mxu0 0
        %584 = vmatpush1.bf16.msra.mxu0 0
        %585 = vmatprep.subr.bf16.mxu0 0
        %586 = vmatpush1.bf16.msra.mxu0 0
        %587 = vmatprep.subr.bf16.mxu0 0
        %588 = vmatpush1.bf16.msra.mxu0 0
        %589 = vmatprep.subr.bf16.mxu0 0
        %590 = vmatpush1.bf16.msra.mxu0 0
        %591 = vmatprep.subr.bf16.mxu0 0
        %592 = vmatpush1.bf16.msra.mxu0 0
        %593 = vmatprep.subr.bf16.mxu0 0
        %594 = vmatpush1.bf16.msra.mxu0 0
        %595 = vmatprep.subr.bf16.mxu0 0
        %596 = vmatpush1.bf16.msra.mxu0 0
        %597 = vmatprep.subr.bf16.mxu0 0
        %598 = vmatpush1.bf16.msra.mxu0 %v581
        %599 = vmatprep.subr.bf16.mxu0 0
        %600 = vmatpush2.bf16.msra.mxu0 0
        %601 = vmatprep.subr.bf16.mxu0 0
        %602 = vmatpush2.bf16.msra.mxu0 0
        %603 = vmatprep.subr.bf16.mxu0 0
        %604 = vmatpush2.bf16.msra.mxu0 0
        %605 = vmatprep.subr.bf16.mxu0 0
        %606 = vmatpush2.bf16.msra.mxu0 0
        %607 = vmatprep.subr.bf16.mxu0 0
        %608 = vmatpush2.bf16.msra.mxu0 0
        %609 = vmatprep.subr.bf16.mxu0 0
        %610 = vmatpush2.bf16.msra.mxu0 0
        %611 = vmatprep.subr.bf16.mxu0 0
        %612 = vmatpush2.bf16.msra.mxu0 0
        %613 = vmatprep.subr.bf16.mxu0 0
        %614 = vmatpush2.bf16.msra.mxu0 0
        %615 = vmatprep.mubr.bf16.mxu0 0
        %616 = vmatmul.mubr.bf16.gmra.mxu0 %v556
        %v617 = vpop.f32.mrf.mxu0
        %v618 = vadd.f32 %v529, %v617
        %v619 = vpop.f32.mrf.mxu0
        %v620 = vpop.f32.mrf.mxu0
        %v621 = vadd.f32 %v529, %v620
        %v622 = vpop.f32.mrf.mxu0
        %623 = vmatprep.mubr.bf16.mxu0 0
        %624 = vmatmul.mubr.bf16.gmra.mxu0 %v559
        %v625 = vpop.f32.mrf.mxu0
        %v626 = vadd.f32 %v529, %v625
        %v627 = vpop.f32.mrf.mxu0
        %v628 = vpop.f32.mrf.mxu0
        %v629 = vadd.f32 %v529, %v628
        %v630 = vpop.f32.mrf.mxu0
        %631 = vmatprep.mubr.bf16.mxu0 0
        %632 = vmatmul.mubr.bf16.gmra.mxu0 %v562
        %v633 = vpop.f32.mrf.mxu0
        %v634 = vadd.f32 %v529, %v633
        %v635 = vpop.f32.mrf.mxu0
        %v636 = vpop.f32.mrf.mxu0
        %v637 = vadd.f32 %v529, %v636
        %v638 = vpop.f32.mrf.mxu0
        %639 = vmatprep.mubr.bf16.mxu0 0
        %640 = vmatmul.mubr.bf16.gmra.mxu0 %v565
        %v641 = vpop.f32.mrf.mxu0
        %v642 = vadd.f32 %v529, %v641
        %v643 = vpop.f32.mrf.mxu0
        %v644 = vpop.f32.mrf.mxu0
        %v645 = vadd.f32 %v529, %v644
        %v646 = vpop.f32.mrf.mxu0
        %647 = vmatprep.mubr.bf16.mxu0 0
        %648 = vmatmul.mubr.bf16.gmra.mxu0 %v568
        %v649 = vpop.f32.mrf.mxu0
        %v650 = vadd.f32 %v529, %v649
        %v651 = vpop.f32.mrf.mxu0
        %v652 = vpop.f32.mrf.mxu0
        %v653 = vadd.f32 %v529, %v652
        %v654 = vpop.f32.mrf.mxu0
        %655 = vmatprep.mubr.bf16.mxu0 0
        %656 = vmatmul.mubr.bf16.gmra.mxu0 %v571
        %v657 = vpop.f32.mrf.mxu0
        %v658 = vadd.f32 %v529, %v657
        %v659 = vpop.f32.mrf.mxu0
        %v660 = vpop.f32.mrf.mxu0
        %v661 = vadd.f32 %v529, %v660
        %v662 = vpop.f32.mrf.mxu0
        %663 = vmatprep.mubr.bf16.mxu0 0
        %664 = vmatmul.mubr.bf16.gmra.mxu0 %v574
        %v665 = vpop.f32.mrf.mxu0
        %v666 = vadd.f32 %v529, %v665
        %v667 = vpop.f32.mrf.mxu0
        %v668 = vpop.f32.mrf.mxu0
        %v669 = vadd.f32 %v529, %v668
        %v670 = vpop.f32.mrf.mxu0
        %671 = vmatprep.mubr.bf16.mxu0 0
        %672 = vmatmul.mubr.bf16.gmra.mxu0 %v577
        %v673 = vpop.f32.mrf.mxu0
        %v674 = vadd.f32 %v529, %v673
        %v675 = vpop.f32.mrf.mxu0
        %v676 = vpop.f32.mrf.mxu0
        %v677 = vadd.f32 %v529, %v676
        %v678 = vpop.f32.mrf.mxu0
        %679 = vdwg.mxu0
        %v680 = vmax.f32 %v618, 0.0
        %v681 = vmax.f32 %v621, 0.0
        %v682 = vmax.f32 %v626, 0.0
        %v683 = vmax.f32 %v629, 0.0
        %v684 = vmax.f32 %v634, 0.0
        %v685 = vmax.f32 %v637, 0.0
        %v686 = vmax.f32 %v642, 0.0
        %v687 = vmax.f32 %v645, 0.0
        %v688 = vmax.f32 %v650, 0.0
        %v689 = vmax.f32 %v653, 0.0
        %v690 = vmax.f32 %v658, 0.0
        %v691 = vmax.f32 %v661, 0.0
        %v692 = vmax.f32 %v666, 0.0
        %v693 = vmax.f32 %v669, 0.0
        %v694 = vmax.f32 %v674, 0.0
        %v695 = vmax.f32 %v677, 0.0
        %v696 = vpack.c.bf16 %v681, %v680
        %v697 = vpack.c.bf16 %v683, %v682
        %v698 = vpack.c.bf16 %v685, %v684
        %v699 = vpack.c.bf16 %v687, %v686
        %v700 = vpack.c.bf16 %v689, %v688
        %v701 = vpack.c.bf16 %v691, %v690
        %v702 = vpack.c.bf16 %v693, %v692
        %v703 = vpack.c.bf16 %v695, %v694
        %v704 = vld [vmem:[%s4] sm:$0xf]
        %v705 = vld [vmem:[%s4 + $0x4] sm:$0xf]
        %v706 = vld [vmem:[%s4 + $0x8] sm:$0xf]
        %v707 = vld [vmem:[%s4 + $0xc] sm:$0xf]
        %v712 = vunpack.c.l.b16 %v704
        %v713 = vunpack.c.l.b16 %v705
        %v714 = vunpack.c.l.b16 %v706
        %v715 = vunpack.c.l.b16 %v707
        %v716 = vpack.c.b16 %v713, %v712
        %v717 = vpack.c.b16 %v715, %v714
        %vm720 = vcmask 261120
        %v722 = vsel %vm720, %v696, 0
        %v725 = vsel %vm720, %v697, 0
        %v728 = vsel %vm720, %v698, 0
        %v731 = vsel %vm720, %v699, 0
        %v734 = vsel %vm720, %v700, 0
        %v737 = vsel %vm720, %v701, 0
        %v740 = vsel %vm720, %v702, 0
        %v743 = vsel %vm720, %v703, 0
        %745 = vmatprep.subr.bf16.mxu0 0
        %746 = vmatpush1.bf16.msra.mxu0 0
        %747 = vmatprep.subr.bf16.mxu0 0
        %748 = vmatpush1.bf16.msra.mxu0 0
        %749 = vmatprep.subr.bf16.mxu0 0
        %750 = vmatpush1.bf16.msra.mxu0 0
        %751 = vmatprep.subr.bf16.mxu0 0
        %752 = vmatpush1.bf16.msra.mxu0 0
        %753 = vmatprep.subr.bf16.mxu0 0
        %754 = vmatpush1.bf16.msra.mxu0 0
        %755 = vmatprep.subr.bf16.mxu0 0
        %756 = vmatpush1.bf16.msra.mxu0 0
        %757 = vmatprep.subr.bf16.mxu0 0
        %758 = vmatpush1.bf16.msra.mxu0 %v717
        %759 = vmatprep.subr.bf16.mxu0 0
        %760 = vmatpush1.bf16.msra.mxu0 %v716
        %761 = vmatprep.subr.bf16.mxu0 0
        %762 = vmatpush2.bf16.msra.mxu0 0
        %763 = vmatprep.subr.bf16.mxu0 0
        %764 = vmatpush2.bf16.msra.mxu0 0
        %765 = vmatprep.subr.bf16.mxu0 0
        %766 = vmatpush2.bf16.msra.mxu0 0
        %767 = vmatprep.subr.bf16.mxu0 0
        %768 = vmatpush2.bf16.msra.mxu0 0
        %769 = vmatprep.subr.bf16.mxu0 0
        %770 = vmatpush2.bf16.msra.mxu0 0
        %771 = vmatprep.subr.bf16.mxu0 0
        %772 = vmatpush2.bf16.msra.mxu0 0
        %773 = vmatprep.subr.bf16.mxu0 0
        %774 = vmatpush2.bf16.msra.mxu0 0
        %775 = vmatprep.subr.bf16.mxu0 0
        %776 = vmatpush2.bf16.msra.mxu0 0
        %777 = vmatprep.mubr.bf16.mxu0 0
        %778 = vmatmul.mubr.bf16.gmra.mxu0 %v722
        %v779 = vpop.f32.mrf.mxu0
        %v780 = vadd.f32 0.0, %v779
        %v781 = vpop.f32.mrf.mxu0
        %v782 = vpop.f32.mrf.mxu0
        %v783 = vadd.f32 0.0, %v782
        %v784 = vpop.f32.mrf.mxu0
        %785 = vmatprep.mubr.bf16.mxu0 0
        %786 = vmatmul.mubr.bf16.gmra.mxu0 %v725
        %v787 = vpop.f32.mrf.mxu0
        %v788 = vadd.f32 0.0, %v787
        %v789 = vpop.f32.mrf.mxu0
        %v790 = vpop.f32.mrf.mxu0
        %v791 = vadd.f32 0.0, %v790
        %v792 = vpop.f32.mrf.mxu0
        %793 = vmatprep.mubr.bf16.mxu0 0
        %794 = vmatmul.mubr.bf16.gmra.mxu0 %v728
        %v795 = vpop.f32.mrf.mxu0
        %v796 = vadd.f32 0.0, %v795
        %v797 = vpop.f32.mrf.mxu0
        %v798 = vpop.f32.mrf.mxu0
        %v799 = vadd.f32 0.0, %v798
        %v800 = vpop.f32.mrf.mxu0
        %801 = vmatprep.mubr.bf16.mxu0 0
        %802 = vmatmul.mubr.bf16.gmra.mxu0 %v731
        %v803 = vpop.f32.mrf.mxu0
        %v804 = vadd.f32 0.0, %v803
        %v805 = vpop.f32.mrf.mxu0
        %v806 = vpop.f32.mrf.mxu0
        %v807 = vadd.f32 0.0, %v806
        %v808 = vpop.f32.mrf.mxu0
        %809 = vmatprep.mubr.bf16.mxu0 0
        %810 = vmatmul.mubr.bf16.gmra.mxu0 %v734
        %v811 = vpop.f32.mrf.mxu0
        %v812 = vadd.f32 0.0, %v811
        %v813 = vpop.f32.mrf.mxu0
        %v814 = vpop.f32.mrf.mxu0
        %v815 = vadd.f32 0.0, %v814
        %v816 = vpop.f32.mrf.mxu0
        %817 = vmatprep.mubr.bf16.mxu0 0
        %818 = vmatmul.mubr.bf16.gmra.mxu0 %v737
        %v819 = vpop.f32.mrf.mxu0
        %v820 = vadd.f32 0.0, %v819
        %v821 = vpop.f32.mrf.mxu0
        %v822 = vpop.f32.mrf.mxu0
        %v823 = vadd.f32 0.0, %v822
        %v824 = vpop.f32.mrf.mxu0
        %825 = vmatprep.mubr.bf16.mxu0 0
        %826 = vmatmul.mubr.bf16.gmra.mxu0 %v740
        %v827 = vpop.f32.mrf.mxu0
        %v828 = vadd.f32 0.0, %v827
        %v829 = vpop.f32.mrf.mxu0
        %v830 = vpop.f32.mrf.mxu0
        %v831 = vadd.f32 0.0, %v830
        %v832 = vpop.f32.mrf.mxu0
        %833 = vmatprep.mubr.bf16.mxu0 0
        %834 = vmatmul.mubr.bf16.gmra.mxu0 %v743
        %v835 = vpop.f32.mrf.mxu0
        %v836 = vadd.f32 0.0, %v835
        %v837 = vpop.f32.mrf.mxu0
        %v838 = vpop.f32.mrf.mxu0
        %v839 = vadd.f32 0.0, %v838
        %v840 = vpop.f32.mrf.mxu0
        %841 = vdwg.mxu0
        %v842 = vlaneseq
        %v843 = vshrl.u32 %v842, 7
        %v844 = vsub.s32 0, %v843
        %v845 = vrot.slane %v268, %v844
        %v846 = vadd.f32 %v845, %v780
        %v847 = vadd.f32 %v845, %v783
        %v848 = vadd.f32 %v845, %v788
        %v849 = vadd.f32 %v845, %v791
        %v850 = vadd.f32 %v845, %v796
        %v851 = vadd.f32 %v845, %v799
        %v852 = vadd.f32 %v845, %v804
        %v853 = vadd.f32 %v845, %v807
        %v854 = vadd.f32 %v845, %v812
        %v855 = vadd.f32 %v845, %v815
        %v856 = vadd.f32 %v845, %v820
        %v857 = vadd.f32 %v845, %v823
        %v858 = vadd.f32 %v845, %v828
        %v859 = vadd.f32 %v845, %v831
        %v860 = vadd.f32 %v845, %v836
        %v861 = vadd.f32 %v845, %v839
        %s862 = sadd.s32 %s266, 1
        %s863 = smul.u32 %s862, 3
        %s864 = smul.addr %s863, 4
        %s865 = scalar_lea.vmem %s263, %s864
        %v866 = vld [vmem:[%s865] sm:$0xf]
        %v867 = vld [vmem:[%s865 + $0x4] sm:$0xf]
        %v868 = vld [vmem:[%s865 + $0x8] sm:$0x7]
        %v869 = vld [vmem:[%s865 + $0xc] sm:$0xf]
        %v870 = vld [vmem:[%s865 + $0x10] sm:$0xf]
        %v871 = vld [vmem:[%s865 + $0x14] sm:$0x7]
        %v872 = vld [vmem:[%s865 + $0x18] sm:$0xf]
        %v873 = vld [vmem:[%s865 + $0x1c] sm:$0xf]
        %v874 = vld [vmem:[%s865 + $0x20] sm:$0x7]
        %v875 = vld [vmem:[%s865 + $0x24] sm:$0xf]
        %v876 = vld [vmem:[%s865 + $0x28] sm:$0xf]
        %v877 = vld [vmem:[%s865 + $0x2c] sm:$0x7]
        %v878 = vld [vmem:[%s865 + $0x30] sm:$0xf]
        %v879 = vld [vmem:[%s865 + $0x34] sm:$0xf]
        %v880 = vld [vmem:[%s865 + $0x38] sm:$0x7]
        %v881 = vld [vmem:[%s865 + $0x3c] sm:$0xf]
        %v882 = vld [vmem:[%s865 + $0x40] sm:$0xf]
        %v883 = vld [vmem:[%s865 + $0x44] sm:$0x7]
        %v884 = vld [vmem:[%s865 + $0x48] sm:$0xf]
        %v885 = vld [vmem:[%s865 + $0x4c] sm:$0xf]
        %v886 = vld [vmem:[%s865 + $0x50] sm:$0x7]
        %v887 = vld [vmem:[%s865 + $0x54] sm:$0xf]
        %v888 = vld [vmem:[%s865 + $0x58] sm:$0xf]
        %v889 = vld [vmem:[%s865 + $0x5c] sm:$0x7]
        %v914 = vunpack.c.l.b16 %v866
        %v915 = vunpack.c.l.b16 %v867
        %v916 = vunpack.c.l.b16 %v868
        %v917 = vunpack.c.l.b16 %v869
        %v918 = vunpack.c.l.b16 %v870
        %v919 = vunpack.c.l.b16 %v871
        %v920 = vunpack.c.l.b16 %v872
        %v921 = vunpack.c.l.b16 %v873
        %v922 = vunpack.c.l.b16 %v874
        %v923 = vunpack.c.l.b16 %v875
        %v924 = vunpack.c.l.b16 %v876
        %v925 = vunpack.c.l.b16 %v877
        %v926 = vunpack.c.l.b16 %v878
        %v927 = vunpack.c.l.b16 %v879
        %v928 = vunpack.c.l.b16 %v880
        %v929 = vunpack.c.l.b16 %v881
        %v930 = vunpack.c.l.b16 %v882
        %v931 = vunpack.c.l.b16 %v883
        %v932 = vunpack.c.l.b16 %v884
        %v933 = vunpack.c.l.b16 %v885
        %v934 = vunpack.c.l.b16 %v886
        %v935 = vunpack.c.l.b16 %v887
        %v936 = vunpack.c.l.b16 %v888
        %v937 = vunpack.c.l.b16 %v889
        %v938 = vpack.c.b16 %v915, %v914
        %v939 = vpack.c.b16 %v916, %v916
        %v940 = vpack.c.b16 %v918, %v917
        %v941 = vpack.c.b16 %v919, %v919
        %v942 = vpack.c.b16 %v921, %v920
        %v943 = vpack.c.b16 %v922, %v922
        %v944 = vpack.c.b16 %v924, %v923
        %v945 = vpack.c.b16 %v925, %v925
        %v946 = vpack.c.b16 %v927, %v926
        %v947 = vpack.c.b16 %v928, %v928
        %v948 = vpack.c.b16 %v930, %v929
        %v949 = vpack.c.b16 %v931, %v931
        %v950 = vpack.c.b16 %v933, %v932
        %v951 = vpack.c.b16 %v934, %v934
        %v952 = vpack.c.b16 %v936, %v935
        %v953 = vpack.c.b16 %v937, %v937
        %vm954 = vcmask 1046528
        %v955 = vrot.slane %v938, 1
        %v956 = vrot.slane %v939, 1
        %v957 = vsel %vm954, %v955, %v956
        %v958 = vrot.slane %v940, 1
        %v959 = vrot.slane %v941, 1
        %v960 = vsel %vm954, %v958, %v959
        %v961 = vrot.slane %v942, 1
        %v962 = vrot.slane %v943, 1
        %v963 = vsel %vm954, %v961, %v962
        %v964 = vrot.slane %v944, 1
        %v965 = vrot.slane %v945, 1
        %v966 = vsel %vm954, %v964, %v965
        %v967 = vrot.slane %v946, 1
        %v968 = vrot.slane %v947, 1
        %v969 = vsel %vm954, %v967, %v968
        %v970 = vrot.slane %v948, 1
        %v971 = vrot.slane %v949, 1
        %v972 = vsel %vm954, %v970, %v971
        %v973 = vrot.slane %v950, 1
        %v974 = vrot.slane %v951, 1
        %v975 = vsel %vm954, %v973, %v974
        %v976 = vrot.slane %v952, 1
        %v977 = vrot.slane %v953, 1
        %v978 = vsel %vm954, %v976, %v977
        %979 = vrot.lane.b32.xlu0 %v957, 8
        %v980 = vpop.permute.xlu0 %979
        %981 = vrot.lane.b32.xlu0 %v956, 8
        %v982 = vpop.permute.xlu0 %981
        %983 = vrot.lane.b32.xlu0 %v960, 8
        %v984 = vpop.permute.xlu0 %983
        %985 = vrot.lane.b32.xlu0 %v959, 8
        %v986 = vpop.permute.xlu0 %985
        %987 = vrot.lane.b32.xlu0 %v963, 8
        %v988 = vpop.permute.xlu0 %987
        %989 = vrot.lane.b32.xlu0 %v962, 8
        %v990 = vpop.permute.xlu0 %989
        %991 = vrot.lane.b32.xlu0 %v966, 8
        %v992 = vpop.permute.xlu0 %991
        %993 = vrot.lane.b32.xlu0 %v965, 8
        %v994 = vpop.permute.xlu0 %993
        %995 = vrot.lane.b32.xlu0 %v969, 8
        %v996 = vpop.permute.xlu0 %995
        %997 = vrot.lane.b32.xlu0 %v968, 8
        %v998 = vpop.permute.xlu0 %997
        %999 = vrot.lane.b32.xlu0 %v972, 8
        %v1000 = vpop.permute.xlu0 %999
        %1001 = vrot.lane.b32.xlu0 %v971, 8
        %v1002 = vpop.permute.xlu0 %1001
        %1003 = vrot.lane.b32.xlu0 %v975, 8
        %v1004 = vpop.permute.xlu0 %1003
        %1005 = vrot.lane.b32.xlu0 %v974, 8
        %v1006 = vpop.permute.xlu0 %1005
        %1007 = vrot.lane.b32.xlu0 %v978, 8
        %v1008 = vpop.permute.xlu0 %1007
        %1009 = vrot.lane.b32.xlu0 %v977, 8
        %v1010 = vpop.permute.xlu0 %1009
        %vm1011 = vcmask 1045504
        %v1012 = vrot.slane %v938, 2
        %v1013 = vrot.slane %v939, 2
        %v1014 = vsel %vm1011, %v1012, %v1013
        %v1015 = vrot.slane %v940, 2
        %v1016 = vrot.slane %v941, 2
        %v1017 = vsel %vm1011, %v1015, %v1016
        %v1018 = vrot.slane %v942, 2
        %v1019 = vrot.slane %v943, 2
        %v1020 = vsel %vm1011, %v1018, %v1019
        %v1021 = vrot.slane %v944, 2
        %v1022 = vrot.slane %v945, 2
        %v1023 = vsel %vm1011, %v1021, %v1022
        %v1024 = vrot.slane %v946, 2
        %v1025 = vrot.slane %v947, 2
        %v1026 = vsel %vm1011, %v1024, %v1025
        %v1027 = vrot.slane %v948, 2
        %v1028 = vrot.slane %v949, 2
        %v1029 = vsel %vm1011, %v1027, %v1028
        %v1030 = vrot.slane %v950, 2
        %v1031 = vrot.slane %v951, 2
        %v1032 = vsel %vm1011, %v1030, %v1031
        %v1033 = vrot.slane %v952, 2
        %v1034 = vrot.slane %v953, 2
        %v1035 = vsel %vm1011, %v1033, %v1034
        %1036 = vrot.lane.b32.xlu0 %v1014, 16
        %v1037 = vpop.permute.xlu0 %1036
        %1038 = vrot.lane.b32.xlu0 %v1013, 16
        %v1039 = vpop.permute.xlu0 %1038
        %1040 = vrot.lane.b32.xlu0 %v1017, 16
        %v1041 = vpop.permute.xlu0 %1040
        %1042 = vrot.lane.b32.xlu0 %v1016, 16
        %v1043 = vpop.permute.xlu0 %1042
        %1044 = vrot.lane.b32.xlu0 %v1020, 16
        %v1045 = vpop.permute.xlu0 %1044
        %1046 = vrot.lane.b32.xlu0 %v1019, 16
        %v1047 = vpop.permute.xlu0 %1046
        %1048 = vrot.lane.b32.xlu0 %v1023, 16
        %v1049 = vpop.permute.xlu0 %1048
        %1050 = vrot.lane.b32.xlu0 %v1022, 16
        %v1051 = vpop.permute.xlu0 %1050
        %1052 = vrot.lane.b32.xlu0 %v1026, 16
        %v1053 = vpop.permute.xlu0 %1052
        %1054 = vrot.lane.b32.xlu0 %v1025, 16
        %v1055 = vpop.permute.xlu0 %1054
        %1056 = vrot.lane.b32.xlu0 %v1029, 16
        %v1057 = vpop.permute.xlu0 %1056
        %1058 = vrot.lane.b32.xlu0 %v1028, 16
        %v1059 = vpop.permute.xlu0 %1058
        %1060 = vrot.lane.b32.xlu0 %v1032, 16
        %v1061 = vpop.permute.xlu0 %1060
        %1062 = vrot.lane.b32.xlu0 %v1031, 16
        %v1063 = vpop.permute.xlu0 %1062
        %1064 = vrot.lane.b32.xlu0 %v1035, 16
        %v1065 = vpop.permute.xlu0 %1064
        %1066 = vrot.lane.b32.xlu0 %v1034, 16
        %v1067 = vpop.permute.xlu0 %1066
        %v1070 = vsel %vm554, %v938, %v980
        %v1073 = vsel %vm554, %v939, %v982
        %v1076 = vsel %vm554, %v940, %v984
        %v1079 = vsel %vm554, %v941, %v986
        %v1082 = vsel %vm554, %v942, %v988
        %v1085 = vsel %vm554, %v943, %v990
        %v1088 = vsel %vm554, %v944, %v992
        %v1091 = vsel %vm554, %v945, %v994
        %v1094 = vsel %vm554, %v946, %v996
        %v1097 = vsel %vm554, %v947, %v998
        %v1100 = vsel %vm554, %v948, %v1000
        %v1103 = vsel %vm554, %v949, %v1002
        %v1106 = vsel %vm554, %v950, %v1004
        %v1109 = vsel %vm554, %v951, %v1006
        %v1112 = vsel %vm554, %v952, %v1008
        %v1115 = vsel %vm554, %v953, %v1010
        %vm1116 = vcmask 130048
        %v1118 = vsel %vm1116, %v1070, %v1037
        %v1120 = vsel %vm1116, %v1073, %v1039
        %v1122 = vsel %vm1116, %v1076, %v1041
        %v1124 = vsel %vm1116, %v1079, %v1043
        %v1126 = vsel %vm1116, %v1082, %v1045
        %v1128 = vsel %vm1116, %v1085, %v1047
        %v1130 = vsel %vm1116, %v1088, %v1049
        %v1132 = vsel %vm1116, %v1091, %v1051
        %v1134 = vsel %vm1116, %v1094, %v1053
        %v1136 = vsel %vm1116, %v1097, %v1055
        %v1138 = vsel %vm1116, %v1100, %v1057
        %v1140 = vsel %vm1116, %v1103, %v1059
        %v1142 = vsel %vm1116, %v1106, %v1061
        %v1144 = vsel %vm1116, %v1109, %v1063
        %v1146 = vsel %vm1116, %v1112, %v1065
        %v1148 = vsel %vm1116, %v1115, %v1067
        %vm1149 = vsmask.f32 7424
        %v1150 = vshrl.u32 %v1118, 16
        %v1152 = vshll.u32 %v1118, 16
        %v1154 = vrot.slane %v1152, 1
        %v1155 = vor.u32 %v1150, %v1154
        %v1156 = vshll.u32 %v1120, 16
        %v1158 = vrot.slane %v1156, 1
        %v1159 = vsel %vm1149, %v1155, %v1158
        %v1160 = vshrl.u32 %v1122, 16
        %v1162 = vshll.u32 %v1122, 16
        %v1164 = vrot.slane %v1162, 1
        %v1165 = vor.u32 %v1160, %v1164
        %v1166 = vshll.u32 %v1124, 16
        %v1168 = vrot.slane %v1166, 1
        %v1169 = vsel %vm1149, %v1165, %v1168
        %v1170 = vshrl.u32 %v1126, 16
        %v1172 = vshll.u32 %v1126, 16
        %v1174 = vrot.slane %v1172, 1
        %v1175 = vor.u32 %v1170, %v1174
        %v1176 = vshll.u32 %v1128, 16
        %v1178 = vrot.slane %v1176, 1
        %v1179 = vsel %vm1149, %v1175, %v1178
        %v1180 = vshrl.u32 %v1130, 16
        %v1182 = vshll.u32 %v1130, 16
        %v1184 = vrot.slane %v1182, 1
        %v1185 = vor.u32 %v1180, %v1184
        %v1186 = vshll.u32 %v1132, 16
        %v1188 = vrot.slane %v1186, 1
        %v1189 = vsel %vm1149, %v1185, %v1188
        %v1190 = vshrl.u32 %v1134, 16
        %v1192 = vshll.u32 %v1134, 16
        %v1194 = vrot.slane %v1192, 1
        %v1195 = vor.u32 %v1190, %v1194
        %v1196 = vshll.u32 %v1136, 16
        %v1198 = vrot.slane %v1196, 1
        %v1199 = vsel %vm1149, %v1195, %v1198
        %v1200 = vshrl.u32 %v1138, 16
        %v1202 = vshll.u32 %v1138, 16
        %v1204 = vrot.slane %v1202, 1
        %v1205 = vor.u32 %v1200, %v1204
        %v1206 = vshll.u32 %v1140, 16
        %v1208 = vrot.slane %v1206, 1
        %v1209 = vsel %vm1149, %v1205, %v1208
        %v1210 = vshrl.u32 %v1142, 16
        %v1212 = vshll.u32 %v1142, 16
        %v1214 = vrot.slane %v1212, 1
        %v1215 = vor.u32 %v1210, %v1214
        %v1216 = vshll.u32 %v1144, 16
        %v1218 = vrot.slane %v1216, 1
        %v1219 = vsel %vm1149, %v1215, %v1218
        %v1220 = vshrl.u32 %v1146, 16
        %v1222 = vshll.u32 %v1146, 16
        %v1224 = vrot.slane %v1222, 1
        %v1225 = vor.u32 %v1220, %v1224
        %v1226 = vshll.u32 %v1148, 16
        %v1228 = vrot.slane %v1226, 1
        %v1229 = vsel %vm1149, %v1225, %v1228
        %v1230 = vld [vmem:[%s3] sm:$0xf]
        %v1231 = vld [vmem:[%s3 + $0x4] sm:$0xf]
        %v1232 = vld [vmem:[%s3 + $0x8] sm:$0xf]
        %v1233 = vld [vmem:[%s272] sm:$0xf]
        %v1234 = vld [vmem:[%s272 + $0x8] sm:$0x7]
        %v1235 = vld [vmem:[%s272 + $0xc] sm:$0xf]
        %v1236 = vld [vmem:[%s272 + $0x14] sm:$0x7]
        %v1237 = vld [vmem:[%s272 + $0x18] sm:$0xf]
        %v1238 = vld [vmem:[%s272 + $0x20] sm:$0x7]
        %v1239 = vld [vmem:[%s272 + $0x24] sm:$0xf]
        %v1240 = vld [vmem:[%s272 + $0x2c] sm:$0x7]
        %v1241 = vld [vmem:[%s272 + $0x30] sm:$0xf]
        %v1242 = vld [vmem:[%s272 + $0x38] sm:$0x7]
        %v1243 = vld [vmem:[%s272 + $0x3c] sm:$0xf]
        %v1244 = vld [vmem:[%s272 + $0x44] sm:$0x7]
        %v1245 = vld [vmem:[%s272 + $0x48] sm:$0xf]
        %v1246 = vld [vmem:[%s272 + $0x50] sm:$0x7]
        %v1247 = vld [vmem:[%s272 + $0x54] sm:$0xf]
        %v1248 = vld [vmem:[%s272 + $0x5c] sm:$0x7]
        %v1273 = vunpack.c.l.b16 %v1233
        %v1274 = vunpack.c.l.b16 %v274
        %v1275 = vunpack.c.l.b16 %v1234
        %v1276 = vunpack.c.l.b16 %v1235
        %v1277 = vunpack.c.l.b16 %v277
        %v1278 = vunpack.c.l.b16 %v1236
        %v1279 = vunpack.c.l.b16 %v1237
        %v1280 = vunpack.c.l.b16 %v280
        %v1281 = vunpack.c.l.b16 %v1238
        %v1282 = vunpack.c.l.b16 %v1239
        %v1283 = vunpack.c.l.b16 %v283
        %v1284 = vunpack.c.l.b16 %v1240
        %v1285 = vunpack.c.l.b16 %v1241
        %v1286 = vunpack.c.l.b16 %v286
        %v1287 = vunpack.c.l.b16 %v1242
        %v1288 = vunpack.c.l.b16 %v1243
        %v1289 = vunpack.c.l.b16 %v289
        %v1290 = vunpack.c.l.b16 %v1244
        %v1291 = vunpack.c.l.b16 %v1245
        %v1292 = vunpack.c.l.b16 %v292
        %v1293 = vunpack.c.l.b16 %v1246
        %v1294 = vunpack.c.l.b16 %v1247
        %v1295 = vunpack.c.l.b16 %v295
        %v1296 = vunpack.c.l.b16 %v1248
        %v1297 = vpack.c.b16 %v1274, %v1273
        %v1298 = vpack.c.b16 %v1275, %v1275
        %v1299 = vpack.c.b16 %v1277, %v1276
        %v1300 = vpack.c.b16 %v1278, %v1278
        %v1301 = vpack.c.b16 %v1280, %v1279
        %v1302 = vpack.c.b16 %v1281, %v1281
        %v1303 = vpack.c.b16 %v1283, %v1282
        %v1304 = vpack.c.b16 %v1284, %v1284
        %v1305 = vpack.c.b16 %v1286, %v1285
        %v1306 = vpack.c.b16 %v1287, %v1287
        %v1307 = vpack.c.b16 %v1289, %v1288
        %v1308 = vpack.c.b16 %v1290, %v1290
        %v1309 = vpack.c.b16 %v1292, %v1291
        %v1310 = vpack.c.b16 %v1293, %v1293
        %v1311 = vpack.c.b16 %v1295, %v1294
        %v1312 = vpack.c.b16 %v1296, %v1296
        %v1313 = vrot.slane %v1297, 1
        %v1314 = vrot.slane %v1298, 1
        %v1315 = vsel %vm954, %v1313, %v1314
        %v1316 = vrot.slane %v1299, 1
        %v1317 = vrot.slane %v1300, 1
        %v1318 = vsel %vm954, %v1316, %v1317
        %v1319 = vrot.slane %v1301, 1
        %v1320 = vrot.slane %v1302, 1
        %v1321 = vsel %vm954, %v1319, %v1320
        %v1322 = vrot.slane %v1303, 1
        %v1323 = vrot.slane %v1304, 1
        %v1324 = vsel %vm954, %v1322, %v1323
        %v1325 = vrot.slane %v1305, 1
        %v1326 = vrot.slane %v1306, 1
        %v1327 = vsel %vm954, %v1325, %v1326
        %v1328 = vrot.slane %v1307, 1
        %v1329 = vrot.slane %v1308, 1
        %v1330 = vsel %vm954, %v1328, %v1329
        %v1331 = vrot.slane %v1309, 1
        %v1332 = vrot.slane %v1310, 1
        %v1333 = vsel %vm954, %v1331, %v1332
        %v1334 = vrot.slane %v1311, 1
        %v1335 = vrot.slane %v1312, 1
        %v1336 = vsel %vm954, %v1334, %v1335
        %1337 = vrot.lane.b32.xlu0 %v1315, 8
        %v1338 = vpop.permute.xlu0 %1337
        %1339 = vrot.lane.b32.xlu0 %v1314, 8
        %v1340 = vpop.permute.xlu0 %1339
        %1341 = vrot.lane.b32.xlu0 %v1318, 8
        %v1342 = vpop.permute.xlu0 %1341
        %1343 = vrot.lane.b32.xlu0 %v1317, 8
        %v1344 = vpop.permute.xlu0 %1343
        %1345 = vrot.lane.b32.xlu0 %v1321, 8
        %v1346 = vpop.permute.xlu0 %1345
        %1347 = vrot.lane.b32.xlu0 %v1320, 8
        %v1348 = vpop.permute.xlu0 %1347
        %1349 = vrot.lane.b32.xlu0 %v1324, 8
        %v1350 = vpop.permute.xlu0 %1349
        %1351 = vrot.lane.b32.xlu0 %v1323, 8
        %v1352 = vpop.permute.xlu0 %1351
        %1353 = vrot.lane.b32.xlu0 %v1327, 8
        %v1354 = vpop.permute.xlu0 %1353
        %1355 = vrot.lane.b32.xlu0 %v1326, 8
        %v1356 = vpop.permute.xlu0 %1355
        %1357 = vrot.lane.b32.xlu0 %v1330, 8
        %v1358 = vpop.permute.xlu0 %1357
        %1359 = vrot.lane.b32.xlu0 %v1329, 8
        %v1360 = vpop.permute.xlu0 %1359
        %1361 = vrot.lane.b32.xlu0 %v1333, 8
        %v1362 = vpop.permute.xlu0 %1361
        %1363 = vrot.lane.b32.xlu0 %v1332, 8
        %v1364 = vpop.permute.xlu0 %1363
        %1365 = vrot.lane.b32.xlu0 %v1336, 8
        %v1366 = vpop.permute.xlu0 %1365
        %1367 = vrot.lane.b32.xlu0 %v1335, 8
        %v1368 = vpop.permute.xlu0 %1367
        %v1369 = vrot.slane %v1297, 2
        %v1370 = vrot.slane %v1298, 2
        %v1371 = vsel %vm1011, %v1369, %v1370
        %v1372 = vrot.slane %v1299, 2
        %v1373 = vrot.slane %v1300, 2
        %v1374 = vsel %vm1011, %v1372, %v1373
        %v1375 = vrot.slane %v1301, 2
        %v1376 = vrot.slane %v1302, 2
        %v1377 = vsel %vm1011, %v1375, %v1376
        %v1378 = vrot.slane %v1303, 2
        %v1379 = vrot.slane %v1304, 2
        %v1380 = vsel %vm1011, %v1378, %v1379
        %v1381 = vrot.slane %v1305, 2
        %v1382 = vrot.slane %v1306, 2
        %v1383 = vsel %vm1011, %v1381, %v1382
        %v1384 = vrot.slane %v1307, 2
        %v1385 = vrot.slane %v1308, 2
        %v1386 = vsel %vm1011, %v1384, %v1385
        %v1387 = vrot.slane %v1309, 2
        %v1388 = vrot.slane %v1310, 2
        %v1389 = vsel %vm1011, %v1387, %v1388
        %v1390 = vrot.slane %v1311, 2
        %v1391 = vrot.slane %v1312, 2
        %v1392 = vsel %vm1011, %v1390, %v1391
        %1393 = vrot.lane.b32.xlu0 %v1371, 16
        %v1394 = vpop.permute.xlu0 %1393
        %1395 = vrot.lane.b32.xlu0 %v1370, 16
        %v1396 = vpop.permute.xlu0 %1395
        %1397 = vrot.lane.b32.xlu0 %v1374, 16
        %v1398 = vpop.permute.xlu0 %1397
        %1399 = vrot.lane.b32.xlu0 %v1373, 16
        %v1400 = vpop.permute.xlu0 %1399
        %1401 = vrot.lane.b32.xlu0 %v1377, 16
        %v1402 = vpop.permute.xlu0 %1401
        %1403 = vrot.lane.b32.xlu0 %v1376, 16
        %v1404 = vpop.permute.xlu0 %1403
        %1405 = vrot.lane.b32.xlu0 %v1380, 16
        %v1406 = vpop.permute.xlu0 %1405
        %1407 = vrot.lane.b32.xlu0 %v1379, 16
        %v1408 = vpop.permute.xlu0 %1407
        %1409 = vrot.lane.b32.xlu0 %v1383, 16
        %v1410 = vpop.permute.xlu0 %1409
        %1411 = vrot.lane.b32.xlu0 %v1382, 16
        %v1412 = vpop.permute.xlu0 %1411
        %1413 = vrot.lane.b32.xlu0 %v1386, 16
        %v1414 = vpop.permute.xlu0 %1413
        %1415 = vrot.lane.b32.xlu0 %v1385, 16
        %v1416 = vpop.permute.xlu0 %1415
        %1417 = vrot.lane.b32.xlu0 %v1389, 16
        %v1418 = vpop.permute.xlu0 %1417
        %1419 = vrot.lane.b32.xlu0 %v1388, 16
        %v1420 = vpop.permute.xlu0 %1419
        %1421 = vrot.lane.b32.xlu0 %v1392, 16
        %v1422 = vpop.permute.xlu0 %1421
        %1423 = vrot.lane.b32.xlu0 %v1391, 16
        %v1424 = vpop.permute.xlu0 %1423
        %v1427 = vsel %vm554, %v1297, %v1338
        %v1430 = vsel %vm554, %v1298, %v1340
        %v1433 = vsel %vm554, %v1299, %v1342
        %v1436 = vsel %vm554, %v1300, %v1344
        %v1439 = vsel %vm554, %v1301, %v1346
        %v1442 = vsel %vm554, %v1302, %v1348
        %v1445 = vsel %vm554, %v1303, %v1350
        %v1448 = vsel %vm554, %v1304, %v1352
        %v1451 = vsel %vm554, %v1305, %v1354
        %v1454 = vsel %vm554, %v1306, %v1356
        %v1457 = vsel %vm554, %v1307, %v1358
        %v1460 = vsel %vm554, %v1308, %v1360
        %v1463 = vsel %vm554, %v1309, %v1362
        %v1466 = vsel %vm554, %v1310, %v1364
        %v1469 = vsel %vm554, %v1311, %v1366
        %v1472 = vsel %vm554, %v1312, %v1368
        %v1474 = vsel %vm1116, %v1427, %v1394
        %v1476 = vsel %vm1116, %v1430, %v1396
        %v1478 = vsel %vm1116, %v1433, %v1398
        %v1480 = vsel %vm1116, %v1436, %v1400
        %v1482 = vsel %vm1116, %v1439, %v1402
        %v1484 = vsel %vm1116, %v1442, %v1404
        %v1486 = vsel %vm1116, %v1445, %v1406
        %v1488 = vsel %vm1116, %v1448, %v1408
        %v1490 = vsel %vm1116, %v1451, %v1410
        %v1492 = vsel %vm1116, %v1454, %v1412
        %v1494 = vsel %vm1116, %v1457, %v1414
        %v1496 = vsel %vm1116, %v1460, %v1416
        %v1498 = vsel %vm1116, %v1463, %v1418
        %v1500 = vsel %vm1116, %v1466, %v1420
        %v1502 = vsel %vm1116, %v1469, %v1422
        %v1504 = vsel %vm1116, %v1472, %v1424
        %v1505 = vshrl.u32 %v1474, 16
        %v1507 = vshll.u32 %v1474, 16
        %v1509 = vrot.slane %v1507, 1
        %v1510 = vor.u32 %v1505, %v1509
        %v1511 = vshll.u32 %v1476, 16
        %v1513 = vrot.slane %v1511, 1
        %v1514 = vsel %vm1149, %v1510, %v1513
        %v1515 = vshrl.u32 %v1478, 16
        %v1517 = vshll.u32 %v1478, 16
        %v1519 = vrot.slane %v1517, 1
        %v1520 = vor.u32 %v1515, %v1519
        %v1521 = vshll.u32 %v1480, 16
        %v1523 = vrot.slane %v1521, 1
        %v1524 = vsel %vm1149, %v1520, %v1523
        %v1525 = vshrl.u32 %v1482, 16
        %v1527 = vshll.u32 %v1482, 16
        %v1529 = vrot.slane %v1527, 1
        %v1530 = vor.u32 %v1525, %v1529
        %v1531 = vshll.u32 %v1484, 16
        %v1533 = vrot.slane %v1531, 1
        %v1534 = vsel %vm1149, %v1530, %v1533
        %v1535 = vshrl.u32 %v1486, 16
        %v1537 = vshll.u32 %v1486, 16
        %v1539 = vrot.slane %v1537, 1
        %v1540 = vor.u32 %v1535, %v1539
        %v1541 = vshll.u32 %v1488, 16
        %v1543 = vrot.slane %v1541, 1
        %v1544 = vsel %vm1149, %v1540, %v1543
        %v1545 = vshrl.u32 %v1490, 16
        %v1547 = vshll.u32 %v1490, 16
        %v1549 = vrot.slane %v1547, 1
        %v1550 = vor.u32 %v1545, %v1549
        %v1551 = vshll.u32 %v1492, 16
        %v1553 = vrot.slane %v1551, 1
        %v1554 = vsel %vm1149, %v1550, %v1553
        %v1555 = vshrl.u32 %v1494, 16
        %v1557 = vshll.u32 %v1494, 16
        %v1559 = vrot.slane %v1557, 1
        %v1560 = vor.u32 %v1555, %v1559
        %v1561 = vshll.u32 %v1496, 16
        %v1563 = vrot.slane %v1561, 1
        %v1564 = vsel %vm1149, %v1560, %v1563
        %v1565 = vshrl.u32 %v1498, 16
        %v1567 = vshll.u32 %v1498, 16
        %v1569 = vrot.slane %v1567, 1
        %v1570 = vor.u32 %v1565, %v1569
        %v1571 = vshll.u32 %v1500, 16
        %v1573 = vrot.slane %v1571, 1
        %v1574 = vsel %vm1149, %v1570, %v1573
        %v1575 = vshrl.u32 %v1502, 16
        %v1577 = vshll.u32 %v1502, 16
        %v1579 = vrot.slane %v1577, 1
        %v1580 = vor.u32 %v1575, %v1579
        %v1581 = vshll.u32 %v1504, 16
        %v1583 = vrot.slane %v1581, 1
        %v1584 = vsel %vm1149, %v1580, %v1583
        %s1585 = scalar_lea.vmem %s3, 12
        %v1586 = vld [vmem:[%s1585] sm:$0xf]
        %v1587 = vld [vmem:[%s1585 + $0x4] sm:$0xf]
        %v1588 = vld [vmem:[%s1585 + $0x8] sm:$0xf]
        %v1592 = vunpack.c.l.b16 %v1586
        %v1593 = vunpack.c.l.b16 %v1587
        %v1594 = vunpack.c.l.b16 %v1588
        %v1595 = vpack.c.b16 %v1593, %v1592
        %v1596 = vpack.c.b16 %v1594, %v1594
        %vm1598 = vcmask 195584
        %v1600 = vsel %vm1598, %v1514, 0
        %v1603 = vsel %vm1598, %v1524, 0
        %v1606 = vsel %vm1598, %v1534, 0
        %v1609 = vsel %vm1598, %v1544, 0
        %v1612 = vsel %vm1598, %v1554, 0
        %v1615 = vsel %vm1598, %v1564, 0
        %v1618 = vsel %vm1598, %v1574, 0
        %v1621 = vsel %vm1598, %v1584, 0
        %v1624 = vsel %vm579, %v1596, 0
        %1626 = vmatprep.subr.bf16.mxu0 0
        %1627 = vmatpush1.bf16.msra.mxu0 0
        %1628 = vmatprep.subr.bf16.mxu0 0
        %1629 = vmatpush1.bf16.msra.mxu0 0
        %1630 = vmatprep.subr.bf16.mxu0 0
        %1631 = vmatpush1.bf16.msra.mxu0 0
        %1632 = vmatprep.subr.bf16.mxu0 0
        %1633 = vmatpush1.bf16.msra.mxu0 0
        %1634 = vmatprep.subr.bf16.mxu0 0
        %1635 = vmatpush1.bf16.msra.mxu0 0
        %1636 = vmatprep.subr.bf16.mxu0 0
        %1637 = vmatpush1.bf16.msra.mxu0 0
        %1638 = vmatprep.subr.bf16.mxu0 0
        %1639 = vmatpush1.bf16.msra.mxu0 %v1624
        %1640 = vmatprep.subr.bf16.mxu0 0
        %1641 = vmatpush1.bf16.msra.mxu0 %v1595
        %1642 = vmatprep.subr.bf16.mxu0 0
        %1643 = vmatpush2.bf16.msra.mxu0 0
        %1644 = vmatprep.subr.bf16.mxu0 0
        %1645 = vmatpush2.bf16.msra.mxu0 0
        %1646 = vmatprep.subr.bf16.mxu0 0
        %1647 = vmatpush2.bf16.msra.mxu0 0
        %1648 = vmatprep.subr.bf16.mxu0 0
        %1649 = vmatpush2.bf16.msra.mxu0 0
        %1650 = vmatprep.subr.bf16.mxu0 0
        %1651 = vmatpush2.bf16.msra.mxu0 0
        %1652 = vmatprep.subr.bf16.mxu0 0
        %1653 = vmatpush2.bf16.msra.mxu0 0
        %1654 = vmatprep.subr.bf16.mxu0 0
        %1655 = vmatpush2.bf16.msra.mxu0 0
        %1656 = vmatprep.subr.bf16.mxu0 0
        %1657 = vmatpush2.bf16.msra.mxu0 0
        %1658 = vmatprep.mubr.bf16.mxu0 0
        %1659 = vmatmul.mubr.bf16.gmra.mxu0 %v1600
        %v1660 = vpop.f32.mrf.mxu0
        %v1661 = vadd.f32 0.0, %v1660
        %v1662 = vpop.f32.mrf.mxu0
        %v1663 = vpop.f32.mrf.mxu0
        %v1664 = vadd.f32 0.0, %v1663
        %v1665 = vpop.f32.mrf.mxu0
        %1666 = vmatprep.mubr.bf16.mxu0 0
        %1667 = vmatmul.mubr.bf16.gmra.mxu0 %v1603
        %v1668 = vpop.f32.mrf.mxu0
        %v1669 = vadd.f32 0.0, %v1668
        %v1670 = vpop.f32.mrf.mxu0
        %v1671 = vpop.f32.mrf.mxu0
        %v1672 = vadd.f32 0.0, %v1671
        %v1673 = vpop.f32.mrf.mxu0
        %1674 = vmatprep.mubr.bf16.mxu0 0
        %1675 = vmatmul.mubr.bf16.gmra.mxu0 %v1606
        %v1676 = vpop.f32.mrf.mxu0
        %v1677 = vadd.f32 0.0, %v1676
        %v1678 = vpop.f32.mrf.mxu0
        %v1679 = vpop.f32.mrf.mxu0
        %v1680 = vadd.f32 0.0, %v1679
        %v1681 = vpop.f32.mrf.mxu0
        %1682 = vmatprep.mubr.bf16.mxu0 0
        %1683 = vmatmul.mubr.bf16.gmra.mxu0 %v1609
        %v1684 = vpop.f32.mrf.mxu0
        %v1685 = vadd.f32 0.0, %v1684
        %v1686 = vpop.f32.mrf.mxu0
        %v1687 = vpop.f32.mrf.mxu0
        %v1688 = vadd.f32 0.0, %v1687
        %v1689 = vpop.f32.mrf.mxu0
        %1690 = vmatprep.mubr.bf16.mxu0 0
        %1691 = vmatmul.mubr.bf16.gmra.mxu0 %v1612
        %v1692 = vpop.f32.mrf.mxu0
        %v1693 = vadd.f32 0.0, %v1692
        %v1694 = vpop.f32.mrf.mxu0
        %v1695 = vpop.f32.mrf.mxu0
        %v1696 = vadd.f32 0.0, %v1695
        %v1697 = vpop.f32.mrf.mxu0
        %1698 = vmatprep.mubr.bf16.mxu0 0
        %1699 = vmatmul.mubr.bf16.gmra.mxu0 %v1615
        %v1700 = vpop.f32.mrf.mxu0
        %v1701 = vadd.f32 0.0, %v1700
        %v1702 = vpop.f32.mrf.mxu0
        %v1703 = vpop.f32.mrf.mxu0
        %v1704 = vadd.f32 0.0, %v1703
        %v1705 = vpop.f32.mrf.mxu0
        %1706 = vmatprep.mubr.bf16.mxu0 0
        %1707 = vmatmul.mubr.bf16.gmra.mxu0 %v1618
        %v1708 = vpop.f32.mrf.mxu0
        %v1709 = vadd.f32 0.0, %v1708
        %v1710 = vpop.f32.mrf.mxu0
        %v1711 = vpop.f32.mrf.mxu0
        %v1712 = vadd.f32 0.0, %v1711
        %v1713 = vpop.f32.mrf.mxu0
        %1714 = vmatprep.mubr.bf16.mxu0 0
        %1715 = vmatmul.mubr.bf16.gmra.mxu0 %v1621
        %v1716 = vpop.f32.mrf.mxu0
        %v1717 = vadd.f32 0.0, %v1716
        %v1718 = vpop.f32.mrf.mxu0
        %v1719 = vpop.f32.mrf.mxu0
        %v1720 = vadd.f32 0.0, %v1719
        %v1721 = vpop.f32.mrf.mxu0
        %1722 = vdwg.mxu0
        %v1726 = vunpack.c.l.b16 %v1230
        %v1727 = vunpack.c.l.b16 %v1231
        %v1728 = vunpack.c.l.b16 %v1232
        %v1729 = vpack.c.b16 %v1727, %v1726
        %v1730 = vpack.c.b16 %v1728, %v1728
        %v1733 = vsel %vm1598, %v1159, 0
        %v1736 = vsel %vm1598, %v1169, 0
        %v1739 = vsel %vm1598, %v1179, 0
        %v1742 = vsel %vm1598, %v1189, 0
        %v1745 = vsel %vm1598, %v1199, 0
        %v1748 = vsel %vm1598, %v1209, 0
        %v1751 = vsel %vm1598, %v1219, 0
        %v1754 = vsel %vm1598, %v1229, 0
        %v1757 = vsel %vm579, %v1730, 0
        %1759 = vmatprep.subr.bf16.mxu0 0
        %1760 = vmatpush1.bf16.msra.mxu0 0
        %1761 = vmatprep.subr.bf16.mxu0 0
        %1762 = vmatpush1.bf16.msra.mxu0 0
        %1763 = vmatprep.subr.bf16.mxu0 0
        %1764 = vmatpush1.bf16.msra.mxu0 0
        %1765 = vmatprep.subr.bf16.mxu0 0
        %1766 = vmatpush1.bf16.msra.mxu0 0
        %1767 = vmatprep.subr.bf16.mxu0 0
        %1768 = vmatpush1.bf16.msra.mxu0 0
        %1769 = vmatprep.subr.bf16.mxu0 0
        %1770 = vmatpush1.bf16.msra.mxu0 0
        %1771 = vmatprep.subr.bf16.mxu0 0
        %1772 = vmatpush1.bf16.msra.mxu0 %v1757
        %1773 = vmatprep.subr.bf16.mxu0 0
        %1774 = vmatpush1.bf16.msra.mxu0 %v1729
        %1775 = vmatprep.subr.bf16.mxu0 0
        %1776 = vmatpush2.bf16.msra.mxu0 0
        %1777 = vmatprep.subr.bf16.mxu0 0
        %1778 = vmatpush2.bf16.msra.mxu0 0
        %1779 = vmatprep.subr.bf16.mxu0 0
        %1780 = vmatpush2.bf16.msra.mxu0 0
        %1781 = vmatprep.subr.bf16.mxu0 0
        %1782 = vmatpush2.bf16.msra.mxu0 0
        %1783 = vmatprep.subr.bf16.mxu0 0
        %1784 = vmatpush2.bf16.msra.mxu0 0
        %1785 = vmatprep.subr.bf16.mxu0 0
        %1786 = vmatpush2.bf16.msra.mxu0 0
        %1787 = vmatprep.subr.bf16.mxu0 0
        %1788 = vmatpush2.bf16.msra.mxu0 0
        %1789 = vmatprep.subr.bf16.mxu0 0
        %1790 = vmatpush2.bf16.msra.mxu0 0
        %1791 = vmatprep.mubr.bf16.mxu0 0
        %1792 = vmatmul.mubr.bf16.gmra.mxu0 %v1733
        %v1793 = vpop.f32.mrf.mxu0
        %v1794 = vadd.f32 %v1661, %v1793
        %v1795 = vpop.f32.mrf.mxu0
        %v1796 = vpop.f32.mrf.mxu0
        %v1797 = vadd.f32 %v1664, %v1796
        %v1798 = vpop.f32.mrf.mxu0
        %1799 = vmatprep.mubr.bf16.mxu0 0
        %1800 = vmatmul.mubr.bf16.gmra.mxu0 %v1736
        %v1801 = vpop.f32.mrf.mxu0
        %v1802 = vadd.f32 %v1669, %v1801
        %v1803 = vpop.f32.mrf.mxu0
        %v1804 = vpop.f32.mrf.mxu0
        %v1805 = vadd.f32 %v1672, %v1804
        %v1806 = vpop.f32.mrf.mxu0
        %1807 = vmatprep.mubr.bf16.mxu0 0
        %1808 = vmatmul.mubr.bf16.gmra.mxu0 %v1739
        %v1809 = vpop.f32.mrf.mxu0
        %v1810 = vadd.f32 %v1677, %v1809
        %v1811 = vpop.f32.mrf.mxu0
        %v1812 = vpop.f32.mrf.mxu0
        %v1813 = vadd.f32 %v1680, %v1812
        %v1814 = vpop.f32.mrf.mxu0
        %1815 = vmatprep.mubr.bf16.mxu0 0
        %1816 = vmatmul.mubr.bf16.gmra.mxu0 %v1742
        %v1817 = vpop.f32.mrf.mxu0
        %v1818 = vadd.f32 %v1685, %v1817
        %v1819 = vpop.f32.mrf.mxu0
        %v1820 = vpop.f32.mrf.mxu0
        %v1821 = vadd.f32 %v1688, %v1820
        %v1822 = vpop.f32.mrf.mxu0
        %1823 = vmatprep.mubr.bf16.mxu0 0
        %1824 = vmatmul.mubr.bf16.gmra.mxu0 %v1745
        %v1825 = vpop.f32.mrf.mxu0
        %v1826 = vadd.f32 %v1693, %v1825
        %v1827 = vpop.f32.mrf.mxu0
        %v1828 = vpop.f32.mrf.mxu0
        %v1829 = vadd.f32 %v1696, %v1828
        %v1830 = vpop.f32.mrf.mxu0
        %1831 = vmatprep.mubr.bf16.mxu0 0
        %1832 = vmatmul.mubr.bf16.gmra.mxu0 %v1748
        %v1833 = vpop.f32.mrf.mxu0
        %v1834 = vadd.f32 %v1701, %v1833
        %v1835 = vpop.f32.mrf.mxu0
        %v1836 = vpop.f32.mrf.mxu0
        %v1837 = vadd.f32 %v1704, %v1836
        %v1838 = vpop.f32.mrf.mxu0
        %1839 = vmatprep.mubr.bf16.mxu0 0
        %1840 = vmatmul.mubr.bf16.gmra.mxu0 %v1751
        %v1841 = vpop.f32.mrf.mxu0
        %v1842 = vadd.f32 %v1709, %v1841
        %v1843 = vpop.f32.mrf.mxu0
        %v1844 = vpop.f32.mrf.mxu0
        %v1845 = vadd.f32 %v1712, %v1844
        %v1846 = vpop.f32.mrf.mxu0
        %1847 = vmatprep.mubr.bf16.mxu0 0
        %1848 = vmatmul.mubr.bf16.gmra.mxu0 %v1754
        %v1849 = vpop.f32.mrf.mxu0
        %v1850 = vadd.f32 %v1717, %v1849
        %v1851 = vpop.f32.mrf.mxu0
        %v1852 = vpop.f32.mrf.mxu0
        %v1853 = vadd.f32 %v1720, %v1852
        %v1854 = vpop.f32.mrf.mxu0
        %1855 = vdwg.mxu0
        %s1856 = sadd.s32 %s266, 5
        %s1857 = smul.u32 %s1856, 3
        %s1858 = smul.addr %s1857, 4
        %s1859 = scalar_lea.vmem %s263, %s1858
        %v1860 = vld [vmem:[%s1859] sm:$0xf]
        %v1861 = vld [vmem:[%s1859 + $0x4] sm:$0xf]
        %v1862 = vld [vmem:[%s1859 + $0x8] sm:$0x7]
        %v1863 = vld [vmem:[%s1859 + $0xc] sm:$0xf]
        %v1864 = vld [vmem:[%s1859 + $0x10] sm:$0xf]
        %v1865 = vld [vmem:[%s1859 + $0x14] sm:$0x7]
        %v1866 = vld [vmem:[%s1859 + $0x18] sm:$0xf]
        %v1867 = vld [vmem:[%s1859 + $0x1c] sm:$0xf]
        %v1868 = vld [vmem:[%s1859 + $0x20] sm:$0x7]
        %v1869 = vld [vmem:[%s1859 + $0x24] sm:$0xf]
        %v1870 = vld [vmem:[%s1859 + $0x28] sm:$0xf]
        %v1871 = vld [vmem:[%s1859 + $0x2c] sm:$0x7]
        %v1872 = vld [vmem:[%s1859 + $0x30] sm:$0xf]
        %v1873 = vld [vmem:[%s1859 + $0x34] sm:$0xf]
        %v1874 = vld [vmem:[%s1859 + $0x38] sm:$0x7]
        %v1875 = vld [vmem:[%s1859 + $0x3c] sm:$0xf]
        %v1876 = vld [vmem:[%s1859 + $0x40] sm:$0xf]
        %v1877 = vld [vmem:[%s1859 + $0x44] sm:$0x7]
        %v1878 = vld [vmem:[%s1859 + $0x48] sm:$0xf]
        %v1879 = vld [vmem:[%s1859 + $0x4c] sm:$0xf]
        %v1880 = vld [vmem:[%s1859 + $0x50] sm:$0x7]
        %v1881 = vld [vmem:[%s1859 + $0x54] sm:$0xf]
        %v1882 = vld [vmem:[%s1859 + $0x58] sm:$0xf]
        %v1883 = vld [vmem:[%s1859 + $0x5c] sm:$0x7]
        %v1908 = vunpack.c.l.b16 %v1860
        %v1909 = vunpack.c.l.b16 %v1861
        %v1910 = vunpack.c.l.b16 %v1862
        %v1911 = vunpack.c.l.b16 %v1863
        %v1912 = vunpack.c.l.b16 %v1864
        %v1913 = vunpack.c.l.b16 %v1865
        %v1914 = vunpack.c.l.b16 %v1866
        %v1915 = vunpack.c.l.b16 %v1867
        %v1916 = vunpack.c.l.b16 %v1868
        %v1917 = vunpack.c.l.b16 %v1869
        %v1918 = vunpack.c.l.b16 %v1870
        %v1919 = vunpack.c.l.b16 %v1871
        %v1920 = vunpack.c.l.b16 %v1872
        %v1921 = vunpack.c.l.b16 %v1873
        %v1922 = vunpack.c.l.b16 %v1874
        %v1923 = vunpack.c.l.b16 %v1875
        %v1924 = vunpack.c.l.b16 %v1876
        %v1925 = vunpack.c.l.b16 %v1877
        %v1926 = vunpack.c.l.b16 %v1878
        %v1927 = vunpack.c.l.b16 %v1879
        %v1928 = vunpack.c.l.b16 %v1880
        %v1929 = vunpack.c.l.b16 %v1881
        %v1930 = vunpack.c.l.b16 %v1882
        %v1931 = vunpack.c.l.b16 %v1883
        %v1932 = vpack.c.b16 %v1909, %v1908
        %v1933 = vpack.c.b16 %v1910, %v1910
        %v1934 = vpack.c.b16 %v1912, %v1911
        %v1935 = vpack.c.b16 %v1913, %v1913
        %v1936 = vpack.c.b16 %v1915, %v1914
        %v1937 = vpack.c.b16 %v1916, %v1916
        %v1938 = vpack.c.b16 %v1918, %v1917
        %v1939 = vpack.c.b16 %v1919, %v1919
        %v1940 = vpack.c.b16 %v1921, %v1920
        %v1941 = vpack.c.b16 %v1922, %v1922
        %v1942 = vpack.c.b16 %v1924, %v1923
        %v1943 = vpack.c.b16 %v1925, %v1925
        %v1944 = vpack.c.b16 %v1927, %v1926
        %v1945 = vpack.c.b16 %v1928, %v1928
        %v1946 = vpack.c.b16 %v1930, %v1929
        %v1947 = vpack.c.b16 %v1931, %v1931
        %v1948 = vrot.slane %v1932, 1
        %v1949 = vrot.slane %v1933, 1
        %v1950 = vsel %vm954, %v1948, %v1949
        %v1951 = vrot.slane %v1934, 1
        %v1952 = vrot.slane %v1935, 1
        %v1953 = vsel %vm954, %v1951, %v1952
        %v1954 = vrot.slane %v1936, 1
        %v1955 = vrot.slane %v1937, 1
        %v1956 = vsel %vm954, %v1954, %v1955
        %v1957 = vrot.slane %v1938, 1
        %v1958 = vrot.slane %v1939, 1
        %v1959 = vsel %vm954, %v1957, %v1958
        %v1960 = vrot.slane %v1940, 1
        %v1961 = vrot.slane %v1941, 1
        %v1962 = vsel %vm954, %v1960, %v1961
        %v1963 = vrot.slane %v1942, 1
        %v1964 = vrot.slane %v1943, 1
        %v1965 = vsel %vm954, %v1963, %v1964
        %v1966 = vrot.slane %v1944, 1
        %v1967 = vrot.slane %v1945, 1
        %v1968 = vsel %vm954, %v1966, %v1967
        %v1969 = vrot.slane %v1946, 1
        %v1970 = vrot.slane %v1947, 1
        %v1971 = vsel %vm954, %v1969, %v1970
        %1972 = vrot.lane.b32.xlu0 %v1950, 8
        %v1973 = vpop.permute.xlu0 %1972
        %1974 = vrot.lane.b32.xlu0 %v1949, 8
        %v1975 = vpop.permute.xlu0 %1974
        %1976 = vrot.lane.b32.xlu0 %v1953, 8
        %v1977 = vpop.permute.xlu0 %1976
        %1978 = vrot.lane.b32.xlu0 %v1952, 8
        %v1979 = vpop.permute.xlu0 %1978
        %1980 = vrot.lane.b32.xlu0 %v1956, 8
        %v1981 = vpop.permute.xlu0 %1980
        %1982 = vrot.lane.b32.xlu0 %v1955, 8
        %v1983 = vpop.permute.xlu0 %1982
        %1984 = vrot.lane.b32.xlu0 %v1959, 8
        %v1985 = vpop.permute.xlu0 %1984
        %1986 = vrot.lane.b32.xlu0 %v1958, 8
        %v1987 = vpop.permute.xlu0 %1986
        %1988 = vrot.lane.b32.xlu0 %v1962, 8
        %v1989 = vpop.permute.xlu0 %1988
        %1990 = vrot.lane.b32.xlu0 %v1961, 8
        %v1991 = vpop.permute.xlu0 %1990
        %1992 = vrot.lane.b32.xlu0 %v1965, 8
        %v1993 = vpop.permute.xlu0 %1992
        %1994 = vrot.lane.b32.xlu0 %v1964, 8
        %v1995 = vpop.permute.xlu0 %1994
        %1996 = vrot.lane.b32.xlu0 %v1968, 8
        %v1997 = vpop.permute.xlu0 %1996
        %1998 = vrot.lane.b32.xlu0 %v1967, 8
        %v1999 = vpop.permute.xlu0 %1998
        %2000 = vrot.lane.b32.xlu0 %v1971, 8
        %v2001 = vpop.permute.xlu0 %2000
        %2002 = vrot.lane.b32.xlu0 %v1970, 8
        %v2003 = vpop.permute.xlu0 %2002
        %v2004 = vrot.slane %v1932, 2
        %v2005 = vrot.slane %v1933, 2
        %v2006 = vsel %vm1011, %v2004, %v2005
        %v2007 = vrot.slane %v1934, 2
        %v2008 = vrot.slane %v1935, 2
        %v2009 = vsel %vm1011, %v2007, %v2008
        %v2010 = vrot.slane %v1936, 2
        %v2011 = vrot.slane %v1937, 2
        %v2012 = vsel %vm1011, %v2010, %v2011
        %v2013 = vrot.slane %v1938, 2
        %v2014 = vrot.slane %v1939, 2
        %v2015 = vsel %vm1011, %v2013, %v2014
        %v2016 = vrot.slane %v1940, 2
        %v2017 = vrot.slane %v1941, 2
        %v2018 = vsel %vm1011, %v2016, %v2017
        %v2019 = vrot.slane %v1942, 2
        %v2020 = vrot.slane %v1943, 2
        %v2021 = vsel %vm1011, %v2019, %v2020
        %v2022 = vrot.slane %v1944, 2
        %v2023 = vrot.slane %v1945, 2
        %v2024 = vsel %vm1011, %v2022, %v2023
        %v2025 = vrot.slane %v1946, 2
        %v2026 = vrot.slane %v1947, 2
        %v2027 = vsel %vm1011, %v2025, %v2026
        %2028 = vrot.lane.b32.xlu0 %v2006, 16
        %v2029 = vpop.permute.xlu0 %2028
        %2030 = vrot.lane.b32.xlu0 %v2005, 16
        %v2031 = vpop.permute.xlu0 %2030
        %2032 = vrot.lane.b32.xlu0 %v2009, 16
        %v2033 = vpop.permute.xlu0 %2032
        %2034 = vrot.lane.b32.xlu0 %v2008, 16
        %v2035 = vpop.permute.xlu0 %2034
        %2036 = vrot.lane.b32.xlu0 %v2012, 16
        %v2037 = vpop.permute.xlu0 %2036
        %2038 = vrot.lane.b32.xlu0 %v2011, 16
        %v2039 = vpop.permute.xlu0 %2038
        %2040 = vrot.lane.b32.xlu0 %v2015, 16
        %v2041 = vpop.permute.xlu0 %2040
        %2042 = vrot.lane.b32.xlu0 %v2014, 16
        %v2043 = vpop.permute.xlu0 %2042
        %2044 = vrot.lane.b32.xlu0 %v2018, 16
        %v2045 = vpop.permute.xlu0 %2044
        %2046 = vrot.lane.b32.xlu0 %v2017, 16
        %v2047 = vpop.permute.xlu0 %2046
        %2048 = vrot.lane.b32.xlu0 %v2021, 16
        %v2049 = vpop.permute.xlu0 %2048
        %2050 = vrot.lane.b32.xlu0 %v2020, 16
        %v2051 = vpop.permute.xlu0 %2050
        %2052 = vrot.lane.b32.xlu0 %v2024, 16
        %v2053 = vpop.permute.xlu0 %2052
        %2054 = vrot.lane.b32.xlu0 %v2023, 16
        %v2055 = vpop.permute.xlu0 %2054
        %2056 = vrot.lane.b32.xlu0 %v2027, 16
        %v2057 = vpop.permute.xlu0 %2056
        %2058 = vrot.lane.b32.xlu0 %v2026, 16
        %v2059 = vpop.permute.xlu0 %2058
        %v2062 = vsel %vm554, %v1932, %v1973
        %v2065 = vsel %vm554, %v1933, %v1975
        %v2068 = vsel %vm554, %v1934, %v1977
        %v2071 = vsel %vm554, %v1935, %v1979
        %v2074 = vsel %vm554, %v1936, %v1981
        %v2077 = vsel %vm554, %v1937, %v1983
        %v2080 = vsel %vm554, %v1938, %v1985
        %v2083 = vsel %vm554, %v1939, %v1987
        %v2086 = vsel %vm554, %v1940, %v1989
        %v2089 = vsel %vm554, %v1941, %v1991
        %v2092 = vsel %vm554, %v1942, %v1993
        %v2095 = vsel %vm554, %v1943, %v1995
        %v2098 = vsel %vm554, %v1944, %v1997
        %v2101 = vsel %vm554, %v1945, %v1999
        %v2104 = vsel %vm554, %v1946, %v2001
        %v2107 = vsel %vm554, %v1947, %v2003
        %v2109 = vsel %vm1116, %v2062, %v2029
        %v2111 = vsel %vm1116, %v2065, %v2031
        %v2113 = vsel %vm1116, %v2068, %v2033
        %v2115 = vsel %vm1116, %v2071, %v2035
        %v2117 = vsel %vm1116, %v2074, %v2037
        %v2119 = vsel %vm1116, %v2077, %v2039
        %v2121 = vsel %vm1116, %v2080, %v2041
        %v2123 = vsel %vm1116, %v2083, %v2043
        %v2125 = vsel %vm1116, %v2086, %v2045
        %v2127 = vsel %vm1116, %v2089, %v2047
        %v2129 = vsel %vm1116, %v2092, %v2049
        %v2131 = vsel %vm1116, %v2095, %v2051
        %v2133 = vsel %vm1116, %v2098, %v2053
        %v2135 = vsel %vm1116, %v2101, %v2055
        %v2137 = vsel %vm1116, %v2104, %v2057
        %v2139 = vsel %vm1116, %v2107, %v2059
        %v2140 = vshrl.u32 %v2109, 16
        %v2142 = vshll.u32 %v2109, 16
        %v2144 = vrot.slane %v2142, 1
        %v2145 = vor.u32 %v2140, %v2144
        %v2146 = vshll.u32 %v2111, 16
        %v2148 = vrot.slane %v2146, 1
        %v2149 = vsel %vm1149, %v2145, %v2148
        %v2150 = vshrl.u32 %v2113, 16
        %v2152 = vshll.u32 %v2113, 16
        %v2154 = vrot.slane %v2152, 1
        %v2155 = vor.u32 %v2150, %v2154
        %v2156 = vshll.u32 %v2115, 16
        %v2158 = vrot.slane %v2156, 1
        %v2159 = vsel %vm1149, %v2155, %v2158
        %v2160 = vshrl.u32 %v2117, 16
        %v2162 = vshll.u32 %v2117, 16
        %v2164 = vrot.slane %v2162, 1
        %v2165 = vor.u32 %v2160, %v2164
        %v2166 = vshll.u32 %v2119, 16
        %v2168 = vrot.slane %v2166, 1
        %v2169 = vsel %vm1149, %v2165, %v2168
        %v2170 = vshrl.u32 %v2121, 16
        %v2172 = vshll.u32 %v2121, 16
        %v2174 = vrot.slane %v2172, 1
        %v2175 = vor.u32 %v2170, %v2174
        %v2176 = vshll.u32 %v2123, 16
        %v2178 = vrot.slane %v2176, 1
        %v2179 = vsel %vm1149, %v2175, %v2178
        %v2180 = vshrl.u32 %v2125, 16
        %v2182 = vshll.u32 %v2125, 16
        %v2184 = vrot.slane %v2182, 1
        %v2185 = vor.u32 %v2180, %v2184
        %v2186 = vshll.u32 %v2127, 16
        %v2188 = vrot.slane %v2186, 1
        %v2189 = vsel %vm1149, %v2185, %v2188
        %v2190 = vshrl.u32 %v2129, 16
        %v2192 = vshll.u32 %v2129, 16
        %v2194 = vrot.slane %v2192, 1
        %v2195 = vor.u32 %v2190, %v2194
        %v2196 = vshll.u32 %v2131, 16
        %v2198 = vrot.slane %v2196, 1
        %v2199 = vsel %vm1149, %v2195, %v2198
        %v2200 = vshrl.u32 %v2133, 16
        %v2202 = vshll.u32 %v2133, 16
        %v2204 = vrot.slane %v2202, 1
        %v2205 = vor.u32 %v2200, %v2204
        %v2206 = vshll.u32 %v2135, 16
        %v2208 = vrot.slane %v2206, 1
        %v2209 = vsel %vm1149, %v2205, %v2208
        %v2210 = vshrl.u32 %v2137, 16
        %v2212 = vshll.u32 %v2137, 16
        %v2214 = vrot.slane %v2212, 1
        %v2215 = vor.u32 %v2210, %v2214
        %v2216 = vshll.u32 %v2139, 16
        %v2218 = vrot.slane %v2216, 1
        %v2219 = vsel %vm1149, %v2215, %v2218
        %s2220 = scalar_lea.vmem %s3, 24
        %v2221 = vld [vmem:[%s2220] sm:$0xf]
        %v2222 = vld [vmem:[%s2220 + $0x4] sm:$0xf]
        %v2223 = vld [vmem:[%s2220 + $0x8] sm:$0xf]
        %v2227 = vunpack.c.l.b16 %v2221
        %v2228 = vunpack.c.l.b16 %v2222
        %v2229 = vunpack.c.l.b16 %v2223
        %v2230 = vpack.c.b16 %v2228, %v2227
        %v2231 = vpack.c.b16 %v2229, %v2229
        %v2234 = vsel %vm1598, %v2149, 0
        %v2237 = vsel %vm1598, %v2159, 0
        %v2240 = vsel %vm1598, %v2169, 0
        %v2243 = vsel %vm1598, %v2179, 0
        %v2246 = vsel %vm1598, %v2189, 0
        %v2249 = vsel %vm1598, %v2199, 0
        %v2252 = vsel %vm1598, %v2209, 0
        %v2255 = vsel %vm1598, %v2219, 0
        %v2258 = vsel %vm579, %v2231, 0
        %2260 = vmatprep.subr.bf16.mxu0 0
        %2261 = vmatpush1.bf16.msra.mxu0 0
        %2262 = vmatprep.subr.bf16.mxu0 0
        %2263 = vmatpush1.bf16.msra.mxu0 0
        %2264 = vmatprep.subr.bf16.mxu0 0
        %2265 = vmatpush1.bf16.msra.mxu0 0
        %2266 = vmatprep.subr.bf16.mxu0 0
        %2267 = vmatpush1.bf16.msra.mxu0 0
        %2268 = vmatprep.subr.bf16.mxu0 0
        %2269 = vmatpush1.bf16.msra.mxu0 0
        %2270 = vmatprep.subr.bf16.mxu0 0
        %2271 = vmatpush1.bf16.msra.mxu0 0
        %2272 = vmatprep.subr.bf16.mxu0 0
        %2273 = vmatpush1.bf16.msra.mxu0 %v2258
        %2274 = vmatprep.subr.bf16.mxu0 0
        %2275 = vmatpush1.bf16.msra.mxu0 %v2230
        %2276 = vmatprep.subr.bf16.mxu0 0
        %2277 = vmatpush2.bf16.msra.mxu0 0
        %2278 = vmatprep.subr.bf16.mxu0 0
        %2279 = vmatpush2.bf16.msra.mxu0 0
        %2280 = vmatprep.subr.bf16.mxu0 0
        %2281 = vmatpush2.bf16.msra.mxu0 0
        %2282 = vmatprep.subr.bf16.mxu0 0
        %2283 = vmatpush2.bf16.msra.mxu0 0
        %2284 = vmatprep.subr.bf16.mxu0 0
        %2285 = vmatpush2.bf16.msra.mxu0 0
        %2286 = vmatprep.subr.bf16.mxu0 0
        %2287 = vmatpush2.bf16.msra.mxu0 0
        %2288 = vmatprep.subr.bf16.mxu0 0
        %2289 = vmatpush2.bf16.msra.mxu0 0
        %2290 = vmatprep.subr.bf16.mxu0 0
        %2291 = vmatpush2.bf16.msra.mxu0 0
        %2292 = vmatprep.mubr.bf16.mxu0 0
        %2293 = vmatmul.mubr.bf16.gmra.mxu0 %v2234
        %v2294 = vpop.f32.mrf.mxu0
        %v2295 = vadd.f32 0.0, %v2294
        %v2296 = vpop.f32.mrf.mxu0
        %v2297 = vpop.f32.mrf.mxu0
        %v2298 = vadd.f32 0.0, %v2297
        %v2299 = vpop.f32.mrf.mxu0
        %2300 = vmatprep.mubr.bf16.mxu0 0
        %2301 = vmatmul.mubr.bf16.gmra.mxu0 %v2237
        %v2302 = vpop.f32.mrf.mxu0
        %v2303 = vadd.f32 0.0, %v2302
        %v2304 = vpop.f32.mrf.mxu0
        %v2305 = vpop.f32.mrf.mxu0
        %v2306 = vadd.f32 0.0, %v2305
        %v2307 = vpop.f32.mrf.mxu0
        %2308 = vmatprep.mubr.bf16.mxu0 0
        %2309 = vmatmul.mubr.bf16.gmra.mxu0 %v2240
        %v2310 = vpop.f32.mrf.mxu0
        %v2311 = vadd.f32 0.0, %v2310
        %v2312 = vpop.f32.mrf.mxu0
        %v2313 = vpop.f32.mrf.mxu0
        %v2314 = vadd.f32 0.0, %v2313
        %v2315 = vpop.f32.mrf.mxu0
        %2316 = vmatprep.mubr.bf16.mxu0 0
        %2317 = vmatmul.mubr.bf16.gmra.mxu0 %v2243
        %v2318 = vpop.f32.mrf.mxu0
        %v2319 = vadd.f32 0.0, %v2318
        %v2320 = vpop.f32.mrf.mxu0
        %v2321 = vpop.f32.mrf.mxu0
        %v2322 = vadd.f32 0.0, %v2321
        %v2323 = vpop.f32.mrf.mxu0
        %2324 = vmatprep.mubr.bf16.mxu0 0
        %2325 = vmatmul.mubr.bf16.gmra.mxu0 %v2246
        %v2326 = vpop.f32.mrf.mxu0
        %v2327 = vadd.f32 0.0, %v2326
        %v2328 = vpop.f32.mrf.mxu0
        %v2329 = vpop.f32.mrf.mxu0
        %v2330 = vadd.f32 0.0, %v2329
        %v2331 = vpop.f32.mrf.mxu0
        %2332 = vmatprep.mubr.bf16.mxu0 0
        %2333 = vmatmul.mubr.bf16.gmra.mxu0 %v2249
        %v2334 = vpop.f32.mrf.mxu0
        %v2335 = vadd.f32 0.0, %v2334
        %v2336 = vpop.f32.mrf.mxu0
        %v2337 = vpop.f32.mrf.mxu0
        %v2338 = vadd.f32 0.0, %v2337
        %v2339 = vpop.f32.mrf.mxu0
        %2340 = vmatprep.mubr.bf16.mxu0 0
        %2341 = vmatmul.mubr.bf16.gmra.mxu0 %v2252
        %v2342 = vpop.f32.mrf.mxu0
        %v2343 = vadd.f32 0.0, %v2342
        %v2344 = vpop.f32.mrf.mxu0
        %v2345 = vpop.f32.mrf.mxu0
        %v2346 = vadd.f32 0.0, %v2345
        %v2347 = vpop.f32.mrf.mxu0
        %2348 = vmatprep.mubr.bf16.mxu0 0
        %2349 = vmatmul.mubr.bf16.gmra.mxu0 %v2255
        %v2350 = vpop.f32.mrf.mxu0
        %v2351 = vadd.f32 0.0, %v2350
        %v2352 = vpop.f32.mrf.mxu0
        %v2353 = vpop.f32.mrf.mxu0
        %v2354 = vadd.f32 0.0, %v2353
        %v2355 = vpop.f32.mrf.mxu0
        %2356 = vdwg.mxu0
        %v2357 = vadd.f32 %v1794, %v2295
        %v2358 = vadd.f32 %v1797, %v2298
        %v2359 = vadd.f32 %v1802, %v2303
        %v2360 = vadd.f32 %v1805, %v2306
        %v2361 = vadd.f32 %v1810, %v2311
        %v2362 = vadd.f32 %v1813, %v2314
        %v2363 = vadd.f32 %v1818, %v2319
        %v2364 = vadd.f32 %v1821, %v2322
        %v2365 = vadd.f32 %v1826, %v2327
        %v2366 = vadd.f32 %v1829, %v2330
        %v2367 = vadd.f32 %v1834, %v2335
        %v2368 = vadd.f32 %v1837, %v2338
        %v2369 = vadd.f32 %v1842, %v2343
        %v2370 = vadd.f32 %v1845, %v2346
        %v2371 = vadd.f32 %v1850, %v2351
        %v2372 = vadd.f32 %v1853, %v2354
        %v2373 = vld [vmem:[%s5 + $0x1] sm:$0x1]
        %v2374 = vlaneseq
        %v2375 = vshrl.u32 %v2374, 7
        %v2376 = vsub.s32 0, %v2375
        %v2377 = vrot.slane %v2373, %v2376
        %v2378 = vadd.f32 %v2357, %v2377
        %v2379 = vadd.f32 %v2358, %v2377
        %v2380 = vadd.f32 %v2359, %v2377
        %v2381 = vadd.f32 %v2360, %v2377
        %v2382 = vadd.f32 %v2361, %v2377
        %v2383 = vadd.f32 %v2362, %v2377
        %v2384 = vadd.f32 %v2363, %v2377
        %v2385 = vadd.f32 %v2364, %v2377
        %v2386 = vadd.f32 %v2365, %v2377
        %v2387 = vadd.f32 %v2366, %v2377
        %v2388 = vadd.f32 %v2367, %v2377
        %v2389 = vadd.f32 %v2368, %v2377
        %v2390 = vadd.f32 %v2369, %v2377
        %v2391 = vadd.f32 %v2370, %v2377
        %v2392 = vadd.f32 %v2371, %v2377
        %v2393 = vadd.f32 %v2372, %v2377
        %v2394 = vmax.f32 %v2378, 0.0
        %v2395 = vmax.f32 %v2379, 0.0
        %v2396 = vmax.f32 %v2380, 0.0
        %v2397 = vmax.f32 %v2381, 0.0
        %v2398 = vmax.f32 %v2382, 0.0
        %v2399 = vmax.f32 %v2383, 0.0
        %v2400 = vmax.f32 %v2384, 0.0
        %v2401 = vmax.f32 %v2385, 0.0
        %v2402 = vmax.f32 %v2386, 0.0
        %v2403 = vmax.f32 %v2387, 0.0
        %v2404 = vmax.f32 %v2388, 0.0
        %v2405 = vmax.f32 %v2389, 0.0
        %v2406 = vmax.f32 %v2390, 0.0
        %v2407 = vmax.f32 %v2391, 0.0
        %v2408 = vmax.f32 %v2392, 0.0
        %v2409 = vmax.f32 %v2393, 0.0
        %v2410 = vpack.c.bf16 %v2395, %v2394
        %v2411 = vpack.c.bf16 %v2397, %v2396
        %v2412 = vpack.c.bf16 %v2399, %v2398
        %v2413 = vpack.c.bf16 %v2401, %v2400
        %v2414 = vpack.c.bf16 %v2403, %v2402
        %v2415 = vpack.c.bf16 %v2405, %v2404
        %v2416 = vpack.c.bf16 %v2407, %v2406
        %v2417 = vpack.c.bf16 %v2409, %v2408
        %s2418 = scalar_lea.vmem %s4, 16
        %v2419 = vld [vmem:[%s2418] sm:$0xf]
        %v2420 = vld [vmem:[%s2418 + $0x4] sm:$0xf]
        %v2421 = vld [vmem:[%s2418 + $0x8] sm:$0xf]
        %v2422 = vld [vmem:[%s2418 + $0xc] sm:$0xf]
        %v2427 = vunpack.c.l.b16 %v2419
        %v2428 = vunpack.c.l.b16 %v2420
        %v2429 = vunpack.c.l.b16 %v2421
        %v2430 = vunpack.c.l.b16 %v2422
        %v2431 = vpack.c.b16 %v2428, %v2427
        %v2432 = vpack.c.b16 %v2430, %v2429
        %v2436 = vsel %vm720, %v2410, 0
        %v2439 = vsel %vm720, %v2411, 0
        %v2442 = vsel %vm720, %v2412, 0
        %v2445 = vsel %vm720, %v2413, 0
        %v2448 = vsel %vm720, %v2414, 0
        %v2451 = vsel %vm720, %v2415, 0
        %v2454 = vsel %vm720, %v2416, 0
        %v2457 = vsel %vm720, %v2417, 0
        %2459 = vmatprep.subr.bf16.mxu0 0
        %2460 = vmatpush1.bf16.msra.mxu0 0
        %2461 = vmatprep.subr.bf16.mxu0 0
        %2462 = vmatpush1.bf16.msra.mxu0 0
        %2463 = vmatprep.subr.bf16.mxu0 0
        %2464 = vmatpush1.bf16.msra.mxu0 0
        %2465 = vmatprep.subr.bf16.mxu0 0
        %2466 = vmatpush1.bf16.msra.mxu0 0
        %2467 = vmatprep.subr.bf16.mxu0 0
        %2468 = vmatpush1.bf16.msra.mxu0 0
        %2469 = vmatprep.subr.bf16.mxu0 0
        %2470 = vmatpush1.bf16.msra.mxu0 0
        %2471 = vmatprep.subr.bf16.mxu0 0
        %2472 = vmatpush1.bf16.msra.mxu0 %v2432
        %2473 = vmatprep.subr.bf16.mxu0 0
        %2474 = vmatpush1.bf16.msra.mxu0 %v2431
        %2475 = vmatprep.subr.bf16.mxu0 0
        %2476 = vmatpush2.bf16.msra.mxu0 0
        %2477 = vmatprep.subr.bf16.mxu0 0
        %2478 = vmatpush2.bf16.msra.mxu0 0
        %2479 = vmatprep.subr.bf16.mxu0 0
        %2480 = vmatpush2.bf16.msra.mxu0 0
        %2481 = vmatprep.subr.bf16.mxu0 0
        %2482 = vmatpush2.bf16.msra.mxu0 0
        %2483 = vmatprep.subr.bf16.mxu0 0
        %2484 = vmatpush2.bf16.msra.mxu0 0
        %2485 = vmatprep.subr.bf16.mxu0 0
        %2486 = vmatpush2.bf16.msra.mxu0 0
        %2487 = vmatprep.subr.bf16.mxu0 0
        %2488 = vmatpush2.bf16.msra.mxu0 0
        %2489 = vmatprep.subr.bf16.mxu0 0
        %2490 = vmatpush2.bf16.msra.mxu0 0
        %2491 = vmatprep.mubr.bf16.mxu0 0
        %2492 = vmatmul.mubr.bf16.gmra.mxu0 %v2436
        %v2493 = vpop.f32.mrf.mxu0
        %v2494 = vadd.f32 0.0, %v2493
        %v2495 = vpop.f32.mrf.mxu0
        %v2496 = vpop.f32.mrf.mxu0
        %v2497 = vadd.f32 0.0, %v2496
        %v2498 = vpop.f32.mrf.mxu0
        %2499 = vmatprep.mubr.bf16.mxu0 0
        %2500 = vmatmul.mubr.bf16.gmra.mxu0 %v2439
        %v2501 = vpop.f32.mrf.mxu0
        %v2502 = vadd.f32 0.0, %v2501
        %v2503 = vpop.f32.mrf.mxu0
        %v2504 = vpop.f32.mrf.mxu0
        %v2505 = vadd.f32 0.0, %v2504
        %v2506 = vpop.f32.mrf.mxu0
        %2507 = vmatprep.mubr.bf16.mxu0 0
        %2508 = vmatmul.mubr.bf16.gmra.mxu0 %v2442
        %v2509 = vpop.f32.mrf.mxu0
        %v2510 = vadd.f32 0.0, %v2509
        %v2511 = vpop.f32.mrf.mxu0
        %v2512 = vpop.f32.mrf.mxu0
        %v2513 = vadd.f32 0.0, %v2512
        %v2514 = vpop.f32.mrf.mxu0
        %2515 = vmatprep.mubr.bf16.mxu0 0
        %2516 = vmatmul.mubr.bf16.gmra.mxu0 %v2445
        %v2517 = vpop.f32.mrf.mxu0
        %v2518 = vadd.f32 0.0, %v2517
        %v2519 = vpop.f32.mrf.mxu0
        %v2520 = vpop.f32.mrf.mxu0
        %v2521 = vadd.f32 0.0, %v2520
        %v2522 = vpop.f32.mrf.mxu0
        %2523 = vmatprep.mubr.bf16.mxu0 0
        %2524 = vmatmul.mubr.bf16.gmra.mxu0 %v2448
        %v2525 = vpop.f32.mrf.mxu0
        %v2526 = vadd.f32 0.0, %v2525
        %v2527 = vpop.f32.mrf.mxu0
        %v2528 = vpop.f32.mrf.mxu0
        %v2529 = vadd.f32 0.0, %v2528
        %v2530 = vpop.f32.mrf.mxu0
        %2531 = vmatprep.mubr.bf16.mxu0 0
        %2532 = vmatmul.mubr.bf16.gmra.mxu0 %v2451
        %v2533 = vpop.f32.mrf.mxu0
        %v2534 = vadd.f32 0.0, %v2533
        %v2535 = vpop.f32.mrf.mxu0
        %v2536 = vpop.f32.mrf.mxu0
        %v2537 = vadd.f32 0.0, %v2536
        %v2538 = vpop.f32.mrf.mxu0
        %2539 = vmatprep.mubr.bf16.mxu0 0
        %2540 = vmatmul.mubr.bf16.gmra.mxu0 %v2454
        %v2541 = vpop.f32.mrf.mxu0
        %v2542 = vadd.f32 0.0, %v2541
        %v2543 = vpop.f32.mrf.mxu0
        %v2544 = vpop.f32.mrf.mxu0
        %v2545 = vadd.f32 0.0, %v2544
        %v2546 = vpop.f32.mrf.mxu0
        %2547 = vmatprep.mubr.bf16.mxu0 0
        %2548 = vmatmul.mubr.bf16.gmra.mxu0 %v2457
        %v2549 = vpop.f32.mrf.mxu0
        %v2550 = vadd.f32 0.0, %v2549
        %v2551 = vpop.f32.mrf.mxu0
        %v2552 = vpop.f32.mrf.mxu0
        %v2553 = vadd.f32 0.0, %v2552
        %v2554 = vpop.f32.mrf.mxu0
        %2555 = vdwg.mxu0
        %v2556 = vadd.f32 %v846, %v2494
        %v2557 = vadd.f32 %v847, %v2497
        %v2558 = vadd.f32 %v848, %v2502
        %v2559 = vadd.f32 %v849, %v2505
        %v2560 = vadd.f32 %v850, %v2510
        %v2561 = vadd.f32 %v851, %v2513
        %v2562 = vadd.f32 %v852, %v2518
        %v2563 = vadd.f32 %v853, %v2521
        %v2564 = vadd.f32 %v854, %v2526
        %v2565 = vadd.f32 %v855, %v2529
        %v2566 = vadd.f32 %v856, %v2534
        %v2567 = vadd.f32 %v857, %v2537
        %v2568 = vadd.f32 %v858, %v2542
        %v2569 = vadd.f32 %v859, %v2545
        %v2570 = vadd.f32 %v860, %v2550
        %v2571 = vadd.f32 %v861, %v2553
        %s2572 = smul.u32 %s266, 3
        %s2573 = smul.addr %s2572, 4
        %s2574 = scalar_lea.vmem %s263, %s2573
        %v2575 = vld [vmem:[%s2574] sm:$0xf]
        %v2576 = vld [vmem:[%s2574 + $0x4] sm:$0xf]
        %v2577 = vld [vmem:[%s2574 + $0x8] sm:$0x7]
        %v2578 = vld [vmem:[%s2574 + $0xc] sm:$0xf]
        %v2579 = vld [vmem:[%s2574 + $0x10] sm:$0xf]
        %v2580 = vld [vmem:[%s2574 + $0x14] sm:$0x7]
        %v2581 = vld [vmem:[%s2574 + $0x18] sm:$0xf]
        %v2582 = vld [vmem:[%s2574 + $0x1c] sm:$0xf]
        %v2583 = vld [vmem:[%s2574 + $0x20] sm:$0x7]
        %v2584 = vld [vmem:[%s2574 + $0x24] sm:$0xf]
        %v2585 = vld [vmem:[%s2574 + $0x28] sm:$0xf]
        %v2586 = vld [vmem:[%s2574 + $0x2c] sm:$0x7]
        %v2587 = vld [vmem:[%s2574 + $0x30] sm:$0xf]
        %v2588 = vld [vmem:[%s2574 + $0x34] sm:$0xf]
        %v2589 = vld [vmem:[%s2574 + $0x38] sm:$0x7]
        %v2590 = vld [vmem:[%s2574 + $0x3c] sm:$0xf]
        %v2591 = vld [vmem:[%s2574 + $0x40] sm:$0xf]
        %v2592 = vld [vmem:[%s2574 + $0x44] sm:$0x7]
        %v2593 = vld [vmem:[%s2574 + $0x48] sm:$0xf]
        %v2594 = vld [vmem:[%s2574 + $0x4c] sm:$0xf]
        %v2595 = vld [vmem:[%s2574 + $0x50] sm:$0x7]
        %v2596 = vld [vmem:[%s2574 + $0x54] sm:$0xf]
        %v2597 = vld [vmem:[%s2574 + $0x58] sm:$0xf]
        %v2598 = vld [vmem:[%s2574 + $0x5c] sm:$0x7]
        %v2615 = vunpack.c.l.b16 %v2575
        %v2616 = vunpack.c.l.b16 %v2576
        %v2617 = vunpack.c.l.b16 %v2578
        %v2618 = vunpack.c.l.b16 %v2579
        %v2619 = vunpack.c.l.b16 %v2581
        %v2620 = vunpack.c.l.b16 %v2582
        %v2621 = vunpack.c.l.b16 %v2584
        %v2622 = vunpack.c.l.b16 %v2585
        %v2623 = vunpack.c.l.b16 %v2587
        %v2624 = vunpack.c.l.b16 %v2588
        %v2625 = vunpack.c.l.b16 %v2590
        %v2626 = vunpack.c.l.b16 %v2591
        %v2627 = vunpack.c.l.b16 %v2593
        %v2628 = vunpack.c.l.b16 %v2594
        %v2629 = vunpack.c.l.b16 %v2596
        %v2630 = vunpack.c.l.b16 %v2597
        %v2631 = vpack.c.b16 %v2616, %v2615
        %v2632 = vpack.c.b16 %v2618, %v2617
        %v2633 = vpack.c.b16 %v2620, %v2619
        %v2634 = vpack.c.b16 %v2622, %v2621
        %v2635 = vpack.c.b16 %v2624, %v2623
        %v2636 = vpack.c.b16 %v2626, %v2625
        %v2637 = vpack.c.b16 %v2628, %v2627
        %v2638 = vpack.c.b16 %v2630, %v2629
        %v2647 = vunpack.c.l.b16 %v2577
        %v2648 = vunpack.c.l.b16 %v2580
        %v2649 = vunpack.c.l.b16 %v2583
        %v2650 = vunpack.c.l.b16 %v2586
        %v2651 = vunpack.c.l.b16 %v2589
        %v2652 = vunpack.c.l.b16 %v2592
        %v2653 = vunpack.c.l.b16 %v2595
        %v2654 = vunpack.c.l.b16 %v2598
        %v2655 = vpack.c.b16 %v2647, %v2647
        %v2656 = vpack.c.b16 %v2648, %v2648
        %v2657 = vpack.c.b16 %v2649, %v2649
        %v2658 = vpack.c.b16 %v2650, %v2650
        %v2659 = vpack.c.b16 %v2651, %v2651
        %v2660 = vpack.c.b16 %v2652, %v2652
        %v2661 = vpack.c.b16 %v2653, %v2653
        %v2662 = vpack.c.b16 %v2654, %v2654
        %vm2663 = vsmask.f32 6400
        %v2665 = vshrl.u32 %v2631, 16
        %v2667 = vrot.slane %v2665, 1
        %v2668 = vshll.u32 %v2631, 16
        %v2670 = vrot.slane %v2668, 2
        %v2671 = vor.u32 %v2667, %v2670
        %v2673 = vshrl.u32 %v2655, 16
        %v2675 = vrot.slane %v2673, 1
        %v2676 = vshll.u32 %v2655, 16
        %v2678 = vrot.slane %v2676, 2
        %v2679 = vor.u32 %v2675, %v2678
        %v2680 = vsel %vm2663, %v2671, %v2679
        %v2682 = vshrl.u32 %v2632, 16
        %v2684 = vrot.slane %v2682, 1
        %v2685 = vshll.u32 %v2632, 16
        %v2687 = vrot.slane %v2685, 2
        %v2688 = vor.u32 %v2684, %v2687
        %v2690 = vshrl.u32 %v2656, 16
        %v2692 = vrot.slane %v2690, 1
        %v2693 = vshll.u32 %v2656, 16
        %v2695 = vrot.slane %v2693, 2
        %v2696 = vor.u32 %v2692, %v2695
        %v2697 = vsel %vm2663, %v2688, %v2696
        %v2699 = vshrl.u32 %v2633, 16
        %v2701 = vrot.slane %v2699, 1
        %v2702 = vshll.u32 %v2633, 16
        %v2704 = vrot.slane %v2702, 2
        %v2705 = vor.u32 %v2701, %v2704
        %v2707 = vshrl.u32 %v2657, 16
        %v2709 = vrot.slane %v2707, 1
        %v2710 = vshll.u32 %v2657, 16
        %v2712 = vrot.slane %v2710, 2
        %v2713 = vor.u32 %v2709, %v2712
        %v2714 = vsel %vm2663, %v2705, %v2713
        %v2716 = vshrl.u32 %v2634, 16
        %v2718 = vrot.slane %v2716, 1
        %v2719 = vshll.u32 %v2634, 16
        %v2721 = vrot.slane %v2719, 2
        %v2722 = vor.u32 %v2718, %v2721
        %v2724 = vshrl.u32 %v2658, 16
        %v2726 = vrot.slane %v2724, 1
        %v2727 = vshll.u32 %v2658, 16
        %v2729 = vrot.slane %v2727, 2
        %v2730 = vor.u32 %v2726, %v2729
        %v2731 = vsel %vm2663, %v2722, %v2730
        %v2733 = vshrl.u32 %v2635, 16
        %v2735 = vrot.slane %v2733, 1
        %v2736 = vshll.u32 %v2635, 16
        %v2738 = vrot.slane %v2736, 2
        %v2739 = vor.u32 %v2735, %v2738
        %v2741 = vshrl.u32 %v2659, 16
        %v2743 = vrot.slane %v2741, 1
        %v2744 = vshll.u32 %v2659, 16
        %v2746 = vrot.slane %v2744, 2
        %v2747 = vor.u32 %v2743, %v2746
        %v2748 = vsel %vm2663, %v2739, %v2747
        %v2750 = vshrl.u32 %v2636, 16
        %v2752 = vrot.slane %v2750, 1
        %v2753 = vshll.u32 %v2636, 16
        %v2755 = vrot.slane %v2753, 2
        %v2756 = vor.u32 %v2752, %v2755
        %v2758 = vshrl.u32 %v2660, 16
        %v2760 = vrot.slane %v2758, 1
        %v2761 = vshll.u32 %v2660, 16
        %v2763 = vrot.slane %v2761, 2
        %v2764 = vor.u32 %v2760, %v2763
        %v2765 = vsel %vm2663, %v2756, %v2764
        %v2767 = vshrl.u32 %v2637, 16
        %v2769 = vrot.slane %v2767, 1
        %v2770 = vshll.u32 %v2637, 16
        %v2772 = vrot.slane %v2770, 2
        %v2773 = vor.u32 %v2769, %v2772
        %v2775 = vshrl.u32 %v2661, 16
        %v2777 = vrot.slane %v2775, 1
        %v2778 = vshll.u32 %v2661, 16
        %v2780 = vrot.slane %v2778, 2
        %v2781 = vor.u32 %v2777, %v2780
        %v2782 = vsel %vm2663, %v2773, %v2781
        %v2784 = vshrl.u32 %v2638, 16
        %v2786 = vrot.slane %v2784, 1
        %v2787 = vshll.u32 %v2638, 16
        %v2789 = vrot.slane %v2787, 2
        %v2790 = vor.u32 %v2786, %v2789
        %v2792 = vshrl.u32 %v2662, 16
        %v2794 = vrot.slane %v2792, 1
        %v2795 = vshll.u32 %v2662, 16
        %v2797 = vrot.slane %v2795, 2
        %v2798 = vor.u32 %v2794, %v2797
        %v2799 = vsel %vm2663, %v2790, %v2798
        %2800 = vrot.lane.b32.xlu0 %v2680, 8
        %v2801 = vpop.permute.xlu0 %2800
        %2802 = vrot.lane.b32.xlu0 %v2697, 8
        %v2803 = vpop.permute.xlu0 %2802
        %2804 = vrot.lane.b32.xlu0 %v2714, 8
        %v2805 = vpop.permute.xlu0 %2804
        %2806 = vrot.lane.b32.xlu0 %v2731, 8
        %v2807 = vpop.permute.xlu0 %2806
        %2808 = vrot.lane.b32.xlu0 %v2748, 8
        %v2809 = vpop.permute.xlu0 %2808
        %2810 = vrot.lane.b32.xlu0 %v2765, 8
        %v2811 = vpop.permute.xlu0 %2810
        %2812 = vrot.lane.b32.xlu0 %v2782, 8
        %v2813 = vpop.permute.xlu0 %2812
        %2814 = vrot.lane.b32.xlu0 %v2799, 8
        %v2815 = vpop.permute.xlu0 %2814
        %vm2816 = vcmask 1044480
        %v2817 = vrot.slane %v2631, 3
        %v2818 = vrot.slane %v2655, 3
        %v2819 = vsel %vm2816, %v2817, %v2818
        %v2820 = vrot.slane %v2632, 3
        %v2821 = vrot.slane %v2656, 3
        %v2822 = vsel %vm2816, %v2820, %v2821
        %v2823 = vrot.slane %v2633, 3
        %v2824 = vrot.slane %v2657, 3
        %v2825 = vsel %vm2816, %v2823, %v2824
        %v2826 = vrot.slane %v2634, 3
        %v2827 = vrot.slane %v2658, 3
        %v2828 = vsel %vm2816, %v2826, %v2827
        %v2829 = vrot.slane %v2635, 3
        %v2830 = vrot.slane %v2659, 3
        %v2831 = vsel %vm2816, %v2829, %v2830
        %v2832 = vrot.slane %v2636, 3
        %v2833 = vrot.slane %v2660, 3
        %v2834 = vsel %vm2816, %v2832, %v2833
        %v2835 = vrot.slane %v2637, 3
        %v2836 = vrot.slane %v2661, 3
        %v2837 = vsel %vm2816, %v2835, %v2836
        %v2838 = vrot.slane %v2638, 3
        %v2839 = vrot.slane %v2662, 3
        %v2840 = vsel %vm2816, %v2838, %v2839
        %2841 = vrot.lane.b32.xlu0 %v2819, 16
        %v2842 = vpop.permute.xlu0 %2841
        %2843 = vrot.lane.b32.xlu0 %v2822, 16
        %v2844 = vpop.permute.xlu0 %2843
        %2845 = vrot.lane.b32.xlu0 %v2825, 16
        %v2846 = vpop.permute.xlu0 %2845
        %2847 = vrot.lane.b32.xlu0 %v2828, 16
        %v2848 = vpop.permute.xlu0 %2847
        %2849 = vrot.lane.b32.xlu0 %v2831, 16
        %v2850 = vpop.permute.xlu0 %2849
        %2851 = vrot.lane.b32.xlu0 %v2834, 16
        %v2852 = vpop.permute.xlu0 %2851
        %2853 = vrot.lane.b32.xlu0 %v2837, 16
        %v2854 = vpop.permute.xlu0 %2853
        %2855 = vrot.lane.b32.xlu0 %v2840, 16
        %v2856 = vpop.permute.xlu0 %2855
        %v2858 = vsel %vm554, %v2631, %v2801
        %v2860 = vsel %vm554, %v2632, %v2803
        %v2862 = vsel %vm554, %v2633, %v2805
        %v2864 = vsel %vm554, %v2634, %v2807
        %v2866 = vsel %vm554, %v2635, %v2809
        %v2868 = vsel %vm554, %v2636, %v2811
        %v2870 = vsel %vm554, %v2637, %v2813
        %v2872 = vsel %vm554, %v2638, %v2815
        %v2874 = vsel %vm1116, %v2858, %v2842
        %v2876 = vsel %vm1116, %v2860, %v2844
        %v2878 = vsel %vm1116, %v2862, %v2846
        %v2880 = vsel %vm1116, %v2864, %v2848
        %v2882 = vsel %vm1116, %v2866, %v2850
        %v2884 = vsel %vm1116, %v2868, %v2852
        %v2886 = vsel %vm1116, %v2870, %v2854
        %v2888 = vsel %vm1116, %v2872, %v2856
        %s2889 = scalar_lea.vmem %s3, 36
        %v2890 = vld [vmem:[%s2889] sm:$0xf]
        %v2891 = vld [vmem:[%s2889 + $0x4] sm:$0xf]
        %v2892 = vld [vmem:[%s2889 + $0x8] sm:$0xf]
        %v2893 = vshrl.u32 %v1297, 16
        %v2895 = vrot.slane %v2893, 1
        %v2896 = vshll.u32 %v1297, 16
        %v2898 = vrot.slane %v2896, 2
        %v2899 = vor.u32 %v2895, %v2898
        %v2900 = vshrl.u32 %v1298, 16
        %v2902 = vrot.slane %v2900, 1
        %v2903 = vshll.u32 %v1298, 16
        %v2905 = vrot.slane %v2903, 2
        %v2906 = vor.u32 %v2902, %v2905
        %v2907 = vsel %vm2663, %v2899, %v2906
        %v2908 = vshrl.u32 %v1299, 16
        %v2910 = vrot.slane %v2908, 1
        %v2911 = vshll.u32 %v1299, 16
        %v2913 = vrot.slane %v2911, 2
        %v2914 = vor.u32 %v2910, %v2913
        %v2915 = vshrl.u32 %v1300, 16
        %v2917 = vrot.slane %v2915, 1
        %v2918 = vshll.u32 %v1300, 16
        %v2920 = vrot.slane %v2918, 2
        %v2921 = vor.u32 %v2917, %v2920
        %v2922 = vsel %vm2663, %v2914, %v2921
        %v2923 = vshrl.u32 %v1301, 16
        %v2925 = vrot.slane %v2923, 1
        %v2926 = vshll.u32 %v1301, 16
        %v2928 = vrot.slane %v2926, 2
        %v2929 = vor.u32 %v2925, %v2928
        %v2930 = vshrl.u32 %v1302, 16
        %v2932 = vrot.slane %v2930, 1
        %v2933 = vshll.u32 %v1302, 16
        %v2935 = vrot.slane %v2933, 2
        %v2936 = vor.u32 %v2932, %v2935
        %v2937 = vsel %vm2663, %v2929, %v2936
        %v2938 = vshrl.u32 %v1303, 16
        %v2940 = vrot.slane %v2938, 1
        %v2941 = vshll.u32 %v1303, 16
        %v2943 = vrot.slane %v2941, 2
        %v2944 = vor.u32 %v2940, %v2943
        %v2945 = vshrl.u32 %v1304, 16
        %v2947 = vrot.slane %v2945, 1
        %v2948 = vshll.u32 %v1304, 16
        %v2950 = vrot.slane %v2948, 2
        %v2951 = vor.u32 %v2947, %v2950
        %v2952 = vsel %vm2663, %v2944, %v2951
        %v2953 = vshrl.u32 %v1305, 16
        %v2955 = vrot.slane %v2953, 1
        %v2956 = vshll.u32 %v1305, 16
        %v2958 = vrot.slane %v2956, 2
        %v2959 = vor.u32 %v2955, %v2958
        %v2960 = vshrl.u32 %v1306, 16
        %v2962 = vrot.slane %v2960, 1
        %v2963 = vshll.u32 %v1306, 16
        %v2965 = vrot.slane %v2963, 2
        %v2966 = vor.u32 %v2962, %v2965
        %v2967 = vsel %vm2663, %v2959, %v2966
        %v2968 = vshrl.u32 %v1307, 16
        %v2970 = vrot.slane %v2968, 1
        %v2971 = vshll.u32 %v1307, 16
        %v2973 = vrot.slane %v2971, 2
        %v2974 = vor.u32 %v2970, %v2973
        %v2975 = vshrl.u32 %v1308, 16
        %v2977 = vrot.slane %v2975, 1
        %v2978 = vshll.u32 %v1308, 16
        %v2980 = vrot.slane %v2978, 2
        %v2981 = vor.u32 %v2977, %v2980
        %v2982 = vsel %vm2663, %v2974, %v2981
        %v2983 = vshrl.u32 %v1309, 16
        %v2985 = vrot.slane %v2983, 1
        %v2986 = vshll.u32 %v1309, 16
        %v2988 = vrot.slane %v2986, 2
        %v2989 = vor.u32 %v2985, %v2988
        %v2990 = vshrl.u32 %v1310, 16
        %v2992 = vrot.slane %v2990, 1
        %v2993 = vshll.u32 %v1310, 16
        %v2995 = vrot.slane %v2993, 2
        %v2996 = vor.u32 %v2992, %v2995
        %v2997 = vsel %vm2663, %v2989, %v2996
        %v2998 = vshrl.u32 %v1311, 16
        %v3000 = vrot.slane %v2998, 1
        %v3001 = vshll.u32 %v1311, 16
        %v3003 = vrot.slane %v3001, 2
        %v3004 = vor.u32 %v3000, %v3003
        %v3005 = vshrl.u32 %v1312, 16
        %v3007 = vrot.slane %v3005, 1
        %v3008 = vshll.u32 %v1312, 16
        %v3010 = vrot.slane %v3008, 2
        %v3011 = vor.u32 %v3007, %v3010
        %v3012 = vsel %vm2663, %v3004, %v3011
        %3013 = vrot.lane.b32.xlu0 %v2907, 8
        %v3014 = vpop.permute.xlu0 %3013
        %3015 = vrot.lane.b32.xlu0 %v2922, 8
        %v3016 = vpop.permute.xlu0 %3015
        %3017 = vrot.lane.b32.xlu0 %v2937, 8
        %v3018 = vpop.permute.xlu0 %3017
        %3019 = vrot.lane.b32.xlu0 %v2952, 8
        %v3020 = vpop.permute.xlu0 %3019
        %3021 = vrot.lane.b32.xlu0 %v2967, 8
        %v3022 = vpop.permute.xlu0 %3021
        %3023 = vrot.lane.b32.xlu0 %v2982, 8
        %v3024 = vpop.permute.xlu0 %3023
        %3025 = vrot.lane.b32.xlu0 %v2997, 8
        %v3026 = vpop.permute.xlu0 %3025
        %3027 = vrot.lane.b32.xlu0 %v3012, 8
        %v3028 = vpop.permute.xlu0 %3027
        %v3029 = vrot.slane %v1297, 3
        %v3030 = vrot.slane %v1298, 3
        %v3031 = vsel %vm2816, %v3029, %v3030
        %v3032 = vrot.slane %v1299, 3
        %v3033 = vrot.slane %v1300, 3
        %v3034 = vsel %vm2816, %v3032, %v3033
        %v3035 = vrot.slane %v1301, 3
        %v3036 = vrot.slane %v1302, 3
        %v3037 = vsel %vm2816, %v3035, %v3036
        %v3038 = vrot.slane %v1303, 3
        %v3039 = vrot.slane %v1304, 3
        %v3040 = vsel %vm2816, %v3038, %v3039
        %v3041 = vrot.slane %v1305, 3
        %v3042 = vrot.slane %v1306, 3
        %v3043 = vsel %vm2816, %v3041, %v3042
        %v3044 = vrot.slane %v1307, 3
        %v3045 = vrot.slane %v1308, 3
        %v3046 = vsel %vm2816, %v3044, %v3045
        %v3047 = vrot.slane %v1309, 3
        %v3048 = vrot.slane %v1310, 3
        %v3049 = vsel %vm2816, %v3047, %v3048
        %v3050 = vrot.slane %v1311, 3
        %v3051 = vrot.slane %v1312, 3
        %v3052 = vsel %vm2816, %v3050, %v3051
        %3053 = vrot.lane.b32.xlu0 %v3031, 16
        %v3054 = vpop.permute.xlu0 %3053
        %3055 = vrot.lane.b32.xlu0 %v3034, 16
        %v3056 = vpop.permute.xlu0 %3055
        %3057 = vrot.lane.b32.xlu0 %v3037, 16
        %v3058 = vpop.permute.xlu0 %3057
        %3059 = vrot.lane.b32.xlu0 %v3040, 16
        %v3060 = vpop.permute.xlu0 %3059
        %3061 = vrot.lane.b32.xlu0 %v3043, 16
        %v3062 = vpop.permute.xlu0 %3061
        %3063 = vrot.lane.b32.xlu0 %v3046, 16
        %v3064 = vpop.permute.xlu0 %3063
        %3065 = vrot.lane.b32.xlu0 %v3049, 16
        %v3066 = vpop.permute.xlu0 %3065
        %3067 = vrot.lane.b32.xlu0 %v3052, 16
        %v3068 = vpop.permute.xlu0 %3067
        %v3070 = vsel %vm554, %v1297, %v3014
        %v3072 = vsel %vm554, %v1299, %v3016
        %v3074 = vsel %vm554, %v1301, %v3018
        %v3076 = vsel %vm554, %v1303, %v3020
        %v3078 = vsel %vm554, %v1305, %v3022
        %v3080 = vsel %vm554, %v1307, %v3024
        %v3082 = vsel %vm554, %v1309, %v3026
        %v3084 = vsel %vm554, %v1311, %v3028
        %v3086 = vsel %vm1116, %v3070, %v3054
        %v3088 = vsel %vm1116, %v3072, %v3056
        %v3090 = vsel %vm1116, %v3074, %v3058
        %v3092 = vsel %vm1116, %v3076, %v3060
        %v3094 = vsel %vm1116, %v3078, %v3062
        %v3096 = vsel %vm1116, %v3080, %v3064
        %v3098 = vsel %vm1116, %v3082, %v3066
        %v3100 = vsel %vm1116, %v3084, %v3068
        %s3101 = scalar_lea.vmem %s3, 48
        %v3102 = vld [vmem:[%s3101] sm:$0xf]
        %v3103 = vld [vmem:[%s3101 + $0x4] sm:$0xf]
        %v3104 = vld [vmem:[%s3101 + $0x8] sm:$0xf]
        %v3108 = vunpack.c.l.b16 %v3102
        %v3109 = vunpack.c.l.b16 %v3103
        %v3110 = vunpack.c.l.b16 %v3104
        %v3111 = vpack.c.b16 %v3109, %v3108
        %v3112 = vpack.c.b16 %v3110, %v3110
        %v3114 = vsel %vm1598, %v3086, 0
        %v3116 = vsel %vm1598, %v3088, 0
        %v3118 = vsel %vm1598, %v3090, 0
        %v3120 = vsel %vm1598, %v3092, 0
        %v3122 = vsel %vm1598, %v3094, 0
        %v3124 = vsel %vm1598, %v3096, 0
        %v3126 = vsel %vm1598, %v3098, 0
        %v3128 = vsel %vm1598, %v3100, 0
        %v3131 = vsel %vm579, %v3112, 0
        %3133 = vmatprep.subr.bf16.mxu0 0
        %3134 = vmatpush1.bf16.msra.mxu0 0
        %3135 = vmatprep.subr.bf16.mxu0 0
        %3136 = vmatpush1.bf16.msra.mxu0 0
        %3137 = vmatprep.subr.bf16.mxu0 0
        %3138 = vmatpush1.bf16.msra.mxu0 0
        %3139 = vmatprep.subr.bf16.mxu0 0
        %3140 = vmatpush1.bf16.msra.mxu0 0
        %3141 = vmatprep.subr.bf16.mxu0 0
        %3142 = vmatpush1.bf16.msra.mxu0 0
        %3143 = vmatprep.subr.bf16.mxu0 0
        %3144 = vmatpush1.bf16.msra.mxu0 0
        %3145 = vmatprep.subr.bf16.mxu0 0
        %3146 = vmatpush1.bf16.msra.mxu0 %v3131
        %3147 = vmatprep.subr.bf16.mxu0 0
        %3148 = vmatpush1.bf16.msra.mxu0 %v3111
        %3149 = vmatprep.subr.bf16.mxu0 0
        %3150 = vmatpush2.bf16.msra.mxu0 0
        %3151 = vmatprep.subr.bf16.mxu0 0
        %3152 = vmatpush2.bf16.msra.mxu0 0
        %3153 = vmatprep.subr.bf16.mxu0 0
        %3154 = vmatpush2.bf16.msra.mxu0 0
        %3155 = vmatprep.subr.bf16.mxu0 0
        %3156 = vmatpush2.bf16.msra.mxu0 0
        %3157 = vmatprep.subr.bf16.mxu0 0
        %3158 = vmatpush2.bf16.msra.mxu0 0
        %3159 = vmatprep.subr.bf16.mxu0 0
        %3160 = vmatpush2.bf16.msra.mxu0 0
        %3161 = vmatprep.subr.bf16.mxu0 0
        %3162 = vmatpush2.bf16.msra.mxu0 0
        %3163 = vmatprep.subr.bf16.mxu0 0
        %3164 = vmatpush2.bf16.msra.mxu0 0
        %3165 = vmatprep.mubr.bf16.mxu0 0
        %3166 = vmatmul.mubr.bf16.gmra.mxu0 %v3114
        %v3167 = vpop.f32.mrf.mxu0
        %v3168 = vadd.f32 0.0, %v3167
        %v3169 = vpop.f32.mrf.mxu0
        %v3170 = vpop.f32.mrf.mxu0
        %v3171 = vadd.f32 0.0, %v3170
        %v3172 = vpop.f32.mrf.mxu0
        %3173 = vmatprep.mubr.bf16.mxu0 0
        %3174 = vmatmul.mubr.bf16.gmra.mxu0 %v3116
        %v3175 = vpop.f32.mrf.mxu0
        %v3176 = vadd.f32 0.0, %v3175
        %v3177 = vpop.f32.mrf.mxu0
        %v3178 = vpop.f32.mrf.mxu0
        %v3179 = vadd.f32 0.0, %v3178
        %v3180 = vpop.f32.mrf.mxu0
        %3181 = vmatprep.mubr.bf16.mxu0 0
        %3182 = vmatmul.mubr.bf16.gmra.mxu0 %v3118
        %v3183 = vpop.f32.mrf.mxu0
        %v3184 = vadd.f32 0.0, %v3183
        %v3185 = vpop.f32.mrf.mxu0
        %v3186 = vpop.f32.mrf.mxu0
        %v3187 = vadd.f32 0.0, %v3186
        %v3188 = vpop.f32.mrf.mxu0
        %3189 = vmatprep.mubr.bf16.mxu0 0
        %3190 = vmatmul.mubr.bf16.gmra.mxu0 %v3120
        %v3191 = vpop.f32.mrf.mxu0
        %v3192 = vadd.f32 0.0, %v3191
        %v3193 = vpop.f32.mrf.mxu0
        %v3194 = vpop.f32.mrf.mxu0
        %v3195 = vadd.f32 0.0, %v3194
        %v3196 = vpop.f32.mrf.mxu0
        %3197 = vmatprep.mubr.bf16.mxu0 0
        %3198 = vmatmul.mubr.bf16.gmra.mxu0 %v3122
        %v3199 = vpop.f32.mrf.mxu0
        %v3200 = vadd.f32 0.0, %v3199
        %v3201 = vpop.f32.mrf.mxu0
        %v3202 = vpop.f32.mrf.mxu0
        %v3203 = vadd.f32 0.0, %v3202
        %v3204 = vpop.f32.mrf.mxu0
        %3205 = vmatprep.mubr.bf16.mxu0 0
        %3206 = vmatmul.mubr.bf16.gmra.mxu0 %v3124
        %v3207 = vpop.f32.mrf.mxu0
        %v3208 = vadd.f32 0.0, %v3207
        %v3209 = vpop.f32.mrf.mxu0
        %v3210 = vpop.f32.mrf.mxu0
        %v3211 = vadd.f32 0.0, %v3210
        %v3212 = vpop.f32.mrf.mxu0
        %3213 = vmatprep.mubr.bf16.mxu0 0
        %3214 = vmatmul.mubr.bf16.gmra.mxu0 %v3126
        %v3215 = vpop.f32.mrf.mxu0
        %v3216 = vadd.f32 0.0, %v3215
        %v3217 = vpop.f32.mrf.mxu0
        %v3218 = vpop.f32.mrf.mxu0
        %v3219 = vadd.f32 0.0, %v3218
        %v3220 = vpop.f32.mrf.mxu0
        %3221 = vmatprep.mubr.bf16.mxu0 0
        %3222 = vmatmul.mubr.bf16.gmra.mxu0 %v3128
        %v3223 = vpop.f32.mrf.mxu0
        %v3224 = vadd.f32 0.0, %v3223
        %v3225 = vpop.f32.mrf.mxu0
        %v3226 = vpop.f32.mrf.mxu0
        %v3227 = vadd.f32 0.0, %v3226
        %v3228 = vpop.f32.mrf.mxu0
        %3229 = vdwg.mxu0
        %v3233 = vunpack.c.l.b16 %v2890
        %v3234 = vunpack.c.l.b16 %v2891
        %v3235 = vunpack.c.l.b16 %v2892
        %v3236 = vpack.c.b16 %v3234, %v3233
        %v3237 = vpack.c.b16 %v3235, %v3235
        %v3239 = vsel %vm1598, %v2874, 0
        %v3241 = vsel %vm1598, %v2876, 0
        %v3243 = vsel %vm1598, %v2878, 0
        %v3245 = vsel %vm1598, %v2880, 0
        %v3247 = vsel %vm1598, %v2882, 0
        %v3249 = vsel %vm1598, %v2884, 0
        %v3251 = vsel %vm1598, %v2886, 0
        %v3253 = vsel %vm1598, %v2888, 0
        %v3256 = vsel %vm579, %v3237, 0
        %3258 = vmatprep.subr.bf16.mxu0 0
        %3259 = vmatpush1.bf16.msra.mxu0 0
        %3260 = vmatprep.subr.bf16.mxu0 0
        %3261 = vmatpush1.bf16.msra.mxu0 0
        %3262 = vmatprep.subr.bf16.mxu0 0
        %3263 = vmatpush1.bf16.msra.mxu0 0
        %3264 = vmatprep.subr.bf16.mxu0 0
        %3265 = vmatpush1.bf16.msra.mxu0 0
        %3266 = vmatprep.subr.bf16.mxu0 0
        %3267 = vmatpush1.bf16.msra.mxu0 0
        %3268 = vmatprep.subr.bf16.mxu0 0
        %3269 = vmatpush1.bf16.msra.mxu0 0
        %3270 = vmatprep.subr.bf16.mxu0 0
        %3271 = vmatpush1.bf16.msra.mxu0 %v3256
        %3272 = vmatprep.subr.bf16.mxu0 0
        %3273 = vmatpush1.bf16.msra.mxu0 %v3236
        %3274 = vmatprep.subr.bf16.mxu0 0
        %3275 = vmatpush2.bf16.msra.mxu0 0
        %3276 = vmatprep.subr.bf16.mxu0 0
        %3277 = vmatpush2.bf16.msra.mxu0 0
        %3278 = vmatprep.subr.bf16.mxu0 0
        %3279 = vmatpush2.bf16.msra.mxu0 0
        %3280 = vmatprep.subr.bf16.mxu0 0
        %3281 = vmatpush2.bf16.msra.mxu0 0
        %3282 = vmatprep.subr.bf16.mxu0 0
        %3283 = vmatpush2.bf16.msra.mxu0 0
        %3284 = vmatprep.subr.bf16.mxu0 0
        %3285 = vmatpush2.bf16.msra.mxu0 0
        %3286 = vmatprep.subr.bf16.mxu0 0
        %3287 = vmatpush2.bf16.msra.mxu0 0
        %3288 = vmatprep.subr.bf16.mxu0 0
        %3289 = vmatpush2.bf16.msra.mxu0 0
        %3290 = vmatprep.mubr.bf16.mxu0 0
        %3291 = vmatmul.mubr.bf16.gmra.mxu0 %v3239
        %v3292 = vpop.f32.mrf.mxu0
        %v3293 = vadd.f32 %v3168, %v3292
        %v3294 = vpop.f32.mrf.mxu0
        %v3295 = vpop.f32.mrf.mxu0
        %v3296 = vadd.f32 %v3171, %v3295
        %v3297 = vpop.f32.mrf.mxu0
        %3298 = vmatprep.mubr.bf16.mxu0 0
        %3299 = vmatmul.mubr.bf16.gmra.mxu0 %v3241
        %v3300 = vpop.f32.mrf.mxu0
        %v3301 = vadd.f32 %v3176, %v3300
        %v3302 = vpop.f32.mrf.mxu0
        %v3303 = vpop.f32.mrf.mxu0
        %v3304 = vadd.f32 %v3179, %v3303
        %v3305 = vpop.f32.mrf.mxu0
        %3306 = vmatprep.mubr.bf16.mxu0 0
        %3307 = vmatmul.mubr.bf16.gmra.mxu0 %v3243
        %v3308 = vpop.f32.mrf.mxu0
        %v3309 = vadd.f32 %v3184, %v3308
        %v3310 = vpop.f32.mrf.mxu0
        %v3311 = vpop.f32.mrf.mxu0
        %v3312 = vadd.f32 %v3187, %v3311
        %v3313 = vpop.f32.mrf.mxu0
        %3314 = vmatprep.mubr.bf16.mxu0 0
        %3315 = vmatmul.mubr.bf16.gmra.mxu0 %v3245
        %v3316 = vpop.f32.mrf.mxu0
        %v3317 = vadd.f32 %v3192, %v3316
        %v3318 = vpop.f32.mrf.mxu0
        %v3319 = vpop.f32.mrf.mxu0
        %v3320 = vadd.f32 %v3195, %v3319
        %v3321 = vpop.f32.mrf.mxu0
        %3322 = vmatprep.mubr.bf16.mxu0 0
        %3323 = vmatmul.mubr.bf16.gmra.mxu0 %v3247
        %v3324 = vpop.f32.mrf.mxu0
        %v3325 = vadd.f32 %v3200, %v3324
        %v3326 = vpop.f32.mrf.mxu0
        %v3327 = vpop.f32.mrf.mxu0
        %v3328 = vadd.f32 %v3203, %v3327
        %v3329 = vpop.f32.mrf.mxu0
        %3330 = vmatprep.mubr.bf16.mxu0 0
        %3331 = vmatmul.mubr.bf16.gmra.mxu0 %v3249
        %v3332 = vpop.f32.mrf.mxu0
        %v3333 = vadd.f32 %v3208, %v3332
        %v3334 = vpop.f32.mrf.mxu0
        %v3335 = vpop.f32.mrf.mxu0
        %v3336 = vadd.f32 %v3211, %v3335
        %v3337 = vpop.f32.mrf.mxu0
        %3338 = vmatprep.mubr.bf16.mxu0 0
        %3339 = vmatmul.mubr.bf16.gmra.mxu0 %v3251
        %v3340 = vpop.f32.mrf.mxu0
        %v3341 = vadd.f32 %v3216, %v3340
        %v3342 = vpop.f32.mrf.mxu0
        %v3343 = vpop.f32.mrf.mxu0
        %v3344 = vadd.f32 %v3219, %v3343
        %v3345 = vpop.f32.mrf.mxu0
        %3346 = vmatprep.mubr.bf16.mxu0 0
        %3347 = vmatmul.mubr.bf16.gmra.mxu0 %v3253
        %v3348 = vpop.f32.mrf.mxu0
        %v3349 = vadd.f32 %v3224, %v3348
        %v3350 = vpop.f32.mrf.mxu0
        %v3351 = vpop.f32.mrf.mxu0
        %v3352 = vadd.f32 %v3227, %v3351
        %v3353 = vpop.f32.mrf.mxu0
        %3354 = vdwg.mxu0
        %s3355 = sadd.s32 %s266, 6
        %s3356 = smul.u32 %s3355, 3
        %s3357 = smul.addr %s3356, 4
        %s3358 = scalar_lea.vmem %s263, %s3357
        %v3359 = vld [vmem:[%s3358] sm:$0xf]
        %v3360 = vld [vmem:[%s3358 + $0x4] sm:$0xf]
        %v3361 = vld [vmem:[%s3358 + $0x8] sm:$0x7]
        %v3362 = vld [vmem:[%s3358 + $0xc] sm:$0xf]
        %v3363 = vld [vmem:[%s3358 + $0x10] sm:$0xf]
        %v3364 = vld [vmem:[%s3358 + $0x14] sm:$0x7]
        %v3365 = vld [vmem:[%s3358 + $0x18] sm:$0xf]
        %v3366 = vld [vmem:[%s3358 + $0x1c] sm:$0xf]
        %v3367 = vld [vmem:[%s3358 + $0x20] sm:$0x7]
        %v3368 = vld [vmem:[%s3358 + $0x24] sm:$0xf]
        %v3369 = vld [vmem:[%s3358 + $0x28] sm:$0xf]
        %v3370 = vld [vmem:[%s3358 + $0x2c] sm:$0x7]
        %v3371 = vld [vmem:[%s3358 + $0x30] sm:$0xf]
        %v3372 = vld [vmem:[%s3358 + $0x34] sm:$0xf]
        %v3373 = vld [vmem:[%s3358 + $0x38] sm:$0x7]
        %v3374 = vld [vmem:[%s3358 + $0x3c] sm:$0xf]
        %v3375 = vld [vmem:[%s3358 + $0x40] sm:$0xf]
        %v3376 = vld [vmem:[%s3358 + $0x44] sm:$0x7]
        %v3377 = vld [vmem:[%s3358 + $0x48] sm:$0xf]
        %v3378 = vld [vmem:[%s3358 + $0x4c] sm:$0xf]
        %v3379 = vld [vmem:[%s3358 + $0x50] sm:$0x7]
        %v3380 = vld [vmem:[%s3358 + $0x54] sm:$0xf]
        %v3381 = vld [vmem:[%s3358 + $0x58] sm:$0xf]
        %v3382 = vld [vmem:[%s3358 + $0x5c] sm:$0x7]
        %v3399 = vunpack.c.l.b16 %v3359
        %v3400 = vunpack.c.l.b16 %v3360
        %v3401 = vunpack.c.l.b16 %v3362
        %v3402 = vunpack.c.l.b16 %v3363
        %v3403 = vunpack.c.l.b16 %v3365
        %v3404 = vunpack.c.l.b16 %v3366
        %v3405 = vunpack.c.l.b16 %v3368
        %v3406 = vunpack.c.l.b16 %v3369
        %v3407 = vunpack.c.l.b16 %v3371
        %v3408 = vunpack.c.l.b16 %v3372
        %v3409 = vunpack.c.l.b16 %v3374
        %v3410 = vunpack.c.l.b16 %v3375
        %v3411 = vunpack.c.l.b16 %v3377
        %v3412 = vunpack.c.l.b16 %v3378
        %v3413 = vunpack.c.l.b16 %v3380
        %v3414 = vunpack.c.l.b16 %v3381
        %v3415 = vpack.c.b16 %v3400, %v3399
        %v3416 = vpack.c.b16 %v3402, %v3401
        %v3417 = vpack.c.b16 %v3404, %v3403
        %v3418 = vpack.c.b16 %v3406, %v3405
        %v3419 = vpack.c.b16 %v3408, %v3407
        %v3420 = vpack.c.b16 %v3410, %v3409
        %v3421 = vpack.c.b16 %v3412, %v3411
        %v3422 = vpack.c.b16 %v3414, %v3413
        %v3431 = vunpack.c.l.b16 %v3361
        %v3432 = vunpack.c.l.b16 %v3364
        %v3433 = vunpack.c.l.b16 %v3367
        %v3434 = vunpack.c.l.b16 %v3370
        %v3435 = vunpack.c.l.b16 %v3373
        %v3436 = vunpack.c.l.b16 %v3376
        %v3437 = vunpack.c.l.b16 %v3379
        %v3438 = vunpack.c.l.b16 %v3382
        %v3439 = vpack.c.b16 %v3431, %v3431
        %v3440 = vpack.c.b16 %v3432, %v3432
        %v3441 = vpack.c.b16 %v3433, %v3433
        %v3442 = vpack.c.b16 %v3434, %v3434
        %v3443 = vpack.c.b16 %v3435, %v3435
        %v3444 = vpack.c.b16 %v3436, %v3436
        %v3445 = vpack.c.b16 %v3437, %v3437
        %v3446 = vpack.c.b16 %v3438, %v3438
        %v3448 = vshrl.u32 %v3415, 16
        %v3450 = vrot.slane %v3448, 1
        %v3451 = vshll.u32 %v3415, 16
        %v3453 = vrot.slane %v3451, 2
        %v3454 = vor.u32 %v3450, %v3453
        %v3456 = vshrl.u32 %v3439, 16
        %v3458 = vrot.slane %v3456, 1
        %v3459 = vshll.u32 %v3439, 16
        %v3461 = vrot.slane %v3459, 2
        %v3462 = vor.u32 %v3458, %v3461
        %v3463 = vsel %vm2663, %v3454, %v3462
        %v3465 = vshrl.u32 %v3416, 16
        %v3467 = vrot.slane %v3465, 1
        %v3468 = vshll.u32 %v3416, 16
        %v3470 = vrot.slane %v3468, 2
        %v3471 = vor.u32 %v3467, %v3470
        %v3473 = vshrl.u32 %v3440, 16
        %v3475 = vrot.slane %v3473, 1
        %v3476 = vshll.u32 %v3440, 16
        %v3478 = vrot.slane %v3476, 2
        %v3479 = vor.u32 %v3475, %v3478
        %v3480 = vsel %vm2663, %v3471, %v3479
        %v3482 = vshrl.u32 %v3417, 16
        %v3484 = vrot.slane %v3482, 1
        %v3485 = vshll.u32 %v3417, 16
        %v3487 = vrot.slane %v3485, 2
        %v3488 = vor.u32 %v3484, %v3487
        %v3490 = vshrl.u32 %v3441, 16
        %v3492 = vrot.slane %v3490, 1
        %v3493 = vshll.u32 %v3441, 16
        %v3495 = vrot.slane %v3493, 2
        %v3496 = vor.u32 %v3492, %v3495
        %v3497 = vsel %vm2663, %v3488, %v3496
        %v3499 = vshrl.u32 %v3418, 16
        %v3501 = vrot.slane %v3499, 1
        %v3502 = vshll.u32 %v3418, 16
        %v3504 = vrot.slane %v3502, 2
        %v3505 = vor.u32 %v3501, %v3504
        %v3507 = vshrl.u32 %v3442, 16
        %v3509 = vrot.slane %v3507, 1
        %v3510 = vshll.u32 %v3442, 16
        %v3512 = vrot.slane %v3510, 2
        %v3513 = vor.u32 %v3509, %v3512
        %v3514 = vsel %vm2663, %v3505, %v3513
        %v3516 = vshrl.u32 %v3419, 16
        %v3518 = vrot.slane %v3516, 1
        %v3519 = vshll.u32 %v3419, 16
        %v3521 = vrot.slane %v3519, 2
        %v3522 = vor.u32 %v3518, %v3521
        %v3524 = vshrl.u32 %v3443, 16
        %v3526 = vrot.slane %v3524, 1
        %v3527 = vshll.u32 %v3443, 16
        %v3529 = vrot.slane %v3527, 2
        %v3530 = vor.u32 %v3526, %v3529
        %v3531 = vsel %vm2663, %v3522, %v3530
        %v3533 = vshrl.u32 %v3420, 16
        %v3535 = vrot.slane %v3533, 1
        %v3536 = vshll.u32 %v3420, 16
        %v3538 = vrot.slane %v3536, 2
        %v3539 = vor.u32 %v3535, %v3538
        %v3541 = vshrl.u32 %v3444, 16
        %v3543 = vrot.slane %v3541, 1
        %v3544 = vshll.u32 %v3444, 16
        %v3546 = vrot.slane %v3544, 2
        %v3547 = vor.u32 %v3543, %v3546
        %v3548 = vsel %vm2663, %v3539, %v3547
        %v3550 = vshrl.u32 %v3421, 16
        %v3552 = vrot.slane %v3550, 1
        %v3553 = vshll.u32 %v3421, 16
        %v3555 = vrot.slane %v3553, 2
        %v3556 = vor.u32 %v3552, %v3555
        %v3558 = vshrl.u32 %v3445, 16
        %v3560 = vrot.slane %v3558, 1
        %v3561 = vshll.u32 %v3445, 16
        %v3563 = vrot.slane %v3561, 2
        %v3564 = vor.u32 %v3560, %v3563
        %v3565 = vsel %vm2663, %v3556, %v3564
        %v3567 = vshrl.u32 %v3422, 16
        %v3569 = vrot.slane %v3567, 1
        %v3570 = vshll.u32 %v3422, 16
        %v3572 = vrot.slane %v3570, 2
        %v3573 = vor.u32 %v3569, %v3572
        %v3575 = vshrl.u32 %v3446, 16
        %v3577 = vrot.slane %v3575, 1
        %v3578 = vshll.u32 %v3446, 16
        %v3580 = vrot.slane %v3578, 2
        %v3581 = vor.u32 %v3577, %v3580
        %v3582 = vsel %vm2663, %v3573, %v3581
        %3583 = vrot.lane.b32.xlu0 %v3463, 8
        %v3584 = vpop.permute.xlu0 %3583
        %3585 = vrot.lane.b32.xlu0 %v3480, 8
        %v3586 = vpop.permute.xlu0 %3585
        %3587 = vrot.lane.b32.xlu0 %v3497, 8
        %v3588 = vpop.permute.xlu0 %3587
        %3589 = vrot.lane.b32.xlu0 %v3514, 8
        %v3590 = vpop.permute.xlu0 %3589
        %3591 = vrot.lane.b32.xlu0 %v3531, 8
        %v3592 = vpop.permute.xlu0 %3591
        %3593 = vrot.lane.b32.xlu0 %v3548, 8
        %v3594 = vpop.permute.xlu0 %3593
        %3595 = vrot.lane.b32.xlu0 %v3565, 8
        %v3596 = vpop.permute.xlu0 %3595
        %3597 = vrot.lane.b32.xlu0 %v3582, 8
        %v3598 = vpop.permute.xlu0 %3597
        %v3599 = vrot.slane %v3415, 3
        %v3600 = vrot.slane %v3439, 3
        %v3601 = vsel %vm2816, %v3599, %v3600
        %v3602 = vrot.slane %v3416, 3
        %v3603 = vrot.slane %v3440, 3
        %v3604 = vsel %vm2816, %v3602, %v3603
        %v3605 = vrot.slane %v3417, 3
        %v3606 = vrot.slane %v3441, 3
        %v3607 = vsel %vm2816, %v3605, %v3606
        %v3608 = vrot.slane %v3418, 3
        %v3609 = vrot.slane %v3442, 3
        %v3610 = vsel %vm2816, %v3608, %v3609
        %v3611 = vrot.slane %v3419, 3
        %v3612 = vrot.slane %v3443, 3
        %v3613 = vsel %vm2816, %v3611, %v3612
        %v3614 = vrot.slane %v3420, 3
        %v3615 = vrot.slane %v3444, 3
        %v3616 = vsel %vm2816, %v3614, %v3615
        %v3617 = vrot.slane %v3421, 3
        %v3618 = vrot.slane %v3445, 3
        %v3619 = vsel %vm2816, %v3617, %v3618
        %v3620 = vrot.slane %v3422, 3
        %v3621 = vrot.slane %v3446, 3
        %v3622 = vsel %vm2816, %v3620, %v3621
        %3623 = vrot.lane.b32.xlu0 %v3601, 16
        %v3624 = vpop.permute.xlu0 %3623
        %3625 = vrot.lane.b32.xlu0 %v3604, 16
        %v3626 = vpop.permute.xlu0 %3625
        %3627 = vrot.lane.b32.xlu0 %v3607, 16
        %v3628 = vpop.permute.xlu0 %3627
        %3629 = vrot.lane.b32.xlu0 %v3610, 16
        %v3630 = vpop.permute.xlu0 %3629
        %3631 = vrot.lane.b32.xlu0 %v3613, 16
        %v3632 = vpop.permute.xlu0 %3631
        %3633 = vrot.lane.b32.xlu0 %v3616, 16
        %v3634 = vpop.permute.xlu0 %3633
        %3635 = vrot.lane.b32.xlu0 %v3619, 16
        %v3636 = vpop.permute.xlu0 %3635
        %3637 = vrot.lane.b32.xlu0 %v3622, 16
        %v3638 = vpop.permute.xlu0 %3637
        %v3640 = vsel %vm554, %v3415, %v3584
        %v3642 = vsel %vm554, %v3416, %v3586
        %v3644 = vsel %vm554, %v3417, %v3588
        %v3646 = vsel %vm554, %v3418, %v3590
        %v3648 = vsel %vm554, %v3419, %v3592
        %v3650 = vsel %vm554, %v3420, %v3594
        %v3652 = vsel %vm554, %v3421, %v3596
        %v3654 = vsel %vm554, %v3422, %v3598
        %v3656 = vsel %vm1116, %v3640, %v3624
        %v3658 = vsel %vm1116, %v3642, %v3626
        %v3660 = vsel %vm1116, %v3644, %v3628
        %v3662 = vsel %vm1116, %v3646, %v3630
        %v3664 = vsel %vm1116, %v3648, %v3632
        %v3666 = vsel %vm1116, %v3650, %v3634
        %v3668 = vsel %vm1116, %v3652, %v3636
        %v3670 = vsel %vm1116, %v3654, %v3638
        %s3671 = scalar_lea.vmem %s3, 60
        %v3672 = vld [vmem:[%s3671] sm:$0xf]
        %v3673 = vld [vmem:[%s3671 + $0x4] sm:$0xf]
        %v3674 = vld [vmem:[%s3671 + $0x8] sm:$0xf]
        %v3678 = vunpack.c.l.b16 %v3672
        %v3679 = vunpack.c.l.b16 %v3673
        %v3680 = vunpack.c.l.b16 %v3674
        %v3681 = vpack.c.b16 %v3679, %v3678
        %v3682 = vpack.c.b16 %v3680, %v3680
        %v3684 = vsel %vm1598, %v3656, 0
        %v3686 = vsel %vm1598, %v3658, 0
        %v3688 = vsel %vm1598, %v3660, 0
        %v3690 = vsel %vm1598, %v3662, 0
        %v3692 = vsel %vm1598, %v3664, 0
        %v3694 = vsel %vm1598, %v3666, 0
        %v3696 = vsel %vm1598, %v3668, 0
        %v3698 = vsel %vm1598, %v3670, 0
        %v3701 = vsel %vm579, %v3682, 0
        %3703 = vmatprep.subr.bf16.mxu0 0
        %3704 = vmatpush1.bf16.msra.mxu0 0
        %3705 = vmatprep.subr.bf16.mxu0 0
        %3706 = vmatpush1.bf16.msra.mxu0 0
        %3707 = vmatprep.subr.bf16.mxu0 0
        %3708 = vmatpush1.bf16.msra.mxu0 0
        %3709 = vmatprep.subr.bf16.mxu0 0
        %3710 = vmatpush1.bf16.msra.mxu0 0
        %3711 = vmatprep.subr.bf16.mxu0 0
        %3712 = vmatpush1.bf16.msra.mxu0 0
        %3713 = vmatprep.subr.bf16.mxu0 0
        %3714 = vmatpush1.bf16.msra.mxu0 0
        %3715 = vmatprep.subr.bf16.mxu0 0
        %3716 = vmatpush1.bf16.msra.mxu0 %v3701
        %3717 = vmatprep.subr.bf16.mxu0 0
        %3718 = vmatpush1.bf16.msra.mxu0 %v3681
        %3719 = vmatprep.subr.bf16.mxu0 0
        %3720 = vmatpush2.bf16.msra.mxu0 0
        %3721 = vmatprep.subr.bf16.mxu0 0
        %3722 = vmatpush2.bf16.msra.mxu0 0
        %3723 = vmatprep.subr.bf16.mxu0 0
        %3724 = vmatpush2.bf16.msra.mxu0 0
        %3725 = vmatprep.subr.bf16.mxu0 0
        %3726 = vmatpush2.bf16.msra.mxu0 0
        %3727 = vmatprep.subr.bf16.mxu0 0
        %3728 = vmatpush2.bf16.msra.mxu0 0
        %3729 = vmatprep.subr.bf16.mxu0 0
        %3730 = vmatpush2.bf16.msra.mxu0 0
        %3731 = vmatprep.subr.bf16.mxu0 0
        %3732 = vmatpush2.bf16.msra.mxu0 0
        %3733 = vmatprep.subr.bf16.mxu0 0
        %3734 = vmatpush2.bf16.msra.mxu0 0
        %3735 = vmatprep.mubr.bf16.mxu0 0
        %3736 = vmatmul.mubr.bf16.gmra.mxu0 %v3684
        %v3737 = vpop.f32.mrf.mxu0
        %v3738 = vadd.f32 0.0, %v3737
        %v3739 = vpop.f32.mrf.mxu0
        %v3740 = vpop.f32.mrf.mxu0
        %v3741 = vadd.f32 0.0, %v3740
        %v3742 = vpop.f32.mrf.mxu0
        %3743 = vmatprep.mubr.bf16.mxu0 0
        %3744 = vmatmul.mubr.bf16.gmra.mxu0 %v3686
        %v3745 = vpop.f32.mrf.mxu0
        %v3746 = vadd.f32 0.0, %v3745
        %v3747 = vpop.f32.mrf.mxu0
        %v3748 = vpop.f32.mrf.mxu0
        %v3749 = vadd.f32 0.0, %v3748
        %v3750 = vpop.f32.mrf.mxu0
        %3751 = vmatprep.mubr.bf16.mxu0 0
        %3752 = vmatmul.mubr.bf16.gmra.mxu0 %v3688
        %v3753 = vpop.f32.mrf.mxu0
        %v3754 = vadd.f32 0.0, %v3753
        %v3755 = vpop.f32.mrf.mxu0
        %v3756 = vpop.f32.mrf.mxu0
        %v3757 = vadd.f32 0.0, %v3756
        %v3758 = vpop.f32.mrf.mxu0
        %3759 = vmatprep.mubr.bf16.mxu0 0
        %3760 = vmatmul.mubr.bf16.gmra.mxu0 %v3690
        %v3761 = vpop.f32.mrf.mxu0
        %v3762 = vadd.f32 0.0, %v3761
        %v3763 = vpop.f32.mrf.mxu0
        %v3764 = vpop.f32.mrf.mxu0
        %v3765 = vadd.f32 0.0, %v3764
        %v3766 = vpop.f32.mrf.mxu0
        %3767 = vmatprep.mubr.bf16.mxu0 0
        %3768 = vmatmul.mubr.bf16.gmra.mxu0 %v3692
        %v3769 = vpop.f32.mrf.mxu0
        %v3770 = vadd.f32 0.0, %v3769
        %v3771 = vpop.f32.mrf.mxu0
        %v3772 = vpop.f32.mrf.mxu0
        %v3773 = vadd.f32 0.0, %v3772
        %v3774 = vpop.f32.mrf.mxu0
        %3775 = vmatprep.mubr.bf16.mxu0 0
        %3776 = vmatmul.mubr.bf16.gmra.mxu0 %v3694
        %v3777 = vpop.f32.mrf.mxu0
        %v3778 = vadd.f32 0.0, %v3777
        %v3779 = vpop.f32.mrf.mxu0
        %v3780 = vpop.f32.mrf.mxu0
        %v3781 = vadd.f32 0.0, %v3780
        %v3782 = vpop.f32.mrf.mxu0
        %3783 = vmatprep.mubr.bf16.mxu0 0
        %3784 = vmatmul.mubr.bf16.gmra.mxu0 %v3696
        %v3785 = vpop.f32.mrf.mxu0
        %v3786 = vadd.f32 0.0, %v3785
        %v3787 = vpop.f32.mrf.mxu0
        %v3788 = vpop.f32.mrf.mxu0
        %v3789 = vadd.f32 0.0, %v3788
        %v3790 = vpop.f32.mrf.mxu0
        %3791 = vmatprep.mubr.bf16.mxu0 0
        %3792 = vmatmul.mubr.bf16.gmra.mxu0 %v3698
        %v3793 = vpop.f32.mrf.mxu0
        %v3794 = vadd.f32 0.0, %v3793
        %v3795 = vpop.f32.mrf.mxu0
        %v3796 = vpop.f32.mrf.mxu0
        %v3797 = vadd.f32 0.0, %v3796
        %v3798 = vpop.f32.mrf.mxu0
        %3799 = vdwg.mxu0
        %v3800 = vadd.f32 %v3293, %v3738
        %v3801 = vadd.f32 %v3296, %v3741
        %v3802 = vadd.f32 %v3301, %v3746
        %v3803 = vadd.f32 %v3304, %v3749
        %v3804 = vadd.f32 %v3309, %v3754
        %v3805 = vadd.f32 %v3312, %v3757
        %v3806 = vadd.f32 %v3317, %v3762
        %v3807 = vadd.f32 %v3320, %v3765
        %v3808 = vadd.f32 %v3325, %v3770
        %v3809 = vadd.f32 %v3328, %v3773
        %v3810 = vadd.f32 %v3333, %v3778
        %v3811 = vadd.f32 %v3336, %v3781
        %v3812 = vadd.f32 %v3341, %v3786
        %v3813 = vadd.f32 %v3344, %v3789
        %v3814 = vadd.f32 %v3349, %v3794
        %v3815 = vadd.f32 %v3352, %v3797
        %v3816 = vld [vmem:[%s5 + $0x2] sm:$0x1]
        %v3817 = vlaneseq
        %v3818 = vshrl.u32 %v3817, 7
        %v3819 = vsub.s32 0, %v3818
        %v3820 = vrot.slane %v3816, %v3819
        %v3821 = vadd.f32 %v3800, %v3820
        %v3822 = vadd.f32 %v3801, %v3820
        %v3823 = vadd.f32 %v3802, %v3820
        %v3824 = vadd.f32 %v3803, %v3820
        %v3825 = vadd.f32 %v3804, %v3820
        %v3826 = vadd.f32 %v3805, %v3820
        %v3827 = vadd.f32 %v3806, %v3820
        %v3828 = vadd.f32 %v3807, %v3820
        %v3829 = vadd.f32 %v3808, %v3820
        %v3830 = vadd.f32 %v3809, %v3820
        %v3831 = vadd.f32 %v3810, %v3820
        %v3832 = vadd.f32 %v3811, %v3820
        %v3833 = vadd.f32 %v3812, %v3820
        %v3834 = vadd.f32 %v3813, %v3820
        %v3835 = vadd.f32 %v3814, %v3820
        %v3836 = vadd.f32 %v3815, %v3820
        %v3837 = vmax.f32 %v3821, 0.0
        %v3838 = vmax.f32 %v3822, 0.0
        %v3839 = vmax.f32 %v3823, 0.0
        %v3840 = vmax.f32 %v3824, 0.0
        %v3841 = vmax.f32 %v3825, 0.0
        %v3842 = vmax.f32 %v3826, 0.0
        %v3843 = vmax.f32 %v3827, 0.0
        %v3844 = vmax.f32 %v3828, 0.0
        %v3845 = vmax.f32 %v3829, 0.0
        %v3846 = vmax.f32 %v3830, 0.0
        %v3847 = vmax.f32 %v3831, 0.0
        %v3848 = vmax.f32 %v3832, 0.0
        %v3849 = vmax.f32 %v3833, 0.0
        %v3850 = vmax.f32 %v3834, 0.0
        %v3851 = vmax.f32 %v3835, 0.0
        %v3852 = vmax.f32 %v3836, 0.0
        %v3853 = vpack.c.bf16 %v3838, %v3837
        %v3854 = vpack.c.bf16 %v3840, %v3839
        %v3855 = vpack.c.bf16 %v3842, %v3841
        %v3856 = vpack.c.bf16 %v3844, %v3843
        %v3857 = vpack.c.bf16 %v3846, %v3845
        %v3858 = vpack.c.bf16 %v3848, %v3847
        %v3859 = vpack.c.bf16 %v3850, %v3849
        %v3860 = vpack.c.bf16 %v3852, %v3851
        %s3861 = scalar_lea.vmem %s4, 32
        %v3862 = vld [vmem:[%s3861] sm:$0xf]
        %v3863 = vld [vmem:[%s3861 + $0x4] sm:$0xf]
        %v3864 = vld [vmem:[%s3861 + $0x8] sm:$0xf]
        %v3865 = vld [vmem:[%s3861 + $0xc] sm:$0xf]
        %v3870 = vunpack.c.l.b16 %v3862
        %v3871 = vunpack.c.l.b16 %v3863
        %v3872 = vunpack.c.l.b16 %v3864
        %v3873 = vunpack.c.l.b16 %v3865
        %v3874 = vpack.c.b16 %v3871, %v3870
        %v3875 = vpack.c.b16 %v3873, %v3872
        %v3879 = vsel %vm720, %v3853, 0
        %v3882 = vsel %vm720, %v3854, 0
        %v3885 = vsel %vm720, %v3855, 0
        %v3888 = vsel %vm720, %v3856, 0
        %v3891 = vsel %vm720, %v3857, 0
        %v3894 = vsel %vm720, %v3858, 0
        %v3897 = vsel %vm720, %v3859, 0
        %v3900 = vsel %vm720, %v3860, 0
        %3902 = vmatprep.subr.bf16.mxu0 0
        %3903 = vmatpush1.bf16.msra.mxu0 0
        %3904 = vmatprep.subr.bf16.mxu0 0
        %3905 = vmatpush1.bf16.msra.mxu0 0
        %3906 = vmatprep.subr.bf16.mxu0 0
        %3907 = vmatpush1.bf16.msra.mxu0 0
        %3908 = vmatprep.subr.bf16.mxu0 0
        %3909 = vmatpush1.bf16.msra.mxu0 0
        %3910 = vmatprep.subr.bf16.mxu0 0
        %3911 = vmatpush1.bf16.msra.mxu0 0
        %3912 = vmatprep.subr.bf16.mxu0 0
        %3913 = vmatpush1.bf16.msra.mxu0 0
        %3914 = vmatprep.subr.bf16.mxu0 0
        %3915 = vmatpush1.bf16.msra.mxu0 %v3875
        %3916 = vmatprep.subr.bf16.mxu0 0
        %3917 = vmatpush1.bf16.msra.mxu0 %v3874
        %3918 = vmatprep.subr.bf16.mxu0 0
        %3919 = vmatpush2.bf16.msra.mxu0 0
        %3920 = vmatprep.subr.bf16.mxu0 0
        %3921 = vmatpush2.bf16.msra.mxu0 0
        %3922 = vmatprep.subr.bf16.mxu0 0
        %3923 = vmatpush2.bf16.msra.mxu0 0
        %3924 = vmatprep.subr.bf16.mxu0 0
        %3925 = vmatpush2.bf16.msra.mxu0 0
        %3926 = vmatprep.subr.bf16.mxu0 0
        %3927 = vmatpush2.bf16.msra.mxu0 0
        %3928 = vmatprep.subr.bf16.mxu0 0
        %3929 = vmatpush2.bf16.msra.mxu0 0
        %3930 = vmatprep.subr.bf16.mxu0 0
        %3931 = vmatpush2.bf16.msra.mxu0 0
        %3932 = vmatprep.subr.bf16.mxu0 0
        %3933 = vmatpush2.bf16.msra.mxu0 0
        %3934 = vmatprep.mubr.bf16.mxu0 0
        %3935 = vmatmul.mubr.bf16.gmra.mxu0 %v3879
        %v3936 = vpop.f32.mrf.mxu0
        %v3937 = vadd.f32 0.0, %v3936
        %v3938 = vpop.f32.mrf.mxu0
        %v3939 = vpop.f32.mrf.mxu0
        %v3940 = vadd.f32 0.0, %v3939
        %v3941 = vpop.f32.mrf.mxu0
        %3942 = vmatprep.mubr.bf16.mxu0 0
        %3943 = vmatmul.mubr.bf16.gmra.mxu0 %v3882
        %v3944 = vpop.f32.mrf.mxu0
        %v3945 = vadd.f32 0.0, %v3944
        %v3946 = vpop.f32.mrf.mxu0
        %v3947 = vpop.f32.mrf.mxu0
        %v3948 = vadd.f32 0.0, %v3947
        %v3949 = vpop.f32.mrf.mxu0
        %3950 = vmatprep.mubr.bf16.mxu0 0
        %3951 = vmatmul.mubr.bf16.gmra.mxu0 %v3885
        %v3952 = vpop.f32.mrf.mxu0
        %v3953 = vadd.f32 0.0, %v3952
        %v3954 = vpop.f32.mrf.mxu0
        %v3955 = vpop.f32.mrf.mxu0
        %v3956 = vadd.f32 0.0, %v3955
        %v3957 = vpop.f32.mrf.mxu0
        %3958 = vmatprep.mubr.bf16.mxu0 0
        %3959 = vmatmul.mubr.bf16.gmra.mxu0 %v3888
        %v3960 = vpop.f32.mrf.mxu0
        %v3961 = vadd.f32 0.0, %v3960
        %v3962 = vpop.f32.mrf.mxu0
        %v3963 = vpop.f32.mrf.mxu0
        %v3964 = vadd.f32 0.0, %v3963
        %v3965 = vpop.f32.mrf.mxu0
        %3966 = vmatprep.mubr.bf16.mxu0 0
        %3967 = vmatmul.mubr.bf16.gmra.mxu0 %v3891
        %v3968 = vpop.f32.mrf.mxu0
        %v3969 = vadd.f32 0.0, %v3968
        %v3970 = vpop.f32.mrf.mxu0
        %v3971 = vpop.f32.mrf.mxu0
        %v3972 = vadd.f32 0.0, %v3971
        %v3973 = vpop.f32.mrf.mxu0
        %3974 = vmatprep.mubr.bf16.mxu0 0
        %3975 = vmatmul.mubr.bf16.gmra.mxu0 %v3894
        %v3976 = vpop.f32.mrf.mxu0
        %v3977 = vadd.f32 0.0, %v3976
        %v3978 = vpop.f32.mrf.mxu0
        %v3979 = vpop.f32.mrf.mxu0
        %v3980 = vadd.f32 0.0, %v3979
        %v3981 = vpop.f32.mrf.mxu0
        %3982 = vmatprep.mubr.bf16.mxu0 0
        %3983 = vmatmul.mubr.bf16.gmra.mxu0 %v3897
        %v3984 = vpop.f32.mrf.mxu0
        %v3985 = vadd.f32 0.0, %v3984
        %v3986 = vpop.f32.mrf.mxu0
        %v3987 = vpop.f32.mrf.mxu0
        %v3988 = vadd.f32 0.0, %v3987
        %v3989 = vpop.f32.mrf.mxu0
        %3990 = vmatprep.mubr.bf16.mxu0 0
        %3991 = vmatmul.mubr.bf16.gmra.mxu0 %v3900
        %v3992 = vpop.f32.mrf.mxu0
        %v3993 = vadd.f32 0.0, %v3992
        %v3994 = vpop.f32.mrf.mxu0
        %v3995 = vpop.f32.mrf.mxu0
        %v3996 = vadd.f32 0.0, %v3995
        %v3997 = vpop.f32.mrf.mxu0
        %3998 = vdwg.mxu0
        %v3999 = vadd.f32 %v2556, %v3937
        %v4000 = vadd.f32 %v2557, %v3940
        %v4001 = vadd.f32 %v2558, %v3945
        %v4002 = vadd.f32 %v2559, %v3948
        %v4003 = vadd.f32 %v2560, %v3953
        %v4004 = vadd.f32 %v2561, %v3956
        %v4005 = vadd.f32 %v2562, %v3961
        %v4006 = vadd.f32 %v2563, %v3964
        %v4007 = vadd.f32 %v2564, %v3969
        %v4008 = vadd.f32 %v2565, %v3972
        %v4009 = vadd.f32 %v2566, %v3977
        %v4010 = vadd.f32 %v2567, %v3980
        %v4011 = vadd.f32 %v2568, %v3985
        %v4012 = vadd.f32 %v2569, %v3988
        %v4013 = vadd.f32 %v2570, %v3993
        %v4014 = vadd.f32 %v2571, %v3996
        %v4015 = vmax.f32 %v3999, 0.0
        %v4016 = vmax.f32 %v4000, 0.0
        %v4017 = vmax.f32 %v4001, 0.0
        %v4018 = vmax.f32 %v4002, 0.0
        %v4019 = vmax.f32 %v4003, 0.0
        %v4020 = vmax.f32 %v4004, 0.0
        %v4021 = vmax.f32 %v4005, 0.0
        %v4022 = vmax.f32 %v4006, 0.0
        %v4023 = vmax.f32 %v4007, 0.0
        %v4024 = vmax.f32 %v4008, 0.0
        %v4025 = vmax.f32 %v4009, 0.0
        %v4026 = vmax.f32 %v4010, 0.0
        %v4027 = vmax.f32 %v4011, 0.0
        %v4028 = vmax.f32 %v4012, 0.0
        %v4029 = vmax.f32 %v4013, 0.0
        %v4030 = vmax.f32 %v4014, 0.0
        %4031 = vst.msk [vmem:[%s258] sm:$0xff] %vm720, %v4015
        %4032 = vst.msk [vmem:[%s258 + $0x8] sm:$0xff] %vm720, %v4016
        %4033 = vst.msk [vmem:[%s258 + $0x10] sm:$0xff] %vm720, %v4017
        %4034 = vst.msk [vmem:[%s258 + $0x18] sm:$0xff] %vm720, %v4018
        %4035 = vst.msk [vmem:[%s258 + $0x20] sm:$0xff] %vm720, %v4019
        %4036 = vst.msk [vmem:[%s258 + $0x28] sm:$0xff] %vm720, %v4020
        %4037 = vst.msk [vmem:[%s258 + $0x30] sm:$0xff] %vm720, %v4021
        %4038 = vst.msk [vmem:[%s258 + $0x38] sm:$0xff] %vm720, %v4022
        %4039 = vst.msk [vmem:[%s258 + $0x40] sm:$0xff] %vm720, %v4023
        %4040 = vst.msk [vmem:[%s258 + $0x48] sm:$0xff] %vm720, %v4024
        %4041 = vst.msk [vmem:[%s258 + $0x50] sm:$0xff] %vm720, %v4025
        %4042 = vst.msk [vmem:[%s258 + $0x58] sm:$0xff] %vm720, %v4026
        %4043 = vst.msk [vmem:[%s258 + $0x60] sm:$0xff] %vm720, %v4027
        %4044 = vst.msk [vmem:[%s258 + $0x68] sm:$0xff] %vm720, %v4028
        %4045 = vst.msk [vmem:[%s258 + $0x70] sm:$0xff] %vm720, %v4029
        %4046 = vst.msk [vmem:[%s258 + $0x78] sm:$0xff] %vm720, %v4030
        %s4047 = sand.u32 %s173, 1
        %s4048 = scalar_lea.sflag [#allocation3], %s4047
        %s4049 = sand.u32 %s173, 1
        %s4050 = smul.addr %s4049, 128
        %s4051 = scalar_lea.vmem [#allocation2], %s4050
        // Predicated region
        $region45: #{tpu_custom_call.1} parent=43 // pred_check
          %p4052 = pneg %p183
        $region46: #{tpu_custom_call.1} parent=43 // pred_check_branch
          %4054 = sbr.rel (%p4052) target = $region48
        $region47: #{tpu_custom_call.1} parent=43 // pred_region
          %s4055 = smul.u32 8, %s25
          %s4057 = ssub.s32 2048, 2048
          %4058 = vsyncadd %s4048, %s4057
          %s4059 = smul.addr %s4055, 2
          %s4060 = smul.addr %s24, 32
          %s4061 = sadd.s32 %s4059, %s4060
          %s4062 = smul.addr %s4061, 128
          %s4063 = scalar_lea.hbm %s6, %s4062
          %s4064 = sshll.u32 %s4051, 4
          %s4065 = int_to_ptr.vmem [resolvable:$true] %s4064
          %4070 = dma.vmem_to_hbm [thread:$0]  %s4065, 2048, %s4063, %s4048, 128, 128, 8
        $region48: #{tpu_custom_call.1} parent=43 // pred_fallthru
          _
      $region44: #{tpu_custom_call.1} parent=5 // pred_fallthru
        _
      %p4071 = scmp.le.s32.totalorder 2, %s15
      // Predicated region
      $region49: #{tpu_custom_call.1} parent=5 // pred_check
        %p4072 = pneg %p4071
      $region50: #{tpu_custom_call.1} parent=5 // pred_check_branch
        %4074 = sbr.rel (%p4072) target = $region52
      $region51: #{tpu_custom_call.1} parent=5 // pred_region
        %s4075 = ssub.s32 %s15, 2
        // Predicated region
        $region53: #{tpu_custom_call.1} parent=51 // pred_check
          %p4076 = pneg %p189
        $region54: #{tpu_custom_call.1} parent=51 // pred_check_branch
          %4078 = sbr.rel (%p4076) target = $region56
        $region55: #{tpu_custom_call.1} parent=51 // pred_region
          %s4079 = sand.u32 %s174, 1
          %s4080 = scalar_lea.sflag [#allocation3], %s4079
          %s4081 = sand.u32 %s174, 1
          %s4082 = smul.addr %s4081, 128
          %s4083 = scalar_lea.vmem [#allocation2], %s4082
          %4084 = dma.done %s4080, 2048
        $region56: #{tpu_custom_call.1} parent=51 // pred_fallthru
          _
      $region52: #{tpu_custom_call.1} parent=5 // pred_fallthru
        _
    $region6: #{tpu_custom_call.1} parent=1 // loop_footer
      %s19 = sadd.s32 1, %s15
    $region7: #{tpu_custom_call.1} parent=1 // loop_footer_branch
      %14 = sbr.rel target = $region3
    $region8: #{tpu_custom_call.1} parent=1 // loop_exit
      _
    %4085 = vsyncpa [#allocation3], 1
    %s4086 = scalar_lea.sflag [#allocation3], 1
    %4087 = vsyncpa %s4086, 1

// kernel: tpu_custom_call.1
$region0: #{tpu_custom_call.1}
  #allocation0 [shape = 'u32[]', space=smem, size = 0x4, offset = 0x4, fixed_abs, tag = 'smem constant byte address 0x4 - core index']
  #allocation1 [shape = 'u32[144,128]{1,0:T(1,128)}', space=vmem, size = 0x12000, scoped, tag = 'internal scratch']
  %s0 = inlined_call_operand.vmem [shape: f32[2,32], index: 0, kind: input, shape index: {}]
  %s1 = inlined_call_operand.vmem [shape: bf16[2,22,22,8], index: 1, kind: input, shape index: {}]
  %s2 = inlined_call_operand.vmem [shape: bf16[8,32], index: 2, kind: input, shape index: {}]
  %s3 = inlined_call_operand.vmem [shape: bf16[6,24,32], index: 3, kind: input, shape index: {}]
  %s4 = inlined_call_operand.vmem [shape: bf16[3,32,32], index: 4, kind: input, shape index: {}]
  %s5 = inlined_call_operand.vmem [shape: f32[3,32], index: 5, kind: input, shape index: {}]
  %s6 = inlined_call_operand.hbm [shape: f32[2,16,16,32], index: 6, kind: output, shape index: {}]
  %s7 = sld [smem:[#allocation0]]
  $region57: #{tpu_custom_call.1} parent=0
    _
  %s9 = ssub.s32 1, %s7
  %s10 = scalar_select 0, %s9, %s7
  $region1: #{tpu_custom_call.1} parent=0
    #allocation2 [shape = 'u8[131072]{0}', space=vmem, size = 0x20000, scoped, tag = 'output window, operand 0']
    #allocation3 [shape = 's32[2]{0}', space=sflag, size = 0x8, scoped, tag = 'scoped memory for tpu_custom_call.1']
    %11 = vsyncpa [#allocation3], 0
    %s12 = scalar_lea.sflag [#allocation3], 1
    %13 = vsyncpa %s12, 0
    loop: start=0, step=1, limit=6
    $region2: #{tpu_custom_call.1} parent=1 // loop_pre_header
      _
    $region3: #{tpu_custom_call.1} parent=1 // loop_header
      %s15 = sphi 0, %s19
      %p16 = scmp.ge.s32.totalorder %s15, 6
      %s22 = sphi 0, %s34
      %s23 = sphi 0, %s30
      %s24 = sphi 0, %s22
      %s25 = sphi 0, %s23
      %s26 = sphi 0, %s24
      %s27 = sphi 0, %s25
      %s35 = sphi 0, %s35
      %s37 = sphi 0, %s35
      %s38 = sphi 0, %s37
      %s52 = sphi 0, %s38
      %s58 = sphi 0, %s60
      %s61 = sphi 0, %s58
      %s62 = sphi 0, %s61
      %s78 = sphi 0, %s62
      %s82 = sphi 0, %s82
      %s84 = sphi 0, %s82
      %s85 = sphi 0, %s84
      %s99 = sphi 0, %s85
      %s103 = sphi 0, %s103
      %s105 = sphi 0, %s103
      %s106 = sphi 0, %s105
      %s120 = sphi 0, %s106
      %s124 = sphi 0, %s124
      %s126 = sphi 0, %s124
      %s127 = sphi 0, %s126
      %s141 = sphi 0, %s127
      %s145 = sphi 0, %s145
      %s147 = sphi 0, %s145
      %s148 = sphi 0, %s147
      %s162 = sphi 0, %s148
      %s170 = sphi 0, %s172
      %s173 = sphi 0, %s170
      %s174 = sphi 0, %s173
      %s190 = sphi 0, %s174
    $region4: #{tpu_custom_call.1} parent=1 // loop_header_branch
      %18 = sbr.rel (%p16) target = $region8
    $region5: #{tpu_custom_call.1} parent=1 // loop_body
      %s20 = ssub.s32 %s15, 1
      %s21 = ssub.s32 %s15, 2
      %s28 = sadd.s32 1, %s23
      %p29 = scmp.ge.s32.totalorder %s28, 2
      %s30 = scalar_select %p29, 0, %s28
      %s31 = sadd.s32 1, %s22
      %s32 = scalar_select %p29, %s31, %s22
      %p33 = scmp.ge.s32.totalorder %s32, 2
      %s34 = scalar_select %p33, 0, %s32
      %s36 = sadd.s32 %s35, 1
      %p39 = scmp.eq.s32.totalorder %s15, 3
      %p40 = scmp.ne.s32.totalorder %s35, %s37
      %p41 = scmp.eq.s32.totalorder %s15, 0
      %p42 = por %p40, %p41
      %p43 = scmp.ne.s32.totalorder %s35, %s37
      %p44 = scmp.eq.s32.totalorder %s20, 3
      %p45 = por %p43, %p44
      %p46 = scmp.ne.s32.totalorder %s37, %s38
      %p47 = scmp.eq.s32.totalorder %s20, 0
      %p48 = por %p46, %p47
      %p49 = scmp.ne.s32.totalorder %s37, %s38
      %p50 = scmp.eq.s32.totalorder %s21, 3
      %p51 = por %p49, %p50
      %p53 = scmp.ne.s32.totalorder %s38, %s52
      %p54 = scmp.eq.s32.totalorder %s21, 0
      %p55 = por %p53, %p54
      %s56 = ssub.s32 %s22, %s34
      %p57 = scmp.eq.s32.totalorder %s56, 0
      %s59 = sadd.s32 %s58, 1
      %s60 = scalar_select %p57, %s58, %s59
      %p63 = pneg %p57
      %p64 = scmp.eq.s32.totalorder %s15, 3
      %p65 = por %p63, %p64
      %p66 = scmp.ne.s32.totalorder %s58, %s61
      %p67 = scmp.eq.s32.totalorder %s15, 0
      %p68 = por %p66, %p67
      %p69 = scmp.ne.s32.totalorder %s58, %s61
      %p70 = scmp.eq.s32.totalorder %s20, 3
      %p71 = por %p69, %p70
      %p72 = scmp.ne.s32.totalorder %s61, %s62
      %p73 = scmp.eq.s32.totalorder %s20, 0
      %p74 = por %p72, %p73
      %p75 = scmp.ne.s32.totalorder %s61, %s62
      %p76 = scmp.eq.s32.totalorder %s21, 3
      %p77 = por %p75, %p76
      %p79 = scmp.ne.s32.totalorder %s62, %s78
      %p80 = scmp.eq.s32.totalorder %s21, 0
      %p81 = por %p79, %p80
      %s83 = sadd.s32 %s82, 1
      %p86 = scmp.eq.s32.totalorder %s15, 3
      %p87 = scmp.ne.s32.totalorder %s82, %s84
      %p88 = scmp.eq.s32.totalorder %s15, 0
      %p89 = por %p87, %p88
      %p90 = scmp.ne.s32.totalorder %s82, %s84
      %p91 = scmp.eq.s32.totalorder %s20, 3
      %p92 = por %p90, %p91
      %p93 = scmp.ne.s32.totalorder %s84, %s85
      %p94 = scmp.eq.s32.totalorder %s20, 0
      %p95 = por %p93, %p94
      %p96 = scmp.ne.s32.totalorder %s84, %s85
      %p97 = scmp.eq.s32.totalorder %s21, 3
      %p98 = por %p96, %p97
      %p100 = scmp.ne.s32.totalorder %s85, %s99
      %p101 = scmp.eq.s32.totalorder %s21, 0
      %p102 = por %p100, %p101
      %s104 = sadd.s32 %s103, 1
      %p107 = scmp.eq.s32.totalorder %s15, 3
      %p108 = scmp.ne.s32.totalorder %s103, %s105
      %p109 = scmp.eq.s32.totalorder %s15, 0
      %p110 = por %p108, %p109
      %p111 = scmp.ne.s32.totalorder %s103, %s105
      %p112 = scmp.eq.s32.totalorder %s20, 3
      %p113 = por %p111, %p112
      %p114 = scmp.ne.s32.totalorder %s105, %s106
      %p115 = scmp.eq.s32.totalorder %s20, 0
      %p116 = por %p114, %p115
      %p117 = scmp.ne.s32.totalorder %s105, %s106
      %p118 = scmp.eq.s32.totalorder %s21, 3
      %p119 = por %p117, %p118
      %p121 = scmp.ne.s32.totalorder %s106, %s120
      %p122 = scmp.eq.s32.totalorder %s21, 0
      %p123 = por %p121, %p122
      %s125 = sadd.s32 %s124, 1
      %p128 = scmp.eq.s32.totalorder %s15, 3
      %p129 = scmp.ne.s32.totalorder %s124, %s126
      %p130 = scmp.eq.s32.totalorder %s15, 0
      %p131 = por %p129, %p130
      %p132 = scmp.ne.s32.totalorder %s124, %s126
      %p133 = scmp.eq.s32.totalorder %s20, 3
      %p134 = por %p132, %p133
      %p135 = scmp.ne.s32.totalorder %s126, %s127
      %p136 = scmp.eq.s32.totalorder %s20, 0
      %p137 = por %p135, %p136
      %p138 = scmp.ne.s32.totalorder %s126, %s127
      %p139 = scmp.eq.s32.totalorder %s21, 3
      %p140 = por %p138, %p139
      %p142 = scmp.ne.s32.totalorder %s127, %s141
      %p143 = scmp.eq.s32.totalorder %s21, 0
      %p144 = por %p142, %p143
      %s146 = sadd.s32 %s145, 1
      %p149 = scmp.eq.s32.totalorder %s15, 3
      %p150 = scmp.ne.s32.totalorder %s145, %s147
      %p151 = scmp.eq.s32.totalorder %s15, 0
      %p152 = por %p150, %p151
      %p153 = scmp.ne.s32.totalorder %s145, %s147
      %p154 = scmp.eq.s32.totalorder %s20, 3
      %p155 = por %p153, %p154
      %p156 = scmp.ne.s32.totalorder %s147, %s148
      %p157 = scmp.eq.s32.totalorder %s20, 0
      %p158 = por %p156, %p157
      %p159 = scmp.ne.s32.totalorder %s147, %s148
      %p160 = scmp.eq.s32.totalorder %s21, 3
      %p161 = por %p159, %p160
      %p163 = scmp.ne.s32.totalorder %s148, %s162
      %p164 = scmp.eq.s32.totalorder %s21, 0
      %p165 = por %p163, %p164
      %s166 = ssub.s32 %s22, %s34
      %s167 = ssub.s32 %s23, %s30
      %s168 = sor.u32 %s166, %s167
      %p169 = scmp.eq.s32.totalorder %s168, 0
      %s171 = sadd.s32 %s170, 1
      %s172 = scalar_select %p169, %s170, %s171
      %p175 = pneg %p169
      %p176 = scmp.eq.s32.totalorder %s15, 3
      %p177 = por %p175, %p176
      %p178 = scmp.ne.s32.totalorder %s170, %s173
      %p179 = scmp.eq.s32.totalorder %s15, 0
      %p180 = por %p178, %p179
      %p181 = scmp.ne.s32.totalorder %s170, %s173
      %p182 = scmp.eq.s32.totalorder %s20, 3
      %p183 = por %p181, %p182
      %p184 = scmp.ne.s32.totalorder %s173, %s174
      %p185 = scmp.eq.s32.totalorder %s20, 0
      %p186 = por %p184, %p185
      %p187 = scmp.ne.s32.totalorder %s173, %s174
      %p188 = scmp.eq.s32.totalorder %s21, 3
      %p189 = por %p187, %p188
      %p191 = scmp.ne.s32.totalorder %s174, %s190
      %p192 = scmp.eq.s32.totalorder %s21, 0
      %p193 = por %p191, %p192
      %p194 = scmp.le.s32.totalorder 1, %s15
      %p195 = scmp.lt.s32.totalorder %s15, 5
      %p196 = pnand %p194, %p195
      %p197 = pneg %p196
      // Predicated region
      $region9: #{tpu_custom_call.1} parent=5 // pred_check
        _
      $region10: #{tpu_custom_call.1} parent=5 // pred_check_branch
        %199 = sbr.rel (%p196) target = $region12
      $region11: #{tpu_custom_call.1} parent=5 // pred_region
        %s200 = ssub.s32 %s15, 1
        // Predicated region
        $region13: #{tpu_custom_call.1} parent=11 // pred_check
          %p201 = pneg %p48
        $region14: #{tpu_custom_call.1} parent=11 // pred_check_branch
          %203 = sbr.rel (%p201) target = $region16
        $region15: #{tpu_custom_call.1} parent=11 // pred_region
          _
        $region16: #{tpu_custom_call.1} parent=11 // pred_fallthru
          _
        // Predicated region
        $region17: #{tpu_custom_call.1} parent=11 // pred_check
          %p204 = pneg %p95
        $region18: #{tpu_custom_call.1} parent=11 // pred_check_branch
          %206 = sbr.rel (%p204) target = $region20
        $region19: #{tpu_custom_call.1} parent=11 // pred_region
          _
        $region20: #{tpu_custom_call.1} parent=11 // pred_fallthru
          _
        // Predicated region
        $region21: #{tpu_custom_call.1} parent=11 // pred_check
          %p207 = pneg %p116
        $region22: #{tpu_custom_call.1} parent=11 // pred_check_branch
          %209 = sbr.rel (%p207) target = $region24
        $region23: #{tpu_custom_call.1} parent=11 // pred_region
          _
        $region24: #{tpu_custom_call.1} parent=11 // pred_fallthru
          _
        // Predicated region
        $region25: #{tpu_custom_call.1} parent=11 // pred_check
          %p210 = pneg %p137
        $region26: #{tpu_custom_call.1} parent=11 // pred_check_branch
          %212 = sbr.rel (%p210) target = $region28
        $region27: #{tpu_custom_call.1} parent=11 // pred_region
          _
        $region28: #{tpu_custom_call.1} parent=11 // pred_fallthru
          _
        // Predicated region
        $region29: #{tpu_custom_call.1} parent=11 // pred_check
          %p213 = pneg %p158
        $region30: #{tpu_custom_call.1} parent=11 // pred_check_branch
          %215 = sbr.rel (%p213) target = $region32
        $region31: #{tpu_custom_call.1} parent=11 // pred_region
          _
        $region32: #{tpu_custom_call.1} parent=11 // pred_fallthru
          _
      $region12: #{tpu_custom_call.1} parent=5 // pred_fallthru
        _
      %p216 = scmp.lt.s32.totalorder %s15, 4
      // Predicated region
      $region33: #{tpu_custom_call.1} parent=5 // pred_check
        %p217 = pneg %p216
      $region34: #{tpu_custom_call.1} parent=5 // pred_check_branch
        %219 = sbr.rel (%p217) target = $region36
      $region35: #{tpu_custom_call.1} parent=5 // pred_region
        // Predicated region
        $region37: #{tpu_custom_call.1} parent=35 // pred_check
          %p220 = pneg %p68
        $region38: #{tpu_custom_call.1} parent=35 // pred_check_branch
          %222 = sbr.rel (%p220) target = $region40
        $region39: #{tpu_custom_call.1} parent=35 // pred_region
          %p223 = scmp.lt.s32.totalorder %s22, 1
          %s224 = scalar_select %p223, %s22, 1
          %s225 = smul.addr %s224, 66
          %s226 = smul.addr %s225, 4
          %s227 = scalar_lea.vmem %s1, %s226
        $region40: #{tpu_custom_call.1} parent=35 // pred_fallthru
          _
      $region36: #{tpu_custom_call.1} parent=5 // pred_fallthru
        _
      %p228 = scmp.le.s32.totalorder 1, %s15
      %p229 = scmp.lt.s32.totalorder %s15, 5
      %p230 = pnand %p228, %p229
      %p231 = pneg %p230
      // Predicated region
      $region41: #{tpu_custom_call.1} parent=5 // pred_check
        _
      $region42: #{tpu_custom_call.1} parent=5 // pred_check_branch
        %233 = sbr.rel (%p230) target = $region44
      $region43: #{tpu_custom_call.1} parent=5 // pred_region
        %s234 = ssub.s32 %s15, 1
        %p235 = pneg %p48
        %p236 = pneg %p45
        %p237 = scmp.lt.s32.totalorder %s24, 1
        %s238 = scalar_select %p237, %s24, 1
        %s239 = smul.addr %s238, 66
        %s240 = smul.addr %s239, 4
        %s241 = scalar_lea.vmem %s1, %s240
        %p242 = pneg %p74
        %p243 = pneg %p71
        %p244 = pneg %p95
        %p245 = pneg %p92
        %p246 = pneg %p116
        %p247 = pneg %p113
        %p248 = pneg %p137
        %p249 = pneg %p134
        %p250 = pneg %p158
        %p251 = pneg %p155
        %p252 = pneg %p186
        %p253 = pneg %p183
        %s254 = sand.u32 %s173, 1
        %s255 = scalar_lea.sflag [#allocation3], %s254
        %s256 = sand.u32 %s173, 1
        %s257 = smul.addr %s256, 128
        %s258 = scalar_lea.vmem [#allocation2], %s257
        %p259 = scmp.lt.s32.totalorder %s24, 1
        %s260 = scalar_select %p259, %s24, 1
        %s261 = smul.addr %s260, 66
        %s262 = smul.addr %s261, 4
        %s263 = scalar_lea.vmem %s1, %s262
        %s264 = smul.u32 8, %s25
        %s266 = smul.u32 %s25, 8
        %s267 = scalar_lea.vmem %s0, %s24
        %v268 = vld [vmem:[%s267] sm:$0x1]
        %s269 = sadd.s32 %s266, 3
        %s270 = smul.u32 %s269, 3
        %s271 = smul.addr %s270, 4
        %s272 = scalar_lea.vmem %s263, %s271
        %v273 = vld [vmem:[%s272] sm:$0xe]
        %v274 = vld [vmem:[%s272 + $0x4] sm:$0xf]
        %v275 = vld [vmem:[%s272 + $0x8] sm:$0x3]
        %v276 = vld [vmem:[%s272 + $0xc] sm:$0xe]
        %v277 = vld [vmem:[%s272 + $0x10] sm:$0xf]
        %v278 = vld [vmem:[%s272 + $0x14] sm:$0x3]
        %v279 = vld [vmem:[%s272 + $0x18] sm:$0xe]
        %v280 = vld [vmem:[%s272 + $0x1c] sm:$0xf]
        %v281 = vld [vmem:[%s272 + $0x20] sm:$0x3]
        %v282 = vld [vmem:[%s272 + $0x24] sm:$0xe]
        %v283 = vld [vmem:[%s272 + $0x28] sm:$0xf]
        %v284 = vld [vmem:[%s272 + $0x2c] sm:$0x3]
        %v285 = vld [vmem:[%s272 + $0x30] sm:$0xe]
        %v286 = vld [vmem:[%s272 + $0x34] sm:$0xf]
        %v287 = vld [vmem:[%s272 + $0x38] sm:$0x3]
        %v288 = vld [vmem:[%s272 + $0x3c] sm:$0xe]
        %v289 = vld [vmem:[%s272 + $0x40] sm:$0xf]
        %v290 = vld [vmem:[%s272 + $0x44] sm:$0x3]
        %v291 = vld [vmem:[%s272 + $0x48] sm:$0xe]
        %v292 = vld [vmem:[%s272 + $0x4c] sm:$0xf]
        %v293 = vld [vmem:[%s272 + $0x50] sm:$0x3]
        %v294 = vld [vmem:[%s272 + $0x54] sm:$0xe]
        %v295 = vld [vmem:[%s272 + $0x58] sm:$0xf]
        %v296 = vld [vmem:[%s272 + $0x5c] sm:$0x3]
        %vm297 = vsmask.f32 2304
        %vm298 = vsmask.f32 6416
        %vm299 = vmor %vm297, %vm298
        %v301 = vshrl.u32 %v273, 16
        %v303 = vrot.slane %v301, 5
        %v304 = vshll.u32 %v273, 16
        %v306 = vrot.slane %v304, 6
        %v307 = vor.u32 %v303, %v306
        %v308 = vrot.slane %v307, 4
        %v310 = vshrl.u32 %v274, 16
        %v312 = vrot.slane %v310, 5
        %v313 = vshll.u32 %v274, 16
        %v315 = vrot.slane %v313, 6
        %v316 = vor.u32 %v312, %v315
        %v317 = vsel %vm299, %v308, %v316
        %v318 = vrot.slane %v316, 4
        %v320 = vshrl.u32 %v275, 16
        %v322 = vrot.slane %v320, 5
        %v323 = vshll.u32 %v275, 16
        %v325 = vrot.slane %v323, 6
        %v326 = vor.u32 %v322, %v325
        %v327 = vsel %vm299, %v318, %v326
        %v329 = vshrl.u32 %v276, 16
        %v331 = vrot.slane %v329, 5
        %v332 = vshll.u32 %v276, 16
        %v334 = vrot.slane %v332, 6
        %v335 = vor.u32 %v331, %v334
        %v336 = vrot.slane %v335, 4
        %v338 = vshrl.u32 %v277, 16
        %v340 = vrot.slane %v338, 5
        %v341 = vshll.u32 %v277, 16
        %v343 = vrot.slane %v341, 6
        %v344 = vor.u32 %v340, %v343
        %v345 = vsel %vm299, %v336, %v344
        %v346 = vrot.slane %v344, 4
        %v348 = vshrl.u32 %v278, 16
        %v350 = vrot.slane %v348, 5
        %v351 = vshll.u32 %v278, 16
        %v353 = vrot.slane %v351, 6
        %v354 = vor.u32 %v350, %v353
        %v355 = vsel %vm299, %v346, %v354
        %v357 = vshrl.u32 %v279, 16
        %v359 = vrot.slane %v357, 5
        %v360 = vshll.u32 %v279, 16
        %v362 = vrot.slane %v360, 6
        %v363 = vor.u32 %v359, %v362
        %v364 = vrot.slane %v363, 4
        %v366 = vshrl.u32 %v280, 16
        %v368 = vrot.slane %v366, 5
        %v369 = vshll.u32 %v280, 16
        %v371 = vrot.slane %v369, 6
        %v372 = vor.u32 %v368, %v371
        %v373 = vsel %vm299, %v364, %v372
        %v374 = vrot.slane %v372, 4
        %v376 = vshrl.u32 %v281, 16
        %v378 = vrot.slane %v376, 5
        %v379 = vshll.u32 %v281, 16
        %v381 = vrot.slane %v379, 6
        %v382 = vor.u32 %v378, %v381
        %v383 = vsel %vm299, %v374, %v382
        %v385 = vshrl.u32 %v282, 16
        %v387 = vrot.slane %v385, 5
        %v388 = vshll.u32 %v282, 16
        %v390 = vrot.slane %v388, 6
        %v391 = vor.u32 %v387, %v390
        %v392 = vrot.slane %v391, 4
        %v394 = vshrl.u32 %v283, 16
        %v396 = vrot.slane %v394, 5
        %v397 = vshll.u32 %v283, 16
        %v399 = vrot.slane %v397, 6
        %v400 = vor.u32 %v396, %v399
        %v401 = vsel %vm299, %v392, %v400
        %v402 = vrot.slane %v400, 4
        %v404 = vshrl.u32 %v284, 16
        %v406 = vrot.slane %v404, 5
        %v407 = vshll.u32 %v284, 16
        %v409 = vrot.slane %v407, 6
        %v410 = vor.u32 %v406, %v409
        %v411 = vsel %vm299, %v402, %v410
        %v413 = vshrl.u32 %v285, 16
        %v415 = vrot.slane %v413, 5
        %v416 = vshll.u32 %v285, 16
        %v418 = vrot.slane %v416, 6
        %v419 = vor.u32 %v415, %v418
        %v420 = vrot.slane %v419, 4
        %v422 = vshrl.u32 %v286, 16
        %v424 = vrot.slane %v422, 5
        %v425 = vshll.u32 %v286, 16
        %v427 = vrot.slane %v425, 6
        %v428 = vor.u32 %v424, %v427
        %v429 = vsel %vm299, %v420, %v428
        %v430 = vrot.slane %v428, 4
        %v432 = vshrl.u32 %v287, 16
        %v434 = vrot.slane %v432, 5
        %v435 = vshll.u32 %v287, 16
        %v437 = vrot.slane %v435, 6
        %v438 = vor.u32 %v434, %v437
        %v439 = vsel %vm299, %v430, %v438
        %v441 = vshrl.u32 %v288, 16
        %v443 = vrot.slane %v441, 5
        %v444 = vshll.u32 %v288, 16
        %v446 = vrot.slane %v444, 6
        %v447 = vor.u32 %v443, %v446
        %v448 = vrot.slane %v447, 4
        %v450 = vshrl.u32 %v289, 16
        %v452 = vrot.slane %v450, 5
        %v453 = vshll.u32 %v289, 16
        %v455 = vrot.slane %v453, 6
        %v456 = vor.u32 %v452, %v455
        %v457 = vsel %vm299, %v448, %v456
        %v458 = vrot.slane %v456, 4
        %v460 = vshrl.u32 %v290, 16
        %v462 = vrot.slane %v460, 5
        %v463 = vshll.u32 %v290, 16
        %v465 = vrot.slane %v463, 6
        %v466 = vor.u32 %v462, %v465
        %v467 = vsel %vm299, %v458, %v466
        %v469 = vshrl.u32 %v291, 16
        %v471 = vrot.slane %v469, 5
        %v472 = vshll.u32 %v291, 16
        %v474 = vrot.slane %v472, 6
        %v475 = vor.u32 %v471, %v474
        %v476 = vrot.slane %v475, 4
        %v478 = vshrl.u32 %v292, 16
        %v480 = vrot.slane %v478, 5
        %v481 = vshll.u32 %v292, 16
        %v483 = vrot.slane %v481, 6
        %v484 = vor.u32 %v480, %v483
        %v485 = vsel %vm299, %v476, %v484
        %v486 = vrot.slane %v484, 4
        %v488 = vshrl.u32 %v293, 16
        %v490 = vrot.slane %v488, 5
        %v491 = vshll.u32 %v293, 16
        %v493 = vrot.slane %v491, 6
        %v494 = vor.u32 %v490, %v493
        %v495 = vsel %vm299, %v486, %v494
        %v497 = vshrl.u32 %v294, 16
        %v499 = vrot.slane %v497, 5
        %v500 = vshll.u32 %v294, 16
        %v502 = vrot.slane %v500, 6
        %v503 = vor.u32 %v499, %v502
        %v504 = vrot.slane %v503, 4
        %v506 = vshrl.u32 %v295, 16
        %v508 = vrot.slane %v506, 5
        %v509 = vshll.u32 %v295, 16
        %v511 = vrot.slane %v509, 6
        %v512 = vor.u32 %v508, %v511
        %v513 = vsel %vm299, %v504, %v512
        %v514 = vrot.slane %v512, 4
        %v516 = vshrl.u32 %v296, 16
        %v518 = vrot.slane %v516, 5
        %v519 = vshll.u32 %v296, 16
        %v521 = vrot.slane %v519, 6
        %v522 = vor.u32 %v518, %v521
        %v523 = vsel %vm299, %v514, %v522
        %v524 = vld [vmem:[%s2] sm:$0xf]
        %v525 = vld [vmem:[%s5] sm:$0x1]
        %v526 = vlaneseq
        %v527 = vshrl.u32 %v526, 7
        %v528 = vsub.s32 0, %v527
        %v529 = vrot.slane %v525, %v528
        %v530 = vunpack.c.l.b16 %v317
        %v531 = vunpack.c.l.b16 %v327
        %v532 = vunpack.c.l.b16 %v345
        %v533 = vunpack.c.l.b16 %v355
        %v534 = vunpack.c.l.b16 %v373
        %v535 = vunpack.c.l.b16 %v383
        %v536 = vunpack.c.l.b16 %v401
        %v537 = vunpack.c.l.b16 %v411
        %v538 = vunpack.c.l.b16 %v429
        %v539 = vunpack.c.l.b16 %v439
        %v540 = vunpack.c.l.b16 %v457
        %v541 = vunpack.c.l.b16 %v467
        %v542 = vunpack.c.l.b16 %v485
        %v543 = vunpack.c.l.b16 %v495
        %v544 = vunpack.c.l.b16 %v513
        %v545 = vunpack.c.l.b16 %v523
        %v546 = vpack.c.b16 %v531, %v530
        %v547 = vpack.c.b16 %v533, %v532
        %v548 = vpack.c.b16 %v535, %v534
        %v549 = vpack.c.b16 %v537, %v536
        %v550 = vpack.c.b16 %v539, %v538
        %v551 = vpack.c.b16 %v541, %v540
        %v552 = vpack.c.b16 %v543, %v542
        %v553 = vpack.c.b16 %v545, %v544
        %vm554 = vcmask 64512
        %v556 = vsel %vm554, %v546, 0
        %v559 = vsel %vm554, %v547, 0
        %v562 = vsel %vm554, %v548, 0
        %v565 = vsel %vm554, %v549, 0
        %v568 = vsel %vm554, %v550, 0
        %v571 = vsel %vm554, %v551, 0
        %v574 = vsel %vm554, %v552, 0
        %v577 = vsel %vm554, %v553, 0
        %vm579 = vcmask 1043456
        %v581 = vsel %vm579, %v524, 0
        %583 = vmatprep.subr.bf16.mxu0 0
        %584 = vmatpush1.bf16.msra.mxu0 0
        %585 = vmatprep.subr.bf16.mxu0 0
        %586 = vmatpush1.bf16.msra.mxu0 0
        %587 = vmatprep.subr.bf16.mxu0 0
        %588 = vmatpush1.bf16.msra.mxu0 0
        %589 = vmatprep.subr.bf16.mxu0 0
        %590 = vmatpush1.bf16.msra.mxu0 0
        %591 = vmatprep.subr.bf16.mxu0 0
        %592 = vmatpush1.bf16.msra.mxu0 0
        %593 = vmatprep.subr.bf16.mxu0 0
        %594 = vmatpush1.bf16.msra.mxu0 0
        %595 = vmatprep.subr.bf16.mxu0 0
        %596 = vmatpush1.bf16.msra.mxu0 0
        %597 = vmatprep.subr.bf16.mxu0 0
        %598 = vmatpush1.bf16.msra.mxu0 %v581
        %599 = vmatprep.subr.bf16.mxu0 0
        %600 = vmatpush2.bf16.msra.mxu0 0
        %601 = vmatprep.subr.bf16.mxu0 0
        %602 = vmatpush2.bf16.msra.mxu0 0
        %603 = vmatprep.subr.bf16.mxu0 0
        %604 = vmatpush2.bf16.msra.mxu0 0
        %605 = vmatprep.subr.bf16.mxu0 0
        %606 = vmatpush2.bf16.msra.mxu0 0
        %607 = vmatprep.subr.bf16.mxu0 0
        %608 = vmatpush2.bf16.msra.mxu0 0
        %609 = vmatprep.subr.bf16.mxu0 0
        %610 = vmatpush2.bf16.msra.mxu0 0
        %611 = vmatprep.subr.bf16.mxu0 0
        %612 = vmatpush2.bf16.msra.mxu0 0
        %613 = vmatprep.subr.bf16.mxu0 0
        %614 = vmatpush2.bf16.msra.mxu0 0
        %615 = vmatprep.mubr.bf16.mxu0 0
        %616 = vmatmul.mubr.bf16.gmra.mxu0 %v556
        %v617 = vpop.f32.mrf.mxu0
        %v618 = vadd.f32 %v529, %v617
        %v619 = vpop.f32.mrf.mxu0
        %v620 = vpop.f32.mrf.mxu0
        %v621 = vadd.f32 %v529, %v620
        %v622 = vpop.f32.mrf.mxu0
        %623 = vmatprep.mubr.bf16.mxu0 0
        %624 = vmatmul.mubr.bf16.gmra.mxu0 %v559
        %v625 = vpop.f32.mrf.mxu0
        %v626 = vadd.f32 %v529, %v625
        %v627 = vpop.f32.mrf.mxu0
        %v628 = vpop.f32.mrf.mxu0
        %v629 = vadd.f32 %v529, %v628
        %v630 = vpop.f32.mrf.mxu0
        %631 = vmatprep.mubr.bf16.mxu0 0
        %632 = vmatmul.mubr.bf16.gmra.mxu0 %v562
        %v633 = vpop.f32.mrf.mxu0
        %v634 = vadd.f32 %v529, %v633
        %v635 = vpop.f32.mrf.mxu0
        %v636 = vpop.f32.mrf.mxu0
        %v637 = vadd.f32 %v529, %v636
        %v638 = vpop.f32.mrf.mxu0
        %639 = vmatprep.mubr.bf16.mxu0 0
        %640 = vmatmul.mubr.bf16.gmra.mxu0 %v565
        %v641 = vpop.f32.mrf.mxu0
        %v642 = vadd.f32 %v529, %v641
        %v643 = vpop.f32.mrf.mxu0
        %v644 = vpop.f32.mrf.mxu0
        %v645 = vadd.f32 %v529, %v644
        %v646 = vpop.f32.mrf.mxu0
        %647 = vmatprep.mubr.bf16.mxu0 0
        %648 = vmatmul.mubr.bf16.gmra.mxu0 %v568
        %v649 = vpop.f32.mrf.mxu0
        %v650 = vadd.f32 %v529, %v649
        %v651 = vpop.f32.mrf.mxu0
        %v652 = vpop.f32.mrf.mxu0
        %v653 = vadd.f32 %v529, %v652
        %v654 = vpop.f32.mrf.mxu0
        %655 = vmatprep.mubr.bf16.mxu0 0
        %656 = vmatmul.mubr.bf16.gmra.mxu0 %v571
        %v657 = vpop.f32.mrf.mxu0
        %v658 = vadd.f32 %v529, %v657
        %v659 = vpop.f32.mrf.mxu0
        %v660 = vpop.f32.mrf.mxu0
        %v661 = vadd.f32 %v529, %v660
        %v662 = vpop.f32.mrf.mxu0
        %663 = vmatprep.mubr.bf16.mxu0 0
        %664 = vmatmul.mubr.bf16.gmra.mxu0 %v574
        %v665 = vpop.f32.mrf.mxu0
        %v666 = vadd.f32 %v529, %v665
        %v667 = vpop.f32.mrf.mxu0
        %v668 = vpop.f32.mrf.mxu0
        %v669 = vadd.f32 %v529, %v668
        %v670 = vpop.f32.mrf.mxu0
        %671 = vmatprep.mubr.bf16.mxu0 0
        %672 = vmatmul.mubr.bf16.gmra.mxu0 %v577
        %v673 = vpop.f32.mrf.mxu0
        %v674 = vadd.f32 %v529, %v673
        %v675 = vpop.f32.mrf.mxu0
        %v676 = vpop.f32.mrf.mxu0
        %v677 = vadd.f32 %v529, %v676
        %v678 = vpop.f32.mrf.mxu0
        %679 = vdwg.mxu0
        %v680 = vmax.f32 %v618, 0.0
        %v681 = vmax.f32 %v621, 0.0
        %v682 = vmax.f32 %v626, 0.0
        %v683 = vmax.f32 %v629, 0.0
        %v684 = vmax.f32 %v634, 0.0
        %v685 = vmax.f32 %v637, 0.0
        %v686 = vmax.f32 %v642, 0.0
        %v687 = vmax.f32 %v645, 0.0
        %v688 = vmax.f32 %v650, 0.0
        %v689 = vmax.f32 %v653, 0.0
        %v690 = vmax.f32 %v658, 0.0
        %v691 = vmax.f32 %v661, 0.0
        %v692 = vmax.f32 %v666, 0.0
        %v693 = vmax.f32 %v669, 0.0
        %v694 = vmax.f32 %v674, 0.0
        %v695 = vmax.f32 %v677, 0.0
        %v696 = vpack.c.bf16 %v681, %v680
        %v697 = vpack.c.bf16 %v683, %v682
        %v698 = vpack.c.bf16 %v685, %v684
        %v699 = vpack.c.bf16 %v687, %v686
        %v700 = vpack.c.bf16 %v689, %v688
        %v701 = vpack.c.bf16 %v691, %v690
        %v702 = vpack.c.bf16 %v693, %v692
        %v703 = vpack.c.bf16 %v695, %v694
        %v704 = vld [vmem:[%s4] sm:$0xf]
        %v705 = vld [vmem:[%s4 + $0x4] sm:$0xf]
        %v706 = vld [vmem:[%s4 + $0x8] sm:$0xf]
        %v707 = vld [vmem:[%s4 + $0xc] sm:$0xf]
        %v712 = vunpack.c.l.b16 %v704
        %v713 = vunpack.c.l.b16 %v705
        %v714 = vunpack.c.l.b16 %v706
        %v715 = vunpack.c.l.b16 %v707
        %v716 = vpack.c.b16 %v713, %v712
        %v717 = vpack.c.b16 %v715, %v714
        %vm720 = vcmask 261120
        %v722 = vsel %vm720, %v696, 0
        %v725 = vsel %vm720, %v697, 0
        %v728 = vsel %vm720, %v698, 0
        %v731 = vsel %vm720, %v699, 0
        %v734 = vsel %vm720, %v700, 0
        %v737 = vsel %vm720, %v701, 0
        %v740 = vsel %vm720, %v702, 0
        %v743 = vsel %vm720, %v703, 0
        %745 = vmatprep.subr.bf16.mxu0 0
        %746 = vmatpush1.bf16.msra.mxu0 0
        %747 = vmatprep.subr.bf16.mxu0 0
        %748 = vmatpush1.bf16.msra.mxu0 0
        %749 = vmatprep.subr.bf16.mxu0 0
        %750 = vmatpush1.bf16.msra.mxu0 0
        %751 = vmatprep.subr.bf16.mxu0 0
        %752 = vmatpush1.bf16.msra.mxu0 0
        %753 = vmatprep.subr.bf16.mxu0 0
        %754 = vmatpush1.bf16.msra.mxu0 0
        %755 = vmatprep.subr.bf16.mxu0 0
        %756 = vmatpush1.bf16.msra.mxu0 0
        %757 = vmatprep.subr.bf16.mxu0 0
        %758 = vmatpush1.bf16.msra.mxu0 %v717
        %759 = vmatprep.subr.bf16.mxu0 0
        %760 = vmatpush1.bf16.msra.mxu0 %v716
        %761 = vmatprep.subr.bf16.mxu0 0
        %762 = vmatpush2.bf16.msra.mxu0 0
        %763 = vmatprep.subr.bf16.mxu0 0
        %764 = vmatpush2.bf16.msra.mxu0 0
        %765 = vmatprep.subr.bf16.mxu0 0
        %766 = vmatpush2.bf16.msra.mxu0 0
        %767 = vmatprep.subr.bf16.mxu0 0
        %768 = vmatpush2.bf16.msra.mxu0 0
        %769 = vmatprep.subr.bf16.mxu0 0
        %770 = vmatpush2.bf16.msra.mxu0 0
        %771 = vmatprep.subr.bf16.mxu0 0
        %772 = vmatpush2.bf16.msra.mxu0 0
        %773 = vmatprep.subr.bf16.mxu0 0
        %774 = vmatpush2.bf16.msra.mxu0 0
        %775 = vmatprep.subr.bf16.mxu0 0
        %776 = vmatpush2.bf16.msra.mxu0 0
        %777 = vmatprep.mubr.bf16.mxu0 0
        %778 = vmatmul.mubr.bf16.gmra.mxu0 %v722
        %v779 = vpop.f32.mrf.mxu0
        %v780 = vadd.f32 0.0, %v779
        %v781 = vpop.f32.mrf.mxu0
        %v782 = vpop.f32.mrf.mxu0
        %v783 = vadd.f32 0.0, %v782
        %v784 = vpop.f32.mrf.mxu0
        %785 = vmatprep.mubr.bf16.mxu0 0
        %786 = vmatmul.mubr.bf16.gmra.mxu0 %v725
        %v787 = vpop.f32.mrf.mxu0
        %v788 = vadd.f32 0.0, %v787
        %v789 = vpop.f32.mrf.mxu0
        %v790 = vpop.f32.mrf.mxu0
        %v791 = vadd.f32 0.0, %v790
        %v792 = vpop.f32.mrf.mxu0
        %793 = vmatprep.mubr.bf16.mxu0 0
        %794 = vmatmul.mubr.bf16.gmra.mxu0 %v728
        %v795 = vpop.f32.mrf.mxu0
        %v796 = vadd.f32 0.0, %v795
        %v797 = vpop.f32.mrf.mxu0
        %v798 = vpop.f32.mrf.mxu0
        %v799 = vadd.f32 0.0, %v798
        %v800 = vpop.f32.mrf.mxu0
        %801 = vmatprep.mubr.bf16.mxu0 0
        %802 = vmatmul.mubr.bf16.gmra.mxu0 %v731
        %v803 = vpop.f32.mrf.mxu0
        %v804 = vadd.f32 0.0, %v803
        %v805 = vpop.f32.mrf.mxu0
        %v806 = vpop.f32.mrf.mxu0
        %v807 = vadd.f32 0.0, %v806
        %v808 = vpop.f32.mrf.mxu0
        %809 = vmatprep.mubr.bf16.mxu0 0
        %810 = vmatmul.mubr.bf16.gmra.mxu0 %v734
        %v811 = vpop.f32.mrf.mxu0
        %v812 = vadd.f32 0.0, %v811
        %v813 = vpop.f32.mrf.mxu0
        %v814 = vpop.f32.mrf.mxu0
        %v815 = vadd.f32 0.0, %v814
        %v816 = vpop.f32.mrf.mxu0
        %817 = vmatprep.mubr.bf16.mxu0 0
        %818 = vmatmul.mubr.bf16.gmra.mxu0 %v737
        %v819 = vpop.f32.mrf.mxu0
        %v820 = vadd.f32 0.0, %v819
        %v821 = vpop.f32.mrf.mxu0
        %v822 = vpop.f32.mrf.mxu0
        %v823 = vadd.f32 0.0, %v822
        %v824 = vpop.f32.mrf.mxu0
        %825 = vmatprep.mubr.bf16.mxu0 0
        %826 = vmatmul.mubr.bf16.gmra.mxu0 %v740
        %v827 = vpop.f32.mrf.mxu0
        %v828 = vadd.f32 0.0, %v827
        %v829 = vpop.f32.mrf.mxu0
        %v830 = vpop.f32.mrf.mxu0
        %v831 = vadd.f32 0.0, %v830
        %v832 = vpop.f32.mrf.mxu0
        %833 = vmatprep.mubr.bf16.mxu0 0
        %834 = vmatmul.mubr.bf16.gmra.mxu0 %v743
        %v835 = vpop.f32.mrf.mxu0
        %v836 = vadd.f32 0.0, %v835
        %v837 = vpop.f32.mrf.mxu0
        %v838 = vpop.f32.mrf.mxu0
        %v839 = vadd.f32 0.0, %v838
        %v840 = vpop.f32.mrf.mxu0
        %841 = vdwg.mxu0
        %v842 = vlaneseq
        %v843 = vshrl.u32 %v842, 7
        %v844 = vsub.s32 0, %v843
        %v845 = vrot.slane %v268, %v844
        %v846 = vadd.f32 %v845, %v780
        %v847 = vadd.f32 %v845, %v783
        %v848 = vadd.f32 %v845, %v788
        %v849 = vadd.f32 %v845, %v791
        %v850 = vadd.f32 %v845, %v796
        %v851 = vadd.f32 %v845, %v799
        %v852 = vadd.f32 %v845, %v804
        %v853 = vadd.f32 %v845, %v807
        %v854 = vadd.f32 %v845, %v812
        %v855 = vadd.f32 %v845, %v815
        %v856 = vadd.f32 %v845, %v820
        %v857 = vadd.f32 %v845, %v823
        %v858 = vadd.f32 %v845, %v828
        %v859 = vadd.f32 %v845, %v831
        %v860 = vadd.f32 %v845, %v836
        %v861 = vadd.f32 %v845, %v839
        %s862 = sadd.s32 %s266, 1
        %s863 = smul.u32 %s862, 3
        %s864 = smul.addr %s863, 4
        %s865 = scalar_lea.vmem %s263, %s864
        %v866 = vld [vmem:[%s865] sm:$0xf]
        %v867 = vld [vmem:[%s865 + $0x4] sm:$0xf]
        %v868 = vld [vmem:[%s865 + $0x8] sm:$0x7]
        %v869 = vld [vmem:[%s865 + $0xc] sm:$0xf]
        %v870 = vld [vmem:[%s865 + $0x10] sm:$0xf]
        %v871 = vld [vmem:[%s865 + $0x14] sm:$0x7]
        %v872 = vld [vmem:[%s865 + $0x18] sm:$0xf]
        %v873 = vld [vmem:[%s865 + $0x1c] sm:$0xf]
        %v874 = vld [vmem:[%s865 + $0x20] sm:$0x7]
        %v875 = vld [vmem:[%s865 + $0x24] sm:$0xf]
        %v876 = vld [vmem:[%s865 + $0x28] sm:$0xf]
        %v877 = vld [vmem:[%s865 + $0x2c] sm:$0x7]
        %v878 = vld [vmem:[%s865 + $0x30] sm:$0xf]
        %v879 = vld [vmem:[%s865 + $0x34] sm:$0xf]
        %v880 = vld [vmem:[%s865 + $0x38] sm:$0x7]
        %v881 = vld [vmem:[%s865 + $0x3c] sm:$0xf]
        %v882 = vld [vmem:[%s865 + $0x40] sm:$0xf]
        %v883 = vld [vmem:[%s865 + $0x44] sm:$0x7]
        %v884 = vld [vmem:[%s865 + $0x48] sm:$0xf]
        %v885 = vld [vmem:[%s865 + $0x4c] sm:$0xf]
        %v886 = vld [vmem:[%s865 + $0x50] sm:$0x7]
        %v887 = vld [vmem:[%s865 + $0x54] sm:$0xf]
        %v888 = vld [vmem:[%s865 + $0x58] sm:$0xf]
        %v889 = vld [vmem:[%s865 + $0x5c] sm:$0x7]
        %v914 = vunpack.c.l.b16 %v866
        %v915 = vunpack.c.l.b16 %v867
        %v916 = vunpack.c.l.b16 %v868
        %v917 = vunpack.c.l.b16 %v869
        %v918 = vunpack.c.l.b16 %v870
        %v919 = vunpack.c.l.b16 %v871
        %v920 = vunpack.c.l.b16 %v872
        %v921 = vunpack.c.l.b16 %v873
        %v922 = vunpack.c.l.b16 %v874
        %v923 = vunpack.c.l.b16 %v875
        %v924 = vunpack.c.l.b16 %v876
        %v925 = vunpack.c.l.b16 %v877
        %v926 = vunpack.c.l.b16 %v878
        %v927 = vunpack.c.l.b16 %v879
        %v928 = vunpack.c.l.b16 %v880
        %v929 = vunpack.c.l.b16 %v881
        %v930 = vunpack.c.l.b16 %v882
        %v931 = vunpack.c.l.b16 %v883
        %v932 = vunpack.c.l.b16 %v884
        %v933 = vunpack.c.l.b16 %v885
        %v934 = vunpack.c.l.b16 %v886
        %v935 = vunpack.c.l.b16 %v887
        %v936 = vunpack.c.l.b16 %v888
        %v937 = vunpack.c.l.b16 %v889
        %v938 = vpack.c.b16 %v915, %v914
        %v939 = vpack.c.b16 %v916, %v916
        %v940 = vpack.c.b16 %v918, %v917
        %v941 = vpack.c.b16 %v919, %v919
        %v942 = vpack.c.b16 %v921, %v920
        %v943 = vpack.c.b16 %v922, %v922
        %v944 = vpack.c.b16 %v924, %v923
        %v945 = vpack.c.b16 %v925, %v925
        %v946 = vpack.c.b16 %v927, %v926
        %v947 = vpack.c.b16 %v928, %v928
        %v948 = vpack.c.b16 %v930, %v929
        %v949 = vpack.c.b16 %v931, %v931
        %v950 = vpack.c.b16 %v933, %v932
        %v951 = vpack.c.b16 %v934, %v934
        %v952 = vpack.c.b16 %v936, %v935
        %v953 = vpack.c.b16 %v937, %v937
        %vm954 = vcmask 1046528
        %v955 = vrot.slane %v938, 1
        %v956 = vrot.slane %v939, 1
        %v957 = vsel %vm954, %v955, %v956
        %v958 = vrot.slane %v940, 1
        %v959 = vrot.slane %v941, 1
        %v960 = vsel %vm954, %v958, %v959
        %v961 = vrot.slane %v942, 1
        %v962 = vrot.slane %v943, 1
        %v963 = vsel %vm954, %v961, %v962
        %v964 = vrot.slane %v944, 1
        %v965 = vrot.slane %v945, 1
        %v966 = vsel %vm954, %v964, %v965
        %v967 = vrot.slane %v946, 1
        %v968 = vrot.slane %v947, 1
        %v969 = vsel %vm954, %v967, %v968
        %v970 = vrot.slane %v948, 1
        %v971 = vrot.slane %v949, 1
        %v972 = vsel %vm954, %v970, %v971
        %v973 = vrot.slane %v950, 1
        %v974 = vrot.slane %v951, 1
        %v975 = vsel %vm954, %v973, %v974
        %v976 = vrot.slane %v952, 1
        %v977 = vrot.slane %v953, 1
        %v978 = vsel %vm954, %v976, %v977
        %979 = vrot.lane.b32.xlu0 %v957, 8
        %v980 = vpop.permute.xlu0 %979
        %981 = vrot.lane.b32.xlu0 %v956, 8
        %v982 = vpop.permute.xlu0 %981
        %983 = vrot.lane.b32.xlu0 %v960, 8
        %v984 = vpop.permute.xlu0 %983
        %985 = vrot.lane.b32.xlu0 %v959, 8
        %v986 = vpop.permute.xlu0 %985
        %987 = vrot.lane.b32.xlu0 %v963, 8
        %v988 = vpop.permute.xlu0 %987
        %989 = vrot.lane.b32.xlu0 %v962, 8
        %v990 = vpop.permute.xlu0 %989
        %991 = vrot.lane.b32.xlu0 %v966, 8
        %v992 = vpop.permute.xlu0 %991
        %993 = vrot.lane.b32.xlu0 %v965, 8
        %v994 = vpop.permute.xlu0 %993
        %995 = vrot.lane.b32.xlu0 %v969, 8
        %v996 = vpop.permute.xlu0 %995
        %997 = vrot.lane.b32.xlu0 %v968, 8
        %v998 = vpop.permute.xlu0 %997
        %999 = vrot.lane.b32.xlu0 %v972, 8
        %v1000 = vpop.permute.xlu0 %999
        %1001 = vrot.lane.b32.xlu0 %v971, 8
        %v1002 = vpop.permute.xlu0 %1001
        %1003 = vrot.lane.b32.xlu0 %v975, 8
        %v1004 = vpop.permute.xlu0 %1003
        %1005 = vrot.lane.b32.xlu0 %v974, 8
        %v1006 = vpop.permute.xlu0 %1005
        %1007 = vrot.lane.b32.xlu0 %v978, 8
        %v1008 = vpop.permute.xlu0 %1007
        %1009 = vrot.lane.b32.xlu0 %v977, 8
        %v1010 = vpop.permute.xlu0 %1009
        %vm1011 = vcmask 1045504
        %v1012 = vrot.slane %v938, 2
        %v1013 = vrot.slane %v939, 2
        %v1014 = vsel %vm1011, %v1012, %v1013
        %v1015 = vrot.slane %v940, 2
        %v1016 = vrot.slane %v941, 2
        %v1017 = vsel %vm1011, %v1015, %v1016
        %v1018 = vrot.slane %v942, 2
        %v1019 = vrot.slane %v943, 2
        %v1020 = vsel %vm1011, %v1018, %v1019
        %v1021 = vrot.slane %v944, 2
        %v1022 = vrot.slane %v945, 2
        %v1023 = vsel %vm1011, %v1021, %v1022
        %v1024 = vrot.slane %v946, 2
        %v1025 = vrot.slane %v947, 2
        %v1026 = vsel %vm1011, %v1024, %v1025
        %v1027 = vrot.slane %v948, 2
        %v1028 = vrot.slane %v949, 2
        %v1029 = vsel %vm1011, %v1027, %v1028
        %v1030 = vrot.slane %v950, 2
        %v1031 = vrot.slane %v951, 2
        %v1032 = vsel %vm1011, %v1030, %v1031
        %v1033 = vrot.slane %v952, 2
        %v1034 = vrot.slane %v953, 2
        %v1035 = vsel %vm1011, %v1033, %v1034
        %1036 = vrot.lane.b32.xlu0 %v1014, 16
        %v1037 = vpop.permute.xlu0 %1036
        %1038 = vrot.lane.b32.xlu0 %v1013, 16
        %v1039 = vpop.permute.xlu0 %1038
        %1040 = vrot.lane.b32.xlu0 %v1017, 16
        %v1041 = vpop.permute.xlu0 %1040
        %1042 = vrot.lane.b32.xlu0 %v1016, 16
        %v1043 = vpop.permute.xlu0 %1042
        %1044 = vrot.lane.b32.xlu0 %v1020, 16
        %v1045 = vpop.permute.xlu0 %1044
        %1046 = vrot.lane.b32.xlu0 %v1019, 16
        %v1047 = vpop.permute.xlu0 %1046
        %1048 = vrot.lane.b32.xlu0 %v1023, 16
        %v1049 = vpop.permute.xlu0 %1048
        %1050 = vrot.lane.b32.xlu0 %v1022, 16
        %v1051 = vpop.permute.xlu0 %1050
        %1052 = vrot.lane.b32.xlu0 %v1026, 16
        %v1053 = vpop.permute.xlu0 %1052
        %1054 = vrot.lane.b32.xlu0 %v1025, 16
        %v1055 = vpop.permute.xlu0 %1054
        %1056 = vrot.lane.b32.xlu0 %v1029, 16
        %v1057 = vpop.permute.xlu0 %1056
        %1058 = vrot.lane.b32.xlu0 %v1028, 16
        %v1059 = vpop.permute.xlu0 %1058
        %1060 = vrot.lane.b32.xlu0 %v1032, 16
        %v1061 = vpop.permute.xlu0 %1060
        %1062 = vrot.lane.b32.xlu0 %v1031, 16
        %v1063 = vpop.permute.xlu0 %1062
        %1064 = vrot.lane.b32.xlu0 %v1035, 16
        %v1065 = vpop.permute.xlu0 %1064
        %1066 = vrot.lane.b32.xlu0 %v1034, 16
        %v1067 = vpop.permute.xlu0 %1066
        %v1070 = vsel %vm554, %v938, %v980
        %v1073 = vsel %vm554, %v939, %v982
        %v1076 = vsel %vm554, %v940, %v984
        %v1079 = vsel %vm554, %v941, %v986
        %v1082 = vsel %vm554, %v942, %v988
        %v1085 = vsel %vm554, %v943, %v990
        %v1088 = vsel %vm554, %v944, %v992
        %v1091 = vsel %vm554, %v945, %v994
        %v1094 = vsel %vm554, %v946, %v996
        %v1097 = vsel %vm554, %v947, %v998
        %v1100 = vsel %vm554, %v948, %v1000
        %v1103 = vsel %vm554, %v949, %v1002
        %v1106 = vsel %vm554, %v950, %v1004
        %v1109 = vsel %vm554, %v951, %v1006
        %v1112 = vsel %vm554, %v952, %v1008
        %v1115 = vsel %vm554, %v953, %v1010
        %vm1116 = vcmask 130048
        %v1118 = vsel %vm1116, %v1070, %v1037
        %v1120 = vsel %vm1116, %v1073, %v1039
        %v1122 = vsel %vm1116, %v1076, %v1041
        %v1124 = vsel %vm1116, %v1079, %v1043
        %v1126 = vsel %vm1116, %v1082, %v1045
        %v1128 = vsel %vm1116, %v1085, %v1047
        %v1130 = vsel %vm1116, %v1088, %v1049
        %v1132 = vsel %vm1116, %v1091, %v1051
        %v1134 = vsel %vm1116, %v1094, %v1053
        %v1136 = vsel %vm1116, %v1097, %v1055
        %v1138 = vsel %vm1116, %v1100, %v1057
        %v1140 = vsel %vm1116, %v1103, %v1059
        %v1142 = vsel %vm1116, %v1106, %v1061
        %v1144 = vsel %vm1116, %v1109, %v1063
        %v1146 = vsel %vm1116, %v1112, %v1065
        %v1148 = vsel %vm1116, %v1115, %v1067
        %vm1149 = vsmask.f32 7424
        %v1150 = vshrl.u32 %v1118, 16
        %v1152 = vshll.u32 %v1118, 16
        %v1154 = vrot.slane %v1152, 1
        %v1155 = vor.u32 %v1150, %v1154
        %v1156 = vshll.u32 %v1120, 16
        %v1158 = vrot.slane %v1156, 1
        %v1159 = vsel %vm1149, %v1155, %v1158
        %v1160 = vshrl.u32 %v1122, 16
        %v1162 = vshll.u32 %v1122, 16
        %v1164 = vrot.slane %v1162, 1
        %v1165 = vor.u32 %v1160, %v1164
        %v1166 = vshll.u32 %v1124, 16
        %v1168 = vrot.slane %v1166, 1
        %v1169 = vsel %vm1149, %v1165, %v1168
        %v1170 = vshrl.u32 %v1126, 16
        %v1172 = vshll.u32 %v1126, 16
        %v1174 = vrot.slane %v1172, 1
        %v1175 = vor.u32 %v1170, %v1174
        %v1176 = vshll.u32 %v1128, 16
        %v1178 = vrot.slane %v1176, 1
        %v1179 = vsel %vm1149, %v1175, %v1178
        %v1180 = vshrl.u32 %v1130, 16
        %v1182 = vshll.u32 %v1130, 16
        %v1184 = vrot.slane %v1182, 1
        %v1185 = vor.u32 %v1180, %v1184
        %v1186 = vshll.u32 %v1132, 16
        %v1188 = vrot.slane %v1186, 1
        %v1189 = vsel %vm1149, %v1185, %v1188
        %v1190 = vshrl.u32 %v1134, 16
        %v1192 = vshll.u32 %v1134, 16
        %v1194 = vrot.slane %v1192, 1
        %v1195 = vor.u32 %v1190, %v1194
        %v1196 = vshll.u32 %v1136, 16
        %v1198 = vrot.slane %v1196, 1
        %v1199 = vsel %vm1149, %v1195, %v1198
        %v1200 = vshrl.u32 %v1138, 16
        %v1202 = vshll.u32 %v1138, 16
        %v1204 = vrot.slane %v1202, 1
        %v1205 = vor.u32 %v1200, %v1204
        %v1206 = vshll.u32 %v1140, 16
        %v1208 = vrot.slane %v1206, 1
        %v1209 = vsel %vm1149, %v1205, %v1208
        %v1210 = vshrl.u32 %v1142, 16
        %v1212 = vshll.u32 %v1142, 16
        %v1214 = vrot.slane %v1212, 1
        %v1215 = vor.u32 %v1210, %v1214
        %v1216 = vshll.u32 %v1144, 16
        %v1218 = vrot.slane %v1216, 1
        %v1219 = vsel %vm1149, %v1215, %v1218
        %v1220 = vshrl.u32 %v1146, 16
        %v1222 = vshll.u32 %v1146, 16
        %v1224 = vrot.slane %v1222, 1
        %v1225 = vor.u32 %v1220, %v1224
        %v1226 = vshll.u32 %v1148, 16
        %v1228 = vrot.slane %v1226, 1
        %v1229 = vsel %vm1149, %v1225, %v1228
        %v1230 = vld [vmem:[%s3] sm:$0xf]
        %v1231 = vld [vmem:[%s3 + $0x4] sm:$0xf]
        %v1232 = vld [vmem:[%s3 + $0x8] sm:$0xf]
        %v1233 = vld [vmem:[%s272] sm:$0xf]
        %v1234 = vld [vmem:[%s272 + $0x8] sm:$0x7]
        %v1235 = vld [vmem:[%s272 + $0xc] sm:$0xf]
        %v1236 = vld [vmem:[%s272 + $0x14] sm:$0x7]
        %v1237 = vld [vmem:[%s272 + $0x18] sm:$0xf]
        %v1238 = vld [vmem:[%s272 + $0x20] sm:$0x7]
        %v1239 = vld [vmem:[%s272 + $0x24] sm:$0xf]
        %v1240 = vld [vmem:[%s272 + $0x2c] sm:$0x7]
        %v1241 = vld [vmem:[%s272 + $0x30] sm:$0xf]
        %v1242 = vld [vmem:[%s272 + $0x38] sm:$0x7]
        %v1243 = vld [vmem:[%s272 + $0x3c] sm:$0xf]
        %v1244 = vld [vmem:[%s272 + $0x44] sm:$0x7]
        %v1245 = vld [vmem:[%s272 + $0x48] sm:$0xf]
        %v1246 = vld [vmem:[%s272 + $0x50] sm:$0x7]
        %v1247 = vld [vmem:[%s272 + $0x54] sm:$0xf]
        %v1248 = vld [vmem:[%s272 + $0x5c] sm:$0x7]
        %v1273 = vunpack.c.l.b16 %v1233
        %v1274 = vunpack.c.l.b16 %v274
        %v1275 = vunpack.c.l.b16 %v1234
        %v1276 = vunpack.c.l.b16 %v1235
        %v1277 = vunpack.c.l.b16 %v277
        %v1278 = vunpack.c.l.b16 %v1236
        %v1279 = vunpack.c.l.b16 %v1237
        %v1280 = vunpack.c.l.b16 %v280
        %v1281 = vunpack.c.l.b16 %v1238
        %v1282 = vunpack.c.l.b16 %v1239
        %v1283 = vunpack.c.l.b16 %v283
        %v1284 = vunpack.c.l.b16 %v1240
        %v1285 = vunpack.c.l.b16 %v1241
        %v1286 = vunpack.c.l.b16 %v286
        %v1287 = vunpack.c.l.b16 %v1242
        %v1288 = vunpack.c.l.b16 %v1243
        %v1289 = vunpack.c.l.b16 %v289
        %v1290 = vunpack.c.l.b16 %v1244
        %v1291 = vunpack.c.l.b16 %v1245
        %v1292 = vunpack.c.l.b16 %v292
        %v1293 = vunpack.c.l.b16 %v1246
        %v1294 = vunpack.c.l.b16 %v1247
        %v1295 = vunpack.c.l.b16 %v295
        %v1296 = vunpack.c.l.b16 %v1248
        %v1297 = vpack.c.b16 %v1274, %v1273
        %v1298 = vpack.c.b16 %v1275, %v1275
        %v1299 = vpack.c.b16 %v1277, %v1276
        %v1300 = vpack.c.b16 %v1278, %v1278
        %v1301 = vpack.c.b16 %v1280, %v1279
        %v1302 = vpack.c.b16 %v1281, %v1281
        %v1303 = vpack.c.b16 %v1283, %v1282
        %v1304 = vpack.c.b16 %v1284, %v1284
        %v1305 = vpack.c.b16 %v1286, %v1285
        %v1306 = vpack.c.b16 %v1287, %v1287
        %v1307 = vpack.c.b16 %v1289, %v1288
        %v1308 = vpack.c.b16 %v1290, %v1290
        %v1309 = vpack.c.b16 %v1292, %v1291
        %v1310 = vpack.c.b16 %v1293, %v1293
        %v1311 = vpack.c.b16 %v1295, %v1294
        %v1312 = vpack.c.b16 %v1296, %v1296
        %v1313 = vrot.slane %v1297, 1
        %v1314 = vrot.slane %v1298, 1
        %v1315 = vsel %vm954, %v1313, %v1314
        %v1316 = vrot.slane %v1299, 1
        %v1317 = vrot.slane %v1300, 1
        %v1318 = vsel %vm954, %v1316, %v1317
        %v1319 = vrot.slane %v1301, 1
        %v1320 = vrot.slane %v1302, 1
        %v1321 = vsel %vm954, %v1319, %v1320
        %v1322 = vrot.slane %v1303, 1
        %v1323 = vrot.slane %v1304, 1
        %v1324 = vsel %vm954, %v1322, %v1323
        %v1325 = vrot.slane %v1305, 1
        %v1326 = vrot.slane %v1306, 1
        %v1327 = vsel %vm954, %v1325, %v1326
        %v1328 = vrot.slane %v1307, 1
        %v1329 = vrot.slane %v1308, 1
        %v1330 = vsel %vm954, %v1328, %v1329
        %v1331 = vrot.slane %v1309, 1
        %v1332 = vrot.slane %v1310, 1
        %v1333 = vsel %vm954, %v1331, %v1332
        %v1334 = vrot.slane %v1311, 1
        %v1335 = vrot.slane %v1312, 1
        %v1336 = vsel %vm954, %v1334, %v1335
        %1337 = vrot.lane.b32.xlu0 %v1315, 8
        %v1338 = vpop.permute.xlu0 %1337
        %1339 = vrot.lane.b32.xlu0 %v1314, 8
        %v1340 = vpop.permute.xlu0 %1339
        %1341 = vrot.lane.b32.xlu0 %v1318, 8
        %v1342 = vpop.permute.xlu0 %1341
        %1343 = vrot.lane.b32.xlu0 %v1317, 8
        %v1344 = vpop.permute.xlu0 %1343
        %1345 = vrot.lane.b32.xlu0 %v1321, 8
        %v1346 = vpop.permute.xlu0 %1345
        %1347 = vrot.lane.b32.xlu0 %v1320, 8
        %v1348 = vpop.permute.xlu0 %1347
        %1349 = vrot.lane.b32.xlu0 %v1324, 8
        %v1350 = vpop.permute.xlu0 %1349
        %1351 = vrot.lane.b32.xlu0 %v1323, 8
        %v1352 = vpop.permute.xlu0 %1351
        %1353 = vrot.lane.b32.xlu0 %v1327, 8
        %v1354 = vpop.permute.xlu0 %1353
        %1355 = vrot.lane.b32.xlu0 %v1326, 8
        %v1356 = vpop.permute.xlu0 %1355
        %1357 = vrot.lane.b32.xlu0 %v1330, 8
        %v1358 = vpop.permute.xlu0 %1357
        %1359 = vrot.lane.b32.xlu0 %v1329, 8
        %v1360 = vpop.permute.xlu0 %1359
        %1361 = vrot.lane.b32.xlu0 %v1333, 8
        %v1362 = vpop.permute.xlu0 %1361
        %1363 = vrot.lane.b32.xlu0 %v1332, 8
        %v1364 = vpop.permute.xlu0 %1363
        %1365 = vrot.lane.b32.xlu0 %v1336, 8
        %v1366 = vpop.permute.xlu0 %1365
        %1367 = vrot.lane.b32.xlu0 %v1335, 8
        %v1368 = vpop.permute.xlu0 %1367
        %v1369 = vrot.slane %v1297, 2
        %v1370 = vrot.slane %v1298, 2
        %v1371 = vsel %vm1011, %v1369, %v1370
        %v1372 = vrot.slane %v1299, 2
        %v1373 = vrot.slane %v1300, 2
        %v1374 = vsel %vm1011, %v1372, %v1373
        %v1375 = vrot.slane %v1301, 2
        %v1376 = vrot.slane %v1302, 2
        %v1377 = vsel %vm1011, %v1375, %v1376
        %v1378 = vrot.slane %v1303, 2
        %v1379 = vrot.slane %v1304, 2
        %v1380 = vsel %vm1011, %v1378, %v1379
        %v1381 = vrot.slane %v1305, 2
        %v1382 = vrot.slane %v1306, 2
        %v1383 = vsel %vm1011, %v1381, %v1382
        %v1384 = vrot.slane %v1307, 2
        %v1385 = vrot.slane %v1308, 2
        %v1386 = vsel %vm1011, %v1384, %v1385
        %v1387 = vrot.slane %v1309, 2
        %v1388 = vrot.slane %v1310, 2
        %v1389 = vsel %vm1011, %v1387, %v1388
        %v1390 = vrot.slane %v1311, 2
        %v1391 = vrot.slane %v1312, 2
        %v1392 = vsel %vm1011, %v1390, %v1391
        %1393 = vrot.lane.b32.xlu0 %v1371, 16
        %v1394 = vpop.permute.xlu0 %1393
        %1395 = vrot.lane.b32.xlu0 %v1370, 16
        %v1396 = vpop.permute.xlu0 %1395
        %1397 = vrot.lane.b32.xlu0 %v1374, 16
        %v1398 = vpop.permute.xlu0 %1397
        %1399 = vrot.lane.b32.xlu0 %v1373, 16
        %v1400 = vpop.permute.xlu0 %1399
        %1401 = vrot.lane.b32.xlu0 %v1377, 16
        %v1402 = vpop.permute.xlu0 %1401
        %1403 = vrot.lane.b32.xlu0 %v1376, 16
        %v1404 = vpop.permute.xlu0 %1403
        %1405 = vrot.lane.b32.xlu0 %v1380, 16
        %v1406 = vpop.permute.xlu0 %1405
        %1407 = vrot.lane.b32.xlu0 %v1379, 16
        %v1408 = vpop.permute.xlu0 %1407
        %1409 = vrot.lane.b32.xlu0 %v1383, 16
        %v1410 = vpop.permute.xlu0 %1409
        %1411 = vrot.lane.b32.xlu0 %v1382, 16
        %v1412 = vpop.permute.xlu0 %1411
        %1413 = vrot.lane.b32.xlu0 %v1386, 16
        %v1414 = vpop.permute.xlu0 %1413
        %1415 = vrot.lane.b32.xlu0 %v1385, 16
        %v1416 = vpop.permute.xlu0 %1415
        %1417 = vrot.lane.b32.xlu0 %v1389, 16
        %v1418 = vpop.permute.xlu0 %1417
        %1419 = vrot.lane.b32.xlu0 %v1388, 16
        %v1420 = vpop.permute.xlu0 %1419
        %1421 = vrot.lane.b32.xlu0 %v1392, 16
        %v1422 = vpop.permute.xlu0 %1421
        %1423 = vrot.lane.b32.xlu0 %v1391, 16
        %v1424 = vpop.permute.xlu0 %1423
        %v1427 = vsel %vm554, %v1297, %v1338
        %v1430 = vsel %vm554, %v1298, %v1340
        %v1433 = vsel %vm554, %v1299, %v1342
        %v1436 = vsel %vm554, %v1300, %v1344
        %v1439 = vsel %vm554, %v1301, %v1346
        %v1442 = vsel %vm554, %v1302, %v1348
        %v1445 = vsel %vm554, %v1303, %v1350
        %v1448 = vsel %vm554, %v1304, %v1352
        %v1451 = vsel %vm554, %v1305, %v1354
        %v1454 = vsel %vm554, %v1306, %v1356
        %v1457 = vsel %vm554, %v1307, %v1358
        %v1460 = vsel %vm554, %v1308, %v1360
        %v1463 = vsel %vm554, %v1309, %v1362
        %v1466 = vsel %vm554, %v1310, %v1364
        %v1469 = vsel %vm554, %v1311, %v1366
        %v1472 = vsel %vm554, %v1312, %v1368
        %v1474 = vsel %vm1116, %v1427, %v1394
        %v1476 = vsel %vm1116, %v1430, %v1396
        %v1478 = vsel %vm1116, %v1433, %v1398
        %v1480 = vsel %vm1116, %v1436, %v1400
        %v1482 = vsel %vm1116, %v1439, %v1402
        %v1484 = vsel %vm1116, %v1442, %v1404
        %v1486 = vsel %vm1116, %v1445, %v1406
        %v1488 = vsel %vm1116, %v1448, %v1408
        %v1490 = vsel %vm1116, %v1451, %v1410
        %v1492 = vsel %vm1116, %v1454, %v1412
        %v1494 = vsel %vm1116, %v1457, %v1414
        %v1496 = vsel %vm1116, %v1460, %v1416
        %v1498 = vsel %vm1116, %v1463, %v1418
        %v1500 = vsel %vm1116, %v1466, %v1420
        %v1502 = vsel %vm1116, %v1469, %v1422
        %v1504 = vsel %vm1116, %v1472, %v1424
        %v1505 = vshrl.u32 %v1474, 16
        %v1507 = vshll.u32 %v1474, 16
        %v1509 = vrot.slane %v1507, 1
        %v1510 = vor.u32 %v1505, %v1509
        %v1511 = vshll.u32 %v1476, 16
        %v1513 = vrot.slane %v1511, 1
        %v1514 = vsel %vm1149, %v1510, %v1513
        %v1515 = vshrl.u32 %v1478, 16
        %v1517 = vshll.u32 %v1478, 16
        %v1519 = vrot.slane %v1517, 1
        %v1520 = vor.u32 %v1515, %v1519
        %v1521 = vshll.u32 %v1480, 16
        %v1523 = vrot.slane %v1521, 1
        %v1524 = vsel %vm1149, %v1520, %v1523
        %v1525 = vshrl.u32 %v1482, 16
        %v1527 = vshll.u32 %v1482, 16
        %v1529 = vrot.slane %v1527, 1
        %v1530 = vor.u32 %v1525, %v1529
        %v1531 = vshll.u32 %v1484, 16
        %v1533 = vrot.slane %v1531, 1
        %v1534 = vsel %vm1149, %v1530, %v1533
        %v1535 = vshrl.u32 %v1486, 16
        %v1537 = vshll.u32 %v1486, 16
        %v1539 = vrot.slane %v1537, 1
        %v1540 = vor.u32 %v1535, %v1539
        %v1541 = vshll.u32 %v1488, 16
        %v1543 = vrot.slane %v1541, 1
        %v1544 = vsel %vm1149, %v1540, %v1543
        %v1545 = vshrl.u32 %v1490, 16
        %v1547 = vshll.u32 %v1490, 16
        %v1549 = vrot.slane %v1547, 1
        %v1550 = vor.u32 %v1545, %v1549
        %v1551 = vshll.u32 %v1492, 16
        %v1553 = vrot.slane %v1551, 1
        %v1554 = vsel %vm1149, %v1550, %v1553
        %v1555 = vshrl.u32 %v1494, 16
        %v1557 = vshll.u32 %v1494, 16
        %v1559 = vrot.slane %v1557, 1
        %v1560 = vor.u32 %v1555, %v1559
        %v1561 = vshll.u32 %v1496, 16
        %v1563 = vrot.slane %v1561, 1
        %v1564 = vsel %vm1149, %v1560, %v1563
        %v1565 = vshrl.u32 %v1498, 16
        %v1567 = vshll.u32 %v1498, 16
        %v1569 = vrot.slane %v1567, 1
        %v1570 = vor.u32 %v1565, %v1569
        %v1571 = vshll.u32 %v1500, 16
        %v1573 = vrot.slane %v1571, 1
        %v1574 = vsel %vm1149, %v1570, %v1573
        %v1575 = vshrl.u32 %v1502, 16
        %v1577 = vshll.u32 %v1502, 16
        %v1579 = vrot.slane %v1577, 1
        %v1580 = vor.u32 %v1575, %v1579
        %v1581 = vshll.u32 %v1504, 16
        %v1583 = vrot.slane %v1581, 1
        %v1584 = vsel %vm1149, %v1580, %v1583
        %s1585 = scalar_lea.vmem %s3, 12
        %v1586 = vld [vmem:[%s1585] sm:$0xf]
        %v1587 = vld [vmem:[%s1585 + $0x4] sm:$0xf]
        %v1588 = vld [vmem:[%s1585 + $0x8] sm:$0xf]
        %v1592 = vunpack.c.l.b16 %v1586
        %v1593 = vunpack.c.l.b16 %v1587
        %v1594 = vunpack.c.l.b16 %v1588
        %v1595 = vpack.c.b16 %v1593, %v1592
        %v1596 = vpack.c.b16 %v1594, %v1594
        %vm1598 = vcmask 195584
        %v1600 = vsel %vm1598, %v1514, 0
        %v1603 = vsel %vm1598, %v1524, 0
        %v1606 = vsel %vm1598, %v1534, 0
        %v1609 = vsel %vm1598, %v1544, 0
        %v1612 = vsel %vm1598, %v1554, 0
        %v1615 = vsel %vm1598, %v1564, 0
        %v1618 = vsel %vm1598, %v1574, 0
        %v1621 = vsel %vm1598, %v1584, 0
        %v1624 = vsel %vm579, %v1596, 0
        %1626 = vmatprep.subr.bf16.mxu0 0
        %1627 = vmatpush1.bf16.msra.mxu0 0
        %1628 = vmatprep.subr.bf16.mxu0 0
        %1629 = vmatpush1.bf16.msra.mxu0 0
        %1630 = vmatprep.subr.bf16.mxu0 0
        %1631 = vmatpush1.bf16.msra.mxu0 0
        %1632 = vmatprep.subr.bf16.mxu0 0
        %1633 = vmatpush1.bf16.msra.mxu0 0
        %1634 = vmatprep.subr.bf16.mxu0 0
        %1635 = vmatpush1.bf16.msra.mxu0 0
        %1636 = vmatprep.subr.bf16.mxu0 0
        %1637 = vmatpush1.bf16.msra.mxu0 0
        %1638 = vmatprep.subr.bf16.mxu0 0
        %1639 = vmatpush1.bf16.msra.mxu0 %v1624
        %1640 = vmatprep.subr.bf16.mxu0 0
        %1641 = vmatpush1.bf16.msra.mxu0 %v1595
        %1642 = vmatprep.subr.bf16.mxu0 0
        %1643 = vmatpush2.bf16.msra.mxu0 0
        %1644 = vmatprep.subr.bf16.mxu0 0
        %1645 = vmatpush2.bf16.msra.mxu0 0
        %1646 = vmatprep.subr.bf16.mxu0 0
        %1647 = vmatpush2.bf16.msra.mxu0 0
        %1648 = vmatprep.subr.bf16.mxu0 0
        %1649 = vmatpush2.bf16.msra.mxu0 0
        %1650 = vmatprep.subr.bf16.mxu0 0
        %1651 = vmatpush2.bf16.msra.mxu0 0
        %1652 = vmatprep.subr.bf16.mxu0 0
        %1653 = vmatpush2.bf16.msra.mxu0 0
        %1654 = vmatprep.subr.bf16.mxu0 0
        %1655 = vmatpush2.bf16.msra.mxu0 0
        %1656 = vmatprep.subr.bf16.mxu0 0
        %1657 = vmatpush2.bf16.msra.mxu0 0
        %1658 = vmatprep.mubr.bf16.mxu0 0
        %1659 = vmatmul.mubr.bf16.gmra.mxu0 %v1600
        %v1660 = vpop.f32.mrf.mxu0
        %v1661 = vadd.f32 0.0, %v1660
        %v1662 = vpop.f32.mrf.mxu0
        %v1663 = vpop.f32.mrf.mxu0
        %v1664 = vadd.f32 0.0, %v1663
        %v1665 = vpop.f32.mrf.mxu0
        %1666 = vmatprep.mubr.bf16.mxu0 0
        %1667 = vmatmul.mubr.bf16.gmra.mxu0 %v1603
        %v1668 = vpop.f32.mrf.mxu0
        %v1669 = vadd.f32 0.0, %v1668
        %v1670 = vpop.f32.mrf.mxu0
        %v1671 = vpop.f32.mrf.mxu0
        %v1672 = vadd.f32 0.0, %v1671
        %v1673 = vpop.f32.mrf.mxu0
        %1674 = vmatprep.mubr.bf16.mxu0 0
        %1675 = vmatmul.mubr.bf16.gmra.mxu0 %v1606
        %v1676 = vpop.f32.mrf.mxu0
        %v1677 = vadd.f32 0.0, %v1676
        %v1678 = vpop.f32.mrf.mxu0
        %v1679 = vpop.f32.mrf.mxu0
        %v1680 = vadd.f32 0.0, %v1679
        %v1681 = vpop.f32.mrf.mxu0
        %1682 = vmatprep.mubr.bf16.mxu0 0
        %1683 = vmatmul.mubr.bf16.gmra.mxu0 %v1609
        %v1684 = vpop.f32.mrf.mxu0
        %v1685 = vadd.f32 0.0, %v1684
        %v1686 = vpop.f32.mrf.mxu0
        %v1687 = vpop.f32.mrf.mxu0
        %v1688 = vadd.f32 0.0, %v1687
        %v1689 = vpop.f32.mrf.mxu0
        %1690 = vmatprep.mubr.bf16.mxu0 0
        %1691 = vmatmul.mubr.bf16.gmra.mxu0 %v1612
        %v1692 = vpop.f32.mrf.mxu0
        %v1693 = vadd.f32 0.0, %v1692
        %v1694 = vpop.f32.mrf.mxu0
        %v1695 = vpop.f32.mrf.mxu0
        %v1696 = vadd.f32 0.0, %v1695
        %v1697 = vpop.f32.mrf.mxu0
        %1698 = vmatprep.mubr.bf16.mxu0 0
        %1699 = vmatmul.mubr.bf16.gmra.mxu0 %v1615
        %v1700 = vpop.f32.mrf.mxu0
        %v1701 = vadd.f32 0.0, %v1700
        %v1702 = vpop.f32.mrf.mxu0
        %v1703 = vpop.f32.mrf.mxu0
        %v1704 = vadd.f32 0.0, %v1703
        %v1705 = vpop.f32.mrf.mxu0
        %1706 = vmatprep.mubr.bf16.mxu0 0
        %1707 = vmatmul.mubr.bf16.gmra.mxu0 %v1618
        %v1708 = vpop.f32.mrf.mxu0
        %v1709 = vadd.f32 0.0, %v1708
        %v1710 = vpop.f32.mrf.mxu0
        %v1711 = vpop.f32.mrf.mxu0
        %v1712 = vadd.f32 0.0, %v1711
        %v1713 = vpop.f32.mrf.mxu0
        %1714 = vmatprep.mubr.bf16.mxu0 0
        %1715 = vmatmul.mubr.bf16.gmra.mxu0 %v1621
        %v1716 = vpop.f32.mrf.mxu0
        %v1717 = vadd.f32 0.0, %v1716
        %v1718 = vpop.f32.mrf.mxu0
        %v1719 = vpop.f32.mrf.mxu0
        %v1720 = vadd.f32 0.0, %v1719
        %v1721 = vpop.f32.mrf.mxu0
        %1722 = vdwg.mxu0
        %v1726 = vunpack.c.l.b16 %v1230
        %v1727 = vunpack.c.l.b16 %v1231
        %v1728 = vunpack.c.l.b16 %v1232
        %v1729 = vpack.c.b16 %v1727, %v1726
        %v1730 = vpack.c.b16 %v1728, %v1728
        %v1733 = vsel %vm1598, %v1159, 0
        %v1736 = vsel %vm1598, %v1169, 0
        %v1739 = vsel %vm1598, %v1179, 0
        %v1742 = vsel %vm1598, %v1189, 0
        %v1745 = vsel %vm1598, %v1199, 0
        %v1748 = vsel %vm1598, %v1209, 0
        %v1751 = vsel %vm1598, %v1219, 0
        %v1754 = vsel %vm1598, %v1229, 0
        %v1757 = vsel %vm579, %v1730, 0
        %1759 = vmatprep.subr.bf16.mxu0 0
        %1760 = vmatpush1.bf16.msra.mxu0 0
        %1761 = vmatprep.subr.bf16.mxu0 0
        %1762 = vmatpush1.bf16.msra.mxu0 0
        %1763 = vmatprep.subr.bf16.mxu0 0
        %1764 = vmatpush1.bf16.msra.mxu0 0
        %1765 = vmatprep.subr.bf16.mxu0 0
        %1766 = vmatpush1.bf16.msra.mxu0 0
        %1767 = vmatprep.subr.bf16.mxu0 0
        %1768 = vmatpush1.bf16.msra.mxu0 0
        %1769 = vmatprep.subr.bf16.mxu0 0
        %1770 = vmatpush1.bf16.msra.mxu0 0
        %1771 = vmatprep.subr.bf16.mxu0 0
        %1772 = vmatpush1.bf16.msra.mxu0 %v1757
        %1773 = vmatprep.subr.bf16.mxu0 0
        %1774 = vmatpush1.bf16.msra.mxu0 %v1729
        %1775 = vmatprep.subr.bf16.mxu0 0
        %1776 = vmatpush2.bf16.msra.mxu0 0
        %1777 = vmatprep.subr.bf16.mxu0 0
        %1778 = vmatpush2.bf16.msra.mxu0 0
        %1779 = vmatprep.subr.bf16.mxu0 0
        %1780 = vmatpush2.bf16.msra.mxu0 0
        %1781 = vmatprep.subr.bf16.mxu0 0
        %1782 = vmatpush2.bf16.msra.mxu0 0
        %1783 = vmatprep.subr.bf16.mxu0 0
        %1784 = vmatpush2.bf16.msra.mxu0 0
        %1785 = vmatprep.subr.bf16.mxu0 0
        %1786 = vmatpush2.bf16.msra.mxu0 0
        %1787 = vmatprep.subr.bf16.mxu0 0
        %1788 = vmatpush2.bf16.msra.mxu0 0
        %1789 = vmatprep.subr.bf16.mxu0 0
        %1790 = vmatpush2.bf16.msra.mxu0 0
        %1791 = vmatprep.mubr.bf16.mxu0 0
        %1792 = vmatmul.mubr.bf16.gmra.mxu0 %v1733
        %v1793 = vpop.f32.mrf.mxu0
        %v1794 = vadd.f32 %v1661, %v1793
        %v1795 = vpop.f32.mrf.mxu0
        %v1796 = vpop.f32.mrf.mxu0
        %v1797 = vadd.f32 %v1664, %v1796
        %v1798 = vpop.f32.mrf.mxu0
        %1799 = vmatprep.mubr.bf16.mxu0 0
        %1800 = vmatmul.mubr.bf16.gmra.mxu0 %v1736
        %v1801 = vpop.f32.mrf.mxu0
        %v1802 = vadd.f32 %v1669, %v1801
        %v1803 = vpop.f32.mrf.mxu0
        %v1804 = vpop.f32.mrf.mxu0
        %v1805 = vadd.f32 %v1672, %v1804
        %v1806 = vpop.f32.mrf.mxu0
        %1807 = vmatprep.mubr.bf16.mxu0 0
        %1808 = vmatmul.mubr.bf16.gmra.mxu0 %v1739
        %v1809 = vpop.f32.mrf.mxu0
        %v1810 = vadd.f32 %v1677, %v1809
        %v1811 = vpop.f32.mrf.mxu0
        %v1812 = vpop.f32.mrf.mxu0
        %v1813 = vadd.f32 %v1680, %v1812
        %v1814 = vpop.f32.mrf.mxu0
        %1815 = vmatprep.mubr.bf16.mxu0 0
        %1816 = vmatmul.mubr.bf16.gmra.mxu0 %v1742
        %v1817 = vpop.f32.mrf.mxu0
        %v1818 = vadd.f32 %v1685, %v1817
        %v1819 = vpop.f32.mrf.mxu0
        %v1820 = vpop.f32.mrf.mxu0
        %v1821 = vadd.f32 %v1688, %v1820
        %v1822 = vpop.f32.mrf.mxu0
        %1823 = vmatprep.mubr.bf16.mxu0 0
        %1824 = vmatmul.mubr.bf16.gmra.mxu0 %v1745
        %v1825 = vpop.f32.mrf.mxu0
        %v1826 = vadd.f32 %v1693, %v1825
        %v1827 = vpop.f32.mrf.mxu0
        %v1828 = vpop.f32.mrf.mxu0
        %v1829 = vadd.f32 %v1696, %v1828
        %v1830 = vpop.f32.mrf.mxu0
        %1831 = vmatprep.mubr.bf16.mxu0 0
        %1832 = vmatmul.mubr.bf16.gmra.mxu0 %v1748
        %v1833 = vpop.f32.mrf.mxu0
        %v1834 = vadd.f32 %v1701, %v1833
        %v1835 = vpop.f32.mrf.mxu0
        %v1836 = vpop.f32.mrf.mxu0
        %v1837 = vadd.f32 %v1704, %v1836
        %v1838 = vpop.f32.mrf.mxu0
        %1839 = vmatprep.mubr.bf16.mxu0 0
        %1840 = vmatmul.mubr.bf16.gmra.mxu0 %v1751
        %v1841 = vpop.f32.mrf.mxu0
        %v1842 = vadd.f32 %v1709, %v1841
        %v1843 = vpop.f32.mrf.mxu0
        %v1844 = vpop.f32.mrf.mxu0
        %v1845 = vadd.f32 %v1712, %v1844
        %v1846 = vpop.f32.mrf.mxu0
        %1847 = vmatprep.mubr.bf16.mxu0 0
        %1848 = vmatmul.mubr.bf16.gmra.mxu0 %v1754
        %v1849 = vpop.f32.mrf.mxu0
        %v1850 = vadd.f32 %v1717, %v1849
        %v1851 = vpop.f32.mrf.mxu0
        %v1852 = vpop.f32.mrf.mxu0
        %v1853 = vadd.f32 %v1720, %v1852
        %v1854 = vpop.f32.mrf.mxu0
        %1855 = vdwg.mxu0
        %s1856 = sadd.s32 %s266, 5
        %s1857 = smul.u32 %s1856, 3
        %s1858 = smul.addr %s1857, 4
        %s1859 = scalar_lea.vmem %s263, %s1858
        %v1860 = vld [vmem:[%s1859] sm:$0xf]
        %v1861 = vld [vmem:[%s1859 + $0x4] sm:$0xf]
        %v1862 = vld [vmem:[%s1859 + $0x8] sm:$0x7]
        %v1863 = vld [vmem:[%s1859 + $0xc] sm:$0xf]
        %v1864 = vld [vmem:[%s1859 + $0x10] sm:$0xf]
        %v1865 = vld [vmem:[%s1859 + $0x14] sm:$0x7]
        %v1866 = vld [vmem:[%s1859 + $0x18] sm:$0xf]
        %v1867 = vld [vmem:[%s1859 + $0x1c] sm:$0xf]
        %v1868 = vld [vmem:[%s1859 + $0x20] sm:$0x7]
        %v1869 = vld [vmem:[%s1859 + $0x24] sm:$0xf]
        %v1870 = vld [vmem:[%s1859 + $0x28] sm:$0xf]
        %v1871 = vld [vmem:[%s1859 + $0x2c] sm:$0x7]
        %v1872 = vld [vmem:[%s1859 + $0x30] sm:$0xf]
        %v1873 = vld [vmem:[%s1859 + $0x34] sm:$0xf]
        %v1874 = vld [vmem:[%s1859 + $0x38] sm:$0x7]
        %v1875 = vld [vmem:[%s1859 + $0x3c] sm:$0xf]
        %v1876 = vld [vmem:[%s1859 + $0x40] sm:$0xf]
        %v1877 = vld [vmem:[%s1859 + $0x44] sm:$0x7]
        %v1878 = vld [vmem:[%s1859 + $0x48] sm:$0xf]
        %v1879 = vld [vmem:[%s1859 + $0x4c] sm:$0xf]
        %v1880 = vld [vmem:[%s1859 + $0x50] sm:$0x7]
        %v1881 = vld [vmem:[%s1859 + $0x54] sm:$0xf]
        %v1882 = vld [vmem:[%s1859 + $0x58] sm:$0xf]
        %v1883 = vld [vmem:[%s1859 + $0x5c] sm:$0x7]
        %v1908 = vunpack.c.l.b16 %v1860
        %v1909 = vunpack.c.l.b16 %v1861
        %v1910 = vunpack.c.l.b16 %v1862
        %v1911 = vunpack.c.l.b16 %v1863
        %v1912 = vunpack.c.l.b16 %v1864
        %v1913 = vunpack.c.l.b16 %v1865
        %v1914 = vunpack.c.l.b16 %v1866
        %v1915 = vunpack.c.l.b16 %v1867
        %v1916 = vunpack.c.l.b16 %v1868
        %v1917 = vunpack.c.l.b16 %v1869
        %v1918 = vunpack.c.l.b16 %v1870
        %v1919 = vunpack.c.l.b16 %v1871
        %v1920 = vunpack.c.l.b16 %v1872
        %v1921 = vunpack.c.l.b16 %v1873
        %v1922 = vunpack.c.l.b16 %v1874
        %v1923 = vunpack.c.l.b16 %v1875
        %v1924 = vunpack.c.l.b16 %v1876
        %v1925 = vunpack.c.l.b16 %v1877
        %v1926 = vunpack.c.l.b16 %v1878
        %v1927 = vunpack.c.l.b16 %v1879
        %v1928 = vunpack.c.l.b16 %v1880
        %v1929 = vunpack.c.l.b16 %v1881
        %v1930 = vunpack.c.l.b16 %v1882
        %v1931 = vunpack.c.l.b16 %v1883
        %v1932 = vpack.c.b16 %v1909, %v1908
        %v1933 = vpack.c.b16 %v1910, %v1910
        %v1934 = vpack.c.b16 %v1912, %v1911
        %v1935 = vpack.c.b16 %v1913, %v1913
        %v1936 = vpack.c.b16 %v1915, %v1914
        %v1937 = vpack.c.b16 %v1916, %v1916
        %v1938 = vpack.c.b16 %v1918, %v1917
        %v1939 = vpack.c.b16 %v1919, %v1919
        %v1940 = vpack.c.b16 %v1921, %v1920
        %v1941 = vpack.c.b16 %v1922, %v1922
        %v1942 = vpack.c.b16 %v1924, %v1923
        %v1943 = vpack.c.b16 %v1925, %v1925
        %v1944 = vpack.c.b16 %v1927, %v1926
        %v1945 = vpack.c.b16 %v1928, %v1928
        %v1946 = vpack.c.b16 %v1930, %v1929
        %v1947 = vpack.c.b16 %v1931, %v1931
        %v1948 = vrot.slane %v1932, 1
        %v1949 = vrot.slane %v1933, 1
        %v1950 = vsel %vm954, %v1948, %v1949
        %v1951 = vrot.slane %v1934, 1
        %v1952 = vrot.slane %v1935, 1
        %v1953 = vsel %vm954, %v1951, %v1952
        %v1954 = vrot.slane %v1936, 1
        %v1955 = vrot.slane %v1937, 1
        %v1956 = vsel %vm954, %v1954, %v1955
        %v1957 = vrot.slane %v1938, 1
        %v1958 = vrot.slane %v1939, 1
        %v1959 = vsel %vm954, %v1957, %v1958
        %v1960 = vrot.slane %v1940, 1
        %v1961 = vrot.slane %v1941, 1
        %v1962 = vsel %vm954, %v1960, %v1961
        %v1963 = vrot.slane %v1942, 1
        %v1964 = vrot.slane %v1943, 1
        %v1965 = vsel %vm954, %v1963, %v1964
        %v1966 = vrot.slane %v1944, 1
        %v1967 = vrot.slane %v1945, 1
        %v1968 = vsel %vm954, %v1966, %v1967
        %v1969 = vrot.slane %v1946, 1
        %v1970 = vrot.slane %v1947, 1
        %v1971 = vsel %vm954, %v1969, %v1970
        %1972 = vrot.lane.b32.xlu0 %v1950, 8
        %v1973 = vpop.permute.xlu0 %1972
        %1974 = vrot.lane.b32.xlu0 %v1949, 8
        %v1975 = vpop.permute.xlu0 %1974
        %1976 = vrot.lane.b32.xlu0 %v1953, 8
        %v1977 = vpop.permute.xlu0 %1976
        %1978 = vrot.lane.b32.xlu0 %v1952, 8
        %v1979 = vpop.permute.xlu0 %1978
        %1980 = vrot.lane.b32.xlu0 %v1956, 8
        %v1981 = vpop.permute.xlu0 %1980
        %1982 = vrot.lane.b32.xlu0 %v1955, 8
        %v1983 = vpop.permute.xlu0 %1982
        %1984 = vrot.lane.b32.xlu0 %v1959, 8
        %v1985 = vpop.permute.xlu0 %1984
        %1986 = vrot.lane.b32.xlu0 %v1958, 8
        %v1987 = vpop.permute.xlu0 %1986
        %1988 = vrot.lane.b32.xlu0 %v1962, 8
        %v1989 = vpop.permute.xlu0 %1988
        %1990 = vrot.lane.b32.xlu0 %v1961, 8
        %v1991 = vpop.permute.xlu0 %1990
        %1992 = vrot.lane.b32.xlu0 %v1965, 8
        %v1993 = vpop.permute.xlu0 %1992
        %1994 = vrot.lane.b32.xlu0 %v1964, 8
        %v1995 = vpop.permute.xlu0 %1994
        %1996 = vrot.lane.b32.xlu0 %v1968, 8
        %v1997 = vpop.permute.xlu0 %1996
        %1998 = vrot.lane.b32.xlu0 %v1967, 8
        %v1999 = vpop.permute.xlu0 %1998
        %2000 = vrot.lane.b32.xlu0 %v1971, 8
        %v2001 = vpop.permute.xlu0 %2000
        %2002 = vrot.lane.b32.xlu0 %v1970, 8
        %v2003 = vpop.permute.xlu0 %2002
        %v2004 = vrot.slane %v1932, 2
        %v2005 = vrot.slane %v1933, 2
        %v2006 = vsel %vm1011, %v2004, %v2005
        %v2007 = vrot.slane %v1934, 2
        %v2008 = vrot.slane %v1935, 2
        %v2009 = vsel %vm1011, %v2007, %v2008
        %v2010 = vrot.slane %v1936, 2
        %v2011 = vrot.slane %v1937, 2
        %v2012 = vsel %vm1011, %v2010, %v2011
        %v2013 = vrot.slane %v1938, 2
        %v2014 = vrot.slane %v1939, 2
        %v2015 = vsel %vm1011, %v2013, %v2014
        %v2016 = vrot.slane %v1940, 2
        %v2017 = vrot.slane %v1941, 2
        %v2018 = vsel %vm1011, %v2016, %v2017
        %v2019 = vrot.slane %v1942, 2
        %v2020 = vrot.slane %v1943, 2
        %v2021 = vsel %vm1011, %v2019, %v2020
        %v2022 = vrot.slane %v1944, 2
        %v2023 = vrot.slane %v1945, 2
        %v2024 = vsel %vm1011, %v2022, %v2023
        %v2025 = vrot.slane %v1946, 2
        %v2026 = vrot.slane %v1947, 2
        %v2027 = vsel %vm1011, %v2025, %v2026
        %2028 = vrot.lane.b32.xlu0 %v2006, 16
        %v2029 = vpop.permute.xlu0 %2028
        %2030 = vrot.lane.b32.xlu0 %v2005, 16
        %v2031 = vpop.permute.xlu0 %2030
        %2032 = vrot.lane.b32.xlu0 %v2009, 16
        %v2033 = vpop.permute.xlu0 %2032
        %2034 = vrot.lane.b32.xlu0 %v2008, 16
        %v2035 = vpop.permute.xlu0 %2034
        %2036 = vrot.lane.b32.xlu0 %v2012, 16
        %v2037 = vpop.permute.xlu0 %2036
        %2038 = vrot.lane.b32.xlu0 %v2011, 16
        %v2039 = vpop.permute.xlu0 %2038
        %2040 = vrot.lane.b32.xlu0 %v2015, 16
        %v2041 = vpop.permute.xlu0 %2040
        %2042 = vrot.lane.b32.xlu0 %v2014, 16
        %v2043 = vpop.permute.xlu0 %2042
        %2044 = vrot.lane.b32.xlu0 %v2018, 16
        %v2045 = vpop.permute.xlu0 %2044
        %2046 = vrot.lane.b32.xlu0 %v2017, 16
        %v2047 = vpop.permute.xlu0 %2046
        %2048 = vrot.lane.b32.xlu0 %v2021, 16
        %v2049 = vpop.permute.xlu0 %2048
        %2050 = vrot.lane.b32.xlu0 %v2020, 16
        %v2051 = vpop.permute.xlu0 %2050
        %2052 = vrot.lane.b32.xlu0 %v2024, 16
        %v2053 = vpop.permute.xlu0 %2052
        %2054 = vrot.lane.b32.xlu0 %v2023, 16
        %v2055 = vpop.permute.xlu0 %2054
        %2056 = vrot.lane.b32.xlu0 %v2027, 16
        %v2057 = vpop.permute.xlu0 %2056
        %2058 = vrot.lane.b32.xlu0 %v2026, 16
        %v2059 = vpop.permute.xlu0 %2058
        %v2062 = vsel %vm554, %v1932, %v1973
        %v2065 = vsel %vm554, %v1933, %v1975
        %v2068 = vsel %vm554, %v1934, %v1977
        %v2071 = vsel %vm554, %v1935, %v1979
        %v2074 = vsel %vm554, %v1936, %v1981
        %v2077 = vsel %vm554, %v1937, %v1983
        %v2080 = vsel %vm554, %v1938, %v1985
        %v2083 = vsel %vm554, %v1939, %v1987
        %v2086 = vsel %vm554, %v1940, %v1989
        %v2089 = vsel %vm554, %v1941, %v1991
        %v2092 = vsel %vm554, %v1942, %v1993
        %v2095 = vsel %vm554, %v1943, %v1995
        %v2098 = vsel %vm554, %v1944, %v1997
        %v2101 = vsel %vm554, %v1945, %v1999
        %v2104 = vsel %vm554, %v1946, %v2001
        %v2107 = vsel %vm554, %v1947, %v2003
        %v2109 = vsel %vm1116, %v2062, %v2029
        %v2111 = vsel %vm1116, %v2065, %v2031
        %v2113 = vsel %vm1116, %v2068, %v2033
        %v2115 = vsel %vm1116, %v2071, %v2035
        %v2117 = vsel %vm1116, %v2074, %v2037
        %v2119 = vsel %vm1116, %v2077, %v2039
        %v2121 = vsel %vm1116, %v2080, %v2041
        %v2123 = vsel %vm1116, %v2083, %v2043
        %v2125 = vsel %vm1116, %v2086, %v2045
        %v2127 = vsel %vm1116, %v2089, %v2047
        %v2129 = vsel %vm1116, %v2092, %v2049
        %v2131 = vsel %vm1116, %v2095, %v2051
        %v2133 = vsel %vm1116, %v2098, %v2053
        %v2135 = vsel %vm1116, %v2101, %v2055
        %v2137 = vsel %vm1116, %v2104, %v2057
        %v2139 = vsel %vm1116, %v2107, %v2059
        %v2140 = vshrl.u32 %v2109, 16
        %v2142 = vshll.u32 %v2109, 16
        %v2144 = vrot.slane %v2142, 1
        %v2145 = vor.u32 %v2140, %v2144
        %v2146 = vshll.u32 %v2111, 16
        %v2148 = vrot.slane %v2146, 1
        %v2149 = vsel %vm1149, %v2145, %v2148
        %v2150 = vshrl.u32 %v2113, 16
        %v2152 = vshll.u32 %v2113, 16
        %v2154 = vrot.slane %v2152, 1
        %v2155 = vor.u32 %v2150, %v2154
        %v2156 = vshll.u32 %v2115, 16
        %v2158 = vrot.slane %v2156, 1
        %v2159 = vsel %vm1149, %v2155, %v2158
        %v2160 = vshrl.u32 %v2117, 16
        %v2162 = vshll.u32 %v2117, 16
        %v2164 = vrot.slane %v2162, 1
        %v2165 = vor.u32 %v2160, %v2164
        %v2166 = vshll.u32 %v2119, 16
        %v2168 = vrot.slane %v2166, 1
        %v2169 = vsel %vm1149, %v2165, %v2168
        %v2170 = vshrl.u32 %v2121, 16
        %v2172 = vshll.u32 %v2121, 16
        %v2174 = vrot.slane %v2172, 1
        %v2175 = vor.u32 %v2170, %v2174
        %v2176 = vshll.u32 %v2123, 16
        %v2178 = vrot.slane %v2176, 1
        %v2179 = vsel %vm1149, %v2175, %v2178
        %v2180 = vshrl.u32 %v2125, 16
        %v2182 = vshll.u32 %v2125, 16
        %v2184 = vrot.slane %v2182, 1
        %v2185 = vor.u32 %v2180, %v2184
        %v2186 = vshll.u32 %v2127, 16
        %v2188 = vrot.slane %v2186, 1
        %v2189 = vsel %vm1149, %v2185, %v2188
        %v2190 = vshrl.u32 %v2129, 16
        %v2192 = vshll.u32 %v2129, 16
        %v2194 = vrot.slane %v2192, 1
        %v2195 = vor.u32 %v2190, %v2194
        %v2196 = vshll.u32 %v2131, 16
        %v2198 = vrot.slane %v2196, 1
        %v2199 = vsel %vm1149, %v2195, %v2198
        %v2200 = vshrl.u32 %v2133, 16
        %v2202 = vshll.u32 %v2133, 16
        %v2204 = vrot.slane %v2202, 1
        %v2205 = vor.u32 %v2200, %v2204
        %v2206 = vshll.u32 %v2135, 16
        %v2208 = vrot.slane %v2206, 1
        %v2209 = vsel %vm1149, %v2205, %v2208
        %v2210 = vshrl.u32 %v2137, 16
        %v2212 = vshll.u32 %v2137, 16
        %v2214 = vrot.slane %v2212, 1
        %v2215 = vor.u32 %v2210, %v2214
        %v2216 = vshll.u32 %v2139, 16
        %v2218 = vrot.slane %v2216, 1
        %v2219 = vsel %vm1149, %v2215, %v2218
        %s2220 = scalar_lea.vmem %s3, 24
        %v2221 = vld [vmem:[%s2220] sm:$0xf]
        %v2222 = vld [vmem:[%s2220 + $0x4] sm:$0xf]
        %v2223 = vld [vmem:[%s2220 + $0x8] sm:$0xf]
        %v2227 = vunpack.c.l.b16 %v2221
        %v2228 = vunpack.c.l.b16 %v2222
        %v2229 = vunpack.c.l.b16 %v2223
        %v2230 = vpack.c.b16 %v2228, %v2227
        %v2231 = vpack.c.b16 %v2229, %v2229
        %v2234 = vsel %vm1598, %v2149, 0
        %v2237 = vsel %vm1598, %v2159, 0
        %v2240 = vsel %vm1598, %v2169, 0
        %v2243 = vsel %vm1598, %v2179, 0
        %v2246 = vsel %vm1598, %v2189, 0
        %v2249 = vsel %vm1598, %v2199, 0
        %v2252 = vsel %vm1598, %v2209, 0
        %v2255 = vsel %vm1598, %v2219, 0
        %v2258 = vsel %vm579, %v2231, 0
        %2260 = vmatprep.subr.bf16.mxu0 0
        %2261 = vmatpush1.bf16.msra.mxu0 0
        %2262 = vmatprep.subr.bf16.mxu0 0
        %2263 = vmatpush1.bf16.msra.mxu0 0
        %2264 = vmatprep.subr.bf16.mxu0 0
        %2265 = vmatpush1.bf16.msra.mxu0 0
        %2266 = vmatprep.subr.bf16.mxu0 0
        %2267 = vmatpush1.bf16.msra.mxu0 0
        %2268 = vmatprep.subr.bf16.mxu0 0
        %2269 = vmatpush1.bf16.msra.mxu0 0
        %2270 = vmatprep.subr.bf16.mxu0 0
        %2271 = vmatpush1.bf16.msra.mxu0 0
        %2272 = vmatprep.subr.bf16.mxu0 0
        %2273 = vmatpush1.bf16.msra.mxu0 %v2258
        %2274 = vmatprep.subr.bf16.mxu0 0
        %2275 = vmatpush1.bf16.msra.mxu0 %v2230
        %2276 = vmatprep.subr.bf16.mxu0 0
        %2277 = vmatpush2.bf16.msra.mxu0 0
        %2278 = vmatprep.subr.bf16.mxu0 0
        %2279 = vmatpush2.bf16.msra.mxu0 0
        %2280 = vmatprep.subr.bf16.mxu0 0
        %2281 = vmatpush2.bf16.msra.mxu0 0
        %2282 = vmatprep.subr.bf16.mxu0 0
        %2283 = vmatpush2.bf16.msra.mxu0 0
        %2284 = vmatprep.subr.bf16.mxu0 0
        %2285 = vmatpush2.bf16.msra.mxu0 0
        %2286 = vmatprep.subr.bf16.mxu0 0
        %2287 = vmatpush2.bf16.msra.mxu0 0
        %2288 = vmatprep.subr.bf16.mxu0 0
        %2289 = vmatpush2.bf16.msra.mxu0 0
        %2290 = vmatprep.subr.bf16.mxu0 0
        %2291 = vmatpush2.bf16.msra.mxu0 0
        %2292 = vmatprep.mubr.bf16.mxu0 0
        %2293 = vmatmul.mubr.bf16.gmra.mxu0 %v2234
        %v2294 = vpop.f32.mrf.mxu0
        %v2295 = vadd.f32 0.0, %v2294
        %v2296 = vpop.f32.mrf.mxu0
        %v2297 = vpop.f32.mrf.mxu0
        %v2298 = vadd.f32 0.0, %v2297
        %v2299 = vpop.f32.mrf.mxu0
        %2300 = vmatprep.mubr.bf16.mxu0 0
        %2301 = vmatmul.mubr.bf16.gmra.mxu0 %v2237
        %v2302 = vpop.f32.mrf.mxu0
        %v2303 = vadd.f32 0.0, %v2302
        %v2304 = vpop.f32.mrf.mxu0
        %v2305 = vpop.f32.mrf.mxu0
        %v2306 = vadd.f32 0.0, %v2305
        %v2307 = vpop.f32.mrf.mxu0
        %2308 = vmatprep.mubr.bf16.mxu0 0
        %2309 = vmatmul.mubr.bf16.gmra.mxu0 %v2240
        %v2310 = vpop.f32.mrf.mxu0
        %v2311 = vadd.f32 0.0, %v2310
        %v2312 = vpop.f32.mrf.mxu0
        %v2313 = vpop.f32.mrf.mxu0
        %v2314 = vadd.f32 0.0, %v2313
        %v2315 = vpop.f32.mrf.mxu0
        %2316 = vmatprep.mubr.bf16.mxu0 0
        %2317 = vmatmul.mubr.bf16.gmra.mxu0 %v2243
        %v2318 = vpop.f32.mrf.mxu0
        %v2319 = vadd.f32 0.0, %v2318
        %v2320 = vpop.f32.mrf.mxu0
        %v2321 = vpop.f32.mrf.mxu0
        %v2322 = vadd.f32 0.0, %v2321
        %v2323 = vpop.f32.mrf.mxu0
        %2324 = vmatprep.mubr.bf16.mxu0 0
        %2325 = vmatmul.mubr.bf16.gmra.mxu0 %v2246
        %v2326 = vpop.f32.mrf.mxu0
        %v2327 = vadd.f32 0.0, %v2326
        %v2328 = vpop.f32.mrf.mxu0
        %v2329 = vpop.f32.mrf.mxu0
        %v2330 = vadd.f32 0.0, %v2329
        %v2331 = vpop.f32.mrf.mxu0
        %2332 = vmatprep.mubr.bf16.mxu0 0
        %2333 = vmatmul.mubr.bf16.gmra.mxu0 %v2249
        %v2334 = vpop.f32.mrf.mxu0
        %v2335 = vadd.f32 0.0, %v2334
        %v2336 = vpop.f32.mrf.mxu0
        %v2337 = vpop.f32.mrf.mxu0
        %v2338 = vadd.f32 0.0, %v2337
        %v2339 = vpop.f32.mrf.mxu0
        %2340 = vmatprep.mubr.bf16.mxu0 0
        %2341 = vmatmul.mubr.bf16.gmra.mxu0 %v2252
        %v2342 = vpop.f32.mrf.mxu0
        %v2343 = vadd.f32 0.0, %v2342
        %v2344 = vpop.f32.mrf.mxu0
        %v2345 = vpop.f32.mrf.mxu0
        %v2346 = vadd.f32 0.0, %v2345
        %v2347 = vpop.f32.mrf.mxu0
        %2348 = vmatprep.mubr.bf16.mxu0 0
        %2349 = vmatmul.mubr.bf16.gmra.mxu0 %v2255
        %v2350 = vpop.f32.mrf.mxu0
        %v2351 = vadd.f32 0.0, %v2350
        %v2352 = vpop.f32.mrf.mxu0
        %v2353 = vpop.f32.mrf.mxu0
        %v2354 = vadd.f32 0.0, %v2353
        %v2355 = vpop.f32.mrf.mxu0
        %2356 = vdwg.mxu0
        %v2357 = vadd.f32 %v1794, %v2295
        %v2358 = vadd.f32 %v1797, %v2298
        %v2359 = vadd.f32 %v1802, %v2303
        %v2360 = vadd.f32 %v1805, %v2306
        %v2361 = vadd.f32 %v1810, %v2311
        %v2362 = vadd.f32 %v1813, %v2314
        %v2363 = vadd.f32 %v1818, %v2319
        %v2364 = vadd.f32 %v1821, %v2322
        %v2365 = vadd.f32 %v1826, %v2327
        %v2366 = vadd.f32 %v1829, %v2330
        %v2367 = vadd.f32 %v1834, %v2335
        %v2368 = vadd.f32 %v1837, %v2338
        %v2369 = vadd.f32 %v1842, %v2343
        %v2370 = vadd.f32 %v1845, %v2346
        %v2371 = vadd.f32 %v1850, %v2351
        %v2372 = vadd.f32 %v1853, %v2354
        %v2373 = vld [vmem:[%s5 + $0x1] sm:$0x1]
        %v2374 = vlaneseq
        %v2375 = vshrl.u32 %v2374, 7
        %v2376 = vsub.s32 0, %v2375
        %v2377 = vrot.slane %v2373, %v2376
        %v2378 = vadd.f32 %v2357, %v2377
        %v2379 = vadd.f32 %v2358, %v2377
        %v2380 = vadd.f32 %v2359, %v2377
        %v2381 = vadd.f32 %v2360, %v2377
        %v2382 = vadd.f32 %v2361, %v2377
        %v2383 = vadd.f32 %v2362, %v2377
        %v2384 = vadd.f32 %v2363, %v2377
        %v2385 = vadd.f32 %v2364, %v2377
        %v2386 = vadd.f32 %v2365, %v2377
        %v2387 = vadd.f32 %v2366, %v2377
        %v2388 = vadd.f32 %v2367, %v2377
        %v2389 = vadd.f32 %v2368, %v2377
        %v2390 = vadd.f32 %v2369, %v2377
        %v2391 = vadd.f32 %v2370, %v2377
        %v2392 = vadd.f32 %v2371, %v2377
        %v2393 = vadd.f32 %v2372, %v2377
        %v2394 = vmax.f32 %v2378, 0.0
        %v2395 = vmax.f32 %v2379, 0.0
        %v2396 = vmax.f32 %v2380, 0.0
        %v2397 = vmax.f32 %v2381, 0.0
        %v2398 = vmax.f32 %v2382, 0.0
        %v2399 = vmax.f32 %v2383, 0.0
        %v2400 = vmax.f32 %v2384, 0.0
        %v2401 = vmax.f32 %v2385, 0.0
        %v2402 = vmax.f32 %v2386, 0.0
        %v2403 = vmax.f32 %v2387, 0.0
        %v2404 = vmax.f32 %v2388, 0.0
        %v2405 = vmax.f32 %v2389, 0.0
        %v2406 = vmax.f32 %v2390, 0.0
        %v2407 = vmax.f32 %v2391, 0.0
        %v2408 = vmax.f32 %v2392, 0.0
        %v2409 = vmax.f32 %v2393, 0.0
        %v2410 = vpack.c.bf16 %v2395, %v2394
        %v2411 = vpack.c.bf16 %v2397, %v2396
        %v2412 = vpack.c.bf16 %v2399, %v2398
        %v2413 = vpack.c.bf16 %v2401, %v2400
        %v2414 = vpack.c.bf16 %v2403, %v2402
        %v2415 = vpack.c.bf16 %v2405, %v2404
        %v2416 = vpack.c.bf16 %v2407, %v2406
        %v2417 = vpack.c.bf16 %v2409, %v2408
        %s2418 = scalar_lea.vmem %s4, 16
        %v2419 = vld [vmem:[%s2418] sm:$0xf]
        %v2420 = vld [vmem:[%s2418 + $0x4] sm:$0xf]
        %v2421 = vld [vmem:[%s2418 + $0x8] sm:$0xf]
        %v2422 = vld [vmem:[%s2418 + $0xc] sm:$0xf]
        %v2427 = vunpack.c.l.b16 %v2419
        %v2428 = vunpack.c.l.b16 %v2420
        %v2429 = vunpack.c.l.b16 %v2421
        %v2430 = vunpack.c.l.b16 %v2422
        %v2431 = vpack.c.b16 %v2428, %v2427
        %v2432 = vpack.c.b16 %v2430, %v2429
        %v2436 = vsel %vm720, %v2410, 0
        %v2439 = vsel %vm720, %v2411, 0
        %v2442 = vsel %vm720, %v2412, 0
        %v2445 = vsel %vm720, %v2413, 0
        %v2448 = vsel %vm720, %v2414, 0
        %v2451 = vsel %vm720, %v2415, 0
        %v2454 = vsel %vm720, %v2416, 0
        %v2457 = vsel %vm720, %v2417, 0
        %2459 = vmatprep.subr.bf16.mxu0 0
        %2460 = vmatpush1.bf16.msra.mxu0 0
        %2461 = vmatprep.subr.bf16.mxu0 0
        %2462 = vmatpush1.bf16.msra.mxu0 0
        %2463 = vmatprep.subr.bf16.mxu0 0
        %2464 = vmatpush1.bf16.msra.mxu0 0
        %2465 = vmatprep.subr.bf16.mxu0 0
        %2466 = vmatpush1.bf16.msra.mxu0 0
        %2467 = vmatprep.subr.bf16.mxu0 0
        %2468 = vmatpush1.bf16.msra.mxu0 0
        %2469 = vmatprep.subr.bf16.mxu0 0
        %2470 = vmatpush1.bf16.msra.mxu0 0
        %2471 = vmatprep.subr.bf16.mxu0 0
        %2472 = vmatpush1.bf16.msra.mxu0 %v2432
        %2473 = vmatprep.subr.bf16.mxu0 0
        %2474 = vmatpush1.bf16.msra.mxu0 %v2431
        %2475 = vmatprep.subr.bf16.mxu0 0
        %2476 = vmatpush2.bf16.msra.mxu0 0
        %2477 = vmatprep.subr.bf16.mxu0 0
        %2478 = vmatpush2.bf16.msra.mxu0 0
        %2479 = vmatprep.subr.bf16.mxu0 0
        %2480 = vmatpush2.bf16.msra.mxu0 0
        %2481 = vmatprep.subr.bf16.mxu0 0
        %2482 = vmatpush2.bf16.msra.mxu0 0
        %2483 = vmatprep.subr.bf16.mxu0 0
        %2484 = vmatpush2.bf16.msra.mxu0 0
        %2485 = vmatprep.subr.bf16.mxu0 0
        %2486 = vmatpush2.bf16.msra.mxu0 0
        %2487 = vmatprep.subr.bf16.mxu0 0
        %2488 = vmatpush2.bf16.msra.mxu0 0
        %2489 = vmatprep.subr.bf16.mxu0 0
        %2490 = vmatpush2.bf16.msra.mxu0 0
        %2491 = vmatprep.mubr.bf16.mxu0 0
        %2492 = vmatmul.mubr.bf16.gmra.mxu0 %v2436
        %v2493 = vpop.f32.mrf.mxu0
        %v2494 = vadd.f32 0.0, %v2493
        %v2495 = vpop.f32.mrf.mxu0
        %v2496 = vpop.f32.mrf.mxu0
        %v2497 = vadd.f32 0.0, %v2496
        %v2498 = vpop.f32.mrf.mxu0
        %2499 = vmatprep.mubr.bf16.mxu0 0
        %2500 = vmatmul.mubr.bf16.gmra.mxu0 %v2439
        %v2501 = vpop.f32.mrf.mxu0
        %v2502 = vadd.f32 0.0, %v2501
        %v2503 = vpop.f32.mrf.mxu0
        %v2504 = vpop.f32.mrf.mxu0
        %v2505 = vadd.f32 0.0, %v2504
        %v2506 = vpop.f32.mrf.mxu0
        %2507 = vmatprep.mubr.bf16.mxu0 0
        %2508 = vmatmul.mubr.bf16.gmra.mxu0 %v2442
        %v2509 = vpop.f32.mrf.mxu0
        %v2510 = vadd.f32 0.0, %v2509
        %v2511 = vpop.f32.mrf.mxu0
        %v2512 = vpop.f32.mrf.mxu0
        %v2513 = vadd.f32 0.0, %v2512
        %v2514 = vpop.f32.mrf.mxu0
        %2515 = vmatprep.mubr.bf16.mxu0 0
        %2516 = vmatmul.mubr.bf16.gmra.mxu0 %v2445
        %v2517 = vpop.f32.mrf.mxu0
        %v2518 = vadd.f32 0.0, %v2517
        %v2519 = vpop.f32.mrf.mxu0
        %v2520 = vpop.f32.mrf.mxu0
        %v2521 = vadd.f32 0.0, %v2520
        %v2522 = vpop.f32.mrf.mxu0
        %2523 = vmatprep.mubr.bf16.mxu0 0
        %2524 = vmatmul.mubr.bf16.gmra.mxu0 %v2448
        %v2525 = vpop.f32.mrf.mxu0
        %v2526 = vadd.f32 0.0, %v2525
        %v2527 = vpop.f32.mrf.mxu0
        %v2528 = vpop.f32.mrf.mxu0
        %v2529 = vadd.f32 0.0, %v2528
        %v2530 = vpop.f32.mrf.mxu0
        %2531 = vmatprep.mubr.bf16.mxu0 0
        %2532 = vmatmul.mubr.bf16.gmra.mxu0 %v2451
        %v2533 = vpop.f32.mrf.mxu0
        %v2534 = vadd.f32 0.0, %v2533
        %v2535 = vpop.f32.mrf.mxu0
        %v2536 = vpop.f32.mrf.mxu0
        %v2537 = vadd.f32 0.0, %v2536
        %v2538 = vpop.f32.mrf.mxu0
        %2539 = vmatprep.mubr.bf16.mxu0 0
        %2540 = vmatmul.mubr.bf16.gmra.mxu0 %v2454
        %v2541 = vpop.f32.mrf.mxu0
        %v2542 = vadd.f32 0.0, %v2541
        %v2543 = vpop.f32.mrf.mxu0
        %v2544 = vpop.f32.mrf.mxu0
        %v2545 = vadd.f32 0.0, %v2544
        %v2546 = vpop.f32.mrf.mxu0
        %2547 = vmatprep.mubr.bf16.mxu0 0
        %2548 = vmatmul.mubr.bf16.gmra.mxu0 %v2457
        %v2549 = vpop.f32.mrf.mxu0
        %v2550 = vadd.f32 0.0, %v2549
        %v2551 = vpop.f32.mrf.mxu0
        %v2552 = vpop.f32.mrf.mxu0
        %v2553 = vadd.f32 0.0, %v2552
        %v2554 = vpop.f32.mrf.mxu0
        %2555 = vdwg.mxu0
        %v2556 = vadd.f32 %v846, %v2494
        %v2557 = vadd.f32 %v847, %v2497
        %v2558 = vadd.f32 %v848, %v2502
        %v2559 = vadd.f32 %v849, %v2505
        %v2560 = vadd.f32 %v850, %v2510
        %v2561 = vadd.f32 %v851, %v2513
        %v2562 = vadd.f32 %v852, %v2518
        %v2563 = vadd.f32 %v853, %v2521
        %v2564 = vadd.f32 %v854, %v2526
        %v2565 = vadd.f32 %v855, %v2529
        %v2566 = vadd.f32 %v856, %v2534
        %v2567 = vadd.f32 %v857, %v2537
        %v2568 = vadd.f32 %v858, %v2542
        %v2569 = vadd.f32 %v859, %v2545
        %v2570 = vadd.f32 %v860, %v2550
        %v2571 = vadd.f32 %v861, %v2553
        %s2572 = smul.u32 %s266, 3
        %s2573 = smul.addr %s2572, 4
        %s2574 = scalar_lea.vmem %s263, %s2573
        %v2575 = vld [vmem:[%s2574] sm:$0xf]
        %v2576 = vld [vmem:[%s2574 + $0x4] sm:$0xf]
        %v2577 = vld [vmem:[%s2574 + $0x8] sm:$0x7]
        %v2578 = vld [vmem:[%s2574 + $0xc] sm:$0xf]
        %v2579 = vld [vmem:[%s2574 + $0x10] sm:$0xf]
        %v2580 = vld [vmem:[%s2574 + $0x14] sm:$0x7]
        %v2581 = vld [vmem:[%s2574 + $0x18] sm:$0xf]
        %v2582 = vld [vmem:[%s2574 + $0x1c] sm:$0xf]
        %v2583 = vld [vmem:[%s2574 + $0x20] sm:$0x7]
        %v2584 = vld [vmem:[%s2574 + $0x24] sm:$0xf]
        %v2585 = vld [vmem:[%s2574 + $0x28] sm:$0xf]
        %v2586 = vld [vmem:[%s2574 + $0x2c] sm:$0x7]
        %v2587 = vld [vmem:[%s2574 + $0x30] sm:$0xf]
        %v2588 = vld [vmem:[%s2574 + $0x34] sm:$0xf]
        %v2589 = vld [vmem:[%s2574 + $0x38] sm:$0x7]
        %v2590 = vld [vmem:[%s2574 + $0x3c] sm:$0xf]
        %v2591 = vld [vmem:[%s2574 + $0x40] sm:$0xf]
        %v2592 = vld [vmem:[%s2574 + $0x44] sm:$0x7]
        %v2593 = vld [vmem:[%s2574 + $0x48] sm:$0xf]
        %v2594 = vld [vmem:[%s2574 + $0x4c] sm:$0xf]
        %v2595 = vld [vmem:[%s2574 + $0x50] sm:$0x7]
        %v2596 = vld [vmem:[%s2574 + $0x54] sm:$0xf]
        %v2597 = vld [vmem:[%s2574 + $0x58] sm:$0xf]
        %v2598 = vld [vmem:[%s2574 + $0x5c] sm:$0x7]
        %v2615 = vunpack.c.l.b16 %v2575
        %v2616 = vunpack.c.l.b16 %v2576
        %v2617 = vunpack.c.l.b16 %v2578
        %v2618 = vunpack.c.l.b16 %v2579
        %v2619 = vunpack.c.l.b16 %v2581
        %v2620 = vunpack.c.l.b16 %v2582
        %v2621 = vunpack.c.l.b16 %v2584
        %v2622 = vunpack.c.l.b16 %v2585
        %v2623 = vunpack.c.l.b16 %v2587
        %v2624 = vunpack.c.l.b16 %v2588
        %v2625 = vunpack.c.l.b16 %v2590
        %v2626 = vunpack.c.l.b16 %v2591
        %v2627 = vunpack.c.l.b16 %v2593
        %v2628 = vunpack.c.l.b16 %v2594
        %v2629 = vunpack.c.l.b16 %v2596
        %v2630 = vunpack.c.l.b16 %v2597
        %v2631 = vpack.c.b16 %v2616, %v2615
        %v2632 = vpack.c.b16 %v2618, %v2617
        %v2633 = vpack.c.b16 %v2620, %v2619
        %v2634 = vpack.c.b16 %v2622, %v2621
        %v2635 = vpack.c.b16 %v2624, %v2623
        %v2636 = vpack.c.b16 %v2626, %v2625
        %v2637 = vpack.c.b16 %v2628, %v2627
        %v2638 = vpack.c.b16 %v2630, %v2629
        %v2647 = vunpack.c.l.b16 %v2577
        %v2648 = vunpack.c.l.b16 %v2580
        %v2649 = vunpack.c.l.b16 %v2583
        %v2650 = vunpack.c.l.b16 %v2586
        %v2651 = vunpack.c.l.b16 %v2589
        %v2652 = vunpack.c.l.b16 %v2592
        %v2653 = vunpack.c.l.b16 %v2595
        %v2654 = vunpack.c.l.b16 %v2598
        %v2655 = vpack.c.b16 %v2647, %v2647
        %v2656 = vpack.c.b16 %v2648, %v2648
        %v2657 = vpack.c.b16 %v2649, %v2649
        %v2658 = vpack.c.b16 %v2650, %v2650
        %v2659 = vpack.c.b16 %v2651, %v2651
        %v2660 = vpack.c.b16 %v2652, %v2652
        %v2661 = vpack.c.b16 %v2653, %v2653
        %v2662 = vpack.c.b16 %v2654, %v2654
        %vm2663 = vsmask.f32 6400
        %v2665 = vshrl.u32 %v2631, 16
        %v2667 = vrot.slane %v2665, 1
        %v2668 = vshll.u32 %v2631, 16
        %v2670 = vrot.slane %v2668, 2
        %v2671 = vor.u32 %v2667, %v2670
        %v2673 = vshrl.u32 %v2655, 16
        %v2675 = vrot.slane %v2673, 1
        %v2676 = vshll.u32 %v2655, 16
        %v2678 = vrot.slane %v2676, 2
        %v2679 = vor.u32 %v2675, %v2678
        %v2680 = vsel %vm2663, %v2671, %v2679
        %v2682 = vshrl.u32 %v2632, 16
        %v2684 = vrot.slane %v2682, 1
        %v2685 = vshll.u32 %v2632, 16
        %v2687 = vrot.slane %v2685, 2
        %v2688 = vor.u32 %v2684, %v2687
        %v2690 = vshrl.u32 %v2656, 16
        %v2692 = vrot.slane %v2690, 1
        %v2693 = vshll.u32 %v2656, 16
        %v2695 = vrot.slane %v2693, 2
        %v2696 = vor.u32 %v2692, %v2695
        %v2697 = vsel %vm2663, %v2688, %v2696
        %v2699 = vshrl.u32 %v2633, 16
        %v2701 = vrot.slane %v2699, 1
        %v2702 = vshll.u32 %v2633, 16
        %v2704 = vrot.slane %v2702, 2
        %v2705 = vor.u32 %v2701, %v2704
        %v2707 = vshrl.u32 %v2657, 16
        %v2709 = vrot.slane %v2707, 1
        %v2710 = vshll.u32 %v2657, 16
        %v2712 = vrot.slane %v2710, 2
        %v2713 = vor.u32 %v2709, %v2712
        %v2714 = vsel %vm2663, %v2705, %v2713
        %v2716 = vshrl.u32 %v2634, 16
        %v2718 = vrot.slane %v2716, 1
        %v2719 = vshll.u32 %v2634, 16
        %v2721 = vrot.slane %v2719, 2
        %v2722 = vor.u32 %v2718, %v2721
        %v2724 = vshrl.u32 %v2658, 16
        %v2726 = vrot.slane %v2724, 1
        %v2727 = vshll.u32 %v2658, 16
        %v2729 = vrot.slane %v2727, 2
        %v2730 = vor.u32 %v2726, %v2729
        %v2731 = vsel %vm2663, %v2722, %v2730
        %v2733 = vshrl.u32 %v2635, 16
        %v2735 = vrot.slane %v2733, 1
        %v2736 = vshll.u32 %v2635, 16
        %v2738 = vrot.slane %v2736, 2
        %v2739 = vor.u32 %v2735, %v2738
        %v2741 = vshrl.u32 %v2659, 16
        %v2743 = vrot.slane %v2741, 1
        %v2744 = vshll.u32 %v2659, 16
        %v2746 = vrot.slane %v2744, 2
        %v2747 = vor.u32 %v2743, %v2746
        %v2748 = vsel %vm2663, %v2739, %v2747
        %v2750 = vshrl.u32 %v2636, 16
        %v2752 = vrot.slane %v2750, 1
        %v2753 = vshll.u32 %v2636, 16
        %v2755 = vrot.slane %v2753, 2
        %v2756 = vor.u32 %v2752, %v2755
        %v2758 = vshrl.u32 %v2660, 16
        %v2760 = vrot.slane %v2758, 1
        %v2761 = vshll.u32 %v2660, 16
        %v2763 = vrot.slane %v2761, 2
        %v2764 = vor.u32 %v2760, %v2763
        %v2765 = vsel %vm2663, %v2756, %v2764
        %v2767 = vshrl.u32 %v2637, 16
        %v2769 = vrot.slane %v2767, 1
        %v2770 = vshll.u32 %v2637, 16
        %v2772 = vrot.slane %v2770, 2
        %v2773 = vor.u32 %v2769, %v2772
        %v2775 = vshrl.u32 %v2661, 16
        %v2777 = vrot.slane %v2775, 1
        %v2778 = vshll.u32 %v2661, 16
        %v2780 = vrot.slane %v2778, 2
        %v2781 = vor.u32 %v2777, %v2780
        %v2782 = vsel %vm2663, %v2773, %v2781
        %v2784 = vshrl.u32 %v2638, 16
        %v2786 = vrot.slane %v2784, 1
        %v2787 = vshll.u32 %v2638, 16
        %v2789 = vrot.slane %v2787, 2
        %v2790 = vor.u32 %v2786, %v2789
        %v2792 = vshrl.u32 %v2662, 16
        %v2794 = vrot.slane %v2792, 1
        %v2795 = vshll.u32 %v2662, 16
        %v2797 = vrot.slane %v2795, 2
        %v2798 = vor.u32 %v2794, %v2797
        %v2799 = vsel %vm2663, %v2790, %v2798
        %2800 = vrot.lane.b32.xlu0 %v2680, 8
        %v2801 = vpop.permute.xlu0 %2800
        %2802 = vrot.lane.b32.xlu0 %v2697, 8
        %v2803 = vpop.permute.xlu0 %2802
        %2804 = vrot.lane.b32.xlu0 %v2714, 8
        %v2805 = vpop.permute.xlu0 %2804
        %2806 = vrot.lane.b32.xlu0 %v2731, 8
        %v2807 = vpop.permute.xlu0 %2806
        %2808 = vrot.lane.b32.xlu0 %v2748, 8
        %v2809 = vpop.permute.xlu0 %2808
        %2810 = vrot.lane.b32.xlu0 %v2765, 8
        %v2811 = vpop.permute.xlu0 %2810
        %2812 = vrot.lane.b32.xlu0 %v2782, 8
        %v2813 = vpop.permute.xlu0 %2812
        %2814 = vrot.lane.b32.xlu0 %v2799, 8
        %v2815 = vpop.permute.xlu0 %2814
        %vm2816 = vcmask 1044480
        %v2817 = vrot.slane %v2631, 3
        %v2818 = vrot.slane %v2655, 3
        %v2819 = vsel %vm2816, %v2817, %v2818
        %v2820 = vrot.slane %v2632, 3
        %v2821 = vrot.slane %v2656, 3
        %v2822 = vsel %vm2816, %v2820, %v2821
        %v2823 = vrot.slane %v2633, 3
        %v2824 = vrot.slane %v2657, 3
        %v2825 = vsel %vm2816, %v2823, %v2824
        %v2826 = vrot.slane %v2634, 3
        %v2827 = vrot.slane %v2658, 3
        %v2828 = vsel %vm2816, %v2826, %v2827
        %v2829 = vrot.slane %v2635, 3
        %v2830 = vrot.slane %v2659, 3
        %v2831 = vsel %vm2816, %v2829, %v2830
        %v2832 = vrot.slane %v2636, 3
        %v2833 = vrot.slane %v2660, 3
        %v2834 = vsel %vm2816, %v2832, %v2833
        %v2835 = vrot.slane %v2637, 3
        %v2836 = vrot.slane %v2661, 3
        %v2837 = vsel %vm2816, %v2835, %v2836
        %v2838 = vrot.slane %v2638, 3
        %v2839 = vrot.slane %v2662, 3
        %v2840 = vsel %vm2816, %v2838, %v2839
        %2841 = vrot.lane.b32.xlu0 %v2819, 16
        %v2842 = vpop.permute.xlu0 %2841
        %2843 = vrot.lane.b32.xlu0 %v2822, 16
        %v2844 = vpop.permute.xlu0 %2843
        %2845 = vrot.lane.b32.xlu0 %v2825, 16
        %v2846 = vpop.permute.xlu0 %2845
        %2847 = vrot.lane.b32.xlu0 %v2828, 16
        %v2848 = vpop.permute.xlu0 %2847
        %2849 = vrot.lane.b32.xlu0 %v2831, 16
        %v2850 = vpop.permute.xlu0 %2849
        %2851 = vrot.lane.b32.xlu0 %v2834, 16
        %v2852 = vpop.permute.xlu0 %2851
        %2853 = vrot.lane.b32.xlu0 %v2837, 16
        %v2854 = vpop.permute.xlu0 %2853
        %2855 = vrot.lane.b32.xlu0 %v2840, 16
        %v2856 = vpop.permute.xlu0 %2855
        %v2858 = vsel %vm554, %v2631, %v2801
        %v2860 = vsel %vm554, %v2632, %v2803
        %v2862 = vsel %vm554, %v2633, %v2805
        %v2864 = vsel %vm554, %v2634, %v2807
        %v2866 = vsel %vm554, %v2635, %v2809
        %v2868 = vsel %vm554, %v2636, %v2811
        %v2870 = vsel %vm554, %v2637, %v2813
        %v2872 = vsel %vm554, %v2638, %v2815
        %v2874 = vsel %vm1116, %v2858, %v2842
        %v2876 = vsel %vm1116, %v2860, %v2844
        %v2878 = vsel %vm1116, %v2862, %v2846
        %v2880 = vsel %vm1116, %v2864, %v2848
        %v2882 = vsel %vm1116, %v2866, %v2850
        %v2884 = vsel %vm1116, %v2868, %v2852
        %v2886 = vsel %vm1116, %v2870, %v2854
        %v2888 = vsel %vm1116, %v2872, %v2856
        %s2889 = scalar_lea.vmem %s3, 36
        %v2890 = vld [vmem:[%s2889] sm:$0xf]
        %v2891 = vld [vmem:[%s2889 + $0x4] sm:$0xf]
        %v2892 = vld [vmem:[%s2889 + $0x8] sm:$0xf]
        %v2893 = vshrl.u32 %v1297, 16
        %v2895 = vrot.slane %v2893, 1
        %v2896 = vshll.u32 %v1297, 16
        %v2898 = vrot.slane %v2896, 2
        %v2899 = vor.u32 %v2895, %v2898
        %v2900 = vshrl.u32 %v1298, 16
        %v2902 = vrot.slane %v2900, 1
        %v2903 = vshll.u32 %v1298, 16
        %v2905 = vrot.slane %v2903, 2
        %v2906 = vor.u32 %v2902, %v2905
        %v2907 = vsel %vm2663, %v2899, %v2906
        %v2908 = vshrl.u32 %v1299, 16
        %v2910 = vrot.slane %v2908, 1
        %v2911 = vshll.u32 %v1299, 16
        %v2913 = vrot.slane %v2911, 2
        %v2914 = vor.u32 %v2910, %v2913
        %v2915 = vshrl.u32 %v1300, 16
        %v2917 = vrot.slane %v2915, 1
        %v2918 = vshll.u32 %v1300, 16
        %v2920 = vrot.slane %v2918, 2
        %v2921 = vor.u32 %v2917, %v2920
        %v2922 = vsel %vm2663, %v2914, %v2921
        %v2923 = vshrl.u32 %v1301, 16
        %v2925 = vrot.slane %v2923, 1
        %v2926 = vshll.u32 %v1301, 16
        %v2928 = vrot.slane %v2926, 2
        %v2929 = vor.u32 %v2925, %v2928
        %v2930 = vshrl.u32 %v1302, 16
        %v2932 = vrot.slane %v2930, 1
        %v2933 = vshll.u32 %v1302, 16
        %v2935 = vrot.slane %v2933, 2
        %v2936 = vor.u32 %v2932, %v2935
        %v2937 = vsel %vm2663, %v2929, %v2936
        %v2938 = vshrl.u32 %v1303, 16
        %v2940 = vrot.slane %v2938, 1
        %v2941 = vshll.u32 %v1303, 16
        %v2943 = vrot.slane %v2941, 2
        %v2944 = vor.u32 %v2940, %v2943
        %v2945 = vshrl.u32 %v1304, 16
        %v2947 = vrot.slane %v2945, 1
        %v2948 = vshll.u32 %v1304, 16
        %v2950 = vrot.slane %v2948, 2
        %v2951 = vor.u32 %v2947, %v2950
        %v2952 = vsel %vm2663, %v2944, %v2951
        %v2953 = vshrl.u32 %v1305, 16
        %v2955 = vrot.slane %v2953, 1
        %v2956 = vshll.u32 %v1305, 16
        %v2958 = vrot.slane %v2956, 2
        %v2959 = vor.u32 %v2955, %v2958
        %v2960 = vshrl.u32 %v1306, 16
        %v2962 = vrot.slane %v2960, 1
        %v2963 = vshll.u32 %v1306, 16
        %v2965 = vrot.slane %v2963, 2
        %v2966 = vor.u32 %v2962, %v2965
        %v2967 = vsel %vm2663, %v2959, %v2966
        %v2968 = vshrl.u32 %v1307, 16
        %v2970 = vrot.slane %v2968, 1
        %v2971 = vshll.u32 %v1307, 16
        %v2973 = vrot.slane %v2971, 2
        %v2974 = vor.u32 %v2970, %v2973
        %v2975 = vshrl.u32 %v1308, 16
        %v2977 = vrot.slane %v2975, 1
        %v2978 = vshll.u32 %v1308, 16
        %v2980 = vrot.slane %v2978, 2
        %v2981 = vor.u32 %v2977, %v2980
        %v2982 = vsel %vm2663, %v2974, %v2981
        %v2983 = vshrl.u32 %v1309, 16
        %v2985 = vrot.slane %v2983, 1
        %v2986 = vshll.u32 %v1309, 16
        %v2988 = vrot.slane %v2986, 2
        %v2989 = vor.u32 %v2985, %v2988
        %v2990 = vshrl.u32 %v1310, 16
        %v2992 = vrot.slane %v2990, 1
        %v2993 = vshll.u32 %v1310, 16
        %v2995 = vrot.slane %v2993, 2
        %v2996 = vor.u32 %v2992, %v2995
        %v2997 = vsel %vm2663, %v2989, %v2996
        %v2998 = vshrl.u32 %v1311, 16
        %v3000 = vrot.slane %v2998, 1
        %v3001 = vshll.u32 %v1311, 16
        %v3003 = vrot.slane %v3001, 2
        %v3004 = vor.u32 %v3000, %v3003
        %v3005 = vshrl.u32 %v1312, 16
        %v3007 = vrot.slane %v3005, 1
        %v3008 = vshll.u32 %v1312, 16
        %v3010 = vrot.slane %v3008, 2
        %v3011 = vor.u32 %v3007, %v3010
        %v3012 = vsel %vm2663, %v3004, %v3011
        %3013 = vrot.lane.b32.xlu0 %v2907, 8
        %v3014 = vpop.permute.xlu0 %3013
        %3015 = vrot.lane.b32.xlu0 %v2922, 8
        %v3016 = vpop.permute.xlu0 %3015
        %3017 = vrot.lane.b32.xlu0 %v2937, 8
        %v3018 = vpop.permute.xlu0 %3017
        %3019 = vrot.lane.b32.xlu0 %v2952, 8
        %v3020 = vpop.permute.xlu0 %3019
        %3021 = vrot.lane.b32.xlu0 %v2967, 8
        %v3022 = vpop.permute.xlu0 %3021
        %3023 = vrot.lane.b32.xlu0 %v2982, 8
        %v3024 = vpop.permute.xlu0 %3023
        %3025 = vrot.lane.b32.xlu0 %v2997, 8
        %v3026 = vpop.permute.xlu0 %3025
        %3027 = vrot.lane.b32.xlu0 %v3012, 8
        %v3028 = vpop.permute.xlu0 %3027
        %v3029 = vrot.slane %v1297, 3
        %v3030 = vrot.slane %v1298, 3
        %v3031 = vsel %vm2816, %v3029, %v3030
        %v3032 = vrot.slane %v1299, 3
        %v3033 = vrot.slane %v1300, 3
        %v3034 = vsel %vm2816, %v3032, %v3033
        %v3035 = vrot.slane %v1301, 3
        %v3036 = vrot.slane %v1302, 3
        %v3037 = vsel %vm2816, %v3035, %v3036
        %v3038 = vrot.slane %v1303, 3
        %v3039 = vrot.slane %v1304, 3
        %v3040 = vsel %vm2816, %v3038, %v3039
        %v3041 = vrot.slane %v1305, 3
        %v3042 = vrot.slane %v1306, 3
        %v3043 = vsel %vm2816, %v3041, %v3042
        %v3044 = vrot.slane %v1307, 3
        %v3045 = vrot.slane %v1308, 3
        %v3046 = vsel %vm2816, %v3044, %v3045
        %v3047 = vrot.slane %v1309, 3
        %v3048 = vrot.slane %v1310, 3
        %v3049 = vsel %vm2816, %v3047, %v3048
        %v3050 = vrot.slane %v1311, 3
        %v3051 = vrot.slane %v1312, 3
        %v3052 = vsel %vm2816, %v3050, %v3051
        %3053 = vrot.lane.b32.xlu0 %v3031, 16
        %v3054 = vpop.permute.xlu0 %3053
        %3055 = vrot.lane.b32.xlu0 %v3034, 16
        %v3056 = vpop.permute.xlu0 %3055
        %3057 = vrot.lane.b32.xlu0 %v3037, 16
        %v3058 = vpop.permute.xlu0 %3057
        %3059 = vrot.lane.b32.xlu0 %v3040, 16
        %v3060 = vpop.permute.xlu0 %3059
        %3061 = vrot.lane.b32.xlu0 %v3043, 16
        %v3062 = vpop.permute.xlu0 %3061
        %3063 = vrot.lane.b32.xlu0 %v3046, 16
        %v3064 = vpop.permute.xlu0 %3063
        %3065 = vrot.lane.b32.xlu0 %v3049, 16
        %v3066 = vpop.permute.xlu0 %3065
        %3067 = vrot.lane.b32.xlu0 %v3052, 16
        %v3068 = vpop.permute.xlu0 %3067
        %v3070 = vsel %vm554, %v1297, %v3014
        %v3072 = vsel %vm554, %v1299, %v3016
        %v3074 = vsel %vm554, %v1301, %v3018
        %v3076 = vsel %vm554, %v1303, %v3020
        %v3078 = vsel %vm554, %v1305, %v3022
        %v3080 = vsel %vm554, %v1307, %v3024
        %v3082 = vsel %vm554, %v1309, %v3026
        %v3084 = vsel %vm554, %v1311, %v3028
        %v3086 = vsel %vm1116, %v3070, %v3054
        %v3088 = vsel %vm1116, %v3072, %v3056
        %v3090 = vsel %vm1116, %v3074, %v3058
        %v3092 = vsel %vm1116, %v3076, %v3060
        %v3094 = vsel %vm1116, %v3078, %v3062
        %v3096 = vsel %vm1116, %v3080, %v3064
        %v3098 = vsel %vm1116, %v3082, %v3066
        %v3100 = vsel %vm1116, %v3084, %v3068
        %s3101 = scalar_lea.vmem %s3, 48
        %v3102 = vld [vmem:[%s3101] sm:$0xf]
        %v3103 = vld [vmem:[%s3101 + $0x4] sm:$0xf]
        %v3104 = vld [vmem:[%s3101 + $0x8] sm:$0xf]
        %v3108 = vunpack.c.l.b16 %v3102
        %v3109 = vunpack.c.l.b16 %v3103
        %v3110 = vunpack.c.l.b16 %v3104
        %v3111 = vpack.c.b16 %v3109, %v3108
        %v3112 = vpack.c.b16 %v3110, %v3110
        %v3114 = vsel %vm1598, %v3086, 0
        %v3116 = vsel %vm1598, %v3088, 0
        %v3118 = vsel %vm1598, %v3090, 0
        %v3120 = vsel %vm1598, %v3092, 0
        %v3122 = vsel %vm1598, %v3094, 0
        %v3124 = vsel %vm1598, %v3096, 0
        %v3126 = vsel %vm1598, %v3098, 0
        %v3128 = vsel %vm1598, %v3100, 0
        %v3131 = vsel %vm579, %v3112, 0
        %3133 = vmatprep.subr.bf16.mxu0 0
        %3134 = vmatpush1.bf16.msra.mxu0 0
        %3135 = vmatprep.subr.bf16.mxu0 0
        %3136 = vmatpush1.bf16.msra.mxu0 0
        %3137 = vmatprep.subr.bf16.mxu0 0
        %3138 = vmatpush1.bf16.msra.mxu0 0
        %3139 = vmatprep.subr.bf16.mxu0 0
        %3140 = vmatpush1.bf16.msra.mxu0 0
        %3141 = vmatprep.subr.bf16.mxu0 0
        %3142 = vmatpush1.bf16.msra.mxu0 0
        %3143 = vmatprep.subr.bf16.mxu0 0
        %3144 = vmatpush1.bf16.msra.mxu0 0
        %3145 = vmatprep.subr.bf16.mxu0 0
        %3146 = vmatpush1.bf16.msra.mxu0 %v3131
        %3147 = vmatprep.subr.bf16.mxu0 0
        %3148 = vmatpush1.bf16.msra.mxu0 %v3111
        %3149 = vmatprep.subr.bf16.mxu0 0
        %3150 = vmatpush2.bf16.msra.mxu0 0
        %3151 = vmatprep.subr.bf16.mxu0 0
        %3152 = vmatpush2.bf16.msra.mxu0 0
        %3153 = vmatprep.subr.bf16.mxu0 0
        %3154 = vmatpush2.bf16.msra.mxu0 0
        %3155 = vmatprep.subr.bf16.mxu0 0
        %3156 = vmatpush2.bf16.msra.mxu0 0
        %3157 = vmatprep.subr.bf16.mxu0 0
        %3158 = vmatpush2.bf16.msra.mxu0 0
        %3159 = vmatprep.subr.bf16.mxu0 0
        %3160 = vmatpush2.bf16.msra.mxu0 0
        %3161 = vmatprep.subr.bf16.mxu0 0
        %3162 = vmatpush2.bf16.msra.mxu0 0
        %3163 = vmatprep.subr.bf16.mxu0 0
        %3164 = vmatpush2.bf16.msra.mxu0 0
        %3165 = vmatprep.mubr.bf16.mxu0 0
        %3166 = vmatmul.mubr.bf16.gmra.mxu0 %v3114
        %v3167 = vpop.f32.mrf.mxu0
        %v3168 = vadd.f32 0.0, %v3167
        %v3169 = vpop.f32.mrf.mxu0
        %v3170 = vpop.f32.mrf.mxu0
        %v3171 = vadd.f32 0.0, %v3170
        %v3172 = vpop.f32.mrf.mxu0
        %3173 = vmatprep.mubr.bf16.mxu0 0
        %3174 = vmatmul.mubr.bf16.gmra.mxu0 %v3116
        %v3175 = vpop.f32.mrf.mxu0
        %v3176 = vadd.f32 0.0, %v3175
        %v3177 = vpop.f32.mrf.mxu0
        %v3178 = vpop.f32.mrf.mxu0
        %v3179 = vadd.f32 0.0, %v3178
        %v3180 = vpop.f32.mrf.mxu0
        %3181 = vmatprep.mubr.bf16.mxu0 0
        %3182 = vmatmul.mubr.bf16.gmra.mxu0 %v3118
        %v3183 = vpop.f32.mrf.mxu0
        %v3184 = vadd.f32 0.0, %v3183
        %v3185 = vpop.f32.mrf.mxu0
        %v3186 = vpop.f32.mrf.mxu0
        %v3187 = vadd.f32 0.0, %v3186
        %v3188 = vpop.f32.mrf.mxu0
        %3189 = vmatprep.mubr.bf16.mxu0 0
        %3190 = vmatmul.mubr.bf16.gmra.mxu0 %v3120
        %v3191 = vpop.f32.mrf.mxu0
        %v3192 = vadd.f32 0.0, %v3191
        %v3193 = vpop.f32.mrf.mxu0
        %v3194 = vpop.f32.mrf.mxu0
        %v3195 = vadd.f32 0.0, %v3194
        %v3196 = vpop.f32.mrf.mxu0
        %3197 = vmatprep.mubr.bf16.mxu0 0
        %3198 = vmatmul.mubr.bf16.gmra.mxu0 %v3122
        %v3199 = vpop.f32.mrf.mxu0
        %v3200 = vadd.f32 0.0, %v3199
        %v3201 = vpop.f32.mrf.mxu0
        %v3202 = vpop.f32.mrf.mxu0
        %v3203 = vadd.f32 0.0, %v3202
        %v3204 = vpop.f32.mrf.mxu0
        %3205 = vmatprep.mubr.bf16.mxu0 0
        %3206 = vmatmul.mubr.bf16.gmra.mxu0 %v3124
        %v3207 = vpop.f32.mrf.mxu0
        %v3208 = vadd.f32 0.0, %v3207
        %v3209 = vpop.f32.mrf.mxu0
        %v3210 = vpop.f32.mrf.mxu0
        %v3211 = vadd.f32 0.0, %v3210
        %v3212 = vpop.f32.mrf.mxu0
        %3213 = vmatprep.mubr.bf16.mxu0 0
        %3214 = vmatmul.mubr.bf16.gmra.mxu0 %v3126
        %v3215 = vpop.f32.mrf.mxu0
        %v3216 = vadd.f32 0.0, %v3215
        %v3217 = vpop.f32.mrf.mxu0
        %v3218 = vpop.f32.mrf.mxu0
        %v3219 = vadd.f32 0.0, %v3218
        %v3220 = vpop.f32.mrf.mxu0
        %3221 = vmatprep.mubr.bf16.mxu0 0
        %3222 = vmatmul.mubr.bf16.gmra.mxu0 %v3128
        %v3223 = vpop.f32.mrf.mxu0
        %v3224 = vadd.f32 0.0, %v3223
        %v3225 = vpop.f32.mrf.mxu0
        %v3226 = vpop.f32.mrf.mxu0
        %v3227 = vadd.f32 0.0, %v3226
        %v3228 = vpop.f32.mrf.mxu0
        %3229 = vdwg.mxu0
        %v3233 = vunpack.c.l.b16 %v2890
        %v3234 = vunpack.c.l.b16 %v2891
        %v3235 = vunpack.c.l.b16 %v2892
        %v3236 = vpack.c.b16 %v3234, %v3233
        %v3237 = vpack.c.b16 %v3235, %v3235
        %v3239 = vsel %vm1598, %v2874, 0
        %v3241 = vsel %vm1598, %v2876, 0
        %v3243 = vsel %vm1598, %v2878, 0
        %v3245 = vsel %vm1598, %v2880, 0
        %v3247 = vsel %vm1598, %v2882, 0
        %v3249 = vsel %vm1598, %v2884, 0
        %v3251 = vsel %vm1598, %v2886, 0
        %v3253 = vsel %vm1598, %v2888, 0
        %v3256 = vsel %vm579, %v3237, 0
        %3258 = vmatprep.subr.bf16.mxu0 0
        %3259 = vmatpush1.bf16.msra.mxu0 0
        %3260 = vmatprep.subr.bf16.mxu0 0
        %3261 = vmatpush1.bf16.msra.mxu0 0
        %3262 = vmatprep.subr.bf16.mxu0 0
        %3263 = vmatpush1.bf16.msra.mxu0 0
        %3264 = vmatprep.subr.bf16.mxu0 0
        %3265 = vmatpush1.bf16.msra.mxu0 0
        %3266 = vmatprep.subr.bf16.mxu0 0
        %3267 = vmatpush1.bf16.msra.mxu0 0
        %3268 = vmatprep.subr.bf16.mxu0 0
        %3269 = vmatpush1.bf16.msra.mxu0 0
        %3270 = vmatprep.subr.bf16.mxu0 0
        %3271 = vmatpush1.bf16.msra.mxu0 %v3256
        %3272 = vmatprep.subr.bf16.mxu0 0
        %3273 = vmatpush1.bf16.msra.mxu0 %v3236
        %3274 = vmatprep.subr.bf16.mxu0 0
        %3275 = vmatpush2.bf16.msra.mxu0 0
        %3276 = vmatprep.subr.bf16.mxu0 0
        %3277 = vmatpush2.bf16.msra.mxu0 0
        %3278 = vmatprep.subr.bf16.mxu0 0
        %3279 = vmatpush2.bf16.msra.mxu0 0
        %3280 = vmatprep.subr.bf16.mxu0 0
        %3281 = vmatpush2.bf16.msra.mxu0 0
        %3282 = vmatprep.subr.bf16.mxu0 0
        %3283 = vmatpush2.bf16.msra.mxu0 0
        %3284 = vmatprep.subr.bf16.mxu0 0
        %3285 = vmatpush2.bf16.msra.mxu0 0
        %3286 = vmatprep.subr.bf16.mxu0 0
        %3287 = vmatpush2.bf16.msra.mxu0 0
        %3288 = vmatprep.subr.bf16.mxu0 0
        %3289 = vmatpush2.bf16.msra.mxu0 0
        %3290 = vmatprep.mubr.bf16.mxu0 0
        %3291 = vmatmul.mubr.bf16.gmra.mxu0 %v3239
        %v3292 = vpop.f32.mrf.mxu0
        %v3293 = vadd.f32 %v3168, %v3292
        %v3294 = vpop.f32.mrf.mxu0
        %v3295 = vpop.f32.mrf.mxu0
        %v3296 = vadd.f32 %v3171, %v3295
        %v3297 = vpop.f32.mrf.mxu0
        %3298 = vmatprep.mubr.bf16.mxu0 0
        %3299 = vmatmul.mubr.bf16.gmra.mxu0 %v3241
        %v3300 = vpop.f32.mrf.mxu0
        %v3301 = vadd.f32 %v3176, %v3300
        %v3302 = vpop.f32.mrf.mxu0
        %v3303 = vpop.f32.mrf.mxu0
        %v3304 = vadd.f32 %v3179, %v3303
        %v3305 = vpop.f32.mrf.mxu0
        %3306 = vmatprep.mubr.bf16.mxu0 0
        %3307 = vmatmul.mubr.bf16.gmra.mxu0 %v3243
        %v3308 = vpop.f32.mrf.mxu0
        %v3309 = vadd.f32 %v3184, %v3308
        %v3310 = vpop.f32.mrf.mxu0
        %v3311 = vpop.f32.mrf.mxu0
        %v3312 = vadd.f32 %v3187, %v3311
        %v3313 = vpop.f32.mrf.mxu0
        %3314 = vmatprep.mubr.bf16.mxu0 0
        %3315 = vmatmul.mubr.bf16.gmra.mxu0 %v3245
        %v3316 = vpop.f32.mrf.mxu0
        %v3317 = vadd.f32 %v3192, %v3316
        %v3318 = vpop.f32.mrf.mxu0
        %v3319 = vpop.f32.mrf.mxu0
        %v3320 = vadd.f32 %v3195, %v3319
        %v3321 = vpop.f32.mrf.mxu0
        %3322 = vmatprep.mubr.bf16.mxu0 0
        %3323 = vmatmul.mubr.bf16.gmra.mxu0 %v3247
        %v3324 = vpop.f32.mrf.mxu0
        %v3325 = vadd.f32 %v3200, %v3324
        %v3326 = vpop.f32.mrf.mxu0
        %v3327 = vpop.f32.mrf.mxu0
        %v3328 = vadd.f32 %v3203, %v3327
        %v3329 = vpop.f32.mrf.mxu0
        %3330 = vmatprep.mubr.bf16.mxu0 0
        %3331 = vmatmul.mubr.bf16.gmra.mxu0 %v3249
        %v3332 = vpop.f32.mrf.mxu0
        %v3333 = vadd.f32 %v3208, %v3332
        %v3334 = vpop.f32.mrf.mxu0
        %v3335 = vpop.f32.mrf.mxu0
        %v3336 = vadd.f32 %v3211, %v3335
        %v3337 = vpop.f32.mrf.mxu0
        %3338 = vmatprep.mubr.bf16.mxu0 0
        %3339 = vmatmul.mubr.bf16.gmra.mxu0 %v3251
        %v3340 = vpop.f32.mrf.mxu0
        %v3341 = vadd.f32 %v3216, %v3340
        %v3342 = vpop.f32.mrf.mxu0
        %v3343 = vpop.f32.mrf.mxu0
        %v3344 = vadd.f32 %v3219, %v3343
        %v3345 = vpop.f32.mrf.mxu0
        %3346 = vmatprep.mubr.bf16.mxu0 0
        %3347 = vmatmul.mubr.bf16.gmra.mxu0 %v3253
        %v3348 = vpop.f32.mrf.mxu0
        %v3349 = vadd.f32 %v3224, %v3348
        %v3350 = vpop.f32.mrf.mxu0
        %v3351 = vpop.f32.mrf.mxu0
        %v3352 = vadd.f32 %v3227, %v3351
        %v3353 = vpop.f32.mrf.mxu0
        %3354 = vdwg.mxu0
        %s3355 = sadd.s32 %s266, 6
        %s3356 = smul.u32 %s3355, 3
        %s3357 = smul.addr %s3356, 4
        %s3358 = scalar_lea.vmem %s263, %s3357
        %v3359 = vld [vmem:[%s3358] sm:$0xf]
        %v3360 = vld [vmem:[%s3358 + $0x4] sm:$0xf]
        %v3361 = vld [vmem:[%s3358 + $0x8] sm:$0x7]
        %v3362 = vld [vmem:[%s3358 + $0xc] sm:$0xf]
        %v3363 = vld [vmem:[%s3358 + $0x10] sm:$0xf]
        %v3364 = vld [vmem:[%s3358 + $0x14] sm:$0x7]
        %v3365 = vld [vmem:[%s3358 + $0x18] sm:$0xf]
        %v3366 = vld [vmem:[%s3358 + $0x1c] sm:$0xf]
        %v3367 = vld [vmem:[%s3358 + $0x20] sm:$0x7]
        %v3368 = vld [vmem:[%s3358 + $0x24] sm:$0xf]
        %v3369 = vld [vmem:[%s3358 + $0x28] sm:$0xf]
        %v3370 = vld [vmem:[%s3358 + $0x2c] sm:$0x7]
        %v3371 = vld [vmem:[%s3358 + $0x30] sm:$0xf]
        %v3372 = vld [vmem:[%s3358 + $0x34] sm:$0xf]
        %v3373 = vld [vmem:[%s3358 + $0x38] sm:$0x7]
        %v3374 = vld [vmem:[%s3358 + $0x3c] sm:$0xf]
        %v3375 = vld [vmem:[%s3358 + $0x40] sm:$0xf]
        %v3376 = vld [vmem:[%s3358 + $0x44] sm:$0x7]
        %v3377 = vld [vmem:[%s3358 + $0x48] sm:$0xf]
        %v3378 = vld [vmem:[%s3358 + $0x4c] sm:$0xf]
        %v3379 = vld [vmem:[%s3358 + $0x50] sm:$0x7]
        %v3380 = vld [vmem:[%s3358 + $0x54] sm:$0xf]
        %v3381 = vld [vmem:[%s3358 + $0x58] sm:$0xf]
        %v3382 = vld [vmem:[%s3358 + $0x5c] sm:$0x7]
        %v3399 = vunpack.c.l.b16 %v3359
        %v3400 = vunpack.c.l.b16 %v3360
        %v3401 = vunpack.c.l.b16 %v3362
        %v3402 = vunpack.c.l.b16 %v3363
        %v3403 = vunpack.c.l.b16 %v3365
        %v3404 = vunpack.c.l.b16 %v3366
        %v3405 = vunpack.c.l.b16 %v3368
        %v3406 = vunpack.c.l.b16 %v3369
        %v3407 = vunpack.c.l.b16 %v3371
        %v3408 = vunpack.c.l.b16 %v3372
        %v3409 = vunpack.c.l.b16 %v3374
        %v3410 = vunpack.c.l.b16 %v3375
        %v3411 = vunpack.c.l.b16 %v3377
        %v3412 = vunpack.c.l.b16 %v3378
        %v3413 = vunpack.c.l.b16 %v3380
        %v3414 = vunpack.c.l.b16 %v3381
        %v3415 = vpack.c.b16 %v3400, %v3399
        %v3416 = vpack.c.b16 %v3402, %v3401
        %v3417 = vpack.c.b16 %v3404, %v3403
        %v3418 = vpack.c.b16 %v3406, %v3405
        %v3419 = vpack.c.b16 %v3408, %v3407
        %v3420 = vpack.c.b16 %v3410, %v3409
        %v3421 = vpack.c.b16 %v3412, %v3411
        %v3422 = vpack.c.b16 %v3414, %v3413
        %v3431 = vunpack.c.l.b16 %v3361
        %v3432 = vunpack.c.l.b16 %v3364
        %v3433 = vunpack.c.l.b16 %v3367
        %v3434 = vunpack.c.l.b16 %v3370
        %v3435 = vunpack.c.l.b16 %v3373
        %v3436 = vunpack.c.l.b16 %v3376
        %v3437 = vunpack.c.l.b16 %v3379
        %v3438 = vunpack.c.l.b16 %v3382
        %v3439 = vpack.c.b16 %v3431, %v3431
        %v3440 = vpack.c.b16 %v3432, %v3432
        %v3441 = vpack.c.b16 %v3433, %v3433
        %v3442 = vpack.c.b16 %v3434, %v3434
        %v3443 = vpack.c.b16 %v3435, %v3435
        %v3444 = vpack.c.b16 %v3436, %v3436
        %v3445 = vpack.c.b16 %v3437, %v3437
        %v3446 = vpack.c.b16 %v3438, %v3438
        %v3448 = vshrl.u32 %v3415, 16
        %v3450 = vrot.slane %v3448, 1
        %v3451 = vshll.u32 %v3415, 16
        %v3453 = vrot.slane %v3451, 2
        %v3454 = vor.u32 %v3450, %v3453
        %v3456 = vshrl.u32 %v3439, 16
        %v3458 = vrot.slane %v3456, 1
        %v3459 = vshll.u32 %v3439, 16
        %v3461 = vrot.slane %v3459, 2
        %v3462 = vor.u32 %v3458, %v3461
        %v3463 = vsel %vm2663, %v3454, %v3462
        %v3465 = vshrl.u32 %v3416, 16
        %v3467 = vrot.slane %v3465, 1
        %v3468 = vshll.u32 %v3416, 16
        %v3470 = vrot.slane %v3468, 2
        %v3471 = vor.u32 %v3467, %v3470
        %v3473 = vshrl.u32 %v3440, 16
        %v3475 = vrot.slane %v3473, 1
        %v3476 = vshll.u32 %v3440, 16
        %v3478 = vrot.slane %v3476, 2
        %v3479 = vor.u32 %v3475, %v3478
        %v3480 = vsel %vm2663, %v3471, %v3479
        %v3482 = vshrl.u32 %v3417, 16
        %v3484 = vrot.slane %v3482, 1
        %v3485 = vshll.u32 %v3417, 16
        %v3487 = vrot.slane %v3485, 2
        %v3488 = vor.u32 %v3484, %v3487
        %v3490 = vshrl.u32 %v3441, 16
        %v3492 = vrot.slane %v3490, 1
        %v3493 = vshll.u32 %v3441, 16
        %v3495 = vrot.slane %v3493, 2
        %v3496 = vor.u32 %v3492, %v3495
        %v3497 = vsel %vm2663, %v3488, %v3496
        %v3499 = vshrl.u32 %v3418, 16
        %v3501 = vrot.slane %v3499, 1
        %v3502 = vshll.u32 %v3418, 16
        %v3504 = vrot.slane %v3502, 2
        %v3505 = vor.u32 %v3501, %v3504
        %v3507 = vshrl.u32 %v3442, 16
        %v3509 = vrot.slane %v3507, 1
        %v3510 = vshll.u32 %v3442, 16
        %v3512 = vrot.slane %v3510, 2
        %v3513 = vor.u32 %v3509, %v3512
        %v3514 = vsel %vm2663, %v3505, %v3513
        %v3516 = vshrl.u32 %v3419, 16
        %v3518 = vrot.slane %v3516, 1
        %v3519 = vshll.u32 %v3419, 16
        %v3521 = vrot.slane %v3519, 2
        %v3522 = vor.u32 %v3518, %v3521
        %v3524 = vshrl.u32 %v3443, 16
        %v3526 = vrot.slane %v3524, 1
        %v3527 = vshll.u32 %v3443, 16
        %v3529 = vrot.slane %v3527, 2
        %v3530 = vor.u32 %v3526, %v3529
        %v3531 = vsel %vm2663, %v3522, %v3530
        %v3533 = vshrl.u32 %v3420, 16
        %v3535 = vrot.slane %v3533, 1
        %v3536 = vshll.u32 %v3420, 16
        %v3538 = vrot.slane %v3536, 2
        %v3539 = vor.u32 %v3535, %v3538
        %v3541 = vshrl.u32 %v3444, 16
        %v3543 = vrot.slane %v3541, 1
        %v3544 = vshll.u32 %v3444, 16
        %v3546 = vrot.slane %v3544, 2
        %v3547 = vor.u32 %v3543, %v3546
        %v3548 = vsel %vm2663, %v3539, %v3547
        %v3550 = vshrl.u32 %v3421, 16
        %v3552 = vrot.slane %v3550, 1
        %v3553 = vshll.u32 %v3421, 16
        %v3555 = vrot.slane %v3553, 2
        %v3556 = vor.u32 %v3552, %v3555
        %v3558 = vshrl.u32 %v3445, 16
        %v3560 = vrot.slane %v3558, 1
        %v3561 = vshll.u32 %v3445, 16
        %v3563 = vrot.slane %v3561, 2
        %v3564 = vor.u32 %v3560, %v3563
        %v3565 = vsel %vm2663, %v3556, %v3564
        %v3567 = vshrl.u32 %v3422, 16
        %v3569 = vrot.slane %v3567, 1
        %v3570 = vshll.u32 %v3422, 16
        %v3572 = vrot.slane %v3570, 2
        %v3573 = vor.u32 %v3569, %v3572
        %v3575 = vshrl.u32 %v3446, 16
        %v3577 = vrot.slane %v3575, 1
        %v3578 = vshll.u32 %v3446, 16
        %v3580 = vrot.slane %v3578, 2
        %v3581 = vor.u32 %v3577, %v3580
        %v3582 = vsel %vm2663, %v3573, %v3581
        %3583 = vrot.lane.b32.xlu0 %v3463, 8
        %v3584 = vpop.permute.xlu0 %3583
        %3585 = vrot.lane.b32.xlu0 %v3480, 8
        %v3586 = vpop.permute.xlu0 %3585
        %3587 = vrot.lane.b32.xlu0 %v3497, 8
        %v3588 = vpop.permute.xlu0 %3587
        %3589 = vrot.lane.b32.xlu0 %v3514, 8
        %v3590 = vpop.permute.xlu0 %3589
        %3591 = vrot.lane.b32.xlu0 %v3531, 8
        %v3592 = vpop.permute.xlu0 %3591
        %3593 = vrot.lane.b32.xlu0 %v3548, 8
        %v3594 = vpop.permute.xlu0 %3593
        %3595 = vrot.lane.b32.xlu0 %v3565, 8
        %v3596 = vpop.permute.xlu0 %3595
        %3597 = vrot.lane.b32.xlu0 %v3582, 8
        %v3598 = vpop.permute.xlu0 %3597
        %v3599 = vrot.slane %v3415, 3
        %v3600 = vrot.slane %v3439, 3
        %v3601 = vsel %vm2816, %v3599, %v3600
        %v3602 = vrot.slane %v3416, 3
        %v3603 = vrot.slane %v3440, 3
        %v3604 = vsel %vm2816, %v3602, %v3603
        %v3605 = vrot.slane %v3417, 3
        %v3606 = vrot.slane %v3441, 3
        %v3607 = vsel %vm2816, %v3605, %v3606
        %v3608 = vrot.slane %v3418, 3
        %v3609 = vrot.slane %v3442, 3
        %v3610 = vsel %vm2816, %v3608, %v3609
        %v3611 = vrot.slane %v3419, 3
        %v3612 = vrot.slane %v3443, 3
        %v3613 = vsel %vm2816, %v3611, %v3612
        %v3614 = vrot.slane %v3420, 3
        %v3615 = vrot.slane %v3444, 3
        %v3616 = vsel %vm2816, %v3614, %v3615
        %v3617 = vrot.slane %v3421, 3
        %v3618 = vrot.slane %v3445, 3
        %v3619 = vsel %vm2816, %v3617, %v3618
        %v3620 = vrot.slane %v3422, 3
        %v3621 = vrot.slane %v3446, 3
        %v3622 = vsel %vm2816, %v3620, %v3621
        %3623 = vrot.lane.b32.xlu0 %v3601, 16
        %v3624 = vpop.permute.xlu0 %3623
        %3625 = vrot.lane.b32.xlu0 %v3604, 16
        %v3626 = vpop.permute.xlu0 %3625
        %3627 = vrot.lane.b32.xlu0 %v3607, 16
        %v3628 = vpop.permute.xlu0 %3627
        %3629 = vrot.lane.b32.xlu0 %v3610, 16
        %v3630 = vpop.permute.xlu0 %3629
        %3631 = vrot.lane.b32.xlu0 %v3613, 16
        %v3632 = vpop.permute.xlu0 %3631
        %3633 = vrot.lane.b32.xlu0 %v3616, 16
        %v3634 = vpop.permute.xlu0 %3633
        %3635 = vrot.lane.b32.xlu0 %v3619, 16
        %v3636 = vpop.permute.xlu0 %3635
        %3637 = vrot.lane.b32.xlu0 %v3622, 16
        %v3638 = vpop.permute.xlu0 %3637
        %v3640 = vsel %vm554, %v3415, %v3584
        %v3642 = vsel %vm554, %v3416, %v3586
        %v3644 = vsel %vm554, %v3417, %v3588
        %v3646 = vsel %vm554, %v3418, %v3590
        %v3648 = vsel %vm554, %v3419, %v3592
        %v3650 = vsel %vm554, %v3420, %v3594
        %v3652 = vsel %vm554, %v3421, %v3596
        %v3654 = vsel %vm554, %v3422, %v3598
        %v3656 = vsel %vm1116, %v3640, %v3624
        %v3658 = vsel %vm1116, %v3642, %v3626
        %v3660 = vsel %vm1116, %v3644, %v3628
        %v3662 = vsel %vm1116, %v3646, %v3630
        %v3664 = vsel %vm1116, %v3648, %v3632
        %v3666 = vsel %vm1116, %v3650, %v3634
        %v3668 = vsel %vm1116, %v3652, %v3636
        %v3670 = vsel %vm1116, %v3654, %v3638
        %s3671 = scalar_lea.vmem %s3, 60
        %v3672 = vld [vmem:[%s3671] sm:$0xf]
        %v3673 = vld [vmem:[%s3671 + $0x4] sm:$0xf]
        %v3674 = vld [vmem:[%s3671 + $0x8] sm:$0xf]
        %v3678 = vunpack.c.l.b16 %v3672
        %v3679 = vunpack.c.l.b16 %v3673
        %v3680 = vunpack.c.l.b16 %v3674
        %v3681 = vpack.c.b16 %v3679, %v3678
        %v3682 = vpack.c.b16 %v3680, %v3680
        %v3684 = vsel %vm1598, %v3656, 0
        %v3686 = vsel %vm1598, %v3658, 0
        %v3688 = vsel %vm1598, %v3660, 0
        %v3690 = vsel %vm1598, %v3662, 0
        %v3692 = vsel %vm1598, %v3664, 0
        %v3694 = vsel %vm1598, %v3666, 0
        %v3696 = vsel %vm1598, %v3668, 0
        %v3698 = vsel %vm1598, %v3670, 0
        %v3701 = vsel %vm579, %v3682, 0
        %3703 = vmatprep.subr.bf16.mxu0 0
        %3704 = vmatpush1.bf16.msra.mxu0 0
        %3705 = vmatprep.subr.bf16.mxu0 0
        %3706 = vmatpush1.bf16.msra.mxu0 0
        %3707 = vmatprep.subr.bf16.mxu0 0
        %3708 = vmatpush1.bf16.msra.mxu0 0
        %3709 = vmatprep.subr.bf16.mxu0 0
        %3710 = vmatpush1.bf16.msra.mxu0 0
        %3711 = vmatprep.subr.bf16.mxu0 0
        %3712 = vmatpush1.bf16.msra.mxu0 0
        %3713 = vmatprep.subr.bf16.mxu0 0
        %3714 = vmatpush1.bf16.msra.mxu0 0
        %3715 = vmatprep.subr.bf16.mxu0 0
        %3716 = vmatpush1.bf16.msra.mxu0 %v3701
        %3717 = vmatprep.subr.bf16.mxu0 0
        %3718 = vmatpush1.bf16.msra.mxu0 %v3681
        %3719 = vmatprep.subr.bf16.mxu0 0
        %3720 = vmatpush2.bf16.msra.mxu0 0
        %3721 = vmatprep.subr.bf16.mxu0 0
        %3722 = vmatpush2.bf16.msra.mxu0 0
        %3723 = vmatprep.subr.bf16.mxu0 0
        %3724 = vmatpush2.bf16.msra.mxu0 0
        %3725 = vmatprep.subr.bf16.mxu0 0
        %3726 = vmatpush2.bf16.msra.mxu0 0
        %3727 = vmatprep.subr.bf16.mxu0 0
        %3728 = vmatpush2.bf16.msra.mxu0 0
        %3729 = vmatprep.subr.bf16.mxu0 0
        %3730 = vmatpush2.bf16.msra.mxu0 0
        %3731 = vmatprep.subr.bf16.mxu0 0
        %3732 = vmatpush2.bf16.msra.mxu0 0
        %3733 = vmatprep.subr.bf16.mxu0 0
        %3734 = vmatpush2.bf16.msra.mxu0 0
        %3735 = vmatprep.mubr.bf16.mxu0 0
        %3736 = vmatmul.mubr.bf16.gmra.mxu0 %v3684
        %v3737 = vpop.f32.mrf.mxu0
        %v3738 = vadd.f32 0.0, %v3737
        %v3739 = vpop.f32.mrf.mxu0
        %v3740 = vpop.f32.mrf.mxu0
        %v3741 = vadd.f32 0.0, %v3740
        %v3742 = vpop.f32.mrf.mxu0
        %3743 = vmatprep.mubr.bf16.mxu0 0
        %3744 = vmatmul.mubr.bf16.gmra.mxu0 %v3686
        %v3745 = vpop.f32.mrf.mxu0
        %v3746 = vadd.f32 0.0, %v3745
        %v3747 = vpop.f32.mrf.mxu0
        %v3748 = vpop.f32.mrf.mxu0
        %v3749 = vadd.f32 0.0, %v3748
        %v3750 = vpop.f32.mrf.mxu0
        %3751 = vmatprep.mubr.bf16.mxu0 0
        %3752 = vmatmul.mubr.bf16.gmra.mxu0 %v3688
        %v3753 = vpop.f32.mrf.mxu0
        %v3754 = vadd.f32 0.0, %v3753
        %v3755 = vpop.f32.mrf.mxu0
        %v3756 = vpop.f32.mrf.mxu0
        %v3757 = vadd.f32 0.0, %v3756
        %v3758 = vpop.f32.mrf.mxu0
        %3759 = vmatprep.mubr.bf16.mxu0 0
        %3760 = vmatmul.mubr.bf16.gmra.mxu0 %v3690
        %v3761 = vpop.f32.mrf.mxu0
        %v3762 = vadd.f32 0.0, %v3761
        %v3763 = vpop.f32.mrf.mxu0
        %v3764 = vpop.f32.mrf.mxu0
        %v3765 = vadd.f32 0.0, %v3764
        %v3766 = vpop.f32.mrf.mxu0
        %3767 = vmatprep.mubr.bf16.mxu0 0
        %3768 = vmatmul.mubr.bf16.gmra.mxu0 %v3692
        %v3769 = vpop.f32.mrf.mxu0
        %v3770 = vadd.f32 0.0, %v3769
        %v3771 = vpop.f32.mrf.mxu0
        %v3772 = vpop.f32.mrf.mxu0
        %v3773 = vadd.f32 0.0, %v3772
        %v3774 = vpop.f32.mrf.mxu0
        %3775 = vmatprep.mubr.bf16.mxu0 0
        %3776 = vmatmul.mubr.bf16.gmra.mxu0 %v3694
        %v3777 = vpop.f32.mrf.mxu0
        %v3778 = vadd.f32 0.0, %v3777
        %v3779 = vpop.f32.mrf.mxu0
        %v3780 = vpop.f32.mrf.mxu0
        %v3781 = vadd.f32 0.0, %v3780
        %v3782 = vpop.f32.mrf.mxu0
        %3783 = vmatprep.mubr.bf16.mxu0 0
        %3784 = vmatmul.mubr.bf16.gmra.mxu0 %v3696
        %v3785 = vpop.f32.mrf.mxu0
        %v3786 = vadd.f32 0.0, %v3785
        %v3787 = vpop.f32.mrf.mxu0
        %v3788 = vpop.f32.mrf.mxu0
        %v3789 = vadd.f32 0.0, %v3788
        %v3790 = vpop.f32.mrf.mxu0
        %3791 = vmatprep.mubr.bf16.mxu0 0
        %3792 = vmatmul.mubr.bf16.gmra.mxu0 %v3698
        %v3793 = vpop.f32.mrf.mxu0
        %v3794 = vadd.f32 0.0, %v3793
        %v3795 = vpop.f32.mrf.mxu0
        %v3796 = vpop.f32.mrf.mxu0
        %v3797 = vadd.f32 0.0, %v3796
        %v3798 = vpop.f32.mrf.mxu0
        %3799 = vdwg.mxu0
        %v3800 = vadd.f32 %v3293, %v3738
        %v3801 = vadd.f32 %v3296, %v3741
        %v3802 = vadd.f32 %v3301, %v3746
        %v3803 = vadd.f32 %v3304, %v3749
        %v3804 = vadd.f32 %v3309, %v3754
        %v3805 = vadd.f32 %v3312, %v3757
        %v3806 = vadd.f32 %v3317, %v3762
        %v3807 = vadd.f32 %v3320, %v3765
        %v3808 = vadd.f32 %v3325, %v3770
        %v3809 = vadd.f32 %v3328, %v3773
        %v3810 = vadd.f32 %v3333, %v3778
        %v3811 = vadd.f32 %v3336, %v3781
        %v3812 = vadd.f32 %v3341, %v3786
        %v3813 = vadd.f32 %v3344, %v3789
        %v3814 = vadd.f32 %v3349, %v3794
        %v3815 = vadd.f32 %v3352, %v3797
        %v3816 = vld [vmem:[%s5 + $0x2] sm:$0x1]
        %v3817 = vlaneseq
        %v3818 = vshrl.u32 %v3817, 7
        %v3819 = vsub.s32 0, %v3818
        %v3820 = vrot.slane %v3816, %v3819
        %v3821 = vadd.f32 %v3800, %v3820
        %v3822 = vadd.f32 %v3801, %v3820
        %v3823 = vadd.f32 %v3802, %v3820
        %v3824 = vadd.f32 %v3803, %v3820
        %v3825 = vadd.f32 %v3804, %v3820
        %v3826 = vadd.f32 %v3805, %v3820
        %v3827 = vadd.f32 %v3806, %v3820
        %v3828 = vadd.f32 %v3807, %v3820
        %v3829 = vadd.f32 %v3808, %v3820
        %v3830 = vadd.f32 %v3809, %v3820
        %v3831 = vadd.f32 %v3810, %v3820
        %v3832 = vadd.f32 %v3811, %v3820
        %v3833 = vadd.f32 %v3812, %v3820
        %v3834 = vadd.f32 %v3813, %v3820
        %v3835 = vadd.f32 %v3814, %v3820
        %v3836 = vadd.f32 %v3815, %v3820
        %v3837 = vmax.f32 %v3821, 0.0
        %v3838 = vmax.f32 %v3822, 0.0
        %v3839 = vmax.f32 %v3823, 0.0
        %v3840 = vmax.f32 %v3824, 0.0
        %v3841 = vmax.f32 %v3825, 0.0
        %v3842 = vmax.f32 %v3826, 0.0
        %v3843 = vmax.f32 %v3827, 0.0
        %v3844 = vmax.f32 %v3828, 0.0
        %v3845 = vmax.f32 %v3829, 0.0
        %v3846 = vmax.f32 %v3830, 0.0
        %v3847 = vmax.f32 %v3831, 0.0
        %v3848 = vmax.f32 %v3832, 0.0
        %v3849 = vmax.f32 %v3833, 0.0
        %v3850 = vmax.f32 %v3834, 0.0
        %v3851 = vmax.f32 %v3835, 0.0
        %v3852 = vmax.f32 %v3836, 0.0
        %v3853 = vpack.c.bf16 %v3838, %v3837
        %v3854 = vpack.c.bf16 %v3840, %v3839
        %v3855 = vpack.c.bf16 %v3842, %v3841
        %v3856 = vpack.c.bf16 %v3844, %v3843
        %v3857 = vpack.c.bf16 %v3846, %v3845
        %v3858 = vpack.c.bf16 %v3848, %v3847
        %v3859 = vpack.c.bf16 %v3850, %v3849
        %v3860 = vpack.c.bf16 %v3852, %v3851
        %s3861 = scalar_lea.vmem %s4, 32
        %v3862 = vld [vmem:[%s3861] sm:$0xf]
        %v3863 = vld [vmem:[%s3861 + $0x4] sm:$0xf]
        %v3864 = vld [vmem:[%s3861 + $0x8] sm:$0xf]
        %v3865 = vld [vmem:[%s3861 + $0xc] sm:$0xf]
        %v3870 = vunpack.c.l.b16 %v3862
        %v3871 = vunpack.c.l.b16 %v3863
        %v3872 = vunpack.c.l.b16 %v3864
        %v3873 = vunpack.c.l.b16 %v3865
        %v3874 = vpack.c.b16 %v3871, %v3870
        %v3875 = vpack.c.b16 %v3873, %v3872
        %v3879 = vsel %vm720, %v3853, 0
        %v3882 = vsel %vm720, %v3854, 0
        %v3885 = vsel %vm720, %v3855, 0
        %v3888 = vsel %vm720, %v3856, 0
        %v3891 = vsel %vm720, %v3857, 0
        %v3894 = vsel %vm720, %v3858, 0
        %v3897 = vsel %vm720, %v3859, 0
        %v3900 = vsel %vm720, %v3860, 0
        %3902 = vmatprep.subr.bf16.mxu0 0
        %3903 = vmatpush1.bf16.msra.mxu0 0
        %3904 = vmatprep.subr.bf16.mxu0 0
        %3905 = vmatpush1.bf16.msra.mxu0 0
        %3906 = vmatprep.subr.bf16.mxu0 0
        %3907 = vmatpush1.bf16.msra.mxu0 0
        %3908 = vmatprep.subr.bf16.mxu0 0
        %3909 = vmatpush1.bf16.msra.mxu0 0
        %3910 = vmatprep.subr.bf16.mxu0 0
        %3911 = vmatpush1.bf16.msra.mxu0 0
        %3912 = vmatprep.subr.bf16.mxu0 0
        %3913 = vmatpush1.bf16.msra.mxu0 0
        %3914 = vmatprep.subr.bf16.mxu0 0
        %3915 = vmatpush1.bf16.msra.mxu0 %v3875
        %3916 = vmatprep.subr.bf16.mxu0 0
        %3917 = vmatpush1.bf16.msra.mxu0 %v3874
        %3918 = vmatprep.subr.bf16.mxu0 0
        %3919 = vmatpush2.bf16.msra.mxu0 0
        %3920 = vmatprep.subr.bf16.mxu0 0
        %3921 = vmatpush2.bf16.msra.mxu0 0
        %3922 = vmatprep.subr.bf16.mxu0 0
        %3923 = vmatpush2.bf16.msra.mxu0 0
        %3924 = vmatprep.subr.bf16.mxu0 0
        %3925 = vmatpush2.bf16.msra.mxu0 0
        %3926 = vmatprep.subr.bf16.mxu0 0
        %3927 = vmatpush2.bf16.msra.mxu0 0
        %3928 = vmatprep.subr.bf16.mxu0 0
        %3929 = vmatpush2.bf16.msra.mxu0 0
        %3930 = vmatprep.subr.bf16.mxu0 0
        %3931 = vmatpush2.bf16.msra.mxu0 0
        %3932 = vmatprep.subr.bf16.mxu0 0
        %3933 = vmatpush2.bf16.msra.mxu0 0
        %3934 = vmatprep.mubr.bf16.mxu0 0
        %3935 = vmatmul.mubr.bf16.gmra.mxu0 %v3879
        %v3936 = vpop.f32.mrf.mxu0
        %v3937 = vadd.f32 0.0, %v3936
        %v3938 = vpop.f32.mrf.mxu0
        %v3939 = vpop.f32.mrf.mxu0
        %v3940 = vadd.f32 0.0, %v3939
        %v3941 = vpop.f32.mrf.mxu0
        %3942 = vmatprep.mubr.bf16.mxu0 0
        %3943 = vmatmul.mubr.bf16.gmra.mxu0 %v3882
        %v3944 = vpop.f32.mrf.mxu0
        %v3945 = vadd.f32 0.0, %v3944
        %v3946 = vpop.f32.mrf.mxu0
        %v3947 = vpop.f32.mrf.mxu0
        %v3948 = vadd.f32 0.0, %v3947
        %v3949 = vpop.f32.mrf.mxu0
        %3950 = vmatprep.mubr.bf16.mxu0 0
        %3951 = vmatmul.mubr.bf16.gmra.mxu0 %v3885
        %v3952 = vpop.f32.mrf.mxu0
        %v3953 = vadd.f32 0.0, %v3952
        %v3954 = vpop.f32.mrf.mxu0
        %v3955 = vpop.f32.mrf.mxu0
        %v3956 = vadd.f32 0.0, %v3955
        %v3957 = vpop.f32.mrf.mxu0
        %3958 = vmatprep.mubr.bf16.mxu0 0
        %3959 = vmatmul.mubr.bf16.gmra.mxu0 %v3888
        %v3960 = vpop.f32.mrf.mxu0
        %v3961 = vadd.f32 0.0, %v3960
        %v3962 = vpop.f32.mrf.mxu0
        %v3963 = vpop.f32.mrf.mxu0
        %v3964 = vadd.f32 0.0, %v3963
        %v3965 = vpop.f32.mrf.mxu0
        %3966 = vmatprep.mubr.bf16.mxu0 0
        %3967 = vmatmul.mubr.bf16.gmra.mxu0 %v3891
        %v3968 = vpop.f32.mrf.mxu0
        %v3969 = vadd.f32 0.0, %v3968
        %v3970 = vpop.f32.mrf.mxu0
        %v3971 = vpop.f32.mrf.mxu0
        %v3972 = vadd.f32 0.0, %v3971
        %v3973 = vpop.f32.mrf.mxu0
        %3974 = vmatprep.mubr.bf16.mxu0 0
        %3975 = vmatmul.mubr.bf16.gmra.mxu0 %v3894
        %v3976 = vpop.f32.mrf.mxu0
        %v3977 = vadd.f32 0.0, %v3976
        %v3978 = vpop.f32.mrf.mxu0
        %v3979 = vpop.f32.mrf.mxu0
        %v3980 = vadd.f32 0.0, %v3979
        %v3981 = vpop.f32.mrf.mxu0
        %3982 = vmatprep.mubr.bf16.mxu0 0
        %3983 = vmatmul.mubr.bf16.gmra.mxu0 %v3897
        %v3984 = vpop.f32.mrf.mxu0
        %v3985 = vadd.f32 0.0, %v3984
        %v3986 = vpop.f32.mrf.mxu0
        %v3987 = vpop.f32.mrf.mxu0
        %v3988 = vadd.f32 0.0, %v3987
        %v3989 = vpop.f32.mrf.mxu0
        %3990 = vmatprep.mubr.bf16.mxu0 0
        %3991 = vmatmul.mubr.bf16.gmra.mxu0 %v3900
        %v3992 = vpop.f32.mrf.mxu0
        %v3993 = vadd.f32 0.0, %v3992
        %v3994 = vpop.f32.mrf.mxu0
        %v3995 = vpop.f32.mrf.mxu0
        %v3996 = vadd.f32 0.0, %v3995
        %v3997 = vpop.f32.mrf.mxu0
        %3998 = vdwg.mxu0
        %v3999 = vadd.f32 %v2556, %v3937
        %v4000 = vadd.f32 %v2557, %v3940
        %v4001 = vadd.f32 %v2558, %v3945
        %v4002 = vadd.f32 %v2559, %v3948
        %v4003 = vadd.f32 %v2560, %v3953
        %v4004 = vadd.f32 %v2561, %v3956
        %v4005 = vadd.f32 %v2562, %v3961
        %v4006 = vadd.f32 %v2563, %v3964
        %v4007 = vadd.f32 %v2564, %v3969
        %v4008 = vadd.f32 %v2565, %v3972
        %v4009 = vadd.f32 %v2566, %v3977
        %v4010 = vadd.f32 %v2567, %v3980
        %v4011 = vadd.f32 %v2568, %v3985
        %v4012 = vadd.f32 %v2569, %v3988
        %v4013 = vadd.f32 %v2570, %v3993
        %v4014 = vadd.f32 %v2571, %v3996
        %v4015 = vmax.f32 %v3999, 0.0
        %v4016 = vmax.f32 %v4000, 0.0
        %v4017 = vmax.f32 %v4001, 0.0
        %v4018 = vmax.f32 %v4002, 0.0
        %v4019 = vmax.f32 %v4003, 0.0
        %v4020 = vmax.f32 %v4004, 0.0
        %v4021 = vmax.f32 %v4005, 0.0
        %v4022 = vmax.f32 %v4006, 0.0
        %v4023 = vmax.f32 %v4007, 0.0
        %v4024 = vmax.f32 %v4008, 0.0
        %v4025 = vmax.f32 %v4009, 0.0
        %v4026 = vmax.f32 %v4010, 0.0
        %v4027 = vmax.f32 %v4011, 0.0
        %v4028 = vmax.f32 %v4012, 0.0
        %v4029 = vmax.f32 %v4013, 0.0
        %v4030 = vmax.f32 %v4014, 0.0
        %4031 = vst.msk [vmem:[%s258] sm:$0xff] %vm720, %v4015
        %4032 = vst.msk [vmem:[%s258 + $0x8] sm:$0xff] %vm720, %v4016
        %4033 = vst.msk [vmem:[%s258 + $0x10] sm:$0xff] %vm720, %v4017
        %4034 = vst.msk [vmem:[%s258 + $0x18] sm:$0xff] %vm720, %v4018
        %4035 = vst.msk [vmem:[%s258 + $0x20] sm:$0xff] %vm720, %v4019
        %4036 = vst.msk [vmem:[%s258 + $0x28] sm:$0xff] %vm720, %v4020
        %4037 = vst.msk [vmem:[%s258 + $0x30] sm:$0xff] %vm720, %v4021
        %4038 = vst.msk [vmem:[%s258 + $0x38] sm:$0xff] %vm720, %v4022
        %4039 = vst.msk [vmem:[%s258 + $0x40] sm:$0xff] %vm720, %v4023
        %4040 = vst.msk [vmem:[%s258 + $0x48] sm:$0xff] %vm720, %v4024
        %4041 = vst.msk [vmem:[%s258 + $0x50] sm:$0xff] %vm720, %v4025
        %4042 = vst.msk [vmem:[%s258 + $0x58] sm:$0xff] %vm720, %v4026
        %4043 = vst.msk [vmem:[%s258 + $0x60] sm:$0xff] %vm720, %v4027
        %4044 = vst.msk [vmem:[%s258 + $0x68] sm:$0xff] %vm720, %v4028
        %4045 = vst.msk [vmem:[%s258 + $0x70] sm:$0xff] %vm720, %v4029
        %4046 = vst.msk [vmem:[%s258 + $0x78] sm:$0xff] %vm720, %v4030
        %s4047 = sand.u32 %s173, 1
        %s4048 = scalar_lea.sflag [#allocation3], %s4047
        %s4049 = sand.u32 %s173, 1
        %s4050 = smul.addr %s4049, 128
        %s4051 = scalar_lea.vmem [#allocation2], %s4050
        // Predicated region
        $region45: #{tpu_custom_call.1} parent=43 // pred_check
          %p4052 = pneg %p183
        $region46: #{tpu_custom_call.1} parent=43 // pred_check_branch
          %4054 = sbr.rel (%p4052) target = $region48
        $region47: #{tpu_custom_call.1} parent=43 // pred_region
          %s4055 = smul.u32 8, %s25
          %s4057 = ssub.s32 2048, 2048
          %4058 = vsyncadd %s4048, %s4057
          %s4059 = smul.addr %s4055, 2
          %s4060 = smul.addr %s24, 32
          %s4061 = sadd.s32 %s4059, %s4060
          %s4062 = smul.addr %s4061, 128
          %s4063 = scalar_lea.hbm %s6, %s4062
          %s4064 = sshll.u32 %s4051, 4
          %s4065 = int_to_ptr.vmem [resolvable:$true] %s4064
          %4070 = dma.vmem_to_hbm [thread:$0]  %s4065, 2048, %s4063, %s4048, 128, 128, 8
        $region48: #{tpu_custom_call.1} parent=43 // pred_fallthru
          _
      $region44: #{tpu_custom_call.1} parent=5 // pred_fallthru
        _
      %p4071 = scmp.le.s32.totalorder 2, %s15
      // Predicated region
      $region49: #{tpu_custom_call.1} parent=5 // pred_check
        %p4072 = pneg %p4071
      $region50: #{tpu_custom_call.1} parent=5 // pred_check_branch
        %4074 = sbr.rel (%p4072) target = $region52
      $region51: #{tpu_custom_call.1} parent=5 // pred_region
        %s4075 = ssub.s32 %s15, 2
        // Predicated region
        $region53: #{tpu_custom_call.1} parent=51 // pred_check
          %p4076 = pneg %p189
        $region54: #{tpu_custom_call.1} parent=51 // pred_check_branch
          %4078 = sbr.rel (%p4076) target = $region56
        $region55: #{tpu_custom_call.1} parent=51 // pred_region
          %s4079 = sand.u32 %s174, 1
          %s4080 = scalar_lea.sflag [#allocation3], %s4079
          %s4081 = sand.u32 %s174, 1
          %s4082 = smul.addr %s4081, 128
          %s4083 = scalar_lea.vmem [#allocation2], %s4082
          %4084 = dma.done %s4080, 2048
        $region56: #{tpu_custom_call.1} parent=51 // pred_fallthru
          _
      $region52: #{tpu_custom_call.1} parent=5 // pred_fallthru
        _
    $region6: #{tpu_custom_call.1} parent=1 // loop_footer
      %s19 = sadd.s32 1, %s15
    $region7: #{tpu_custom_call.1} parent=1 // loop_footer_branch
      %14 = sbr.rel target = $region3
    $region8: #{tpu_custom_call.1} parent=1 // loop_exit
      _
    %4085 = vsyncpa [#allocation3], 1
    %s4086 = scalar_lea.sflag [#allocation3], 1
    %4087 = vsyncpa %s4086, 1

</llo_original>
